<compile_context>
chip_gen: v6e
topology: v6e:2x2x1
jax: 0.10.0
libtpu: 0.0.40
codegen_flags: <defaults>
</compile_context>

<pallas_src>
import functools

import numpy as np
import jax
import jax.numpy as jnp
from jax import lax
from jax.experimental import pallas as pl
from jax.experimental.pallas import tpu as pltpu

N_FEATURES = 3          # `n_features` in networks109.py
EPS = 1e-5              # nn.InstanceNorm1d default eps
PAD = 4                 # Res convs: kernel 9, padding 4


# ------------------------------ fused kernel --------------------------------

def _gen_kernel(zext_ref, lin_w_ref, res_w_ref, res_b_ref, ct_w_ref, ct_b_ref,
                head_w_ref, head_b_ref, out_ref, buf0, buf1, buf2, buf3):
    bufs = (buf0, buf1, buf2, buf3)
    B = buf0.shape[0]

    # ---- zero the halo rows of every padded line buffer (once per call) ----
    for buf in bufs:
        Lb = buf.shape[1] - 2 * PAD
        C = buf.shape[2]
        zero = jnp.zeros((B, PAD, C), jnp.float32)
        buf[:, 0:PAD, :] = zero
        buf[:, PAD + Lb:PAD + Lb + PAD, :] = zero

    # ---------------------------- helpers -----------------------------------
    def instance_norm(y, L):
        # single pass: sum and sum-of-squares -> mean / biased var (matches
        # nn.InstanceNorm1d), rsqrt goes to the EUP slot.
        inv_l = 1.0 / float(L)
        s1 = jnp.sum(y, axis=1, keepdims=True)
        s2 = jnp.sum(y * y, axis=1, keepdims=True)
        mean = s1 * inv_l
        var = s2 * inv_l - mean * mean
        return (y - mean) * lax.rsqrt(var + EPS)

    def conv9(buf, L, C, widx):
        # kernel-9 / pad-4 conv: 9 shifted-window bf16 matmuls (batch folded into
        # the matmul M dimension), partial products summed with a balanced tree.
        acc = []
        for k in range(9):
            xk = buf[:, k:k + L, :].reshape(B * L, C).astype(jnp.bfloat16)
            wk = res_w_ref[widx * 9 + k, 0:C, 0:C]          # bf16 (C, C)
            acc.append(jnp.dot(xk, wk, preferred_element_type=jnp.float32))
        while len(acc) > 1:
            nxt = [acc[i] + acc[i + 1] for i in range(0, len(acc) - 1, 2)]
            if len(acc) % 2 == 1:
                nxt.append(acc[-1])
            acc = nxt
        return acc[0] + res_b_ref[widx, :, 0:C]             # (1, C) bias broadcast

    def res_block(stage, buf, store_out=True):
        L = buf.shape[1] - 2 * PAD
        C = buf.shape[2]
        x = buf[:, PAD:PAD + L, :]                          # residual input (snapshot)
        y = conv9(buf, L, C, stage * 2).reshape(B, L, C)
        y = jnp.maximum(instance_norm(y, L), 0.0)
        buf[:, PAD:PAD + L, :] = y                          # interior only; halos stay 0
        y = conv9(buf, L, C, stage * 2 + 1).reshape(B, L, C)
        y = instance_norm(y, L)
        out = jnp.maximum(x + y, 0.0)
        if store_out:
            buf[:, PAD:PAD + L, :] = out                    # consumed by next conv-T
        return out

    def conv_transpose_x2(stage, buf_in, buf_out):
        # ConvTranspose1d(k=4, s=2, p=1): Lout = 2*L
        #   y[2m]   = x[m]   @ W[1] + x[m-1] @ W[3] + b
        #   y[2m+1] = x[m+1] @ W[0] + x[m]   @ W[2] + b
        # Phases are interleaved with two stride-2 sublane stores (no staging).
        L = buf_in.shape[1] - 2 * PAD
        c_in = buf_in.shape[2]
        c_out = buf_out.shape[2]
        xp = buf_in[:, PAD - 1:PAD - 1 + L, :].reshape(B * L, c_in).astype(jnp.bfloat16)
        xc = buf_in[:, PAD:PAD + L, :].reshape(B * L, c_in).astype(jnp.bfloat16)
        xn = buf_in[:, PAD + 1:PAD + 1 + L, :].reshape(B * L, c_in).astype(jnp.bfloat16)

        def w(k):
            return ct_w_ref[stage * 4 + k, 0:c_in, 0:c_out]  # bf16 (c_in, c_out)

        bias = ct_b_ref[stage, :, 0:c_out]                   # f32 (1, c_out)
        even = (jnp.dot(xc, w(1), preferred_element_type=jnp.float32)
                + jnp.dot(xp, w(3), preferred_element_type=jnp.float32) + bias)
        odd = (jnp.dot(xn, w(0), preferred_element_type=jnp.float32)
               + jnp.dot(xc, w(2), preferred_element_type=jnp.float32) + bias)
        buf_out[:, pl.ds(PAD, L, stride=2), :] = even.reshape(B, L, c_out)
        buf_out[:, pl.ds(PAD + 1, L, stride=2), :] = odd.reshape(B, L, c_out)

    # ---- lin0 (+ folded bias) + ReLU: single matmul, single aligned store ---
    L0 = buf0.shape[1] - 2 * PAD
    C0 = buf0.shape[2]
    y0 = jnp.dot(zext_ref[...].astype(jnp.bfloat16), lin_w_ref[...],
                 preferred_element_type=jnp.float32)         # (B*L0, C0)
    buf0[:, PAD:PAD + L0, :] = jnp.maximum(y0, 0.0).reshape(B, L0, C0)

    # ---- trunk: res / upsample stages, all VMEM resident --------------------
    res_block(0, buf0)
    conv_transpose_x2(0, buf0, buf1)
    res_block(1, buf1)
    conv_transpose_x2(1, buf1, buf2)
    res_block(2, buf2)
    conv_transpose_x2(2, buf2, buf3)
    x = res_block(3, buf3, store_out=False)                  # (B, L, ngf)

    # ---- fused heads (convw ++ convp), transposed + row-padded to 8 so the
    #      kernel's only output store is a lane-dense unmasked (8, B*L) tile.
    L = x.shape[1]
    ngf_c = x.shape[2]
    x2d = x.reshape(B * L, ngf_c)
    out_t = lax.dot_general(head_w_ref[...], x2d, (((1,), (1,)), ((), ())),
                            preferred_element_type=jnp.float32)
    out_ref[...] = jnp.tanh(out_t + head_b_ref[...])


# ------------------------------ wrapper --------------------------------------

def gen_forward(kp, z, ngf, latent_dims, seq_len, encoded_dim):
    """z: (B, latent_dims).  Returns (tanh(p), tanh(w)) in PyTorch (B, C, L) layout."""
    B = z.shape[0]
    L0 = seq_len // 8
    chans = [ngf * 8, ngf * 4, ngf * 2, ngf]
    n_head = encoded_dim + N_FEATURES
    n_head_pad = kp["head_w"].shape[0]

    # Block-diagonal lin0 lhs with a one-hot "bias" block appended (layout
    # plumbing only -- lets the kernel do lin0 as ONE plain 2-D matmul whose rows
    # are already in (b, l) order):
    #   Zext[b*L0 + l, l*latent + d]   = z[b, d]
    #   Zext[b*L0 + l, L0*latent + l]  = 1
    eye = jnp.eye(L0, dtype=jnp.float32)
    zblk = (eye[None, :, :, None] * z[:, None, None, :]).reshape(B * L0, L0 * latent_dims)
    ones_blk = jnp.tile(eye, (B, 1))
    zext = jnp.concatenate([zblk, ones_blk], axis=1)          # (B*L0, L0*latent + L0)

    out = pl.pallas_call(
        _gen_kernel,
        out_shape=jax.ShapeDtypeStruct((n_head_pad, B * seq_len), jnp.float32),
        scratch_shapes=[
            pltpu.VMEM((B, L0 + 2 * PAD, chans[0]), jnp.float32),       # buf0
            pltpu.VMEM((B, 2 * L0 + 2 * PAD, chans[1]), jnp.float32),   # buf1
            pltpu.VMEM((B, 4 * L0 + 2 * PAD, chans[2]), jnp.float32),   # buf2
            pltpu.VMEM((B, 8 * L0 + 2 * PAD, chans[3]), jnp.float32),   # buf3
        ],
    )(zext, kp["lin_w"], kp["res_w"], kp["res_b"], kp["ct_w"], kp["ct_b"],
      kp["head_w"], kp["head_b"])

    # (8, B*L) -> PyTorch (B, C, L); tiny XLA slice/reshape/transpose outside.
    head = out[:n_head].reshape(n_head, B, seq_len)
    w_out = head[:encoded_dim].transpose(1, 0, 2)             # (B, encoded_dim, L)
    p_out = head[encoded_dim:].transpose(1, 0, 2)             # (B, n_features,  L)
    return p_out, w_out


# ------------------------------ parameters -----------------------------------

def init_canonical_params(key, ngf, latent_dims, seq_len, encoded_dim):
    """Random parameters in PyTorch-canonical layouts."""
    L0 = seq_len // 8
    ks = iter(jax.random.split(key, 40))

    def rnd(shape, scale=0.1):
        return (scale * jax.random.normal(next(ks), shape)).astype(jnp.float32)

    def res_p(c):
        return dict(w0=rnd((c, c, 9)), b0=rnd((c,), 0.01),
                    w1=rnd((c, c, 9)), b1=rnd((c,), 0.01))

    p = {}
    p["lin0_w"] = rnd((L0 * ngf * 8, latent_dims))            # (out, in)
    p["lin0_b"] = rnd((L0 * ngf * 8,), 0.01)
    p["res0"] = res_p(ngf * 8)
    p["convu1_w"] = rnd((ngf * 8, ngf * 4, 4)); p["convu1_b"] = rnd((ngf * 4,), 0.01)
    p["res1"] = res_p(ngf * 4)
    p["convu2_w"] = rnd((ngf * 4, ngf * 2, 4)); p["convu2_b"] = rnd((ngf * 2,), 0.01)
    p["res2"] = res_p(ngf * 2)
    p["convu3_w"] = rnd((ngf * 2, ngf, 4)); p["convu3_b"] = rnd((ngf,), 0.01)
    p["res3"] = res_p(ngf)
    p["convw_w"] = rnd((encoded_dim, ngf, 1)); p["convw_b"] = rnd((encoded_dim,), 0.01)
    p["convp_w"] = rnd((N_FEATURES, ngf, 1)); p["convp_b"] = rnd((N_FEATURES,), 0.01)
    return p


def pack_kernel_params(cp, ngf, latent_dims, seq_len, encoded_dim):
    """Pack PyTorch-layout params into 7 kernel arrays (matmul weights in bf16)."""
    L0 = seq_len // 8
    C0 = ngf * 8
    CMAX = C0
    chans = [ngf * 8, ngf * 4, ngf * 2, ngf]

    # lin0: rows [W (l*latent+d, c); bias rows (l, c)], bias folded into the matmul.
    lin_w_pt = np.asarray(cp["lin0_w"], np.float32)           # (L0*C0, latent), row = c*L0 + l
    lin_b_pt = np.asarray(cp["lin0_b"], np.float32)
    Wl = lin_w_pt.reshape(C0, L0, latent_dims).transpose(1, 2, 0).reshape(L0 * latent_dims, C0)
    bl = lin_b_pt.reshape(C0, L0).T                           # (L0, C0)
    lin_w = np.concatenate([Wl, bl], axis=0)                  # (L0*latent + L0, C0)

    # res convs: one (4*2*9, 64, 64) slab, zero padded;  w[idx, ci, co] = W_pt[co, ci, k].
    res_w = np.zeros((4 * 2 * 9, CMAX, CMAX), np.float32)
    res_b = np.zeros((4 * 2, 1, CMAX), np.float32)
    for s, C in enumerate(chans):
        blk = cp[f"res{s}"]
        for i in range(2):
            W = np.asarray(blk[f"w{i}"], np.float32)          # (C, C, 9)
            for k in range(9):
                res_w[(s * 2 + i) * 9 + k, :C, :C] = W[:, :, k].T
            res_b[s * 2 + i, 0, :C] = np.asarray(blk[f"b{i}"], np.float32)

    # convT: one (3*4, 64, 64) slab;  w[idx, ci, co] = W_pt[ci, co, k].
    ct_w = np.zeros((3 * 4, CMAX, CMAX), np.float32)
    ct_b = np.zeros((3, 1, CMAX), np.float32)
    for s in range(3):
        W = np.asarray(cp[f"convu{s + 1}_w"], np.float32)     # (Cin, Cout, 4)
        Cin, Cout = W.shape[0], W.shape[1]
        for k in range(4):
            ct_w[s * 4 + k, :Cin, :Cout] = W[:, :, k]
        ct_b[s, 0, :Cout] = np.asarray(cp[f"convu{s + 1}_b"], np.float32)

    # heads: rows [convw (enc); convp (3); zero pad to a multiple of 8 sublanes].
    n_head = encoded_dim + N_FEATURES
    n_head_pad = ((n_head + 7) // 8) * 8
    head_w = np.zeros((n_head_pad, ngf), np.float32)
    head_b = np.zeros((n_head_pad, 1), np.float32)
    head_w[:encoded_dim] = np.asarray(cp["convw_w"], np.float32)[:, :, 0]
    head_w[encoded_dim:n_head] = np.asarray(cp["convp_w"], np.float32)[:, :, 0]
    head_b[:encoded_dim, 0] = np.asarray(cp["convw_b"], np.float32)
    head_b[encoded_dim:n_head, 0] = np.asarray(cp["convp_b"], np.float32)

    return dict(
        lin_w=jnp.asarray(lin_w, jnp.bfloat16),
        res_w=jnp.asarray(res_w, jnp.bfloat16),
        res_b=jnp.asarray(res_b, jnp.float32),
        ct_w=jnp.asarray(ct_w, jnp.bfloat16),
        ct_b=jnp.asarray(ct_b, jnp.float32),
        head_w=jnp.asarray(head_w, jnp.float32),
        head_b=jnp.asarray(head_b, jnp.float32),
    )


# ------------------------- pure-JAX reference (check) ------------------------

def ref_forward(cp, z, ngf, seq_len, encoded_dim):
    """Plain-JAX Gen.forward (matmul inputs rounded to bf16 to mirror the kernel)."""
    f32 = jnp.float32

    def bf(x):
        return x.astype(jnp.bfloat16).astype(f32)

    B = z.shape[0]
    L0 = seq_len // 8

    y = bf(z) @ bf(cp["lin0_w"]).T + bf(cp["lin0_b"])
    x = jax.nn.relu(y).reshape(B, ngf * 8, L0)                # torch (B, C, L)

    def conv1d(x, w, b):                                      # w (Co, Ci, 9), pad 4
        K = w.shape[-1]
        P = K // 2
        L = x.shape[-1]
        xp = jnp.pad(x, ((0, 0), (0, 0), (P, P)))
        acc = jnp.zeros((x.shape[0], w.shape[0], L), f32)
        for k in range(K):
            acc = acc + jnp.einsum("oc,bcl->bol", bf(w[:, :, k]), bf(xp[:, :, k:k + L]))
        return acc + b[None, :, None]

    def inorm(v):
        m = jnp.mean(v, axis=-1, keepdims=True)
        var = jnp.mean((v - m) ** 2, axis=-1, keepdims=True)
        return (v - m) * lax.rsqrt(var + EPS)

    def res(x, p):
        y = jax.nn.relu(inorm(conv1d(x, p["w0"], p["b0"])))
        y = inorm(conv1d(y, p["w1"], p["b1"]))
        return jax.nn.relu(x + y)

    def convT(x, w, b):                                       # w (Ci, Co, 4), s=2, p=1
        Bn, Ci, L = x.shape
        Co = w.shape[1]
        yfull = jnp.zeros((Bn, Co, 2 * L + 2), f32)
        for k in range(4):
            contrib = jnp.einsum("io,bil->bol", bf(w[:, :, k]), bf(x))
            yfull = yfull.at[:, :, k:k + 2 * L:2].add(contrib)
        return yfull[:, :, 1:1 + 2 * L] + b[None, :, None]

    x = res(x, cp["res0"])
    x = convT(x, cp["convu1_w"], cp["convu1_b"])
    x = res(x, cp["res1"])
    x = convT(x, cp["convu2_w"], cp["convu2_b"])
    x = res(x, cp["res2"])
    x = convT(x, cp["convu3_w"], cp["convu3_b"])
    x = res(x, cp["res3"])
    w_out = jnp.tanh(jnp.einsum("oc,bcl->bol", cp["convw_w"][:, :, 0], x)
                     + cp["convw_b"][None, :, None])
    p_out = jnp.tanh(jnp.einsum("oc,bcl->bol", cp["convp_w"][:, :, 0], x)
                     + cp["convp_b"][None, :, None])
    return p_out, w_out


if __name__ == "__main__":
    ngf, latent_dims, seq_len, encoded_dim = 8, 16, 64, 4
    B = 2

    key = jax.random.PRNGKey(0)
    pkey, zkey = jax.random.split(key)
    cparams = init_canonical_params(pkey, ngf, latent_dims, seq_len, encoded_dim)
    kparams = pack_kernel_params(cparams, ngf, latent_dims, seq_len, encoded_dim)
    z = jax.random.normal(zkey, (B, latent_dims), dtype=jnp.float32)

    fwd = jax.jit(functools.partial(gen_forward, ngf=ngf, latent_dims=latent_dims,
                                    seq_len=seq_len, encoded_dim=encoded_dim))
    p, w = fwd(kparams, z)
    jax.block_until_ready((p, w))

    assert p.shape == (B, N_FEATURES, seq_len), p.shape
    assert w.shape == (B, encoded_dim, seq_len), w.shape
    assert bool(jnp.all(jnp.isfinite(p))) and bool(jnp.all(jnp.isfinite(w)))

    p_ref, w_ref = ref_forward(cparams, z, ngf, seq_len, encoded_dim)
    err = max(float(jnp.max(jnp.abs(p - p_ref))), float(jnp.max(jnp.abs(w - w_ref))))
    assert err < 5e-2, f"mismatch vs pure-JAX reference: {err}"

    print("KERNEL_OK")
</pallas_src>

<mosaic_0001>
module attributes {stable_mosaic.version = 11 : i64} {
  func.func @_gen_kernel(%arg0: memref<16x136xf32, #tpu.memory_space<vmem>>, %arg1: memref<136x64xbf16, #tpu.memory_space<vmem>>, %arg2: memref<72x64x64xbf16, #tpu.memory_space<vmem>>, %arg3: memref<8x1x64xf32, #tpu.memory_space<vmem>>, %arg4: memref<12x64x64xbf16, #tpu.memory_space<vmem>>, %arg5: memref<3x1x64xf32, #tpu.memory_space<vmem>>, %arg6: memref<8x8xf32, #tpu.memory_space<vmem>>, %arg7: memref<8x1xf32, #tpu.memory_space<vmem>>, %arg8: memref<8x128xf32, #tpu.memory_space<vmem>>, %arg9: memref<2x16x64xf32, #tpu.memory_space<vmem>>, %arg10: memref<2x24x32xf32, #tpu.memory_space<vmem>>, %arg11: memref<2x40x16xf32, #tpu.memory_space<vmem>>, %arg12: memref<2x72x8xf32, #tpu.memory_space<vmem>>) attributes {dimension_semantics = [], scalar_prefetch = 0 : i64, scratch_operands = 4 : i64, tpu.core_type = #tpu.core_type<tc>} {
    %cst = arith.constant 0.000000e+00 : f32
    %0 = vector.broadcast %cst : f32 to vector<2x4x64xf32>
    %c0 = arith.constant 0 : index
    %c0_0 = arith.constant 0 : index
    %c0_1 = arith.constant 0 : index
    %1 = vector.load %arg9[%c0, %c0_0, %c0_1] : memref<2x16x64xf32, #tpu.memory_space<vmem>>, vector<2x4x64xf32>
    tpu.vector_store %arg9[%c0, %c0_0, %c0_1], %0 {strides = array<i32>} : memref<2x16x64xf32, #tpu.memory_space<vmem>>, vector<2x4x64xf32>,
    %c0_2 = arith.constant 0 : index
    %c12 = arith.constant 12 : index
    %c0_3 = arith.constant 0 : index
    %2 = vector.load %arg9[%c0_2, %c12, %c0_3] : memref<2x16x64xf32, #tpu.memory_space<vmem>>, vector<2x4x64xf32>
    tpu.vector_store %arg9[%c0_2, %c12, %c0_3], %0 {strides = array<i32>} : memref<2x16x64xf32, #tpu.memory_space<vmem>>, vector<2x4x64xf32>,
    %cst_4 = arith.constant 0.000000e+00 : f32
    %3 = vector.broadcast %cst_4 : f32 to vector<2x4x32xf32>
    %c0_5 = arith.constant 0 : index
    %c0_6 = arith.constant 0 : index
    %c0_7 = arith.constant 0 : index
    %4 = vector.load %arg10[%c0_5, %c0_6, %c0_7] : memref<2x24x32xf32, #tpu.memory_space<vmem>>, vector<2x4x32xf32>
    tpu.vector_store %arg10[%c0_5, %c0_6, %c0_7], %3 {strides = array<i32>} : memref<2x24x32xf32, #tpu.memory_space<vmem>>, vector<2x4x32xf32>,
    %c0_8 = arith.constant 0 : index
    %c20 = arith.constant 20 : index
    %c0_9 = arith.constant 0 : index
    %5 = vector.load %arg10[%c0_8, %c20, %c0_9] : memref<2x24x32xf32, #tpu.memory_space<vmem>>, vector<2x4x32xf32>
    tpu.vector_store %arg10[%c0_8, %c20, %c0_9], %3 {strides = array<i32>} : memref<2x24x32xf32, #tpu.memory_space<vmem>>, vector<2x4x32xf32>,
    %cst_10 = arith.constant 0.000000e+00 : f32
    %6 = vector.broadcast %cst_10 : f32 to vector<2x4x16xf32>
    %c0_11 = arith.constant 0 : index
    %c0_12 = arith.constant 0 : index
    %c0_13 = arith.constant 0 : index
    %7 = vector.load %arg11[%c0_11, %c0_12, %c0_13] : memref<2x40x16xf32, #tpu.memory_space<vmem>>, vector<2x4x16xf32>
    tpu.vector_store %arg11[%c0_11, %c0_12, %c0_13], %6 {strides = array<i32>} : memref<2x40x16xf32, #tpu.memory_space<vmem>>, vector<2x4x16xf32>,
    %c0_14 = arith.constant 0 : index
    %c36 = arith.constant 36 : index
    %c0_15 = arith.constant 0 : index
    %8 = vector.load %arg11[%c0_14, %c36, %c0_15] : memref<2x40x16xf32, #tpu.memory_space<vmem>>, vector<2x4x16xf32>
    tpu.vector_store %arg11[%c0_14, %c36, %c0_15], %6 {strides = array<i32>} : memref<2x40x16xf32, #tpu.memory_space<vmem>>, vector<2x4x16xf32>,
    %cst_16 = arith.constant 0.000000e+00 : f32
    %9 = vector.broadcast %cst_16 : f32 to vector<2x4x8xf32>
    %c0_17 = arith.constant 0 : index
    %c0_18 = arith.constant 0 : index
    %c0_19 = arith.constant 0 : index
    %10 = vector.load %arg12[%c0_17, %c0_18, %c0_19] : memref<2x72x8xf32, #tpu.memory_space<vmem>>, vector<2x4x8xf32>
    tpu.vector_store %arg12[%c0_17, %c0_18, %c0_19], %9 {strides = array<i32>} : memref<2x72x8xf32, #tpu.memory_space<vmem>>, vector<2x4x8xf32>,
    %c0_20 = arith.constant 0 : index
    %c68 = arith.constant 68 : index
    %c0_21 = arith.constant 0 : index
    %11 = vector.load %arg12[%c0_20, %c68, %c0_21] : memref<2x72x8xf32, #tpu.memory_space<vmem>>, vector<2x4x8xf32>
    tpu.vector_store %arg12[%c0_20, %c68, %c0_21], %9 {strides = array<i32>} : memref<2x72x8xf32, #tpu.memory_space<vmem>>, vector<2x4x8xf32>,
    %c0_22 = arith.constant 0 : index
    %c0_23 = arith.constant 0 : index
    %12 = vector.load %arg0[%c0_22, %c0_23] : memref<16x136xf32, #tpu.memory_space<vmem>>, vector<16x136xf32>
    %13 = arith.truncf %12 : vector<16x136xf32> to vector<16x136xbf16>
    %c0_24 = arith.constant 0 : index
    %c0_25 = arith.constant 0 : index
    %14 = vector.load %arg1[%c0_24, %c0_25] : memref<136x64xbf16, #tpu.memory_space<vmem>>, vector<136x64xbf16>
    %cst_26 = arith.constant dense<0.000000e+00> : vector<16x64xf32>
    %15 = tpu.matmul %13, %14, %cst_26 {dimension_numbers = #tpu.dot_dimension_numbers<[1], [0], [0], [1], [0, 0, 1, 1], [], []>} : vector<16x136xbf16>, vector<136x64xbf16>, vector<16x64xf32> -> vector<16x64xf32>
    %cst_27 = arith.constant 0.000000e+00 : f32
    %16 = vector.broadcast %cst_27 : f32 to vector<16x64xf32>
    %17 = arith.maximumf %15, %16 : vector<16x64xf32>
    %18 = vector.shape_cast %17 : vector<16x64xf32> to vector<2x8x64xf32>
    %c0_28 = arith.constant 0 : index
    %c4 = arith.constant 4 : index
    %c0_29 = arith.constant 0 : index
    %19 = vector.load %arg9[%c0_28, %c4, %c0_29] : memref<2x16x64xf32, #tpu.memory_space<vmem>>, vector<2x8x64xf32>
    tpu.vector_store %arg9[%c0_28, %c4, %c0_29], %18 {strides = array<i32>} : memref<2x16x64xf32, #tpu.memory_space<vmem>>, vector<2x8x64xf32>,
    %c0_30 = arith.constant 0 : index
    %c4_31 = arith.constant 4 : index
    %c0_32 = arith.constant 0 : index
    %20 = vector.load %arg9[%c0_30, %c4_31, %c0_32] : memref<2x16x64xf32, #tpu.memory_space<vmem>>, vector<2x8x64xf32>
    %c0_33 = arith.constant 0 : index
    %c0_34 = arith.constant 0 : index
    %c0_35 = arith.constant 0 : index
    %21 = vector.load %arg9[%c0_33, %c0_34, %c0_35] : memref<2x16x64xf32, #tpu.memory_space<vmem>>, vector<2x8x64xf32>
    %22 = vector.shape_cast %21 : vector<2x8x64xf32> to vector<16x64xf32>
    %23 = arith.truncf %22 : vector<16x64xf32> to vector<16x64xbf16>
    %c0_36 = arith.constant 0 : index
    %c0_37 = arith.constant 0 : index
    %c0_38 = arith.constant 0 : index
    %24 = vector.load %arg2[%c0_36, %c0_37, %c0_38] : memref<72x64x64xbf16, #tpu.memory_space<vmem>>, vector<1x64x64xbf16>
    %25 = vector.shape_cast %24 : vector<1x64x64xbf16> to vector<64x64xbf16>
    %cst_39 = arith.constant dense<0.000000e+00> : vector<16x64xf32>
    %26 = tpu.matmul %23, %25, %cst_39 {dimension_numbers = #tpu.dot_dimension_numbers<[1], [0], [0], [1], [0, 0, 1, 1], [], []>} : vector<16x64xbf16>, vector<64x64xbf16>, vector<16x64xf32> -> vector<16x64xf32>
    %c0_40 = arith.constant 0 : index
    %c1 = arith.constant 1 : index
    %c0_41 = arith.constant 0 : index
    %27 = vector.load %arg9[%c0_40, %c1, %c0_41] : memref<2x16x64xf32, #tpu.memory_space<vmem>>, vector<2x8x64xf32>
    %28 = vector.shape_cast %27 : vector<2x8x64xf32> to vector<16x64xf32>
    %29 = arith.truncf %28 : vector<16x64xf32> to vector<16x64xbf16>
    %c1_42 = arith.constant 1 : index
    %c0_43 = arith.constant 0 : index
    %c0_44 = arith.constant 0 : index
    %30 = vector.load %arg2[%c1_42, %c0_43, %c0_44] : memref<72x64x64xbf16, #tpu.memory_space<vmem>>, vector<1x64x64xbf16>
    %31 = vector.shape_cast %30 : vector<1x64x64xbf16> to vector<64x64xbf16>
    %cst_45 = arith.constant dense<0.000000e+00> : vector<16x64xf32>
    %32 = tpu.matmul %29, %31, %cst_45 {dimension_numbers = #tpu.dot_dimension_numbers<[1], [0], [0], [1], [0, 0, 1, 1], [], []>} : vector<16x64xbf16>, vector<64x64xbf16>, vector<16x64xf32> -> vector<16x64xf32>
    %c0_46 = arith.constant 0 : index
    %c2 = arith.constant 2 : index
    %c0_47 = arith.constant 0 : index
    %33 = vector.load %arg9[%c0_46, %c2, %c0_47] : memref<2x16x64xf32, #tpu.memory_space<vmem>>, vector<2x8x64xf32>
    %34 = vector.shape_cast %33 : vector<2x8x64xf32> to vector<16x64xf32>
    %35 = arith.truncf %34 : vector<16x64xf32> to vector<16x64xbf16>
    %c2_48 = arith.constant 2 : index
    %c0_49 = arith.constant 0 : index
    %c0_50 = arith.constant 0 : index
    %36 = vector.load %arg2[%c2_48, %c0_49, %c0_50] : memref<72x64x64xbf16, #tpu.memory_space<vmem>>, vector<1x64x64xbf16>
    %37 = vector.shape_cast %36 : vector<1x64x64xbf16> to vector<64x64xbf16>
    %cst_51 = arith.constant dense<0.000000e+00> : vector<16x64xf32>
    %38 = tpu.matmul %35, %37, %cst_51 {dimension_numbers = #tpu.dot_dimension_numbers<[1], [0], [0], [1], [0, 0, 1, 1], [], []>} : vector<16x64xbf16>, vector<64x64xbf16>, vector<16x64xf32> -> vector<16x64xf32>
    %c0_52 = arith.constant 0 : index
    %c3 = arith.constant 3 : index
    %c0_53 = arith.constant 0 : index
    %39 = vector.load %arg9[%c0_52, %c3, %c0_53] : memref<2x16x64xf32, #tpu.memory_space<vmem>>, vector<2x8x64xf32>
    %40 = vector.shape_cast %39 : vector<2x8x64xf32> to vector<16x64xf32>
    %41 = arith.truncf %40 : vector<16x64xf32> to vector<16x64xbf16>
    %c3_54 = arith.constant 3 : index
    %c0_55 = arith.constant 0 : index
    %c0_56 = arith.constant 0 : index
    %42 = vector.load %arg2[%c3_54, %c0_55, %c0_56] : memref<72x64x64xbf16, #tpu.memory_space<vmem>>, vector<1x64x64xbf16>
    %43 = vector.shape_cast %42 : vector<1x64x64xbf16> to vector<64x64xbf16>
    %cst_57 = arith.constant dense<0.000000e+00> : vector<16x64xf32>
    %44 = tpu.matmul %41, %43, %cst_57 {dimension_numbers = #tpu.dot_dimension_numbers<[1], [0], [0], [1], [0, 0, 1, 1], [], []>} : vector<16x64xbf16>, vector<64x64xbf16>, vector<16x64xf32> -> vector<16x64xf32>
    %c0_58 = arith.constant 0 : index
    %c4_59 = arith.constant 4 : index
    %c0_60 = arith.constant 0 : index
    %45 = vector.load %arg9[%c0_58, %c4_59, %c0_60] : memref<2x16x64xf32, #tpu.memory_space<vmem>>, vector<2x8x64xf32>
    %46 = vector.shape_cast %45 : vector<2x8x64xf32> to vector<16x64xf32>
    %47 = arith.truncf %46 : vector<16x64xf32> to vector<16x64xbf16>
    %c4_61 = arith.constant 4 : index
    %c0_62 = arith.constant 0 : index
    %c0_63 = arith.constant 0 : index
    %48 = vector.load %arg2[%c4_61, %c0_62, %c0_63] : memref<72x64x64xbf16, #tpu.memory_space<vmem>>, vector<1x64x64xbf16>
    %49 = vector.shape_cast %48 : vector<1x64x64xbf16> to vector<64x64xbf16>
    %cst_64 = arith.constant dense<0.000000e+00> : vector<16x64xf32>
    %50 = tpu.matmul %47, %49, %cst_64 {dimension_numbers = #tpu.dot_dimension_numbers<[1], [0], [0], [1], [0, 0, 1, 1], [], []>} : vector<16x64xbf16>, vector<64x64xbf16>, vector<16x64xf32> -> vector<16x64xf32>
    %c0_65 = arith.constant 0 : index
    %c5 = arith.constant 5 : index
    %c0_66 = arith.constant 0 : index
    %51 = vector.load %arg9[%c0_65, %c5, %c0_66] : memref<2x16x64xf32, #tpu.memory_space<vmem>>, vector<2x8x64xf32>
    %52 = vector.shape_cast %51 : vector<2x8x64xf32> to vector<16x64xf32>
    %53 = arith.truncf %52 : vector<16x64xf32> to vector<16x64xbf16>
    %c5_67 = arith.constant 5 : index
    %c0_68 = arith.constant 0 : index
    %c0_69 = arith.constant 0 : index
    %54 = vector.load %arg2[%c5_67, %c0_68, %c0_69] : memref<72x64x64xbf16, #tpu.memory_space<vmem>>, vector<1x64x64xbf16>
    %55 = vector.shape_cast %54 : vector<1x64x64xbf16> to vector<64x64xbf16>
    %cst_70 = arith.constant dense<0.000000e+00> : vector<16x64xf32>
    %56 = tpu.matmul %53, %55, %cst_70 {dimension_numbers = #tpu.dot_dimension_numbers<[1], [0], [0], [1], [0, 0, 1, 1], [], []>} : vector<16x64xbf16>, vector<64x64xbf16>, vector<16x64xf32> -> vector<16x64xf32>
    %c0_71 = arith.constant 0 : index
    %c6 = arith.constant 6 : index
    %c0_72 = arith.constant 0 : index
    %57 = vector.load %arg9[%c0_71, %c6, %c0_72] : memref<2x16x64xf32, #tpu.memory_space<vmem>>, vector<2x8x64xf32>
    %58 = vector.shape_cast %57 : vector<2x8x64xf32> to vector<16x64xf32>
    %59 = arith.truncf %58 : vector<16x64xf32> to vector<16x64xbf16>
    %c6_73 = arith.constant 6 : index
    %c0_74 = arith.constant 0 : index
    %c0_75 = arith.constant 0 : index
    %60 = vector.load %arg2[%c6_73, %c0_74, %c0_75] : memref<72x64x64xbf16, #tpu.memory_space<vmem>>, vector<1x64x64xbf16>
    %61 = vector.shape_cast %60 : vector<1x64x64xbf16> to vector<64x64xbf16>
    %cst_76 = arith.constant dense<0.000000e+00> : vector<16x64xf32>
    %62 = tpu.matmul %59, %61, %cst_76 {dimension_numbers = #tpu.dot_dimension_numbers<[1], [0], [0], [1], [0, 0, 1, 1], [], []>} : vector<16x64xbf16>, vector<64x64xbf16>, vector<16x64xf32> -> vector<16x64xf32>
    %c0_77 = arith.constant 0 : index
    %c7 = arith.constant 7 : index
    %c0_78 = arith.constant 0 : index
    %63 = vector.load %arg9[%c0_77, %c7, %c0_78] : memref<2x16x64xf32, #tpu.memory_space<vmem>>, vector<2x8x64xf32>
    %64 = vector.shape_cast %63 : vector<2x8x64xf32> to vector<16x64xf32>
    %65 = arith.truncf %64 : vector<16x64xf32> to vector<16x64xbf16>
    %c7_79 = arith.constant 7 : index
    %c0_80 = arith.constant 0 : index
    %c0_81 = arith.constant 0 : index
    %66 = vector.load %arg2[%c7_79, %c0_80, %c0_81] : memref<72x64x64xbf16, #tpu.memory_space<vmem>>, vector<1x64x64xbf16>
    %67 = vector.shape_cast %66 : vector<1x64x64xbf16> to vector<64x64xbf16>
    %cst_82 = arith.constant dense<0.000000e+00> : vector<16x64xf32>
    %68 = tpu.matmul %65, %67, %cst_82 {dimension_numbers = #tpu.dot_dimension_numbers<[1], [0], [0], [1], [0, 0, 1, 1], [], []>} : vector<16x64xbf16>, vector<64x64xbf16>, vector<16x64xf32> -> vector<16x64xf32>
    %c0_83 = arith.constant 0 : index
    %c8 = arith.constant 8 : index
    %c0_84 = arith.constant 0 : index
    %69 = vector.load %arg9[%c0_83, %c8, %c0_84] : memref<2x16x64xf32, #tpu.memory_space<vmem>>, vector<2x8x64xf32>
    %70 = vector.shape_cast %69 : vector<2x8x64xf32> to vector<16x64xf32>
    %71 = arith.truncf %70 : vector<16x64xf32> to vector<16x64xbf16>
    %c8_85 = arith.constant 8 : index
    %c0_86 = arith.constant 0 : index
    %c0_87 = arith.constant 0 : index
    %72 = vector.load %arg2[%c8_85, %c0_86, %c0_87] : memref<72x64x64xbf16, #tpu.memory_space<vmem>>, vector<1x64x64xbf16>
    %73 = vector.shape_cast %72 : vector<1x64x64xbf16> to vector<64x64xbf16>
    %cst_88 = arith.constant dense<0.000000e+00> : vector<16x64xf32>
    %74 = tpu.matmul %71, %73, %cst_88 {dimension_numbers = #tpu.dot_dimension_numbers<[1], [0], [0], [1], [0, 0, 1, 1], [], []>} : vector<16x64xbf16>, vector<64x64xbf16>, vector<16x64xf32> -> vector<16x64xf32>
    %75 = arith.addf %26, %32 : vector<16x64xf32>
    %76 = arith.addf %38, %44 : vector<16x64xf32>
    %77 = arith.addf %50, %56 : vector<16x64xf32>
    %78 = arith.addf %62, %68 : vector<16x64xf32>
    %79 = arith.addf %75, %76 : vector<16x64xf32>
    %80 = arith.addf %77, %78 : vector<16x64xf32>
    %81 = arith.addf %79, %80 : vector<16x64xf32>
    %82 = arith.addf %81, %74 : vector<16x64xf32>
    %c0_89 = arith.constant 0 : index
    %c0_90 = arith.constant 0 : index
    %c0_91 = arith.constant 0 : index
    %83 = vector.load %arg3[%c0_89, %c0_90, %c0_91] : memref<8x1x64xf32, #tpu.memory_space<vmem>>, vector<1x1x64xf32>
    %84 = vector.shape_cast %83 : vector<1x1x64xf32> to vector<1x64xf32>
    %85 = vector.broadcast %84 : vector<1x64xf32> to vector<16x64xf32>
    %86 = arith.addf %82, %85 : vector<16x64xf32>
    %87 = vector.shape_cast %86 : vector<16x64xf32> to vector<2x8x64xf32>
    %cst_92 = arith.constant dense<0.000000e+00> : vector<2x64xf32>
    %88 = vector.multi_reduction <add>, %87, %cst_92 [1] : vector<2x8x64xf32> to vector<2x64xf32>
    %89 = vector.shape_cast %88 : vector<2x64xf32> to vector<2x1x64xf32>
    %90 = arith.mulf %87, %87 : vector<2x8x64xf32>
    %cst_93 = arith.constant dense<0.000000e+00> : vector<2x64xf32>
    %91 = vector.multi_reduction <add>, %90, %cst_93 [1] : vector<2x8x64xf32> to vector<2x64xf32>
    %92 = vector.shape_cast %91 : vector<2x64xf32> to vector<2x1x64xf32>
    %cst_94 = arith.constant 1.250000e-01 : f32
    %93 = vector.broadcast %cst_94 : f32 to vector<2x1x64xf32>
    %94 = arith.mulf %89, %93 : vector<2x1x64xf32>
    %cst_95 = arith.constant 1.250000e-01 : f32
    %95 = vector.broadcast %cst_95 : f32 to vector<2x1x64xf32>
    %96 = arith.mulf %92, %95 : vector<2x1x64xf32>
    %97 = arith.mulf %94, %94 : vector<2x1x64xf32>
    %98 = arith.subf %96, %97 : vector<2x1x64xf32>
    %99 = vector.broadcast %94 : vector<2x1x64xf32> to vector<2x8x64xf32>
    %100 = arith.subf %87, %99 : vector<2x8x64xf32>
    %cst_96 = arith.constant 9.99999974E-6 : f32
    %101 = vector.broadcast %cst_96 : f32 to vector<2x1x64xf32>
    %102 = arith.addf %98, %101 : vector<2x1x64xf32>
    %103 = math.rsqrt %102 : vector<2x1x64xf32>
    %104 = vector.broadcast %103 : vector<2x1x64xf32> to vector<2x8x64xf32>
    %105 = arith.mulf %100, %104 : vector<2x8x64xf32>
    %cst_97 = arith.constant 0.000000e+00 : f32
    %106 = vector.broadcast %cst_97 : f32 to vector<2x8x64xf32>
    %107 = arith.maximumf %105, %106 : vector<2x8x64xf32>
    %c0_98 = arith.constant 0 : index
    %c4_99 = arith.constant 4 : index
    %c0_100 = arith.constant 0 : index
    %108 = vector.load %arg9[%c0_98, %c4_99, %c0_100] : memref<2x16x64xf32, #tpu.memory_space<vmem>>, vector<2x8x64xf32>
    tpu.vector_store %arg9[%c0_98, %c4_99, %c0_100], %107 {strides = array<i32>} : memref<2x16x64xf32, #tpu.memory_space<vmem>>, vector<2x8x64xf32>,
    %c0_101 = arith.constant 0 : index
    %c0_102 = arith.constant 0 : index
    %c0_103 = arith.constant 0 : index
    %109 = vector.load %arg9[%c0_101, %c0_102, %c0_103] : memref<2x16x64xf32, #tpu.memory_space<vmem>>, vector<2x8x64xf32>
    %110 = vector.shape_cast %109 : vector<2x8x64xf32> to vector<16x64xf32>
    %111 = arith.truncf %110 : vector<16x64xf32> to vector<16x64xbf16>
    %c9 = arith.constant 9 : index
    %c0_104 = arith.constant 0 : index
    %c0_105 = arith.constant 0 : index
    %112 = vector.load %arg2[%c9, %c0_104, %c0_105] : memref<72x64x64xbf16, #tpu.memory_space<vmem>>, vector<1x64x64xbf16>
    %113 = vector.shape_cast %112 : vector<1x64x64xbf16> to vector<64x64xbf16>
    %cst_106 = arith.constant dense<0.000000e+00> : vector<16x64xf32>
    %114 = tpu.matmul %111, %113, %cst_106 {dimension_numbers = #tpu.dot_dimension_numbers<[1], [0], [0], [1], [0, 0, 1, 1], [], []>} : vector<16x64xbf16>, vector<64x64xbf16>, vector<16x64xf32> -> vector<16x64xf32>
    %c0_107 = arith.constant 0 : index
    %c1_108 = arith.constant 1 : index
    %c0_109 = arith.constant 0 : index
    %115 = vector.load %arg9[%c0_107, %c1_108, %c0_109] : memref<2x16x64xf32, #tpu.memory_space<vmem>>, vector<2x8x64xf32>
    %116 = vector.shape_cast %115 : vector<2x8x64xf32> to vector<16x64xf32>
    %117 = arith.truncf %116 : vector<16x64xf32> to vector<16x64xbf16>
    %c10 = arith.constant 10 : index
    %c0_110 = arith.constant 0 : index
    %c0_111 = arith.constant 0 : index
    %118 = vector.load %arg2[%c10, %c0_110, %c0_111] : memref<72x64x64xbf16, #tpu.memory_space<vmem>>, vector<1x64x64xbf16>
    %119 = vector.shape_cast %118 : vector<1x64x64xbf16> to vector<64x64xbf16>
    %cst_112 = arith.constant dense<0.000000e+00> : vector<16x64xf32>
    %120 = tpu.matmul %117, %119, %cst_112 {dimension_numbers = #tpu.dot_dimension_numbers<[1], [0], [0], [1], [0, 0, 1, 1], [], []>} : vector<16x64xbf16>, vector<64x64xbf16>, vector<16x64xf32> -> vector<16x64xf32>
    %c0_113 = arith.constant 0 : index
    %c2_114 = arith.constant 2 : index
    %c0_115 = arith.constant 0 : index
    %121 = vector.load %arg9[%c0_113, %c2_114, %c0_115] : memref<2x16x64xf32, #tpu.memory_space<vmem>>, vector<2x8x64xf32>
    %122 = vector.shape_cast %121 : vector<2x8x64xf32> to vector<16x64xf32>
    %123 = arith.truncf %122 : vector<16x64xf32> to vector<16x64xbf16>
    %c11 = arith.constant 11 : index
    %c0_116 = arith.constant 0 : index
    %c0_117 = arith.constant 0 : index
    %124 = vector.load %arg2[%c11, %c0_116, %c0_117] : memref<72x64x64xbf16, #tpu.memory_space<vmem>>, vector<1x64x64xbf16>
    %125 = vector.shape_cast %124 : vector<1x64x64xbf16> to vector<64x64xbf16>
    %cst_118 = arith.constant dense<0.000000e+00> : vector<16x64xf32>
    %126 = tpu.matmul %123, %125, %cst_118 {dimension_numbers = #tpu.dot_dimension_numbers<[1], [0], [0], [1], [0, 0, 1, 1], [], []>} : vector<16x64xbf16>, vector<64x64xbf16>, vector<16x64xf32> -> vector<16x64xf32>
    %c0_119 = arith.constant 0 : index
    %c3_120 = arith.constant 3 : index
    %c0_121 = arith.constant 0 : index
    %127 = vector.load %arg9[%c0_119, %c3_120, %c0_121] : memref<2x16x64xf32, #tpu.memory_space<vmem>>, vector<2x8x64xf32>
    %128 = vector.shape_cast %127 : vector<2x8x64xf32> to vector<16x64xf32>
    %129 = arith.truncf %128 : vector<16x64xf32> to vector<16x64xbf16>
    %c12_122 = arith.constant 12 : index
    %c0_123 = arith.constant 0 : index
    %c0_124 = arith.constant 0 : index
    %130 = vector.load %arg2[%c12_122, %c0_123, %c0_124] : memref<72x64x64xbf16, #tpu.memory_space<vmem>>, vector<1x64x64xbf16>
    %131 = vector.shape_cast %130 : vector<1x64x64xbf16> to vector<64x64xbf16>
    %cst_125 = arith.constant dense<0.000000e+00> : vector<16x64xf32>
    %132 = tpu.matmul %129, %131, %cst_125 {dimension_numbers = #tpu.dot_dimension_numbers<[1], [0], [0], [1], [0, 0, 1, 1], [], []>} : vector<16x64xbf16>, vector<64x64xbf16>, vector<16x64xf32> -> vector<16x64xf32>
    %c0_126 = arith.constant 0 : index
    %c4_127 = arith.constant 4 : index
    %c0_128 = arith.constant 0 : index
    %133 = vector.load %arg9[%c0_126, %c4_127, %c0_128] : memref<2x16x64xf32, #tpu.memory_space<vmem>>, vector<2x8x64xf32>
    %134 = vector.shape_cast %133 : vector<2x8x64xf32> to vector<16x64xf32>
    %135 = arith.truncf %134 : vector<16x64xf32> to vector<16x64xbf16>
    %c13 = arith.constant 13 : index
    %c0_129 = arith.constant 0 : index
    %c0_130 = arith.constant 0 : index
    %136 = vector.load %arg2[%c13, %c0_129, %c0_130] : memref<72x64x64xbf16, #tpu.memory_space<vmem>>, vector<1x64x64xbf16>
    %137 = vector.shape_cast %136 : vector<1x64x64xbf16> to vector<64x64xbf16>
    %cst_131 = arith.constant dense<0.000000e+00> : vector<16x64xf32>
    %138 = tpu.matmul %135, %137, %cst_131 {dimension_numbers = #tpu.dot_dimension_numbers<[1], [0], [0], [1], [0, 0, 1, 1], [], []>} : vector<16x64xbf16>, vector<64x64xbf16>, vector<16x64xf32> -> vector<16x64xf32>
    %c0_132 = arith.constant 0 : index
    %c5_133 = arith.constant 5 : index
    %c0_134 = arith.constant 0 : index
    %139 = vector.load %arg9[%c0_132, %c5_133, %c0_134] : memref<2x16x64xf32, #tpu.memory_space<vmem>>, vector<2x8x64xf32>
    %140 = vector.shape_cast %139 : vector<2x8x64xf32> to vector<16x64xf32>
    %141 = arith.truncf %140 : vector<16x64xf32> to vector<16x64xbf16>
    %c14 = arith.constant 14 : index
    %c0_135 = arith.constant 0 : index
    %c0_136 = arith.constant 0 : index
    %142 = vector.load %arg2[%c14, %c0_135, %c0_136] : memref<72x64x64xbf16, #tpu.memory_space<vmem>>, vector<1x64x64xbf16>
    %143 = vector.shape_cast %142 : vector<1x64x64xbf16> to vector<64x64xbf16>
    %cst_137 = arith.constant dense<0.000000e+00> : vector<16x64xf32>
    %144 = tpu.matmul %141, %143, %cst_137 {dimension_numbers = #tpu.dot_dimension_numbers<[1], [0], [0], [1], [0, 0, 1, 1], [], []>} : vector<16x64xbf16>, vector<64x64xbf16>, vector<16x64xf32> -> vector<16x64xf32>
    %c0_138 = arith.constant 0 : index
    %c6_139 = arith.constant 6 : index
    %c0_140 = arith.constant 0 : index
    %145 = vector.load %arg9[%c0_138, %c6_139, %c0_140] : memref<2x16x64xf32, #tpu.memory_space<vmem>>, vector<2x8x64xf32>
    %146 = vector.shape_cast %145 : vector<2x8x64xf32> to vector<16x64xf32>
    %147 = arith.truncf %146 : vector<16x64xf32> to vector<16x64xbf16>
    %c15 = arith.constant 15 : index
    %c0_141 = arith.constant 0 : index
    %c0_142 = arith.constant 0 : index
    %148 = vector.load %arg2[%c15, %c0_141, %c0_142] : memref<72x64x64xbf16, #tpu.memory_space<vmem>>, vector<1x64x64xbf16>
    %149 = vector.shape_cast %148 : vector<1x64x64xbf16> to vector<64x64xbf16>
    %cst_143 = arith.constant dense<0.000000e+00> : vector<16x64xf32>
    %150 = tpu.matmul %147, %149, %cst_143 {dimension_numbers = #tpu.dot_dimension_numbers<[1], [0], [0], [1], [0, 0, 1, 1], [], []>} : vector<16x64xbf16>, vector<64x64xbf16>, vector<16x64xf32> -> vector<16x64xf32>
    %c0_144 = arith.constant 0 : index
    %c7_145 = arith.constant 7 : index
    %c0_146 = arith.constant 0 : index
    %151 = vector.load %arg9[%c0_144, %c7_145, %c0_146] : memref<2x16x64xf32, #tpu.memory_space<vmem>>, vector<2x8x64xf32>
    %152 = vector.shape_cast %151 : vector<2x8x64xf32> to vector<16x64xf32>
    %153 = arith.truncf %152 : vector<16x64xf32> to vector<16x64xbf16>
    %c16 = arith.constant 16 : index
    %c0_147 = arith.constant 0 : index
    %c0_148 = arith.constant 0 : index
    %154 = vector.load %arg2[%c16, %c0_147, %c0_148] : memref<72x64x64xbf16, #tpu.memory_space<vmem>>, vector<1x64x64xbf16>
    %155 = vector.shape_cast %154 : vector<1x64x64xbf16> to vector<64x64xbf16>
    %cst_149 = arith.constant dense<0.000000e+00> : vector<16x64xf32>
    %156 = tpu.matmul %153, %155, %cst_149 {dimension_numbers = #tpu.dot_dimension_numbers<[1], [0], [0], [1], [0, 0, 1, 1], [], []>} : vector<16x64xbf16>, vector<64x64xbf16>, vector<16x64xf32> -> vector<16x64xf32>
    %c0_150 = arith.constant 0 : index
    %c8_151 = arith.constant 8 : index
    %c0_152 = arith.constant 0 : index
    %157 = vector.load %arg9[%c0_150, %c8_151, %c0_152] : memref<2x16x64xf32, #tpu.memory_space<vmem>>, vector<2x8x64xf32>
    %158 = vector.shape_cast %157 : vector<2x8x64xf32> to vector<16x64xf32>
    %159 = arith.truncf %158 : vector<16x64xf32> to vector<16x64xbf16>
    %c17 = arith.constant 17 : index
    %c0_153 = arith.constant 0 : index
    %c0_154 = arith.constant 0 : index
    %160 = vector.load %arg2[%c17, %c0_153, %c0_154] : memref<72x64x64xbf16, #tpu.memory_space<vmem>>, vector<1x64x64xbf16>
    %161 = vector.shape_cast %160 : vector<1x64x64xbf16> to vector<64x64xbf16>
    %cst_155 = arith.constant dense<0.000000e+00> : vector<16x64xf32>
    %162 = tpu.matmul %159, %161, %cst_155 {dimension_numbers = #tpu.dot_dimension_numbers<[1], [0], [0], [1], [0, 0, 1, 1], [], []>} : vector<16x64xbf16>, vector<64x64xbf16>, vector<16x64xf32> -> vector<16x64xf32>
    %163 = arith.addf %114, %120 : vector<16x64xf32>
    %164 = arith.addf %126, %132 : vector<16x64xf32>
    %165 = arith.addf %138, %144 : vector<16x64xf32>
    %166 = arith.addf %150, %156 : vector<16x64xf32>
    %167 = arith.addf %163, %164 : vector<16x64xf32>
    %168 = arith.addf %165, %166 : vector<16x64xf32>
    %169 = arith.addf %167, %168 : vector<16x64xf32>
    %170 = arith.addf %169, %162 : vector<16x64xf32>
    %c1_156 = arith.constant 1 : index
    %c0_157 = arith.constant 0 : index
    %c0_158 = arith.constant 0 : index
    %171 = vector.load %arg3[%c1_156, %c0_157, %c0_158] : memref<8x1x64xf32, #tpu.memory_space<vmem>>, vector<1x1x64xf32>
    %172 = vector.shape_cast %171 : vector<1x1x64xf32> to vector<1x64xf32>
    %173 = vector.broadcast %172 : vector<1x64xf32> to vector<16x64xf32>
    %174 = arith.addf %170, %173 : vector<16x64xf32>
    %175 = vector.shape_cast %174 : vector<16x64xf32> to vector<2x8x64xf32>
    %cst_159 = arith.constant dense<0.000000e+00> : vector<2x64xf32>
    %176 = vector.multi_reduction <add>, %175, %cst_159 [1] : vector<2x8x64xf32> to vector<2x64xf32>
    %177 = vector.shape_cast %176 : vector<2x64xf32> to vector<2x1x64xf32>
    %178 = arith.mulf %175, %175 : vector<2x8x64xf32>
    %cst_160 = arith.constant dense<0.000000e+00> : vector<2x64xf32>
    %179 = vector.multi_reduction <add>, %178, %cst_160 [1] : vector<2x8x64xf32> to vector<2x64xf32>
    %180 = vector.shape_cast %179 : vector<2x64xf32> to vector<2x1x64xf32>
    %cst_161 = arith.constant 1.250000e-01 : f32
    %181 = vector.broadcast %cst_161 : f32 to vector<2x1x64xf32>
    %182 = arith.mulf %177, %181 : vector<2x1x64xf32>
    %cst_162 = arith.constant 1.250000e-01 : f32
    %183 = vector.broadcast %cst_162 : f32 to vector<2x1x64xf32>
    %184 = arith.mulf %180, %183 : vector<2x1x64xf32>
    %185 = arith.mulf %182, %182 : vector<2x1x64xf32>
    %186 = arith.subf %184, %185 : vector<2x1x64xf32>
    %187 = vector.broadcast %182 : vector<2x1x64xf32> to vector<2x8x64xf32>
    %188 = arith.subf %175, %187 : vector<2x8x64xf32>
    %cst_163 = arith.constant 9.99999974E-6 : f32
    %189 = vector.broadcast %cst_163 : f32 to vector<2x1x64xf32>
    %190 = arith.addf %186, %189 : vector<2x1x64xf32>
    %191 = math.rsqrt %190 : vector<2x1x64xf32>
    %192 = vector.broadcast %191 : vector<2x1x64xf32> to vector<2x8x64xf32>
    %193 = arith.mulf %188, %192 : vector<2x8x64xf32>
    %194 = arith.addf %20, %193 : vector<2x8x64xf32>
    %cst_164 = arith.constant 0.000000e+00 : f32
    %195 = vector.broadcast %cst_164 : f32 to vector<2x8x64xf32>
    %196 = arith.maximumf %194, %195 : vector<2x8x64xf32>
    %c0_165 = arith.constant 0 : index
    %c4_166 = arith.constant 4 : index
    %c0_167 = arith.constant 0 : index
    %197 = vector.load %arg9[%c0_165, %c4_166, %c0_167] : memref<2x16x64xf32, #tpu.memory_space<vmem>>, vector<2x8x64xf32>
    tpu.vector_store %arg9[%c0_165, %c4_166, %c0_167], %196 {strides = array<i32>} : memref<2x16x64xf32, #tpu.memory_space<vmem>>, vector<2x8x64xf32>,
    %c0_168 = arith.constant 0 : index
    %c3_169 = arith.constant 3 : index
    %c0_170 = arith.constant 0 : index
    %198 = vector.load %arg9[%c0_168, %c3_169, %c0_170] : memref<2x16x64xf32, #tpu.memory_space<vmem>>, vector<2x8x64xf32>
    %199 = vector.shape_cast %198 : vector<2x8x64xf32> to vector<16x64xf32>
    %200 = arith.truncf %199 : vector<16x64xf32> to vector<16x64xbf16>
    %c0_171 = arith.constant 0 : index
    %c4_172 = arith.constant 4 : index
    %c0_173 = arith.constant 0 : index
    %201 = vector.load %arg9[%c0_171, %c4_172, %c0_173] : memref<2x16x64xf32, #tpu.memory_space<vmem>>, vector<2x8x64xf32>
    %202 = vector.shape_cast %201 : vector<2x8x64xf32> to vector<16x64xf32>
    %203 = arith.truncf %202 : vector<16x64xf32> to vector<16x64xbf16>
    %c0_174 = arith.constant 0 : index
    %c5_175 = arith.constant 5 : index
    %c0_176 = arith.constant 0 : index
    %204 = vector.load %arg9[%c0_174, %c5_175, %c0_176] : memref<2x16x64xf32, #tpu.memory_space<vmem>>, vector<2x8x64xf32>
    %205 = vector.shape_cast %204 : vector<2x8x64xf32> to vector<16x64xf32>
    %206 = arith.truncf %205 : vector<16x64xf32> to vector<16x64xbf16>
    %c0_177 = arith.constant 0 : index
    %c0_178 = arith.constant 0 : index
    %c0_179 = arith.constant 0 : index
    %207 = vector.load %arg5[%c0_177, %c0_178, %c0_179] : memref<3x1x64xf32, #tpu.memory_space<vmem>>, vector<1x1x32xf32>
    %208 = vector.shape_cast %207 : vector<1x1x32xf32> to vector<1x32xf32>
    %c1_180 = arith.constant 1 : index
    %c0_181 = arith.constant 0 : index
    %c0_182 = arith.constant 0 : index
    %209 = vector.load %arg4[%c1_180, %c0_181, %c0_182] : memref<12x64x64xbf16, #tpu.memory_space<vmem>>, vector<1x64x32xbf16>
    %210 = vector.shape_cast %209 : vector<1x64x32xbf16> to vector<64x32xbf16>
    %cst_183 = arith.constant dense<0.000000e+00> : vector<16x32xf32>
    %211 = tpu.matmul %203, %210, %cst_183 {dimension_numbers = #tpu.dot_dimension_numbers<[1], [0], [0], [1], [0, 0, 1, 1], [], []>} : vector<16x64xbf16>, vector<64x32xbf16>, vector<16x32xf32> -> vector<16x32xf32>
    %c3_184 = arith.constant 3 : index
    %c0_185 = arith.constant 0 : index
    %c0_186 = arith.constant 0 : index
    %212 = vector.load %arg4[%c3_184, %c0_185, %c0_186] : memref<12x64x64xbf16, #tpu.memory_space<vmem>>, vector<1x64x32xbf16>
    %213 = vector.shape_cast %212 : vector<1x64x32xbf16> to vector<64x32xbf16>
    %cst_187 = arith.constant dense<0.000000e+00> : vector<16x32xf32>
    %214 = tpu.matmul %200, %213, %cst_187 {dimension_numbers = #tpu.dot_dimension_numbers<[1], [0], [0], [1], [0, 0, 1, 1], [], []>} : vector<16x64xbf16>, vector<64x32xbf16>, vector<16x32xf32> -> vector<16x32xf32>
    %215 = arith.addf %211, %214 : vector<16x32xf32>
    %216 = vector.broadcast %208 : vector<1x32xf32> to vector<16x32xf32>
    %217 = arith.addf %215, %216 : vector<16x32xf32>
    %c0_188 = arith.constant 0 : index
    %c0_189 = arith.constant 0 : index
    %c0_190 = arith.constant 0 : index
    %218 = vector.load %arg4[%c0_188, %c0_189, %c0_190] : memref<12x64x64xbf16, #tpu.memory_space<vmem>>, vector<1x64x32xbf16>
    %219 = vector.shape_cast %218 : vector<1x64x32xbf16> to vector<64x32xbf16>
    %cst_191 = arith.constant dense<0.000000e+00> : vector<16x32xf32>
    %220 = tpu.matmul %206, %219, %cst_191 {dimension_numbers = #tpu.dot_dimension_numbers<[1], [0], [0], [1], [0, 0, 1, 1], [], []>} : vector<16x64xbf16>, vector<64x32xbf16>, vector<16x32xf32> -> vector<16x32xf32>
    %c2_192 = arith.constant 2 : index
    %c0_193 = arith.constant 0 : index
    %c0_194 = arith.constant 0 : index
    %221 = vector.load %arg4[%c2_192, %c0_193, %c0_194] : memref<12x64x64xbf16, #tpu.memory_space<vmem>>, vector<1x64x32xbf16>
    %222 = vector.shape_cast %221 : vector<1x64x32xbf16> to vector<64x32xbf16>
    %cst_195 = arith.constant dense<0.000000e+00> : vector<16x32xf32>
    %223 = tpu.matmul %203, %222, %cst_195 {dimension_numbers = #tpu.dot_dimension_numbers<[1], [0], [0], [1], [0, 0, 1, 1], [], []>} : vector<16x64xbf16>, vector<64x32xbf16>, vector<16x32xf32> -> vector<16x32xf32>
    %224 = arith.addf %220, %223 : vector<16x32xf32>
    %225 = vector.broadcast %208 : vector<1x32xf32> to vector<16x32xf32>
    %226 = arith.addf %224, %225 : vector<16x32xf32>
    %227 = vector.shape_cast %217 : vector<16x32xf32> to vector<2x8x32xf32>
    %c0_196 = arith.constant 0 : index
    %c4_197 = arith.constant 4 : index
    %c0_198 = arith.constant 0 : index
    %228 = tpu.strided_load %arg10[%c0_196, %c4_197, %c0_198] {strides = array<i32: 1, 2, 1>} : memref<2x24x32xf32, #tpu.memory_space<vmem>>, vector<2x8x32xf32>
    tpu.strided_store %arg10[%c0_196, %c4_197, %c0_198], %227 {strides = array<i32: 1, 2, 1>} : memref<2x24x32xf32, #tpu.memory_space<vmem>>, vector<2x8x32xf32>
    %229 = vector.shape_cast %226 : vector<16x32xf32> to vector<2x8x32xf32>
    %c0_199 = arith.constant 0 : index
    %c5_200 = arith.constant 5 : index
    %c0_201 = arith.constant 0 : index
    %230 = tpu.strided_load %arg10[%c0_199, %c5_200, %c0_201] {strides = array<i32: 1, 2, 1>} : memref<2x24x32xf32, #tpu.memory_space<vmem>>, vector<2x8x32xf32>
    tpu.strided_store %arg10[%c0_199, %c5_200, %c0_201], %229 {strides = array<i32: 1, 2, 1>} : memref<2x24x32xf32, #tpu.memory_space<vmem>>, vector<2x8x32xf32>
    %c0_202 = arith.constant 0 : index
    %c4_203 = arith.constant 4 : index
    %c0_204 = arith.constant 0 : index
    %231 = vector.load %arg10[%c0_202, %c4_203, %c0_204] : memref<2x24x32xf32, #tpu.memory_space<vmem>>, vector<2x16x32xf32>
    %c0_205 = arith.constant 0 : index
    %c0_206 = arith.constant 0 : index
    %c0_207 = arith.constant 0 : index
    %232 = vector.load %arg10[%c0_205, %c0_206, %c0_207] : memref<2x24x32xf32, #tpu.memory_space<vmem>>, vector<2x16x32xf32>
    %233 = vector.shape_cast %232 : vector<2x16x32xf32> to vector<32x32xf32>
    %234 = arith.truncf %233 : vector<32x32xf32> to vector<32x32xbf16>
    %c18 = arith.constant 18 : index
    %c0_208 = arith.constant 0 : index
    %c0_209 = arith.constant 0 : index
    %235 = vector.load %arg2[%c18, %c0_208, %c0_209] : memref<72x64x64xbf16, #tpu.memory_space<vmem>>, vector<1x32x32xbf16>
    %236 = vector.shape_cast %235 : vector<1x32x32xbf16> to vector<32x32xbf16>
    %cst_210 = arith.constant dense<0.000000e+00> : vector<32x32xf32>
    %237 = tpu.matmul %234, %236, %cst_210 {dimension_numbers = #tpu.dot_dimension_numbers<[1], [0], [0], [1], [0, 0, 1, 1], [], []>} : vector<32x32xbf16>, vector<32x32xbf16>, vector<32x32xf32> -> vector<32x32xf32>
    %c0_211 = arith.constant 0 : index
    %c1_212 = arith.constant 1 : index
    %c0_213 = arith.constant 0 : index
    %238 = vector.load %arg10[%c0_211, %c1_212, %c0_213] : memref<2x24x32xf32, #tpu.memory_space<vmem>>, vector<2x16x32xf32>
    %239 = vector.shape_cast %238 : vector<2x16x32xf32> to vector<32x32xf32>
    %240 = arith.truncf %239 : vector<32x32xf32> to vector<32x32xbf16>
    %c19 = arith.constant 19 : index
    %c0_214 = arith.constant 0 : index
    %c0_215 = arith.constant 0 : index
    %241 = vector.load %arg2[%c19, %c0_214, %c0_215] : memref<72x64x64xbf16, #tpu.memory_space<vmem>>, vector<1x32x32xbf16>
    %242 = vector.shape_cast %241 : vector<1x32x32xbf16> to vector<32x32xbf16>
    %cst_216 = arith.constant dense<0.000000e+00> : vector<32x32xf32>
    %243 = tpu.matmul %240, %242, %cst_216 {dimension_numbers = #tpu.dot_dimension_numbers<[1], [0], [0], [1], [0, 0, 1, 1], [], []>} : vector<32x32xbf16>, vector<32x32xbf16>, vector<32x32xf32> -> vector<32x32xf32>
    %c0_217 = arith.constant 0 : index
    %c2_218 = arith.constant 2 : index
    %c0_219 = arith.constant 0 : index
    %244 = vector.load %arg10[%c0_217, %c2_218, %c0_219] : memref<2x24x32xf32, #tpu.memory_space<vmem>>, vector<2x16x32xf32>
    %245 = vector.shape_cast %244 : vector<2x16x32xf32> to vector<32x32xf32>
    %246 = arith.truncf %245 : vector<32x32xf32> to vector<32x32xbf16>
    %c20_220 = arith.constant 20 : index
    %c0_221 = arith.constant 0 : index
    %c0_222 = arith.constant 0 : index
    %247 = vector.load %arg2[%c20_220, %c0_221, %c0_222] : memref<72x64x64xbf16, #tpu.memory_space<vmem>>, vector<1x32x32xbf16>
    %248 = vector.shape_cast %247 : vector<1x32x32xbf16> to vector<32x32xbf16>
    %cst_223 = arith.constant dense<0.000000e+00> : vector<32x32xf32>
    %249 = tpu.matmul %246, %248, %cst_223 {dimension_numbers = #tpu.dot_dimension_numbers<[1], [0], [0], [1], [0, 0, 1, 1], [], []>} : vector<32x32xbf16>, vector<32x32xbf16>, vector<32x32xf32> -> vector<32x32xf32>
    %c0_224 = arith.constant 0 : index
    %c3_225 = arith.constant 3 : index
    %c0_226 = arith.constant 0 : index
    %250 = vector.load %arg10[%c0_224, %c3_225, %c0_226] : memref<2x24x32xf32, #tpu.memory_space<vmem>>, vector<2x16x32xf32>
    %251 = vector.shape_cast %250 : vector<2x16x32xf32> to vector<32x32xf32>
    %252 = arith.truncf %251 : vector<32x32xf32> to vector<32x32xbf16>
    %c21 = arith.constant 21 : index
    %c0_227 = arith.constant 0 : index
    %c0_228 = arith.constant 0 : index
    %253 = vector.load %arg2[%c21, %c0_227, %c0_228] : memref<72x64x64xbf16, #tpu.memory_space<vmem>>, vector<1x32x32xbf16>
    %254 = vector.shape_cast %253 : vector<1x32x32xbf16> to vector<32x32xbf16>
    %cst_229 = arith.constant dense<0.000000e+00> : vector<32x32xf32>
    %255 = tpu.matmul %252, %254, %cst_229 {dimension_numbers = #tpu.dot_dimension_numbers<[1], [0], [0], [1], [0, 0, 1, 1], [], []>} : vector<32x32xbf16>, vector<32x32xbf16>, vector<32x32xf32> -> vector<32x32xf32>
    %c0_230 = arith.constant 0 : index
    %c4_231 = arith.constant 4 : index
    %c0_232 = arith.constant 0 : index
    %256 = vector.load %arg10[%c0_230, %c4_231, %c0_232] : memref<2x24x32xf32, #tpu.memory_space<vmem>>, vector<2x16x32xf32>
    %257 = vector.shape_cast %256 : vector<2x16x32xf32> to vector<32x32xf32>
    %258 = arith.truncf %257 : vector<32x32xf32> to vector<32x32xbf16>
    %c22 = arith.constant 22 : index
    %c0_233 = arith.constant 0 : index
    %c0_234 = arith.constant 0 : index
    %259 = vector.load %arg2[%c22, %c0_233, %c0_234] : memref<72x64x64xbf16, #tpu.memory_space<vmem>>, vector<1x32x32xbf16>
    %260 = vector.shape_cast %259 : vector<1x32x32xbf16> to vector<32x32xbf16>
    %cst_235 = arith.constant dense<0.000000e+00> : vector<32x32xf32>
    %261 = tpu.matmul %258, %260, %cst_235 {dimension_numbers = #tpu.dot_dimension_numbers<[1], [0], [0], [1], [0, 0, 1, 1], [], []>} : vector<32x32xbf16>, vector<32x32xbf16>, vector<32x32xf32> -> vector<32x32xf32>
    %c0_236 = arith.constant 0 : index
    %c5_237 = arith.constant 5 : index
    %c0_238 = arith.constant 0 : index
    %262 = vector.load %arg10[%c0_236, %c5_237, %c0_238] : memref<2x24x32xf32, #tpu.memory_space<vmem>>, vector<2x16x32xf32>
    %263 = vector.shape_cast %262 : vector<2x16x32xf32> to vector<32x32xf32>
    %264 = arith.truncf %263 : vector<32x32xf32> to vector<32x32xbf16>
    %c23 = arith.constant 23 : index
    %c0_239 = arith.constant 0 : index
    %c0_240 = arith.constant 0 : index
    %265 = vector.load %arg2[%c23, %c0_239, %c0_240] : memref<72x64x64xbf16, #tpu.memory_space<vmem>>, vector<1x32x32xbf16>
    %266 = vector.shape_cast %265 : vector<1x32x32xbf16> to vector<32x32xbf16>
    %cst_241 = arith.constant dense<0.000000e+00> : vector<32x32xf32>
    %267 = tpu.matmul %264, %266, %cst_241 {dimension_numbers = #tpu.dot_dimension_numbers<[1], [0], [0], [1], [0, 0, 1, 1], [], []>} : vector<32x32xbf16>, vector<32x32xbf16>, vector<32x32xf32> -> vector<32x32xf32>
    %c0_242 = arith.constant 0 : index
    %c6_243 = arith.constant 6 : index
    %c0_244 = arith.constant 0 : index
    %268 = vector.load %arg10[%c0_242, %c6_243, %c0_244] : memref<2x24x32xf32, #tpu.memory_space<vmem>>, vector<2x16x32xf32>
    %269 = vector.shape_cast %268 : vector<2x16x32xf32> to vector<32x32xf32>
    %270 = arith.truncf %269 : vector<32x32xf32> to vector<32x32xbf16>
    %c24 = arith.constant 24 : index
    %c0_245 = arith.constant 0 : index
    %c0_246 = arith.constant 0 : index
    %271 = vector.load %arg2[%c24, %c0_245, %c0_246] : memref<72x64x64xbf16, #tpu.memory_space<vmem>>, vector<1x32x32xbf16>
    %272 = vector.shape_cast %271 : vector<1x32x32xbf16> to vector<32x32xbf16>
    %cst_247 = arith.constant dense<0.000000e+00> : vector<32x32xf32>
    %273 = tpu.matmul %270, %272, %cst_247 {dimension_numbers = #tpu.dot_dimension_numbers<[1], [0], [0], [1], [0, 0, 1, 1], [], []>} : vector<32x32xbf16>, vector<32x32xbf16>, vector<32x32xf32> -> vector<32x32xf32>
    %c0_248 = arith.constant 0 : index
    %c7_249 = arith.constant 7 : index
    %c0_250 = arith.constant 0 : index
    %274 = vector.load %arg10[%c0_248, %c7_249, %c0_250] : memref<2x24x32xf32, #tpu.memory_space<vmem>>, vector<2x16x32xf32>
    %275 = vector.shape_cast %274 : vector<2x16x32xf32> to vector<32x32xf32>
    %276 = arith.truncf %275 : vector<32x32xf32> to vector<32x32xbf16>
    %c25 = arith.constant 25 : index
    %c0_251 = arith.constant 0 : index
    %c0_252 = arith.constant 0 : index
    %277 = vector.load %arg2[%c25, %c0_251, %c0_252] : memref<72x64x64xbf16, #tpu.memory_space<vmem>>, vector<1x32x32xbf16>
    %278 = vector.shape_cast %277 : vector<1x32x32xbf16> to vector<32x32xbf16>
    %cst_253 = arith.constant dense<0.000000e+00> : vector<32x32xf32>
    %279 = tpu.matmul %276, %278, %cst_253 {dimension_numbers = #tpu.dot_dimension_numbers<[1], [0], [0], [1], [0, 0, 1, 1], [], []>} : vector<32x32xbf16>, vector<32x32xbf16>, vector<32x32xf32> -> vector<32x32xf32>
    %c0_254 = arith.constant 0 : index
    %c8_255 = arith.constant 8 : index
    %c0_256 = arith.constant 0 : index
    %280 = vector.load %arg10[%c0_254, %c8_255, %c0_256] : memref<2x24x32xf32, #tpu.memory_space<vmem>>, vector<2x16x32xf32>
    %281 = vector.shape_cast %280 : vector<2x16x32xf32> to vector<32x32xf32>
    %282 = arith.truncf %281 : vector<32x32xf32> to vector<32x32xbf16>
    %c26 = arith.constant 26 : index
    %c0_257 = arith.constant 0 : index
    %c0_258 = arith.constant 0 : index
    %283 = vector.load %arg2[%c26, %c0_257, %c0_258] : memref<72x64x64xbf16, #tpu.memory_space<vmem>>, vector<1x32x32xbf16>
    %284 = vector.shape_cast %283 : vector<1x32x32xbf16> to vector<32x32xbf16>
    %cst_259 = arith.constant dense<0.000000e+00> : vector<32x32xf32>
    %285 = tpu.matmul %282, %284, %cst_259 {dimension_numbers = #tpu.dot_dimension_numbers<[1], [0], [0], [1], [0, 0, 1, 1], [], []>} : vector<32x32xbf16>, vector<32x32xbf16>, vector<32x32xf32> -> vector<32x32xf32>
    %286 = arith.addf %237, %243 : vector<32x32xf32>
    %287 = arith.addf %249, %255 : vector<32x32xf32>
    %288 = arith.addf %261, %267 : vector<32x32xf32>
    %289 = arith.addf %273, %279 : vector<32x32xf32>
    %290 = arith.addf %286, %287 : vector<32x32xf32>
    %291 = arith.addf %288, %289 : vector<32x32xf32>
    %292 = arith.addf %290, %291 : vector<32x32xf32>
    %293 = arith.addf %292, %285 : vector<32x32xf32>
    %c2_260 = arith.constant 2 : index
    %c0_261 = arith.constant 0 : index
    %c0_262 = arith.constant 0 : index
    %294 = vector.load %arg3[%c2_260, %c0_261, %c0_262] : memref<8x1x64xf32, #tpu.memory_space<vmem>>, vector<1x1x32xf32>
    %295 = vector.shape_cast %294 : vector<1x1x32xf32> to vector<1x32xf32>
    %296 = vector.broadcast %295 : vector<1x32xf32> to vector<32x32xf32>
    %297 = arith.addf %293, %296 : vector<32x32xf32>
    %298 = vector.shape_cast %297 : vector<32x32xf32> to vector<2x16x32xf32>
    %cst_263 = arith.constant dense<0.000000e+00> : vector<2x32xf32>
    %299 = vector.multi_reduction <add>, %298, %cst_263 [1] : vector<2x16x32xf32> to vector<2x32xf32>
    %300 = vector.shape_cast %299 : vector<2x32xf32> to vector<2x1x32xf32>
    %301 = arith.mulf %298, %298 : vector<2x16x32xf32>
    %cst_264 = arith.constant dense<0.000000e+00> : vector<2x32xf32>
    %302 = vector.multi_reduction <add>, %301, %cst_264 [1] : vector<2x16x32xf32> to vector<2x32xf32>
    %303 = vector.shape_cast %302 : vector<2x32xf32> to vector<2x1x32xf32>
    %cst_265 = arith.constant 6.250000e-02 : f32
    %304 = vector.broadcast %cst_265 : f32 to vector<2x1x32xf32>
    %305 = arith.mulf %300, %304 : vector<2x1x32xf32>
    %cst_266 = arith.constant 6.250000e-02 : f32
    %306 = vector.broadcast %cst_266 : f32 to vector<2x1x32xf32>
    %307 = arith.mulf %303, %306 : vector<2x1x32xf32>
    %308 = arith.mulf %305, %305 : vector<2x1x32xf32>
    %309 = arith.subf %307, %308 : vector<2x1x32xf32>
    %310 = vector.broadcast %305 : vector<2x1x32xf32> to vector<2x16x32xf32>
    %311 = arith.subf %298, %310 : vector<2x16x32xf32>
    %cst_267 = arith.constant 9.99999974E-6 : f32
    %312 = vector.broadcast %cst_267 : f32 to vector<2x1x32xf32>
    %313 = arith.addf %309, %312 : vector<2x1x32xf32>
    %314 = math.rsqrt %313 : vector<2x1x32xf32>
    %315 = vector.broadcast %314 : vector<2x1x32xf32> to vector<2x16x32xf32>
    %316 = arith.mulf %311, %315 : vector<2x16x32xf32>
    %cst_268 = arith.constant 0.000000e+00 : f32
    %317 = vector.broadcast %cst_268 : f32 to vector<2x16x32xf32>
    %318 = arith.maximumf %316, %317 : vector<2x16x32xf32>
    %c0_269 = arith.constant 0 : index
    %c4_270 = arith.constant 4 : index
    %c0_271 = arith.constant 0 : index
    %319 = vector.load %arg10[%c0_269, %c4_270, %c0_271] : memref<2x24x32xf32, #tpu.memory_space<vmem>>, vector<2x16x32xf32>
    tpu.vector_store %arg10[%c0_269, %c4_270, %c0_271], %318 {strides = array<i32>} : memref<2x24x32xf32, #tpu.memory_space<vmem>>, vector<2x16x32xf32>,
    %c0_272 = arith.constant 0 : index
    %c0_273 = arith.constant 0 : index
    %c0_274 = arith.constant 0 : index
    %320 = vector.load %arg10[%c0_272, %c0_273, %c0_274] : memref<2x24x32xf32, #tpu.memory_space<vmem>>, vector<2x16x32xf32>
    %321 = vector.shape_cast %320 : vector<2x16x32xf32> to vector<32x32xf32>
    %322 = arith.truncf %321 : vector<32x32xf32> to vector<32x32xbf16>
    %c27 = arith.constant 27 : index
    %c0_275 = arith.constant 0 : index
    %c0_276 = arith.constant 0 : index
    %323 = vector.load %arg2[%c27, %c0_275, %c0_276] : memref<72x64x64xbf16, #tpu.memory_space<vmem>>, vector<1x32x32xbf16>
    %324 = vector.shape_cast %323 : vector<1x32x32xbf16> to vector<32x32xbf16>
    %cst_277 = arith.constant dense<0.000000e+00> : vector<32x32xf32>
    %325 = tpu.matmul %322, %324, %cst_277 {dimension_numbers = #tpu.dot_dimension_numbers<[1], [0], [0], [1], [0, 0, 1, 1], [], []>} : vector<32x32xbf16>, vector<32x32xbf16>, vector<32x32xf32> -> vector<32x32xf32>
    %c0_278 = arith.constant 0 : index
    %c1_279 = arith.constant 1 : index
    %c0_280 = arith.constant 0 : index
    %326 = vector.load %arg10[%c0_278, %c1_279, %c0_280] : memref<2x24x32xf32, #tpu.memory_space<vmem>>, vector<2x16x32xf32>
    %327 = vector.shape_cast %326 : vector<2x16x32xf32> to vector<32x32xf32>
    %328 = arith.truncf %327 : vector<32x32xf32> to vector<32x32xbf16>
    %c28 = arith.constant 28 : index
    %c0_281 = arith.constant 0 : index
    %c0_282 = arith.constant 0 : index
    %329 = vector.load %arg2[%c28, %c0_281, %c0_282] : memref<72x64x64xbf16, #tpu.memory_space<vmem>>, vector<1x32x32xbf16>
    %330 = vector.shape_cast %329 : vector<1x32x32xbf16> to vector<32x32xbf16>
    %cst_283 = arith.constant dense<0.000000e+00> : vector<32x32xf32>
    %331 = tpu.matmul %328, %330, %cst_283 {dimension_numbers = #tpu.dot_dimension_numbers<[1], [0], [0], [1], [0, 0, 1, 1], [], []>} : vector<32x32xbf16>, vector<32x32xbf16>, vector<32x32xf32> -> vector<32x32xf32>
    %c0_284 = arith.constant 0 : index
    %c2_285 = arith.constant 2 : index
    %c0_286 = arith.constant 0 : index
    %332 = vector.load %arg10[%c0_284, %c2_285, %c0_286] : memref<2x24x32xf32, #tpu.memory_space<vmem>>, vector<2x16x32xf32>
    %333 = vector.shape_cast %332 : vector<2x16x32xf32> to vector<32x32xf32>
    %334 = arith.truncf %333 : vector<32x32xf32> to vector<32x32xbf16>
    %c29 = arith.constant 29 : index
    %c0_287 = arith.constant 0 : index
    %c0_288 = arith.constant 0 : index
    %335 = vector.load %arg2[%c29, %c0_287, %c0_288] : memref<72x64x64xbf16, #tpu.memory_space<vmem>>, vector<1x32x32xbf16>
    %336 = vector.shape_cast %335 : vector<1x32x32xbf16> to vector<32x32xbf16>
    %cst_289 = arith.constant dense<0.000000e+00> : vector<32x32xf32>
    %337 = tpu.matmul %334, %336, %cst_289 {dimension_numbers = #tpu.dot_dimension_numbers<[1], [0], [0], [1], [0, 0, 1, 1], [], []>} : vector<32x32xbf16>, vector<32x32xbf16>, vector<32x32xf32> -> vector<32x32xf32>
    %c0_290 = arith.constant 0 : index
    %c3_291 = arith.constant 3 : index
    %c0_292 = arith.constant 0 : index
    %338 = vector.load %arg10[%c0_290, %c3_291, %c0_292] : memref<2x24x32xf32, #tpu.memory_space<vmem>>, vector<2x16x32xf32>
    %339 = vector.shape_cast %338 : vector<2x16x32xf32> to vector<32x32xf32>
    %340 = arith.truncf %339 : vector<32x32xf32> to vector<32x32xbf16>
    %c30 = arith.constant 30 : index
    %c0_293 = arith.constant 0 : index
    %c0_294 = arith.constant 0 : index
    %341 = vector.load %arg2[%c30, %c0_293, %c0_294] : memref<72x64x64xbf16, #tpu.memory_space<vmem>>, vector<1x32x32xbf16>
    %342 = vector.shape_cast %341 : vector<1x32x32xbf16> to vector<32x32xbf16>
    %cst_295 = arith.constant dense<0.000000e+00> : vector<32x32xf32>
    %343 = tpu.matmul %340, %342, %cst_295 {dimension_numbers = #tpu.dot_dimension_numbers<[1], [0], [0], [1], [0, 0, 1, 1], [], []>} : vector<32x32xbf16>, vector<32x32xbf16>, vector<32x32xf32> -> vector<32x32xf32>
    %c0_296 = arith.constant 0 : index
    %c4_297 = arith.constant 4 : index
    %c0_298 = arith.constant 0 : index
    %344 = vector.load %arg10[%c0_296, %c4_297, %c0_298] : memref<2x24x32xf32, #tpu.memory_space<vmem>>, vector<2x16x32xf32>
    %345 = vector.shape_cast %344 : vector<2x16x32xf32> to vector<32x32xf32>
    %346 = arith.truncf %345 : vector<32x32xf32> to vector<32x32xbf16>
    %c31 = arith.constant 31 : index
    %c0_299 = arith.constant 0 : index
    %c0_300 = arith.constant 0 : index
    %347 = vector.load %arg2[%c31, %c0_299, %c0_300] : memref<72x64x64xbf16, #tpu.memory_space<vmem>>, vector<1x32x32xbf16>
    %348 = vector.shape_cast %347 : vector<1x32x32xbf16> to vector<32x32xbf16>
    %cst_301 = arith.constant dense<0.000000e+00> : vector<32x32xf32>
    %349 = tpu.matmul %346, %348, %cst_301 {dimension_numbers = #tpu.dot_dimension_numbers<[1], [0], [0], [1], [0, 0, 1, 1], [], []>} : vector<32x32xbf16>, vector<32x32xbf16>, vector<32x32xf32> -> vector<32x32xf32>
    %c0_302 = arith.constant 0 : index
    %c5_303 = arith.constant 5 : index
    %c0_304 = arith.constant 0 : index
    %350 = vector.load %arg10[%c0_302, %c5_303, %c0_304] : memref<2x24x32xf32, #tpu.memory_space<vmem>>, vector<2x16x32xf32>
    %351 = vector.shape_cast %350 : vector<2x16x32xf32> to vector<32x32xf32>
    %352 = arith.truncf %351 : vector<32x32xf32> to vector<32x32xbf16>
    %c32 = arith.constant 32 : index
    %c0_305 = arith.constant 0 : index
    %c0_306 = arith.constant 0 : index
    %353 = vector.load %arg2[%c32, %c0_305, %c0_306] : memref<72x64x64xbf16, #tpu.memory_space<vmem>>, vector<1x32x32xbf16>
    %354 = vector.shape_cast %353 : vector<1x32x32xbf16> to vector<32x32xbf16>
    %cst_307 = arith.constant dense<0.000000e+00> : vector<32x32xf32>
    %355 = tpu.matmul %352, %354, %cst_307 {dimension_numbers = #tpu.dot_dimension_numbers<[1], [0], [0], [1], [0, 0, 1, 1], [], []>} : vector<32x32xbf16>, vector<32x32xbf16>, vector<32x32xf32> -> vector<32x32xf32>
    %c0_308 = arith.constant 0 : index
    %c6_309 = arith.constant 6 : index
    %c0_310 = arith.constant 0 : index
    %356 = vector.load %arg10[%c0_308, %c6_309, %c0_310] : memref<2x24x32xf32, #tpu.memory_space<vmem>>, vector<2x16x32xf32>
    %357 = vector.shape_cast %356 : vector<2x16x32xf32> to vector<32x32xf32>
    %358 = arith.truncf %357 : vector<32x32xf32> to vector<32x32xbf16>
    %c33 = arith.constant 33 : index
    %c0_311 = arith.constant 0 : index
    %c0_312 = arith.constant 0 : index
    %359 = vector.load %arg2[%c33, %c0_311, %c0_312] : memref<72x64x64xbf16, #tpu.memory_space<vmem>>, vector<1x32x32xbf16>
    %360 = vector.shape_cast %359 : vector<1x32x32xbf16> to vector<32x32xbf16>
    %cst_313 = arith.constant dense<0.000000e+00> : vector<32x32xf32>
    %361 = tpu.matmul %358, %360, %cst_313 {dimension_numbers = #tpu.dot_dimension_numbers<[1], [0], [0], [1], [0, 0, 1, 1], [], []>} : vector<32x32xbf16>, vector<32x32xbf16>, vector<32x32xf32> -> vector<32x32xf32>
    %c0_314 = arith.constant 0 : index
    %c7_315 = arith.constant 7 : index
    %c0_316 = arith.constant 0 : index
    %362 = vector.load %arg10[%c0_314, %c7_315, %c0_316] : memref<2x24x32xf32, #tpu.memory_space<vmem>>, vector<2x16x32xf32>
    %363 = vector.shape_cast %362 : vector<2x16x32xf32> to vector<32x32xf32>
    %364 = arith.truncf %363 : vector<32x32xf32> to vector<32x32xbf16>
    %c34 = arith.constant 34 : index
    %c0_317 = arith.constant 0 : index
    %c0_318 = arith.constant 0 : index
    %365 = vector.load %arg2[%c34, %c0_317, %c0_318] : memref<72x64x64xbf16, #tpu.memory_space<vmem>>, vector<1x32x32xbf16>
    %366 = vector.shape_cast %365 : vector<1x32x32xbf16> to vector<32x32xbf16>
    %cst_319 = arith.constant dense<0.000000e+00> : vector<32x32xf32>
    %367 = tpu.matmul %364, %366, %cst_319 {dimension_numbers = #tpu.dot_dimension_numbers<[1], [0], [0], [1], [0, 0, 1, 1], [], []>} : vector<32x32xbf16>, vector<32x32xbf16>, vector<32x32xf32> -> vector<32x32xf32>
    %c0_320 = arith.constant 0 : index
    %c8_321 = arith.constant 8 : index
    %c0_322 = arith.constant 0 : index
    %368 = vector.load %arg10[%c0_320, %c8_321, %c0_322] : memref<2x24x32xf32, #tpu.memory_space<vmem>>, vector<2x16x32xf32>
    %369 = vector.shape_cast %368 : vector<2x16x32xf32> to vector<32x32xf32>
    %370 = arith.truncf %369 : vector<32x32xf32> to vector<32x32xbf16>
    %c35 = arith.constant 35 : index
    %c0_323 = arith.constant 0 : index
    %c0_324 = arith.constant 0 : index
    %371 = vector.load %arg2[%c35, %c0_323, %c0_324] : memref<72x64x64xbf16, #tpu.memory_space<vmem>>, vector<1x32x32xbf16>
    %372 = vector.shape_cast %371 : vector<1x32x32xbf16> to vector<32x32xbf16>
    %cst_325 = arith.constant dense<0.000000e+00> : vector<32x32xf32>
    %373 = tpu.matmul %370, %372, %cst_325 {dimension_numbers = #tpu.dot_dimension_numbers<[1], [0], [0], [1], [0, 0, 1, 1], [], []>} : vector<32x32xbf16>, vector<32x32xbf16>, vector<32x32xf32> -> vector<32x32xf32>
    %374 = arith.addf %325, %331 : vector<32x32xf32>
    %375 = arith.addf %337, %343 : vector<32x32xf32>
    %376 = arith.addf %349, %355 : vector<32x32xf32>
    %377 = arith.addf %361, %367 : vector<32x32xf32>
    %378 = arith.addf %374, %375 : vector<32x32xf32>
    %379 = arith.addf %376, %377 : vector<32x32xf32>
    %380 = arith.addf %378, %379 : vector<32x32xf32>
    %381 = arith.addf %380, %373 : vector<32x32xf32>
    %c3_326 = arith.constant 3 : index
    %c0_327 = arith.constant 0 : index
    %c0_328 = arith.constant 0 : index
    %382 = vector.load %arg3[%c3_326, %c0_327, %c0_328] : memref<8x1x64xf32, #tpu.memory_space<vmem>>, vector<1x1x32xf32>
    %383 = vector.shape_cast %382 : vector<1x1x32xf32> to vector<1x32xf32>
    %384 = vector.broadcast %383 : vector<1x32xf32> to vector<32x32xf32>
    %385 = arith.addf %381, %384 : vector<32x32xf32>
    %386 = vector.shape_cast %385 : vector<32x32xf32> to vector<2x16x32xf32>
    %cst_329 = arith.constant dense<0.000000e+00> : vector<2x32xf32>
    %387 = vector.multi_reduction <add>, %386, %cst_329 [1] : vector<2x16x32xf32> to vector<2x32xf32>
    %388 = vector.shape_cast %387 : vector<2x32xf32> to vector<2x1x32xf32>
    %389 = arith.mulf %386, %386 : vector<2x16x32xf32>
    %cst_330 = arith.constant dense<0.000000e+00> : vector<2x32xf32>
    %390 = vector.multi_reduction <add>, %389, %cst_330 [1] : vector<2x16x32xf32> to vector<2x32xf32>
    %391 = vector.shape_cast %390 : vector<2x32xf32> to vector<2x1x32xf32>
    %cst_331 = arith.constant 6.250000e-02 : f32
    %392 = vector.broadcast %cst_331 : f32 to vector<2x1x32xf32>
    %393 = arith.mulf %388, %392 : vector<2x1x32xf32>
    %cst_332 = arith.constant 6.250000e-02 : f32
    %394 = vector.broadcast %cst_332 : f32 to vector<2x1x32xf32>
    %395 = arith.mulf %391, %394 : vector<2x1x32xf32>
    %396 = arith.mulf %393, %393 : vector<2x1x32xf32>
    %397 = arith.subf %395, %396 : vector<2x1x32xf32>
    %398 = vector.broadcast %393 : vector<2x1x32xf32> to vector<2x16x32xf32>
    %399 = arith.subf %386, %398 : vector<2x16x32xf32>
    %cst_333 = arith.constant 9.99999974E-6 : f32
    %400 = vector.broadcast %cst_333 : f32 to vector<2x1x32xf32>
    %401 = arith.addf %397, %400 : vector<2x1x32xf32>
    %402 = math.rsqrt %401 : vector<2x1x32xf32>
    %403 = vector.broadcast %402 : vector<2x1x32xf32> to vector<2x16x32xf32>
    %404 = arith.mulf %399, %403 : vector<2x16x32xf32>
    %405 = arith.addf %231, %404 : vector<2x16x32xf32>
    %cst_334 = arith.constant 0.000000e+00 : f32
    %406 = vector.broadcast %cst_334 : f32 to vector<2x16x32xf32>
    %407 = arith.maximumf %405, %406 : vector<2x16x32xf32>
    %c0_335 = arith.constant 0 : index
    %c4_336 = arith.constant 4 : index
    %c0_337 = arith.constant 0 : index
    %408 = vector.load %arg10[%c0_335, %c4_336, %c0_337] : memref<2x24x32xf32, #tpu.memory_space<vmem>>, vector<2x16x32xf32>
    tpu.vector_store %arg10[%c0_335, %c4_336, %c0_337], %407 {strides = array<i32>} : memref<2x24x32xf32, #tpu.memory_space<vmem>>, vector<2x16x32xf32>,
    %c0_338 = arith.constant 0 : index
    %c3_339 = arith.constant 3 : index
    %c0_340 = arith.constant 0 : index
    %409 = vector.load %arg10[%c0_338, %c3_339, %c0_340] : memref<2x24x32xf32, #tpu.memory_space<vmem>>, vector<2x16x32xf32>
    %410 = vector.shape_cast %409 : vector<2x16x32xf32> to vector<32x32xf32>
    %411 = arith.truncf %410 : vector<32x32xf32> to vector<32x32xbf16>
    %c0_341 = arith.constant 0 : index
    %c4_342 = arith.constant 4 : index
    %c0_343 = arith.constant 0 : index
    %412 = vector.load %arg10[%c0_341, %c4_342, %c0_343] : memref<2x24x32xf32, #tpu.memory_space<vmem>>, vector<2x16x32xf32>
    %413 = vector.shape_cast %412 : vector<2x16x32xf32> to vector<32x32xf32>
    %414 = arith.truncf %413 : vector<32x32xf32> to vector<32x32xbf16>
    %c0_344 = arith.constant 0 : index
    %c5_345 = arith.constant 5 : index
    %c0_346 = arith.constant 0 : index
    %415 = vector.load %arg10[%c0_344, %c5_345, %c0_346] : memref<2x24x32xf32, #tpu.memory_space<vmem>>, vector<2x16x32xf32>
    %416 = vector.shape_cast %415 : vector<2x16x32xf32> to vector<32x32xf32>
    %417 = arith.truncf %416 : vector<32x32xf32> to vector<32x32xbf16>
    %c1_347 = arith.constant 1 : index
    %c0_348 = arith.constant 0 : index
    %c0_349 = arith.constant 0 : index
    %418 = vector.load %arg5[%c1_347, %c0_348, %c0_349] : memref<3x1x64xf32, #tpu.memory_space<vmem>>, vector<1x1x16xf32>
    %419 = vector.shape_cast %418 : vector<1x1x16xf32> to vector<1x16xf32>
    %c5_350 = arith.constant 5 : index
    %c0_351 = arith.constant 0 : index
    %c0_352 = arith.constant 0 : index
    %420 = vector.load %arg4[%c5_350, %c0_351, %c0_352] : memref<12x64x64xbf16, #tpu.memory_space<vmem>>, vector<1x32x16xbf16>
    %421 = vector.shape_cast %420 : vector<1x32x16xbf16> to vector<32x16xbf16>
    %cst_353 = arith.constant dense<0.000000e+00> : vector<32x16xf32>
    %422 = tpu.matmul %414, %421, %cst_353 {dimension_numbers = #tpu.dot_dimension_numbers<[1], [0], [0], [1], [0, 0, 1, 1], [], []>} : vector<32x32xbf16>, vector<32x16xbf16>, vector<32x16xf32> -> vector<32x16xf32>
    %c7_354 = arith.constant 7 : index
    %c0_355 = arith.constant 0 : index
    %c0_356 = arith.constant 0 : index
    %423 = vector.load %arg4[%c7_354, %c0_355, %c0_356] : memref<12x64x64xbf16, #tpu.memory_space<vmem>>, vector<1x32x16xbf16>
    %424 = vector.shape_cast %423 : vector<1x32x16xbf16> to vector<32x16xbf16>
    %cst_357 = arith.constant dense<0.000000e+00> : vector<32x16xf32>
    %425 = tpu.matmul %411, %424, %cst_357 {dimension_numbers = #tpu.dot_dimension_numbers<[1], [0], [0], [1], [0, 0, 1, 1], [], []>} : vector<32x32xbf16>, vector<32x16xbf16>, vector<32x16xf32> -> vector<32x16xf32>
    %426 = arith.addf %422, %425 : vector<32x16xf32>
    %427 = vector.broadcast %419 : vector<1x16xf32> to vector<32x16xf32>
    %428 = arith.addf %426, %427 : vector<32x16xf32>
    %c4_358 = arith.constant 4 : index
    %c0_359 = arith.constant 0 : index
    %c0_360 = arith.constant 0 : index
    %429 = vector.load %arg4[%c4_358, %c0_359, %c0_360] : memref<12x64x64xbf16, #tpu.memory_space<vmem>>, vector<1x32x16xbf16>
    %430 = vector.shape_cast %429 : vector<1x32x16xbf16> to vector<32x16xbf16>
    %cst_361 = arith.constant dense<0.000000e+00> : vector<32x16xf32>
    %431 = tpu.matmul %417, %430, %cst_361 {dimension_numbers = #tpu.dot_dimension_numbers<[1], [0], [0], [1], [0, 0, 1, 1], [], []>} : vector<32x32xbf16>, vector<32x16xbf16>, vector<32x16xf32> -> vector<32x16xf32>
    %c6_362 = arith.constant 6 : index
    %c0_363 = arith.constant 0 : index
    %c0_364 = arith.constant 0 : index
    %432 = vector.load %arg4[%c6_362, %c0_363, %c0_364] : memref<12x64x64xbf16, #tpu.memory_space<vmem>>, vector<1x32x16xbf16>
    %433 = vector.shape_cast %432 : vector<1x32x16xbf16> to vector<32x16xbf16>
    %cst_365 = arith.constant dense<0.000000e+00> : vector<32x16xf32>
    %434 = tpu.matmul %414, %433, %cst_365 {dimension_numbers = #tpu.dot_dimension_numbers<[1], [0], [0], [1], [0, 0, 1, 1], [], []>} : vector<32x32xbf16>, vector<32x16xbf16>, vector<32x16xf32> -> vector<32x16xf32>
    %435 = arith.addf %431, %434 : vector<32x16xf32>
    %436 = vector.broadcast %419 : vector<1x16xf32> to vector<32x16xf32>
    %437 = arith.addf %435, %436 : vector<32x16xf32>
    %438 = vector.shape_cast %428 : vector<32x16xf32> to vector<2x16x16xf32>
    %c0_366 = arith.constant 0 : index
    %c4_367 = arith.constant 4 : index
    %c0_368 = arith.constant 0 : index
    %439 = tpu.strided_load %arg11[%c0_366, %c4_367, %c0_368] {strides = array<i32: 1, 2, 1>} : memref<2x40x16xf32, #tpu.memory_space<vmem>>, vector<2x16x16xf32>
    tpu.strided_store %arg11[%c0_366, %c4_367, %c0_368], %438 {strides = array<i32: 1, 2, 1>} : memref<2x40x16xf32, #tpu.memory_space<vmem>>, vector<2x16x16xf32>
    %440 = vector.shape_cast %437 : vector<32x16xf32> to vector<2x16x16xf32>
    %c0_369 = arith.constant 0 : index
    %c5_370 = arith.constant 5 : index
    %c0_371 = arith.constant 0 : index
    %441 = tpu.strided_load %arg11[%c0_369, %c5_370, %c0_371] {strides = array<i32: 1, 2, 1>} : memref<2x40x16xf32, #tpu.memory_space<vmem>>, vector<2x16x16xf32>
    tpu.strided_store %arg11[%c0_369, %c5_370, %c0_371], %440 {strides = array<i32: 1, 2, 1>} : memref<2x40x16xf32, #tpu.memory_space<vmem>>, vector<2x16x16xf32>
    %c0_372 = arith.constant 0 : index
    %c4_373 = arith.constant 4 : index
    %c0_374 = arith.constant 0 : index
    %442 = vector.load %arg11[%c0_372, %c4_373, %c0_374] : memref<2x40x16xf32, #tpu.memory_space<vmem>>, vector<2x32x16xf32>
    %c0_375 = arith.constant 0 : index
    %c0_376 = arith.constant 0 : index
    %c0_377 = arith.constant 0 : index
    %443 = vector.load %arg11[%c0_375, %c0_376, %c0_377] : memref<2x40x16xf32, #tpu.memory_space<vmem>>, vector<2x32x16xf32>
    %444 = vector.shape_cast %443 : vector<2x32x16xf32> to vector<64x16xf32>
    %445 = arith.truncf %444 : vector<64x16xf32> to vector<64x16xbf16>
    %c36_378 = arith.constant 36 : index
    %c0_379 = arith.constant 0 : index
    %c0_380 = arith.constant 0 : index
    %446 = vector.load %arg2[%c36_378, %c0_379, %c0_380] : memref<72x64x64xbf16, #tpu.memory_space<vmem>>, vector<1x16x16xbf16>
    %447 = vector.shape_cast %446 : vector<1x16x16xbf16> to vector<16x16xbf16>
    %cst_381 = arith.constant dense<0.000000e+00> : vector<64x16xf32>
    %448 = tpu.matmul %445, %447, %cst_381 {dimension_numbers = #tpu.dot_dimension_numbers<[1], [0], [0], [1], [0, 0, 1, 1], [], []>} : vector<64x16xbf16>, vector<16x16xbf16>, vector<64x16xf32> -> vector<64x16xf32>
    %c0_382 = arith.constant 0 : index
    %c1_383 = arith.constant 1 : index
    %c0_384 = arith.constant 0 : index
    %449 = vector.load %arg11[%c0_382, %c1_383, %c0_384] : memref<2x40x16xf32, #tpu.memory_space<vmem>>, vector<2x32x16xf32>
    %450 = vector.shape_cast %449 : vector<2x32x16xf32> to vector<64x16xf32>
    %451 = arith.truncf %450 : vector<64x16xf32> to vector<64x16xbf16>
    %c37 = arith.constant 37 : index
    %c0_385 = arith.constant 0 : index
    %c0_386 = arith.constant 0 : index
    %452 = vector.load %arg2[%c37, %c0_385, %c0_386] : memref<72x64x64xbf16, #tpu.memory_space<vmem>>, vector<1x16x16xbf16>
    %453 = vector.shape_cast %452 : vector<1x16x16xbf16> to vector<16x16xbf16>
    %cst_387 = arith.constant dense<0.000000e+00> : vector<64x16xf32>
    %454 = tpu.matmul %451, %453, %cst_387 {dimension_numbers = #tpu.dot_dimension_numbers<[1], [0], [0], [1], [0, 0, 1, 1], [], []>} : vector<64x16xbf16>, vector<16x16xbf16>, vector<64x16xf32> -> vector<64x16xf32>
    %c0_388 = arith.constant 0 : index
    %c2_389 = arith.constant 2 : index
    %c0_390 = arith.constant 0 : index
    %455 = vector.load %arg11[%c0_388, %c2_389, %c0_390] : memref<2x40x16xf32, #tpu.memory_space<vmem>>, vector<2x32x16xf32>
    %456 = vector.shape_cast %455 : vector<2x32x16xf32> to vector<64x16xf32>
    %457 = arith.truncf %456 : vector<64x16xf32> to vector<64x16xbf16>
    %c38 = arith.constant 38 : index
    %c0_391 = arith.constant 0 : index
    %c0_392 = arith.constant 0 : index
    %458 = vector.load %arg2[%c38, %c0_391, %c0_392] : memref<72x64x64xbf16, #tpu.memory_space<vmem>>, vector<1x16x16xbf16>
    %459 = vector.shape_cast %458 : vector<1x16x16xbf16> to vector<16x16xbf16>
    %cst_393 = arith.constant dense<0.000000e+00> : vector<64x16xf32>
    %460 = tpu.matmul %457, %459, %cst_393 {dimension_numbers = #tpu.dot_dimension_numbers<[1], [0], [0], [1], [0, 0, 1, 1], [], []>} : vector<64x16xbf16>, vector<16x16xbf16>, vector<64x16xf32> -> vector<64x16xf32>
    %c0_394 = arith.constant 0 : index
    %c3_395 = arith.constant 3 : index
    %c0_396 = arith.constant 0 : index
    %461 = vector.load %arg11[%c0_394, %c3_395, %c0_396] : memref<2x40x16xf32, #tpu.memory_space<vmem>>, vector<2x32x16xf32>
    %462 = vector.shape_cast %461 : vector<2x32x16xf32> to vector<64x16xf32>
    %463 = arith.truncf %462 : vector<64x16xf32> to vector<64x16xbf16>
    %c39 = arith.constant 39 : index
    %c0_397 = arith.constant 0 : index
    %c0_398 = arith.constant 0 : index
    %464 = vector.load %arg2[%c39, %c0_397, %c0_398] : memref<72x64x64xbf16, #tpu.memory_space<vmem>>, vector<1x16x16xbf16>
    %465 = vector.shape_cast %464 : vector<1x16x16xbf16> to vector<16x16xbf16>
    %cst_399 = arith.constant dense<0.000000e+00> : vector<64x16xf32>
    %466 = tpu.matmul %463, %465, %cst_399 {dimension_numbers = #tpu.dot_dimension_numbers<[1], [0], [0], [1], [0, 0, 1, 1], [], []>} : vector<64x16xbf16>, vector<16x16xbf16>, vector<64x16xf32> -> vector<64x16xf32>
    %c0_400 = arith.constant 0 : index
    %c4_401 = arith.constant 4 : index
    %c0_402 = arith.constant 0 : index
    %467 = vector.load %arg11[%c0_400, %c4_401, %c0_402] : memref<2x40x16xf32, #tpu.memory_space<vmem>>, vector<2x32x16xf32>
    %468 = vector.shape_cast %467 : vector<2x32x16xf32> to vector<64x16xf32>
    %469 = arith.truncf %468 : vector<64x16xf32> to vector<64x16xbf16>
    %c40 = arith.constant 40 : index
    %c0_403 = arith.constant 0 : index
    %c0_404 = arith.constant 0 : index
    %470 = vector.load %arg2[%c40, %c0_403, %c0_404] : memref<72x64x64xbf16, #tpu.memory_space<vmem>>, vector<1x16x16xbf16>
    %471 = vector.shape_cast %470 : vector<1x16x16xbf16> to vector<16x16xbf16>
    %cst_405 = arith.constant dense<0.000000e+00> : vector<64x16xf32>
    %472 = tpu.matmul %469, %471, %cst_405 {dimension_numbers = #tpu.dot_dimension_numbers<[1], [0], [0], [1], [0, 0, 1, 1], [], []>} : vector<64x16xbf16>, vector<16x16xbf16>, vector<64x16xf32> -> vector<64x16xf32>
    %c0_406 = arith.constant 0 : index
    %c5_407 = arith.constant 5 : index
    %c0_408 = arith.constant 0 : index
    %473 = vector.load %arg11[%c0_406, %c5_407, %c0_408] : memref<2x40x16xf32, #tpu.memory_space<vmem>>, vector<2x32x16xf32>
    %474 = vector.shape_cast %473 : vector<2x32x16xf32> to vector<64x16xf32>
    %475 = arith.truncf %474 : vector<64x16xf32> to vector<64x16xbf16>
    %c41 = arith.constant 41 : index
    %c0_409 = arith.constant 0 : index
    %c0_410 = arith.constant 0 : index
    %476 = vector.load %arg2[%c41, %c0_409, %c0_410] : memref<72x64x64xbf16, #tpu.memory_space<vmem>>, vector<1x16x16xbf16>
    %477 = vector.shape_cast %476 : vector<1x16x16xbf16> to vector<16x16xbf16>
    %cst_411 = arith.constant dense<0.000000e+00> : vector<64x16xf32>
    %478 = tpu.matmul %475, %477, %cst_411 {dimension_numbers = #tpu.dot_dimension_numbers<[1], [0], [0], [1], [0, 0, 1, 1], [], []>} : vector<64x16xbf16>, vector<16x16xbf16>, vector<64x16xf32> -> vector<64x16xf32>
    %c0_412 = arith.constant 0 : index
    %c6_413 = arith.constant 6 : index
    %c0_414 = arith.constant 0 : index
    %479 = vector.load %arg11[%c0_412, %c6_413, %c0_414] : memref<2x40x16xf32, #tpu.memory_space<vmem>>, vector<2x32x16xf32>
    %480 = vector.shape_cast %479 : vector<2x32x16xf32> to vector<64x16xf32>
    %481 = arith.truncf %480 : vector<64x16xf32> to vector<64x16xbf16>
    %c42 = arith.constant 42 : index
    %c0_415 = arith.constant 0 : index
    %c0_416 = arith.constant 0 : index
    %482 = vector.load %arg2[%c42, %c0_415, %c0_416] : memref<72x64x64xbf16, #tpu.memory_space<vmem>>, vector<1x16x16xbf16>
    %483 = vector.shape_cast %482 : vector<1x16x16xbf16> to vector<16x16xbf16>
    %cst_417 = arith.constant dense<0.000000e+00> : vector<64x16xf32>
    %484 = tpu.matmul %481, %483, %cst_417 {dimension_numbers = #tpu.dot_dimension_numbers<[1], [0], [0], [1], [0, 0, 1, 1], [], []>} : vector<64x16xbf16>, vector<16x16xbf16>, vector<64x16xf32> -> vector<64x16xf32>
    %c0_418 = arith.constant 0 : index
    %c7_419 = arith.constant 7 : index
    %c0_420 = arith.constant 0 : index
    %485 = vector.load %arg11[%c0_418, %c7_419, %c0_420] : memref<2x40x16xf32, #tpu.memory_space<vmem>>, vector<2x32x16xf32>
    %486 = vector.shape_cast %485 : vector<2x32x16xf32> to vector<64x16xf32>
    %487 = arith.truncf %486 : vector<64x16xf32> to vector<64x16xbf16>
    %c43 = arith.constant 43 : index
    %c0_421 = arith.constant 0 : index
    %c0_422 = arith.constant 0 : index
    %488 = vector.load %arg2[%c43, %c0_421, %c0_422] : memref<72x64x64xbf16, #tpu.memory_space<vmem>>, vector<1x16x16xbf16>
    %489 = vector.shape_cast %488 : vector<1x16x16xbf16> to vector<16x16xbf16>
    %cst_423 = arith.constant dense<0.000000e+00> : vector<64x16xf32>
    %490 = tpu.matmul %487, %489, %cst_423 {dimension_numbers = #tpu.dot_dimension_numbers<[1], [0], [0], [1], [0, 0, 1, 1], [], []>} : vector<64x16xbf16>, vector<16x16xbf16>, vector<64x16xf32> -> vector<64x16xf32>
    %c0_424 = arith.constant 0 : index
    %c8_425 = arith.constant 8 : index
    %c0_426 = arith.constant 0 : index
    %491 = vector.load %arg11[%c0_424, %c8_425, %c0_426] : memref<2x40x16xf32, #tpu.memory_space<vmem>>, vector<2x32x16xf32>
    %492 = vector.shape_cast %491 : vector<2x32x16xf32> to vector<64x16xf32>
    %493 = arith.truncf %492 : vector<64x16xf32> to vector<64x16xbf16>
    %c44 = arith.constant 44 : index
    %c0_427 = arith.constant 0 : index
    %c0_428 = arith.constant 0 : index
    %494 = vector.load %arg2[%c44, %c0_427, %c0_428] : memref<72x64x64xbf16, #tpu.memory_space<vmem>>, vector<1x16x16xbf16>
    %495 = vector.shape_cast %494 : vector<1x16x16xbf16> to vector<16x16xbf16>
    %cst_429 = arith.constant dense<0.000000e+00> : vector<64x16xf32>
    %496 = tpu.matmul %493, %495, %cst_429 {dimension_numbers = #tpu.dot_dimension_numbers<[1], [0], [0], [1], [0, 0, 1, 1], [], []>} : vector<64x16xbf16>, vector<16x16xbf16>, vector<64x16xf32> -> vector<64x16xf32>
    %497 = arith.addf %448, %454 : vector<64x16xf32>
    %498 = arith.addf %460, %466 : vector<64x16xf32>
    %499 = arith.addf %472, %478 : vector<64x16xf32>
    %500 = arith.addf %484, %490 : vector<64x16xf32>
    %501 = arith.addf %497, %498 : vector<64x16xf32>
    %502 = arith.addf %499, %500 : vector<64x16xf32>
    %503 = arith.addf %501, %502 : vector<64x16xf32>
    %504 = arith.addf %503, %496 : vector<64x16xf32>
    %c4_430 = arith.constant 4 : index
    %c0_431 = arith.constant 0 : index
    %c0_432 = arith.constant 0 : index
    %505 = vector.load %arg3[%c4_430, %c0_431, %c0_432] : memref<8x1x64xf32, #tpu.memory_space<vmem>>, vector<1x1x16xf32>
    %506 = vector.shape_cast %505 : vector<1x1x16xf32> to vector<1x16xf32>
    %507 = vector.broadcast %506 : vector<1x16xf32> to vector<64x16xf32>
    %508 = arith.addf %504, %507 : vector<64x16xf32>
    %509 = vector.shape_cast %508 : vector<64x16xf32> to vector<2x32x16xf32>
    %cst_433 = arith.constant dense<0.000000e+00> : vector<2x16xf32>
    %510 = vector.multi_reduction <add>, %509, %cst_433 [1] : vector<2x32x16xf32> to vector<2x16xf32>
    %511 = vector.shape_cast %510 : vector<2x16xf32> to vector<2x1x16xf32>
    %512 = arith.mulf %509, %509 : vector<2x32x16xf32>
    %cst_434 = arith.constant dense<0.000000e+00> : vector<2x16xf32>
    %513 = vector.multi_reduction <add>, %512, %cst_434 [1] : vector<2x32x16xf32> to vector<2x16xf32>
    %514 = vector.shape_cast %513 : vector<2x16xf32> to vector<2x1x16xf32>
    %cst_435 = arith.constant 3.125000e-02 : f32
    %515 = vector.broadcast %cst_435 : f32 to vector<2x1x16xf32>
    %516 = arith.mulf %511, %515 : vector<2x1x16xf32>
    %cst_436 = arith.constant 3.125000e-02 : f32
    %517 = vector.broadcast %cst_436 : f32 to vector<2x1x16xf32>
    %518 = arith.mulf %514, %517 : vector<2x1x16xf32>
    %519 = arith.mulf %516, %516 : vector<2x1x16xf32>
    %520 = arith.subf %518, %519 : vector<2x1x16xf32>
    %521 = vector.broadcast %516 : vector<2x1x16xf32> to vector<2x32x16xf32>
    %522 = arith.subf %509, %521 : vector<2x32x16xf32>
    %cst_437 = arith.constant 9.99999974E-6 : f32
    %523 = vector.broadcast %cst_437 : f32 to vector<2x1x16xf32>
    %524 = arith.addf %520, %523 : vector<2x1x16xf32>
    %525 = math.rsqrt %524 : vector<2x1x16xf32>
    %526 = vector.broadcast %525 : vector<2x1x16xf32> to vector<2x32x16xf32>
    %527 = arith.mulf %522, %526 : vector<2x32x16xf32>
    %cst_438 = arith.constant 0.000000e+00 : f32
    %528 = vector.broadcast %cst_438 : f32 to vector<2x32x16xf32>
    %529 = arith.maximumf %527, %528 : vector<2x32x16xf32>
    %c0_439 = arith.constant 0 : index
    %c4_440 = arith.constant 4 : index
    %c0_441 = arith.constant 0 : index
    %530 = vector.load %arg11[%c0_439, %c4_440, %c0_441] : memref<2x40x16xf32, #tpu.memory_space<vmem>>, vector<2x32x16xf32>
    tpu.vector_store %arg11[%c0_439, %c4_440, %c0_441], %529 {strides = array<i32>} : memref<2x40x16xf32, #tpu.memory_space<vmem>>, vector<2x32x16xf32>,
    %c0_442 = arith.constant 0 : index
    %c0_443 = arith.constant 0 : index
    %c0_444 = arith.constant 0 : index
    %531 = vector.load %arg11[%c0_442, %c0_443, %c0_444] : memref<2x40x16xf32, #tpu.memory_space<vmem>>, vector<2x32x16xf32>
    %532 = vector.shape_cast %531 : vector<2x32x16xf32> to vector<64x16xf32>
    %533 = arith.truncf %532 : vector<64x16xf32> to vector<64x16xbf16>
    %c45 = arith.constant 45 : index
    %c0_445 = arith.constant 0 : index
    %c0_446 = arith.constant 0 : index
    %534 = vector.load %arg2[%c45, %c0_445, %c0_446] : memref<72x64x64xbf16, #tpu.memory_space<vmem>>, vector<1x16x16xbf16>
    %535 = vector.shape_cast %534 : vector<1x16x16xbf16> to vector<16x16xbf16>
    %cst_447 = arith.constant dense<0.000000e+00> : vector<64x16xf32>
    %536 = tpu.matmul %533, %535, %cst_447 {dimension_numbers = #tpu.dot_dimension_numbers<[1], [0], [0], [1], [0, 0, 1, 1], [], []>} : vector<64x16xbf16>, vector<16x16xbf16>, vector<64x16xf32> -> vector<64x16xf32>
    %c0_448 = arith.constant 0 : index
    %c1_449 = arith.constant 1 : index
    %c0_450 = arith.constant 0 : index
    %537 = vector.load %arg11[%c0_448, %c1_449, %c0_450] : memref<2x40x16xf32, #tpu.memory_space<vmem>>, vector<2x32x16xf32>
    %538 = vector.shape_cast %537 : vector<2x32x16xf32> to vector<64x16xf32>
    %539 = arith.truncf %538 : vector<64x16xf32> to vector<64x16xbf16>
    %c46 = arith.constant 46 : index
    %c0_451 = arith.constant 0 : index
    %c0_452 = arith.constant 0 : index
    %540 = vector.load %arg2[%c46, %c0_451, %c0_452] : memref<72x64x64xbf16, #tpu.memory_space<vmem>>, vector<1x16x16xbf16>
    %541 = vector.shape_cast %540 : vector<1x16x16xbf16> to vector<16x16xbf16>
    %cst_453 = arith.constant dense<0.000000e+00> : vector<64x16xf32>
    %542 = tpu.matmul %539, %541, %cst_453 {dimension_numbers = #tpu.dot_dimension_numbers<[1], [0], [0], [1], [0, 0, 1, 1], [], []>} : vector<64x16xbf16>, vector<16x16xbf16>, vector<64x16xf32> -> vector<64x16xf32>
    %c0_454 = arith.constant 0 : index
    %c2_455 = arith.constant 2 : index
    %c0_456 = arith.constant 0 : index
    %543 = vector.load %arg11[%c0_454, %c2_455, %c0_456] : memref<2x40x16xf32, #tpu.memory_space<vmem>>, vector<2x32x16xf32>
    %544 = vector.shape_cast %543 : vector<2x32x16xf32> to vector<64x16xf32>
    %545 = arith.truncf %544 : vector<64x16xf32> to vector<64x16xbf16>
    %c47 = arith.constant 47 : index
    %c0_457 = arith.constant 0 : index
    %c0_458 = arith.constant 0 : index
    %546 = vector.load %arg2[%c47, %c0_457, %c0_458] : memref<72x64x64xbf16, #tpu.memory_space<vmem>>, vector<1x16x16xbf16>
    %547 = vector.shape_cast %546 : vector<1x16x16xbf16> to vector<16x16xbf16>
    %cst_459 = arith.constant dense<0.000000e+00> : vector<64x16xf32>
    %548 = tpu.matmul %545, %547, %cst_459 {dimension_numbers = #tpu.dot_dimension_numbers<[1], [0], [0], [1], [0, 0, 1, 1], [], []>} : vector<64x16xbf16>, vector<16x16xbf16>, vector<64x16xf32> -> vector<64x16xf32>
    %c0_460 = arith.constant 0 : index
    %c3_461 = arith.constant 3 : index
    %c0_462 = arith.constant 0 : index
    %549 = vector.load %arg11[%c0_460, %c3_461, %c0_462] : memref<2x40x16xf32, #tpu.memory_space<vmem>>, vector<2x32x16xf32>
    %550 = vector.shape_cast %549 : vector<2x32x16xf32> to vector<64x16xf32>
    %551 = arith.truncf %550 : vector<64x16xf32> to vector<64x16xbf16>
    %c48 = arith.constant 48 : index
    %c0_463 = arith.constant 0 : index
    %c0_464 = arith.constant 0 : index
    %552 = vector.load %arg2[%c48, %c0_463, %c0_464] : memref<72x64x64xbf16, #tpu.memory_space<vmem>>, vector<1x16x16xbf16>
    %553 = vector.shape_cast %552 : vector<1x16x16xbf16> to vector<16x16xbf16>
    %cst_465 = arith.constant dense<0.000000e+00> : vector<64x16xf32>
    %554 = tpu.matmul %551, %553, %cst_465 {dimension_numbers = #tpu.dot_dimension_numbers<[1], [0], [0], [1], [0, 0, 1, 1], [], []>} : vector<64x16xbf16>, vector<16x16xbf16>, vector<64x16xf32> -> vector<64x16xf32>
    %c0_466 = arith.constant 0 : index
    %c4_467 = arith.constant 4 : index
    %c0_468 = arith.constant 0 : index
    %555 = vector.load %arg11[%c0_466, %c4_467, %c0_468] : memref<2x40x16xf32, #tpu.memory_space<vmem>>, vector<2x32x16xf32>
    %556 = vector.shape_cast %555 : vector<2x32x16xf32> to vector<64x16xf32>
    %557 = arith.truncf %556 : vector<64x16xf32> to vector<64x16xbf16>
    %c49 = arith.constant 49 : index
    %c0_469 = arith.constant 0 : index
    %c0_470 = arith.constant 0 : index
    %558 = vector.load %arg2[%c49, %c0_469, %c0_470] : memref<72x64x64xbf16, #tpu.memory_space<vmem>>, vector<1x16x16xbf16>
    %559 = vector.shape_cast %558 : vector<1x16x16xbf16> to vector<16x16xbf16>
    %cst_471 = arith.constant dense<0.000000e+00> : vector<64x16xf32>
    %560 = tpu.matmul %557, %559, %cst_471 {dimension_numbers = #tpu.dot_dimension_numbers<[1], [0], [0], [1], [0, 0, 1, 1], [], []>} : vector<64x16xbf16>, vector<16x16xbf16>, vector<64x16xf32> -> vector<64x16xf32>
    %c0_472 = arith.constant 0 : index
    %c5_473 = arith.constant 5 : index
    %c0_474 = arith.constant 0 : index
    %561 = vector.load %arg11[%c0_472, %c5_473, %c0_474] : memref<2x40x16xf32, #tpu.memory_space<vmem>>, vector<2x32x16xf32>
    %562 = vector.shape_cast %561 : vector<2x32x16xf32> to vector<64x16xf32>
    %563 = arith.truncf %562 : vector<64x16xf32> to vector<64x16xbf16>
    %c50 = arith.constant 50 : index
    %c0_475 = arith.constant 0 : index
    %c0_476 = arith.constant 0 : index
    %564 = vector.load %arg2[%c50, %c0_475, %c0_476] : memref<72x64x64xbf16, #tpu.memory_space<vmem>>, vector<1x16x16xbf16>
    %565 = vector.shape_cast %564 : vector<1x16x16xbf16> to vector<16x16xbf16>
    %cst_477 = arith.constant dense<0.000000e+00> : vector<64x16xf32>
    %566 = tpu.matmul %563, %565, %cst_477 {dimension_numbers = #tpu.dot_dimension_numbers<[1], [0], [0], [1], [0, 0, 1, 1], [], []>} : vector<64x16xbf16>, vector<16x16xbf16>, vector<64x16xf32> -> vector<64x16xf32>
    %c0_478 = arith.constant 0 : index
    %c6_479 = arith.constant 6 : index
    %c0_480 = arith.constant 0 : index
    %567 = vector.load %arg11[%c0_478, %c6_479, %c0_480] : memref<2x40x16xf32, #tpu.memory_space<vmem>>, vector<2x32x16xf32>
    %568 = vector.shape_cast %567 : vector<2x32x16xf32> to vector<64x16xf32>
    %569 = arith.truncf %568 : vector<64x16xf32> to vector<64x16xbf16>
    %c51 = arith.constant 51 : index
    %c0_481 = arith.constant 0 : index
    %c0_482 = arith.constant 0 : index
    %570 = vector.load %arg2[%c51, %c0_481, %c0_482] : memref<72x64x64xbf16, #tpu.memory_space<vmem>>, vector<1x16x16xbf16>
    %571 = vector.shape_cast %570 : vector<1x16x16xbf16> to vector<16x16xbf16>
    %cst_483 = arith.constant dense<0.000000e+00> : vector<64x16xf32>
    %572 = tpu.matmul %569, %571, %cst_483 {dimension_numbers = #tpu.dot_dimension_numbers<[1], [0], [0], [1], [0, 0, 1, 1], [], []>} : vector<64x16xbf16>, vector<16x16xbf16>, vector<64x16xf32> -> vector<64x16xf32>
    %c0_484 = arith.constant 0 : index
    %c7_485 = arith.constant 7 : index
    %c0_486 = arith.constant 0 : index
    %573 = vector.load %arg11[%c0_484, %c7_485, %c0_486] : memref<2x40x16xf32, #tpu.memory_space<vmem>>, vector<2x32x16xf32>
    %574 = vector.shape_cast %573 : vector<2x32x16xf32> to vector<64x16xf32>
    %575 = arith.truncf %574 : vector<64x16xf32> to vector<64x16xbf16>
    %c52 = arith.constant 52 : index
    %c0_487 = arith.constant 0 : index
    %c0_488 = arith.constant 0 : index
    %576 = vector.load %arg2[%c52, %c0_487, %c0_488] : memref<72x64x64xbf16, #tpu.memory_space<vmem>>, vector<1x16x16xbf16>
    %577 = vector.shape_cast %576 : vector<1x16x16xbf16> to vector<16x16xbf16>
    %cst_489 = arith.constant dense<0.000000e+00> : vector<64x16xf32>
    %578 = tpu.matmul %575, %577, %cst_489 {dimension_numbers = #tpu.dot_dimension_numbers<[1], [0], [0], [1], [0, 0, 1, 1], [], []>} : vector<64x16xbf16>, vector<16x16xbf16>, vector<64x16xf32> -> vector<64x16xf32>
    %c0_490 = arith.constant 0 : index
    %c8_491 = arith.constant 8 : index
    %c0_492 = arith.constant 0 : index
    %579 = vector.load %arg11[%c0_490, %c8_491, %c0_492] : memref<2x40x16xf32, #tpu.memory_space<vmem>>, vector<2x32x16xf32>
    %580 = vector.shape_cast %579 : vector<2x32x16xf32> to vector<64x16xf32>
    %581 = arith.truncf %580 : vector<64x16xf32> to vector<64x16xbf16>
    %c53 = arith.constant 53 : index
    %c0_493 = arith.constant 0 : index
    %c0_494 = arith.constant 0 : index
    %582 = vector.load %arg2[%c53, %c0_493, %c0_494] : memref<72x64x64xbf16, #tpu.memory_space<vmem>>, vector<1x16x16xbf16>
    %583 = vector.shape_cast %582 : vector<1x16x16xbf16> to vector<16x16xbf16>
    %cst_495 = arith.constant dense<0.000000e+00> : vector<64x16xf32>
    %584 = tpu.matmul %581, %583, %cst_495 {dimension_numbers = #tpu.dot_dimension_numbers<[1], [0], [0], [1], [0, 0, 1, 1], [], []>} : vector<64x16xbf16>, vector<16x16xbf16>, vector<64x16xf32> -> vector<64x16xf32>
    %585 = arith.addf %536, %542 : vector<64x16xf32>
    %586 = arith.addf %548, %554 : vector<64x16xf32>
    %587 = arith.addf %560, %566 : vector<64x16xf32>
    %588 = arith.addf %572, %578 : vector<64x16xf32>
    %589 = arith.addf %585, %586 : vector<64x16xf32>
    %590 = arith.addf %587, %588 : vector<64x16xf32>
    %591 = arith.addf %589, %590 : vector<64x16xf32>
    %592 = arith.addf %591, %584 : vector<64x16xf32>
    %c5_496 = arith.constant 5 : index
    %c0_497 = arith.constant 0 : index
    %c0_498 = arith.constant 0 : index
    %593 = vector.load %arg3[%c5_496, %c0_497, %c0_498] : memref<8x1x64xf32, #tpu.memory_space<vmem>>, vector<1x1x16xf32>
    %594 = vector.shape_cast %593 : vector<1x1x16xf32> to vector<1x16xf32>
    %595 = vector.broadcast %594 : vector<1x16xf32> to vector<64x16xf32>
    %596 = arith.addf %592, %595 : vector<64x16xf32>
    %597 = vector.shape_cast %596 : vector<64x16xf32> to vector<2x32x16xf32>
    %cst_499 = arith.constant dense<0.000000e+00> : vector<2x16xf32>
    %598 = vector.multi_reduction <add>, %597, %cst_499 [1] : vector<2x32x16xf32> to vector<2x16xf32>
    %599 = vector.shape_cast %598 : vector<2x16xf32> to vector<2x1x16xf32>
    %600 = arith.mulf %597, %597 : vector<2x32x16xf32>
    %cst_500 = arith.constant dense<0.000000e+00> : vector<2x16xf32>
    %601 = vector.multi_reduction <add>, %600, %cst_500 [1] : vector<2x32x16xf32> to vector<2x16xf32>
    %602 = vector.shape_cast %601 : vector<2x16xf32> to vector<2x1x16xf32>
    %cst_501 = arith.constant 3.125000e-02 : f32
    %603 = vector.broadcast %cst_501 : f32 to vector<2x1x16xf32>
    %604 = arith.mulf %599, %603 : vector<2x1x16xf32>
    %cst_502 = arith.constant 3.125000e-02 : f32
    %605 = vector.broadcast %cst_502 : f32 to vector<2x1x16xf32>
    %606 = arith.mulf %602, %605 : vector<2x1x16xf32>
    %607 = arith.mulf %604, %604 : vector<2x1x16xf32>
    %608 = arith.subf %606, %607 : vector<2x1x16xf32>
    %609 = vector.broadcast %604 : vector<2x1x16xf32> to vector<2x32x16xf32>
    %610 = arith.subf %597, %609 : vector<2x32x16xf32>
    %cst_503 = arith.constant 9.99999974E-6 : f32
    %611 = vector.broadcast %cst_503 : f32 to vector<2x1x16xf32>
    %612 = arith.addf %608, %611 : vector<2x1x16xf32>
    %613 = math.rsqrt %612 : vector<2x1x16xf32>
    %614 = vector.broadcast %613 : vector<2x1x16xf32> to vector<2x32x16xf32>
    %615 = arith.mulf %610, %614 : vector<2x32x16xf32>
    %616 = arith.addf %442, %615 : vector<2x32x16xf32>
    %cst_504 = arith.constant 0.000000e+00 : f32
    %617 = vector.broadcast %cst_504 : f32 to vector<2x32x16xf32>
    %618 = arith.maximumf %616, %617 : vector<2x32x16xf32>
    %c0_505 = arith.constant 0 : index
    %c4_506 = arith.constant 4 : index
    %c0_507 = arith.constant 0 : index
    %619 = vector.load %arg11[%c0_505, %c4_506, %c0_507] : memref<2x40x16xf32, #tpu.memory_space<vmem>>, vector<2x32x16xf32>
    tpu.vector_store %arg11[%c0_505, %c4_506, %c0_507], %618 {strides = array<i32>} : memref<2x40x16xf32, #tpu.memory_space<vmem>>, vector<2x32x16xf32>,
    %c0_508 = arith.constant 0 : index
    %c3_509 = arith.constant 3 : index
    %c0_510 = arith.constant 0 : index
    %620 = vector.load %arg11[%c0_508, %c3_509, %c0_510] : memref<2x40x16xf32, #tpu.memory_space<vmem>>, vector<2x32x16xf32>
    %621 = vector.shape_cast %620 : vector<2x32x16xf32> to vector<64x16xf32>
    %622 = arith.truncf %621 : vector<64x16xf32> to vector<64x16xbf16>
    %c0_511 = arith.constant 0 : index
    %c4_512 = arith.constant 4 : index
    %c0_513 = arith.constant 0 : index
    %623 = vector.load %arg11[%c0_511, %c4_512, %c0_513] : memref<2x40x16xf32, #tpu.memory_space<vmem>>, vector<2x32x16xf32>
    %624 = vector.shape_cast %623 : vector<2x32x16xf32> to vector<64x16xf32>
    %625 = arith.truncf %624 : vector<64x16xf32> to vector<64x16xbf16>
    %c0_514 = arith.constant 0 : index
    %c5_515 = arith.constant 5 : index
    %c0_516 = arith.constant 0 : index
    %626 = vector.load %arg11[%c0_514, %c5_515, %c0_516] : memref<2x40x16xf32, #tpu.memory_space<vmem>>, vector<2x32x16xf32>
    %627 = vector.shape_cast %626 : vector<2x32x16xf32> to vector<64x16xf32>
    %628 = arith.truncf %627 : vector<64x16xf32> to vector<64x16xbf16>
    %c2_517 = arith.constant 2 : index
    %c0_518 = arith.constant 0 : index
    %c0_519 = arith.constant 0 : index
    %629 = vector.load %arg5[%c2_517, %c0_518, %c0_519] : memref<3x1x64xf32, #tpu.memory_space<vmem>>, vector<1x1x8xf32>
    %630 = vector.shape_cast %629 : vector<1x1x8xf32> to vector<1x8xf32>
    %c9_520 = arith.constant 9 : index
    %c0_521 = arith.constant 0 : index
    %c0_522 = arith.constant 0 : index
    %631 = vector.load %arg4[%c9_520, %c0_521, %c0_522] : memref<12x64x64xbf16, #tpu.memory_space<vmem>>, vector<1x16x8xbf16>
    %632 = vector.shape_cast %631 : vector<1x16x8xbf16> to vector<16x8xbf16>
    %cst_523 = arith.constant dense<0.000000e+00> : vector<64x8xf32>
    %633 = tpu.matmul %625, %632, %cst_523 {dimension_numbers = #tpu.dot_dimension_numbers<[1], [0], [0], [1], [0, 0, 1, 1], [], []>} : vector<64x16xbf16>, vector<16x8xbf16>, vector<64x8xf32> -> vector<64x8xf32>
    %c11_524 = arith.constant 11 : index
    %c0_525 = arith.constant 0 : index
    %c0_526 = arith.constant 0 : index
    %634 = vector.load %arg4[%c11_524, %c0_525, %c0_526] : memref<12x64x64xbf16, #tpu.memory_space<vmem>>, vector<1x16x8xbf16>
    %635 = vector.shape_cast %634 : vector<1x16x8xbf16> to vector<16x8xbf16>
    %cst_527 = arith.constant dense<0.000000e+00> : vector<64x8xf32>
    %636 = tpu.matmul %622, %635, %cst_527 {dimension_numbers = #tpu.dot_dimension_numbers<[1], [0], [0], [1], [0, 0, 1, 1], [], []>} : vector<64x16xbf16>, vector<16x8xbf16>, vector<64x8xf32> -> vector<64x8xf32>
    %637 = arith.addf %633, %636 : vector<64x8xf32>
    %638 = vector.broadcast %630 : vector<1x8xf32> to vector<64x8xf32>
    %639 = arith.addf %637, %638 : vector<64x8xf32>
    %c8_528 = arith.constant 8 : index
    %c0_529 = arith.constant 0 : index
    %c0_530 = arith.constant 0 : index
    %640 = vector.load %arg4[%c8_528, %c0_529, %c0_530] : memref<12x64x64xbf16, #tpu.memory_space<vmem>>, vector<1x16x8xbf16>
    %641 = vector.shape_cast %640 : vector<1x16x8xbf16> to vector<16x8xbf16>
    %cst_531 = arith.constant dense<0.000000e+00> : vector<64x8xf32>
    %642 = tpu.matmul %628, %641, %cst_531 {dimension_numbers = #tpu.dot_dimension_numbers<[1], [0], [0], [1], [0, 0, 1, 1], [], []>} : vector<64x16xbf16>, vector<16x8xbf16>, vector<64x8xf32> -> vector<64x8xf32>
    %c10_532 = arith.constant 10 : index
    %c0_533 = arith.constant 0 : index
    %c0_534 = arith.constant 0 : index
    %643 = vector.load %arg4[%c10_532, %c0_533, %c0_534] : memref<12x64x64xbf16, #tpu.memory_space<vmem>>, vector<1x16x8xbf16>
    %644 = vector.shape_cast %643 : vector<1x16x8xbf16> to vector<16x8xbf16>
    %cst_535 = arith.constant dense<0.000000e+00> : vector<64x8xf32>
    %645 = tpu.matmul %625, %644, %cst_535 {dimension_numbers = #tpu.dot_dimension_numbers<[1], [0], [0], [1], [0, 0, 1, 1], [], []>} : vector<64x16xbf16>, vector<16x8xbf16>, vector<64x8xf32> -> vector<64x8xf32>
    %646 = arith.addf %642, %645 : vector<64x8xf32>
    %647 = vector.broadcast %630 : vector<1x8xf32> to vector<64x8xf32>
    %648 = arith.addf %646, %647 : vector<64x8xf32>
    %649 = vector.shape_cast %639 : vector<64x8xf32> to vector<2x32x8xf32>
    %c0_536 = arith.constant 0 : index
    %c4_537 = arith.constant 4 : index
    %c0_538 = arith.constant 0 : index
    %650 = tpu.strided_load %arg12[%c0_536, %c4_537, %c0_538] {strides = array<i32: 1, 2, 1>} : memref<2x72x8xf32, #tpu.memory_space<vmem>>, vector<2x32x8xf32>
    tpu.strided_store %arg12[%c0_536, %c4_537, %c0_538], %649 {strides = array<i32: 1, 2, 1>} : memref<2x72x8xf32, #tpu.memory_space<vmem>>, vector<2x32x8xf32>
    %651 = vector.shape_cast %648 : vector<64x8xf32> to vector<2x32x8xf32>
    %c0_539 = arith.constant 0 : index
    %c5_540 = arith.constant 5 : index
    %c0_541 = arith.constant 0 : index
    %652 = tpu.strided_load %arg12[%c0_539, %c5_540, %c0_541] {strides = array<i32: 1, 2, 1>} : memref<2x72x8xf32, #tpu.memory_space<vmem>>, vector<2x32x8xf32>
    tpu.strided_store %arg12[%c0_539, %c5_540, %c0_541], %651 {strides = array<i32: 1, 2, 1>} : memref<2x72x8xf32, #tpu.memory_space<vmem>>, vector<2x32x8xf32>
    %c0_542 = arith.constant 0 : index
    %c4_543 = arith.constant 4 : index
    %c0_544 = arith.constant 0 : index
    %653 = vector.load %arg12[%c0_542, %c4_543, %c0_544] : memref<2x72x8xf32, #tpu.memory_space<vmem>>, vector<2x64x8xf32>
    %c0_545 = arith.constant 0 : index
    %c0_546 = arith.constant 0 : index
    %c0_547 = arith.constant 0 : index
    %654 = vector.load %arg12[%c0_545, %c0_546, %c0_547] : memref<2x72x8xf32, #tpu.memory_space<vmem>>, vector<2x64x8xf32>
    %655 = vector.shape_cast %654 : vector<2x64x8xf32> to vector<128x8xf32>
    %656 = arith.truncf %655 : vector<128x8xf32> to vector<128x8xbf16>
    %c54 = arith.constant 54 : index
    %c0_548 = arith.constant 0 : index
    %c0_549 = arith.constant 0 : index
    %657 = vector.load %arg2[%c54, %c0_548, %c0_549] : memref<72x64x64xbf16, #tpu.memory_space<vmem>>, vector<1x8x8xbf16>
    %658 = vector.shape_cast %657 : vector<1x8x8xbf16> to vector<8x8xbf16>
    %cst_550 = arith.constant dense<0.000000e+00> : vector<128x8xf32>
    %659 = tpu.matmul %656, %658, %cst_550 {dimension_numbers = #tpu.dot_dimension_numbers<[1], [0], [0], [1], [0, 0, 1, 1], [], []>} : vector<128x8xbf16>, vector<8x8xbf16>, vector<128x8xf32> -> vector<128x8xf32>
    %c0_551 = arith.constant 0 : index
    %c1_552 = arith.constant 1 : index
    %c0_553 = arith.constant 0 : index
    %660 = vector.load %arg12[%c0_551, %c1_552, %c0_553] : memref<2x72x8xf32, #tpu.memory_space<vmem>>, vector<2x64x8xf32>
    %661 = vector.shape_cast %660 : vector<2x64x8xf32> to vector<128x8xf32>
    %662 = arith.truncf %661 : vector<128x8xf32> to vector<128x8xbf16>
    %c55 = arith.constant 55 : index
    %c0_554 = arith.constant 0 : index
    %c0_555 = arith.constant 0 : index
    %663 = vector.load %arg2[%c55, %c0_554, %c0_555] : memref<72x64x64xbf16, #tpu.memory_space<vmem>>, vector<1x8x8xbf16>
    %664 = vector.shape_cast %663 : vector<1x8x8xbf16> to vector<8x8xbf16>
    %cst_556 = arith.constant dense<0.000000e+00> : vector<128x8xf32>
    %665 = tpu.matmul %662, %664, %cst_556 {dimension_numbers = #tpu.dot_dimension_numbers<[1], [0], [0], [1], [0, 0, 1, 1], [], []>} : vector<128x8xbf16>, vector<8x8xbf16>, vector<128x8xf32> -> vector<128x8xf32>
    %c0_557 = arith.constant 0 : index
    %c2_558 = arith.constant 2 : index
    %c0_559 = arith.constant 0 : index
    %666 = vector.load %arg12[%c0_557, %c2_558, %c0_559] : memref<2x72x8xf32, #tpu.memory_space<vmem>>, vector<2x64x8xf32>
    %667 = vector.shape_cast %666 : vector<2x64x8xf32> to vector<128x8xf32>
    %668 = arith.truncf %667 : vector<128x8xf32> to vector<128x8xbf16>
    %c56 = arith.constant 56 : index
    %c0_560 = arith.constant 0 : index
    %c0_561 = arith.constant 0 : index
    %669 = vector.load %arg2[%c56, %c0_560, %c0_561] : memref<72x64x64xbf16, #tpu.memory_space<vmem>>, vector<1x8x8xbf16>
    %670 = vector.shape_cast %669 : vector<1x8x8xbf16> to vector<8x8xbf16>
    %cst_562 = arith.constant dense<0.000000e+00> : vector<128x8xf32>
    %671 = tpu.matmul %668, %670, %cst_562 {dimension_numbers = #tpu.dot_dimension_numbers<[1], [0], [0], [1], [0, 0, 1, 1], [], []>} : vector<128x8xbf16>, vector<8x8xbf16>, vector<128x8xf32> -> vector<128x8xf32>
    %c0_563 = arith.constant 0 : index
    %c3_564 = arith.constant 3 : index
    %c0_565 = arith.constant 0 : index
    %672 = vector.load %arg12[%c0_563, %c3_564, %c0_565] : memref<2x72x8xf32, #tpu.memory_space<vmem>>, vector<2x64x8xf32>
    %673 = vector.shape_cast %672 : vector<2x64x8xf32> to vector<128x8xf32>
    %674 = arith.truncf %673 : vector<128x8xf32> to vector<128x8xbf16>
    %c57 = arith.constant 57 : index
    %c0_566 = arith.constant 0 : index
    %c0_567 = arith.constant 0 : index
    %675 = vector.load %arg2[%c57, %c0_566, %c0_567] : memref<72x64x64xbf16, #tpu.memory_space<vmem>>, vector<1x8x8xbf16>
    %676 = vector.shape_cast %675 : vector<1x8x8xbf16> to vector<8x8xbf16>
    %cst_568 = arith.constant dense<0.000000e+00> : vector<128x8xf32>
    %677 = tpu.matmul %674, %676, %cst_568 {dimension_numbers = #tpu.dot_dimension_numbers<[1], [0], [0], [1], [0, 0, 1, 1], [], []>} : vector<128x8xbf16>, vector<8x8xbf16>, vector<128x8xf32> -> vector<128x8xf32>
    %c0_569 = arith.constant 0 : index
    %c4_570 = arith.constant 4 : index
    %c0_571 = arith.constant 0 : index
    %678 = vector.load %arg12[%c0_569, %c4_570, %c0_571] : memref<2x72x8xf32, #tpu.memory_space<vmem>>, vector<2x64x8xf32>
    %679 = vector.shape_cast %678 : vector<2x64x8xf32> to vector<128x8xf32>
    %680 = arith.truncf %679 : vector<128x8xf32> to vector<128x8xbf16>
    %c58 = arith.constant 58 : index
    %c0_572 = arith.constant 0 : index
    %c0_573 = arith.constant 0 : index
    %681 = vector.load %arg2[%c58, %c0_572, %c0_573] : memref<72x64x64xbf16, #tpu.memory_space<vmem>>, vector<1x8x8xbf16>
    %682 = vector.shape_cast %681 : vector<1x8x8xbf16> to vector<8x8xbf16>
    %cst_574 = arith.constant dense<0.000000e+00> : vector<128x8xf32>
    %683 = tpu.matmul %680, %682, %cst_574 {dimension_numbers = #tpu.dot_dimension_numbers<[1], [0], [0], [1], [0, 0, 1, 1], [], []>} : vector<128x8xbf16>, vector<8x8xbf16>, vector<128x8xf32> -> vector<128x8xf32>
    %c0_575 = arith.constant 0 : index
    %c5_576 = arith.constant 5 : index
    %c0_577 = arith.constant 0 : index
    %684 = vector.load %arg12[%c0_575, %c5_576, %c0_577] : memref<2x72x8xf32, #tpu.memory_space<vmem>>, vector<2x64x8xf32>
    %685 = vector.shape_cast %684 : vector<2x64x8xf32> to vector<128x8xf32>
    %686 = arith.truncf %685 : vector<128x8xf32> to vector<128x8xbf16>
    %c59 = arith.constant 59 : index
    %c0_578 = arith.constant 0 : index
    %c0_579 = arith.constant 0 : index
    %687 = vector.load %arg2[%c59, %c0_578, %c0_579] : memref<72x64x64xbf16, #tpu.memory_space<vmem>>, vector<1x8x8xbf16>
    %688 = vector.shape_cast %687 : vector<1x8x8xbf16> to vector<8x8xbf16>
    %cst_580 = arith.constant dense<0.000000e+00> : vector<128x8xf32>
    %689 = tpu.matmul %686, %688, %cst_580 {dimension_numbers = #tpu.dot_dimension_numbers<[1], [0], [0], [1], [0, 0, 1, 1], [], []>} : vector<128x8xbf16>, vector<8x8xbf16>, vector<128x8xf32> -> vector<128x8xf32>
    %c0_581 = arith.constant 0 : index
    %c6_582 = arith.constant 6 : index
    %c0_583 = arith.constant 0 : index
    %690 = vector.load %arg12[%c0_581, %c6_582, %c0_583] : memref<2x72x8xf32, #tpu.memory_space<vmem>>, vector<2x64x8xf32>
    %691 = vector.shape_cast %690 : vector<2x64x8xf32> to vector<128x8xf32>
    %692 = arith.truncf %691 : vector<128x8xf32> to vector<128x8xbf16>
    %c60 = arith.constant 60 : index
    %c0_584 = arith.constant 0 : index
    %c0_585 = arith.constant 0 : index
    %693 = vector.load %arg2[%c60, %c0_584, %c0_585] : memref<72x64x64xbf16, #tpu.memory_space<vmem>>, vector<1x8x8xbf16>
    %694 = vector.shape_cast %693 : vector<1x8x8xbf16> to vector<8x8xbf16>
    %cst_586 = arith.constant dense<0.000000e+00> : vector<128x8xf32>
    %695 = tpu.matmul %692, %694, %cst_586 {dimension_numbers = #tpu.dot_dimension_numbers<[1], [0], [0], [1], [0, 0, 1, 1], [], []>} : vector<128x8xbf16>, vector<8x8xbf16>, vector<128x8xf32> -> vector<128x8xf32>
    %c0_587 = arith.constant 0 : index
    %c7_588 = arith.constant 7 : index
    %c0_589 = arith.constant 0 : index
    %696 = vector.load %arg12[%c0_587, %c7_588, %c0_589] : memref<2x72x8xf32, #tpu.memory_space<vmem>>, vector<2x64x8xf32>
    %697 = vector.shape_cast %696 : vector<2x64x8xf32> to vector<128x8xf32>
    %698 = arith.truncf %697 : vector<128x8xf32> to vector<128x8xbf16>
    %c61 = arith.constant 61 : index
    %c0_590 = arith.constant 0 : index
    %c0_591 = arith.constant 0 : index
    %699 = vector.load %arg2[%c61, %c0_590, %c0_591] : memref<72x64x64xbf16, #tpu.memory_space<vmem>>, vector<1x8x8xbf16>
    %700 = vector.shape_cast %699 : vector<1x8x8xbf16> to vector<8x8xbf16>
    %cst_592 = arith.constant dense<0.000000e+00> : vector<128x8xf32>
    %701 = tpu.matmul %698, %700, %cst_592 {dimension_numbers = #tpu.dot_dimension_numbers<[1], [0], [0], [1], [0, 0, 1, 1], [], []>} : vector<128x8xbf16>, vector<8x8xbf16>, vector<128x8xf32> -> vector<128x8xf32>
    %c0_593 = arith.constant 0 : index
    %c8_594 = arith.constant 8 : index
    %c0_595 = arith.constant 0 : index
    %702 = vector.load %arg12[%c0_593, %c8_594, %c0_595] : memref<2x72x8xf32, #tpu.memory_space<vmem>>, vector<2x64x8xf32>
    %703 = vector.shape_cast %702 : vector<2x64x8xf32> to vector<128x8xf32>
    %704 = arith.truncf %703 : vector<128x8xf32> to vector<128x8xbf16>
    %c62 = arith.constant 62 : index
    %c0_596 = arith.constant 0 : index
    %c0_597 = arith.constant 0 : index
    %705 = vector.load %arg2[%c62, %c0_596, %c0_597] : memref<72x64x64xbf16, #tpu.memory_space<vmem>>, vector<1x8x8xbf16>
    %706 = vector.shape_cast %705 : vector<1x8x8xbf16> to vector<8x8xbf16>
    %cst_598 = arith.constant dense<0.000000e+00> : vector<128x8xf32>
    %707 = tpu.matmul %704, %706, %cst_598 {dimension_numbers = #tpu.dot_dimension_numbers<[1], [0], [0], [1], [0, 0, 1, 1], [], []>} : vector<128x8xbf16>, vector<8x8xbf16>, vector<128x8xf32> -> vector<128x8xf32>
    %708 = arith.addf %659, %665 : vector<128x8xf32>
    %709 = arith.addf %671, %677 : vector<128x8xf32>
    %710 = arith.addf %683, %689 : vector<128x8xf32>
    %711 = arith.addf %695, %701 : vector<128x8xf32>
    %712 = arith.addf %708, %709 : vector<128x8xf32>
    %713 = arith.addf %710, %711 : vector<128x8xf32>
    %714 = arith.addf %712, %713 : vector<128x8xf32>
    %715 = arith.addf %714, %707 : vector<128x8xf32>
    %c6_599 = arith.constant 6 : index
    %c0_600 = arith.constant 0 : index
    %c0_601 = arith.constant 0 : index
    %716 = vector.load %arg3[%c6_599, %c0_600, %c0_601] : memref<8x1x64xf32, #tpu.memory_space<vmem>>, vector<1x1x8xf32>
    %717 = vector.shape_cast %716 : vector<1x1x8xf32> to vector<1x8xf32>
    %718 = vector.broadcast %717 : vector<1x8xf32> to vector<128x8xf32>
    %719 = arith.addf %715, %718 : vector<128x8xf32>
    %720 = vector.shape_cast %719 : vector<128x8xf32> to vector<2x64x8xf32>
    %cst_602 = arith.constant dense<0.000000e+00> : vector<2x8xf32>
    %721 = vector.multi_reduction <add>, %720, %cst_602 [1] : vector<2x64x8xf32> to vector<2x8xf32>
    %722 = vector.shape_cast %721 : vector<2x8xf32> to vector<2x1x8xf32>
    %723 = arith.mulf %720, %720 : vector<2x64x8xf32>
    %cst_603 = arith.constant dense<0.000000e+00> : vector<2x8xf32>
    %724 = vector.multi_reduction <add>, %723, %cst_603 [1] : vector<2x64x8xf32> to vector<2x8xf32>
    %725 = vector.shape_cast %724 : vector<2x8xf32> to vector<2x1x8xf32>
    %cst_604 = arith.constant 1.562500e-02 : f32
    %726 = vector.broadcast %cst_604 : f32 to vector<2x1x8xf32>
    %727 = arith.mulf %722, %726 : vector<2x1x8xf32>
    %cst_605 = arith.constant 1.562500e-02 : f32
    %728 = vector.broadcast %cst_605 : f32 to vector<2x1x8xf32>
    %729 = arith.mulf %725, %728 : vector<2x1x8xf32>
    %730 = arith.mulf %727, %727 : vector<2x1x8xf32>
    %731 = arith.subf %729, %730 : vector<2x1x8xf32>
    %732 = vector.broadcast %727 : vector<2x1x8xf32> to vector<2x64x8xf32>
    %733 = arith.subf %720, %732 : vector<2x64x8xf32>
    %cst_606 = arith.constant 9.99999974E-6 : f32
    %734 = vector.broadcast %cst_606 : f32 to vector<2x1x8xf32>
    %735 = arith.addf %731, %734 : vector<2x1x8xf32>
    %736 = math.rsqrt %735 : vector<2x1x8xf32>
    %737 = vector.broadcast %736 : vector<2x1x8xf32> to vector<2x64x8xf32>
    %738 = arith.mulf %733, %737 : vector<2x64x8xf32>
    %cst_607 = arith.constant 0.000000e+00 : f32
    %739 = vector.broadcast %cst_607 : f32 to vector<2x64x8xf32>
    %740 = arith.maximumf %738, %739 : vector<2x64x8xf32>
    %c0_608 = arith.constant 0 : index
    %c4_609 = arith.constant 4 : index
    %c0_610 = arith.constant 0 : index
    %741 = vector.load %arg12[%c0_608, %c4_609, %c0_610] : memref<2x72x8xf32, #tpu.memory_space<vmem>>, vector<2x64x8xf32>
    tpu.vector_store %arg12[%c0_608, %c4_609, %c0_610], %740 {strides = array<i32>} : memref<2x72x8xf32, #tpu.memory_space<vmem>>, vector<2x64x8xf32>,
    %c0_611 = arith.constant 0 : index
    %c0_612 = arith.constant 0 : index
    %c0_613 = arith.constant 0 : index
    %742 = vector.load %arg12[%c0_611, %c0_612, %c0_613] : memref<2x72x8xf32, #tpu.memory_space<vmem>>, vector<2x64x8xf32>
    %743 = vector.shape_cast %742 : vector<2x64x8xf32> to vector<128x8xf32>
    %744 = arith.truncf %743 : vector<128x8xf32> to vector<128x8xbf16>
    %c63 = arith.constant 63 : index
    %c0_614 = arith.constant 0 : index
    %c0_615 = arith.constant 0 : index
    %745 = vector.load %arg2[%c63, %c0_614, %c0_615] : memref<72x64x64xbf16, #tpu.memory_space<vmem>>, vector<1x8x8xbf16>
    %746 = vector.shape_cast %745 : vector<1x8x8xbf16> to vector<8x8xbf16>
    %cst_616 = arith.constant dense<0.000000e+00> : vector<128x8xf32>
    %747 = tpu.matmul %744, %746, %cst_616 {dimension_numbers = #tpu.dot_dimension_numbers<[1], [0], [0], [1], [0, 0, 1, 1], [], []>} : vector<128x8xbf16>, vector<8x8xbf16>, vector<128x8xf32> -> vector<128x8xf32>
    %c0_617 = arith.constant 0 : index
    %c1_618 = arith.constant 1 : index
    %c0_619 = arith.constant 0 : index
    %748 = vector.load %arg12[%c0_617, %c1_618, %c0_619] : memref<2x72x8xf32, #tpu.memory_space<vmem>>, vector<2x64x8xf32>
    %749 = vector.shape_cast %748 : vector<2x64x8xf32> to vector<128x8xf32>
    %750 = arith.truncf %749 : vector<128x8xf32> to vector<128x8xbf16>
    %c64 = arith.constant 64 : index
    %c0_620 = arith.constant 0 : index
    %c0_621 = arith.constant 0 : index
    %751 = vector.load %arg2[%c64, %c0_620, %c0_621] : memref<72x64x64xbf16, #tpu.memory_space<vmem>>, vector<1x8x8xbf16>
    %752 = vector.shape_cast %751 : vector<1x8x8xbf16> to vector<8x8xbf16>
    %cst_622 = arith.constant dense<0.000000e+00> : vector<128x8xf32>
    %753 = tpu.matmul %750, %752, %cst_622 {dimension_numbers = #tpu.dot_dimension_numbers<[1], [0], [0], [1], [0, 0, 1, 1], [], []>} : vector<128x8xbf16>, vector<8x8xbf16>, vector<128x8xf32> -> vector<128x8xf32>
    %c0_623 = arith.constant 0 : index
    %c2_624 = arith.constant 2 : index
    %c0_625 = arith.constant 0 : index
    %754 = vector.load %arg12[%c0_623, %c2_624, %c0_625] : memref<2x72x8xf32, #tpu.memory_space<vmem>>, vector<2x64x8xf32>
    %755 = vector.shape_cast %754 : vector<2x64x8xf32> to vector<128x8xf32>
    %756 = arith.truncf %755 : vector<128x8xf32> to vector<128x8xbf16>
    %c65 = arith.constant 65 : index
    %c0_626 = arith.constant 0 : index
    %c0_627 = arith.constant 0 : index
    %757 = vector.load %arg2[%c65, %c0_626, %c0_627] : memref<72x64x64xbf16, #tpu.memory_space<vmem>>, vector<1x8x8xbf16>
    %758 = vector.shape_cast %757 : vector<1x8x8xbf16> to vector<8x8xbf16>
    %cst_628 = arith.constant dense<0.000000e+00> : vector<128x8xf32>
    %759 = tpu.matmul %756, %758, %cst_628 {dimension_numbers = #tpu.dot_dimension_numbers<[1], [0], [0], [1], [0, 0, 1, 1], [], []>} : vector<128x8xbf16>, vector<8x8xbf16>, vector<128x8xf32> -> vector<128x8xf32>
    %c0_629 = arith.constant 0 : index
    %c3_630 = arith.constant 3 : index
    %c0_631 = arith.constant 0 : index
    %760 = vector.load %arg12[%c0_629, %c3_630, %c0_631] : memref<2x72x8xf32, #tpu.memory_space<vmem>>, vector<2x64x8xf32>
    %761 = vector.shape_cast %760 : vector<2x64x8xf32> to vector<128x8xf32>
    %762 = arith.truncf %761 : vector<128x8xf32> to vector<128x8xbf16>
    %c66 = arith.constant 66 : index
    %c0_632 = arith.constant 0 : index
    %c0_633 = arith.constant 0 : index
    %763 = vector.load %arg2[%c66, %c0_632, %c0_633] : memref<72x64x64xbf16, #tpu.memory_space<vmem>>, vector<1x8x8xbf16>
    %764 = vector.shape_cast %763 : vector<1x8x8xbf16> to vector<8x8xbf16>
    %cst_634 = arith.constant dense<0.000000e+00> : vector<128x8xf32>
    %765 = tpu.matmul %762, %764, %cst_634 {dimension_numbers = #tpu.dot_dimension_numbers<[1], [0], [0], [1], [0, 0, 1, 1], [], []>} : vector<128x8xbf16>, vector<8x8xbf16>, vector<128x8xf32> -> vector<128x8xf32>
    %c0_635 = arith.constant 0 : index
    %c4_636 = arith.constant 4 : index
    %c0_637 = arith.constant 0 : index
    %766 = vector.load %arg12[%c0_635, %c4_636, %c0_637] : memref<2x72x8xf32, #tpu.memory_space<vmem>>, vector<2x64x8xf32>
    %767 = vector.shape_cast %766 : vector<2x64x8xf32> to vector<128x8xf32>
    %768 = arith.truncf %767 : vector<128x8xf32> to vector<128x8xbf16>
    %c67 = arith.constant 67 : index
    %c0_638 = arith.constant 0 : index
    %c0_639 = arith.constant 0 : index
    %769 = vector.load %arg2[%c67, %c0_638, %c0_639] : memref<72x64x64xbf16, #tpu.memory_space<vmem>>, vector<1x8x8xbf16>
    %770 = vector.shape_cast %769 : vector<1x8x8xbf16> to vector<8x8xbf16>
    %cst_640 = arith.constant dense<0.000000e+00> : vector<128x8xf32>
    %771 = tpu.matmul %768, %770, %cst_640 {dimension_numbers = #tpu.dot_dimension_numbers<[1], [0], [0], [1], [0, 0, 1, 1], [], []>} : vector<128x8xbf16>, vector<8x8xbf16>, vector<128x8xf32> -> vector<128x8xf32>
    %c0_641 = arith.constant 0 : index
    %c5_642 = arith.constant 5 : index
    %c0_643 = arith.constant 0 : index
    %772 = vector.load %arg12[%c0_641, %c5_642, %c0_643] : memref<2x72x8xf32, #tpu.memory_space<vmem>>, vector<2x64x8xf32>
    %773 = vector.shape_cast %772 : vector<2x64x8xf32> to vector<128x8xf32>
    %774 = arith.truncf %773 : vector<128x8xf32> to vector<128x8xbf16>
    %c68_644 = arith.constant 68 : index
    %c0_645 = arith.constant 0 : index
    %c0_646 = arith.constant 0 : index
    %775 = vector.load %arg2[%c68_644, %c0_645, %c0_646] : memref<72x64x64xbf16, #tpu.memory_space<vmem>>, vector<1x8x8xbf16>
    %776 = vector.shape_cast %775 : vector<1x8x8xbf16> to vector<8x8xbf16>
    %cst_647 = arith.constant dense<0.000000e+00> : vector<128x8xf32>
    %777 = tpu.matmul %774, %776, %cst_647 {dimension_numbers = #tpu.dot_dimension_numbers<[1], [0], [0], [1], [0, 0, 1, 1], [], []>} : vector<128x8xbf16>, vector<8x8xbf16>, vector<128x8xf32> -> vector<128x8xf32>
    %c0_648 = arith.constant 0 : index
    %c6_649 = arith.constant 6 : index
    %c0_650 = arith.constant 0 : index
    %778 = vector.load %arg12[%c0_648, %c6_649, %c0_650] : memref<2x72x8xf32, #tpu.memory_space<vmem>>, vector<2x64x8xf32>
    %779 = vector.shape_cast %778 : vector<2x64x8xf32> to vector<128x8xf32>
    %780 = arith.truncf %779 : vector<128x8xf32> to vector<128x8xbf16>
    %c69 = arith.constant 69 : index
    %c0_651 = arith.constant 0 : index
    %c0_652 = arith.constant 0 : index
    %781 = vector.load %arg2[%c69, %c0_651, %c0_652] : memref<72x64x64xbf16, #tpu.memory_space<vmem>>, vector<1x8x8xbf16>
    %782 = vector.shape_cast %781 : vector<1x8x8xbf16> to vector<8x8xbf16>
    %cst_653 = arith.constant dense<0.000000e+00> : vector<128x8xf32>
    %783 = tpu.matmul %780, %782, %cst_653 {dimension_numbers = #tpu.dot_dimension_numbers<[1], [0], [0], [1], [0, 0, 1, 1], [], []>} : vector<128x8xbf16>, vector<8x8xbf16>, vector<128x8xf32> -> vector<128x8xf32>
    %c0_654 = arith.constant 0 : index
    %c7_655 = arith.constant 7 : index
    %c0_656 = arith.constant 0 : index
    %784 = vector.load %arg12[%c0_654, %c7_655, %c0_656] : memref<2x72x8xf32, #tpu.memory_space<vmem>>, vector<2x64x8xf32>
    %785 = vector.shape_cast %784 : vector<2x64x8xf32> to vector<128x8xf32>
    %786 = arith.truncf %785 : vector<128x8xf32> to vector<128x8xbf16>
    %c70 = arith.constant 70 : index
    %c0_657 = arith.constant 0 : index
    %c0_658 = arith.constant 0 : index
    %787 = vector.load %arg2[%c70, %c0_657, %c0_658] : memref<72x64x64xbf16, #tpu.memory_space<vmem>>, vector<1x8x8xbf16>
    %788 = vector.shape_cast %787 : vector<1x8x8xbf16> to vector<8x8xbf16>
    %cst_659 = arith.constant dense<0.000000e+00> : vector<128x8xf32>
    %789 = tpu.matmul %786, %788, %cst_659 {dimension_numbers = #tpu.dot_dimension_numbers<[1], [0], [0], [1], [0, 0, 1, 1], [], []>} : vector<128x8xbf16>, vector<8x8xbf16>, vector<128x8xf32> -> vector<128x8xf32>
    %c0_660 = arith.constant 0 : index
    %c8_661 = arith.constant 8 : index
    %c0_662 = arith.constant 0 : index
    %790 = vector.load %arg12[%c0_660, %c8_661, %c0_662] : memref<2x72x8xf32, #tpu.memory_space<vmem>>, vector<2x64x8xf32>
    %791 = vector.shape_cast %790 : vector<2x64x8xf32> to vector<128x8xf32>
    %792 = arith.truncf %791 : vector<128x8xf32> to vector<128x8xbf16>
    %c71 = arith.constant 71 : index
    %c0_663 = arith.constant 0 : index
    %c0_664 = arith.constant 0 : index
    %793 = vector.load %arg2[%c71, %c0_663, %c0_664] : memref<72x64x64xbf16, #tpu.memory_space<vmem>>, vector<1x8x8xbf16>
    %794 = vector.shape_cast %793 : vector<1x8x8xbf16> to vector<8x8xbf16>
    %cst_665 = arith.constant dense<0.000000e+00> : vector<128x8xf32>
    %795 = tpu.matmul %792, %794, %cst_665 {dimension_numbers = #tpu.dot_dimension_numbers<[1], [0], [0], [1], [0, 0, 1, 1], [], []>} : vector<128x8xbf16>, vector<8x8xbf16>, vector<128x8xf32> -> vector<128x8xf32>
    %796 = arith.addf %747, %753 : vector<128x8xf32>
    %797 = arith.addf %759, %765 : vector<128x8xf32>
    %798 = arith.addf %771, %777 : vector<128x8xf32>
    %799 = arith.addf %783, %789 : vector<128x8xf32>
    %800 = arith.addf %796, %797 : vector<128x8xf32>
    %801 = arith.addf %798, %799 : vector<128x8xf32>
    %802 = arith.addf %800, %801 : vector<128x8xf32>
    %803 = arith.addf %802, %795 : vector<128x8xf32>
    %c7_666 = arith.constant 7 : index
    %c0_667 = arith.constant 0 : index
    %c0_668 = arith.constant 0 : index
    %804 = vector.load %arg3[%c7_666, %c0_667, %c0_668] : memref<8x1x64xf32, #tpu.memory_space<vmem>>, vector<1x1x8xf32>
    %805 = vector.shape_cast %804 : vector<1x1x8xf32> to vector<1x8xf32>
    %806 = vector.broadcast %805 : vector<1x8xf32> to vector<128x8xf32>
    %807 = arith.addf %803, %806 : vector<128x8xf32>
    %808 = vector.shape_cast %807 : vector<128x8xf32> to vector<2x64x8xf32>
    %cst_669 = arith.constant dense<0.000000e+00> : vector<2x8xf32>
    %809 = vector.multi_reduction <add>, %808, %cst_669 [1] : vector<2x64x8xf32> to vector<2x8xf32>
    %810 = vector.shape_cast %809 : vector<2x8xf32> to vector<2x1x8xf32>
    %811 = arith.mulf %808, %808 : vector<2x64x8xf32>
    %cst_670 = arith.constant dense<0.000000e+00> : vector<2x8xf32>
    %812 = vector.multi_reduction <add>, %811, %cst_670 [1] : vector<2x64x8xf32> to vector<2x8xf32>
    %813 = vector.shape_cast %812 : vector<2x8xf32> to vector<2x1x8xf32>
    %cst_671 = arith.constant 1.562500e-02 : f32
    %814 = vector.broadcast %cst_671 : f32 to vector<2x1x8xf32>
    %815 = arith.mulf %810, %814 : vector<2x1x8xf32>
    %cst_672 = arith.constant 1.562500e-02 : f32
    %816 = vector.broadcast %cst_672 : f32 to vector<2x1x8xf32>
    %817 = arith.mulf %813, %816 : vector<2x1x8xf32>
    %818 = arith.mulf %815, %815 : vector<2x1x8xf32>
    %819 = arith.subf %817, %818 : vector<2x1x8xf32>
    %820 = vector.broadcast %815 : vector<2x1x8xf32> to vector<2x64x8xf32>
    %821 = arith.subf %808, %820 : vector<2x64x8xf32>
    %cst_673 = arith.constant 9.99999974E-6 : f32
    %822 = vector.broadcast %cst_673 : f32 to vector<2x1x8xf32>
    %823 = arith.addf %819, %822 : vector<2x1x8xf32>
    %824 = math.rsqrt %823 : vector<2x1x8xf32>
    %825 = vector.broadcast %824 : vector<2x1x8xf32> to vector<2x64x8xf32>
    %826 = arith.mulf %821, %825 : vector<2x64x8xf32>
    %827 = arith.addf %653, %826 : vector<2x64x8xf32>
    %cst_674 = arith.constant 0.000000e+00 : f32
    %828 = vector.broadcast %cst_674 : f32 to vector<2x64x8xf32>
    %829 = arith.maximumf %827, %828 : vector<2x64x8xf32>
    %830 = vector.shape_cast %829 : vector<2x64x8xf32> to vector<128x8xf32>
    %c0_675 = arith.constant 0 : index
    %c0_676 = arith.constant 0 : index
    %831 = vector.load %arg6[%c0_675, %c0_676] : memref<8x8xf32, #tpu.memory_space<vmem>>, vector<8x8xf32>
    %cst_677 = arith.constant dense<0.000000e+00> : vector<8x128xf32>
    %832 = tpu.matmul %831, %830, %cst_677 {dimension_numbers = #tpu.dot_dimension_numbers<[1], [1], [0], [0], [0, 0, 1, 0], [], []>} : vector<8x8xf32>, vector<128x8xf32>, vector<8x128xf32> -> vector<8x128xf32>
    %c0_678 = arith.constant 0 : index
    %c0_679 = arith.constant 0 : index
    %833 = vector.load %arg7[%c0_678, %c0_679] : memref<8x1xf32, #tpu.memory_space<vmem>>, vector<8x1xf32>
    %834 = vector.broadcast %833 : vector<8x1xf32> to vector<8x128xf32>
    %835 = arith.addf %832, %834 : vector<8x128xf32>
    %836 = math.tanh %835 : vector<8x128xf32>
    %c0_680 = arith.constant 0 : index
    %c0_681 = arith.constant 0 : index
    %837 = vector.load %arg8[%c0_680, %c0_681] : memref<8x128xf32, #tpu.memory_space<vmem>>, vector<8x128xf32>
    tpu.vector_store %arg8[%c0_680, %c0_681], %836 {strides = array<i32>} : memref<8x128xf32, #tpu.memory_space<vmem>>, vector<8x128xf32>,
    return
  }
}

</mosaic_0001>

<llo_original>
// kernel: gen_forward.1
$region0: #{gen_forward.1}
  #allocation0 [shape = 'u32[]', space=smem, size = 0x4, offset = 0x4, fixed_abs, tag = 'smem constant byte address 0x4 - core index']
  #allocation1 [shape = 'u32[144,128]{1,0:T(1,128)}', space=vmem, size = 0x12000, scoped, tag = 'internal scratch']
  #allocation2 [shape = 'f32[2,16,64]{2,1,0:T(8,128)}', space=vmem, size = 0x4000, scoped, tag = 'scratch operand']
  #allocation3 [shape = 'f32[2,24,32]{2,1,0:T(8,128)}', space=vmem, size = 0x6000, scoped, tag = 'scratch operand']
  #allocation4 [shape = 'f32[2,40,16]{2,1,0:T(8,128)}', space=vmem, size = 0xa000, scoped, tag = 'scratch operand']
  #allocation5 [shape = 'f32[2,72,8]{2,1,0:T(8,128)}', space=vmem, size = 0x12000, scoped, tag = 'scratch operand']
  %s0 = inlined_call_operand.vmem [shape: f32[16,136], index: 0, kind: input, shape index: {}]
  %s1 = inlined_call_operand.vmem [shape: bf16[136,64], index: 1, kind: input, shape index: {}]
  %s2 = inlined_call_operand.vmem [shape: bf16[72,64,64], index: 2, kind: input, shape index: {}]
  %s3 = inlined_call_operand.vmem [shape: f32[8,1,64], index: 3, kind: input, shape index: {}]
  %s4 = inlined_call_operand.vmem [shape: bf16[12,64,64], index: 4, kind: input, shape index: {}]
  %s5 = inlined_call_operand.vmem [shape: f32[3,1,64], index: 5, kind: input, shape index: {}]
  %s6 = inlined_call_operand.vmem [shape: f32[8,8], index: 6, kind: input, shape index: {}]
  %s7 = inlined_call_operand.vmem [shape: f32[8,1], index: 7, kind: input, shape index: {}]
  %s8 = inlined_call_operand.vmem [shape: f32[8,128], index: 8, kind: output, shape index: {}]
  %s9 = sld [smem:[#allocation0]]
  $region42: #{gen_forward.1} parent=0
    _
  %s11 = ssub.s32 1, %s9
  %s12 = scalar_select 0, %s11, %s9
  // Predicated region
  $region2: #{gen_forward.1} parent=0 // pred_check
    _
  $region3: #{gen_forward.1} parent=0 // pred_check_branch
    %14 = sbr.rel (0) target = $region5
  $region4: #{gen_forward.1} parent=0 // pred_region
    _
  $region5: #{gen_forward.1} parent=0 // pred_fallthru
    _
  // Predicated region
  $region6: #{gen_forward.1} parent=0 // pred_check
    _
  $region7: #{gen_forward.1} parent=0 // pred_check_branch
    %16 = sbr.rel (0) target = $region9
  $region8: #{gen_forward.1} parent=0 // pred_region
    _
  $region9: #{gen_forward.1} parent=0 // pred_fallthru
    _
  // Predicated region
  $region10: #{gen_forward.1} parent=0 // pred_check
    _
  $region11: #{gen_forward.1} parent=0 // pred_check_branch
    %18 = sbr.rel (0) target = $region13
  $region12: #{gen_forward.1} parent=0 // pred_region
    _
  $region13: #{gen_forward.1} parent=0 // pred_fallthru
    _
  // Predicated region
  $region14: #{gen_forward.1} parent=0 // pred_check
    _
  $region15: #{gen_forward.1} parent=0 // pred_check_branch
    %20 = sbr.rel (0) target = $region17
  $region16: #{gen_forward.1} parent=0 // pred_region
    _
  $region17: #{gen_forward.1} parent=0 // pred_fallthru
    _
  // Predicated region
  $region18: #{gen_forward.1} parent=0 // pred_check
    _
  $region19: #{gen_forward.1} parent=0 // pred_check_branch
    %22 = sbr.rel (0) target = $region21
  $region20: #{gen_forward.1} parent=0 // pred_region
    _
  $region21: #{gen_forward.1} parent=0 // pred_fallthru
    _
  // Predicated region
  $region22: #{gen_forward.1} parent=0 // pred_check
    _
  $region23: #{gen_forward.1} parent=0 // pred_check_branch
    %24 = sbr.rel (0) target = $region25
  $region24: #{gen_forward.1} parent=0 // pred_region
    _
  $region25: #{gen_forward.1} parent=0 // pred_fallthru
    _
  // Predicated region
  $region26: #{gen_forward.1} parent=0 // pred_check
    _
  $region27: #{gen_forward.1} parent=0 // pred_check_branch
    %26 = sbr.rel (0) target = $region29
  $region28: #{gen_forward.1} parent=0 // pred_region
    _
  $region29: #{gen_forward.1} parent=0 // pred_fallthru
    _
  // Predicated region
  $region30: #{gen_forward.1} parent=0 // pred_check
    _
  $region31: #{gen_forward.1} parent=0 // pred_check_branch
    %28 = sbr.rel (0) target = $region33
  $region32: #{gen_forward.1} parent=0 // pred_region
    _
  $region33: #{gen_forward.1} parent=0 // pred_fallthru
    _
  %vm30 = vcmask 519168
  %31 = vst.msk [vmem:[#allocation2] sm:$0xf] %vm30, 0.0
  %32 = vst.msk [vmem:[#allocation2 + $0x10] sm:$0xf] %vm30, 0.0
  %33 = vst.msk [vmem:[#allocation2 + $0xc] sm:$0xf] %vm30, 0.0
  %34 = vst.msk [vmem:[#allocation2 + $0x1c] sm:$0xf] %vm30, 0.0
  %vm35 = vcmask 257024
  %36 = vst.msk [vmem:[#allocation3] sm:$0xf] %vm35, 0.0
  %37 = vst.msk [vmem:[#allocation3 + $0x18] sm:$0xf] %vm35, 0.0
  %38 = vst.msk [vmem:[#allocation3 + $0x14] sm:$0xf] %vm35, 0.0
  %39 = vst.msk [vmem:[#allocation3 + $0x2c] sm:$0xf] %vm35, 0.0
  %vm40 = vcmask 125952
  %41 = vst.msk [vmem:[#allocation4] sm:$0xf] %vm40, 0.0
  %42 = vst.msk [vmem:[#allocation4 + $0x28] sm:$0xf] %vm40, 0.0
  %43 = vst.msk [vmem:[#allocation4 + $0x24] sm:$0xf] %vm40, 0.0
  %44 = vst.msk [vmem:[#allocation4 + $0x4c] sm:$0xf] %vm40, 0.0
  %vm45 = vcmask 60416
  %46 = vst.msk [vmem:[#allocation5] sm:$0xf] %vm45, 0.0
  %47 = vst.msk [vmem:[#allocation5 + $0x48] sm:$0xf] %vm45, 0.0
  %48 = vst.msk [vmem:[#allocation5 + $0x44] sm:$0xf] %vm45, 0.0
  %49 = vst.msk [vmem:[#allocation5 + $0x8c] sm:$0xf] %vm45, 0.0
  %v50 = vld [vmem:[%s0] sm:$0xff]
  %v51 = vld [vmem:[%s0 + $0x8] sm:$0xff]
  %v52 = vld [vmem:[%s0 + $0x10] sm:$0xff]
  %v53 = vld [vmem:[%s0 + $0x18] sm:$0xff]
  %v54 = vpack.c.bf16 %v52, %v50
  %v55 = vpack.c.bf16 %v53, %v51
  %v56 = vld [vmem:[%s1] sm:$0xf]
  %v57 = vld [vmem:[%s1 + $0x4] sm:$0xf]
  %v58 = vld [vmem:[%s1 + $0x8] sm:$0xf]
  %v59 = vld [vmem:[%s1 + $0xc] sm:$0xf]
  %v60 = vld [vmem:[%s1 + $0x10] sm:$0xf]
  %v61 = vld [vmem:[%s1 + $0x14] sm:$0xf]
  %v62 = vld [vmem:[%s1 + $0x18] sm:$0xf]
  %v63 = vld [vmem:[%s1 + $0x1c] sm:$0xf]
  %v64 = vld [vmem:[%s1 + $0x20] sm:$0xf]
  %v65 = vld [vmem:[%s1 + $0x24] sm:$0xf]
  %v66 = vld [vmem:[%s1 + $0x28] sm:$0xf]
  %v67 = vld [vmem:[%s1 + $0x2c] sm:$0xf]
  %v68 = vld [vmem:[%s1 + $0x30] sm:$0xf]
  %v69 = vld [vmem:[%s1 + $0x34] sm:$0xf]
  %v70 = vld [vmem:[%s1 + $0x38] sm:$0xf]
  %v71 = vld [vmem:[%s1 + $0x3c] sm:$0xf]
  %v72 = vld [vmem:[%s1 + $0x40] sm:$0xf]
  %v90 = vunpack.c.l.b16 %v56
  %v91 = vunpack.c.l.b16 %v57
  %v92 = vunpack.c.l.b16 %v58
  %v93 = vunpack.c.l.b16 %v59
  %v94 = vunpack.c.l.b16 %v60
  %v95 = vunpack.c.l.b16 %v61
  %v96 = vunpack.c.l.b16 %v62
  %v97 = vunpack.c.l.b16 %v63
  %v98 = vunpack.c.l.b16 %v64
  %v99 = vunpack.c.l.b16 %v65
  %v100 = vunpack.c.l.b16 %v66
  %v101 = vunpack.c.l.b16 %v67
  %v102 = vunpack.c.l.b16 %v68
  %v103 = vunpack.c.l.b16 %v69
  %v104 = vunpack.c.l.b16 %v70
  %v105 = vunpack.c.l.b16 %v71
  %v106 = vunpack.c.l.b16 %v72
  %v107 = vpack.c.b16 %v91, %v90
  %v108 = vpack.c.b16 %v93, %v92
  %v109 = vpack.c.b16 %v95, %v94
  %v110 = vpack.c.b16 %v97, %v96
  %v111 = vpack.c.b16 %v99, %v98
  %v112 = vpack.c.b16 %v101, %v100
  %v113 = vpack.c.b16 %v103, %v102
  %v114 = vpack.c.b16 %v105, %v104
  %v115 = vpack.c.b16 %v106, %v106
  %vm124 = vcmask 64512
  %v126 = vsel %vm124, %v55, 0
  %vm128 = vcmask 1043456
  %v130 = vsel %vm128, %v115, 0
  %132 = vmatprep.subr.bf16.mxu0 0
  %133 = vmatpush1.bf16.msra.mxu0 %v114
  %134 = vmatprep.subr.bf16.mxu0 0
  %135 = vmatpush1.bf16.msra.mxu0 %v113
  %136 = vmatprep.subr.bf16.mxu0 0
  %137 = vmatpush1.bf16.msra.mxu0 %v112
  %138 = vmatprep.subr.bf16.mxu0 0
  %139 = vmatpush1.bf16.msra.mxu0 %v111
  %140 = vmatprep.subr.bf16.mxu0 0
  %141 = vmatpush1.bf16.msra.mxu0 %v110
  %142 = vmatprep.subr.bf16.mxu0 0
  %143 = vmatpush1.bf16.msra.mxu0 %v109
  %144 = vmatprep.subr.bf16.mxu0 0
  %145 = vmatpush1.bf16.msra.mxu0 %v108
  %146 = vmatprep.subr.bf16.mxu0 0
  %147 = vmatpush1.bf16.msra.mxu0 %v107
  %148 = vmatprep.subr.bf16.mxu0 0
  %149 = vmatpush2.bf16.msra.mxu0 0
  %150 = vmatprep.subr.bf16.mxu0 0
  %151 = vmatpush2.bf16.msra.mxu0 0
  %152 = vmatprep.subr.bf16.mxu0 0
  %153 = vmatpush2.bf16.msra.mxu0 0
  %154 = vmatprep.subr.bf16.mxu0 0
  %155 = vmatpush2.bf16.msra.mxu0 0
  %156 = vmatprep.subr.bf16.mxu0 0
  %157 = vmatpush2.bf16.msra.mxu0 0
  %158 = vmatprep.subr.bf16.mxu0 0
  %159 = vmatpush2.bf16.msra.mxu0 0
  %160 = vmatprep.subr.bf16.mxu0 0
  %161 = vmatpush2.bf16.msra.mxu0 0
  %162 = vmatprep.subr.bf16.mxu0 0
  %163 = vmatpush2.bf16.msra.mxu0 %v130
  %164 = vmatprep.mubr.bf16.mxu0 %v126
  %165 = vmatmul.mubr.bf16.gmra.mxu0 %v54
  %v166 = vpop.f32.mrf.mxu0
  %v167 = vadd.f32 0.0, %v166
  %v168 = vpop.f32.mrf.mxu0
  %v169 = vpop.f32.mrf.mxu0
  %v170 = vadd.f32 0.0, %v169
  %v171 = vpop.f32.mrf.mxu0
  %172 = vdwg.mxu0
  %v173 = vmax.f32 %v167, 0.0
  %v174 = vmax.f32 %v170, 0.0
  %vm175 = vcmask 523264
  %176 = vst.msk [vmem:[#allocation2 + $0x4] sm:$0xff] %vm175, %v173
  %177 = vst.msk [vmem:[#allocation2 + $0x14] sm:$0xff] %vm175, %v174
  %v178 = vld [vmem:[#allocation2 + $0x4] sm:$0xff]
  %v179 = vld [vmem:[#allocation2 + $0x14] sm:$0xff]
  %v180 = vld [vmem:[#allocation2] sm:$0xff]
  %v181 = vld [vmem:[#allocation2 + $0x10] sm:$0xff]
  %v182 = vpack.c.bf16 %v181, %v180
  %v183 = vld [vmem:[%s2] sm:$0xf]
  %v184 = vld [vmem:[%s2 + $0x4] sm:$0xf]
  %v185 = vld [vmem:[%s2 + $0x8] sm:$0xf]
  %v186 = vld [vmem:[%s2 + $0xc] sm:$0xf]
  %v187 = vld [vmem:[%s2 + $0x10] sm:$0xf]
  %v188 = vld [vmem:[%s2 + $0x14] sm:$0xf]
  %v189 = vld [vmem:[%s2 + $0x18] sm:$0xf]
  %v190 = vld [vmem:[%s2 + $0x1c] sm:$0xf]
  %v191 = vld [vmem:[#allocation2 + $0x1] sm:$0xff]
  %v192 = vld [vmem:[#allocation2 + $0x11] sm:$0xff]
  %v193 = vpack.c.bf16 %v192, %v191
  %s194 = scalar_lea.vmem %s2, 32
  %v195 = vld [vmem:[%s194] sm:$0xf]
  %v196 = vld [vmem:[%s194 + $0x4] sm:$0xf]
  %v197 = vld [vmem:[%s194 + $0x8] sm:$0xf]
  %v198 = vld [vmem:[%s194 + $0xc] sm:$0xf]
  %v199 = vld [vmem:[%s194 + $0x10] sm:$0xf]
  %v200 = vld [vmem:[%s194 + $0x14] sm:$0xf]
  %v201 = vld [vmem:[%s194 + $0x18] sm:$0xf]
  %v202 = vld [vmem:[%s194 + $0x1c] sm:$0xf]
  %v211 = vunpack.c.l.b16 %v195
  %v212 = vunpack.c.l.b16 %v196
  %v213 = vunpack.c.l.b16 %v197
  %v214 = vunpack.c.l.b16 %v198
  %v215 = vunpack.c.l.b16 %v199
  %v216 = vunpack.c.l.b16 %v200
  %v217 = vunpack.c.l.b16 %v201
  %v218 = vunpack.c.l.b16 %v202
  %v219 = vpack.c.b16 %v212, %v211
  %v220 = vpack.c.b16 %v214, %v213
  %v221 = vpack.c.b16 %v216, %v215
  %v222 = vpack.c.b16 %v218, %v217
  %v228 = vsel %vm175, %v193, 0
  %230 = vmatprep.subr.bf16.mxu0 0
  %231 = vmatpush1.bf16.msra.mxu0 0
  %232 = vmatprep.subr.bf16.mxu0 0
  %233 = vmatpush1.bf16.msra.mxu0 0
  %234 = vmatprep.subr.bf16.mxu0 0
  %235 = vmatpush1.bf16.msra.mxu0 0
  %236 = vmatprep.subr.bf16.mxu0 0
  %237 = vmatpush1.bf16.msra.mxu0 0
  %238 = vmatprep.subr.bf16.mxu0 0
  %239 = vmatpush1.bf16.msra.mxu0 %v222
  %240 = vmatprep.subr.bf16.mxu0 0
  %241 = vmatpush1.bf16.msra.mxu0 %v221
  %242 = vmatprep.subr.bf16.mxu0 0
  %243 = vmatpush1.bf16.msra.mxu0 %v220
  %244 = vmatprep.subr.bf16.mxu0 0
  %245 = vmatpush1.bf16.msra.mxu0 %v219
  %246 = vmatprep.subr.bf16.mxu0 0
  %247 = vmatpush2.bf16.msra.mxu0 0
  %248 = vmatprep.subr.bf16.mxu0 0
  %249 = vmatpush2.bf16.msra.mxu0 0
  %250 = vmatprep.subr.bf16.mxu0 0
  %251 = vmatpush2.bf16.msra.mxu0 0
  %252 = vmatprep.subr.bf16.mxu0 0
  %253 = vmatpush2.bf16.msra.mxu0 0
  %254 = vmatprep.subr.bf16.mxu0 0
  %255 = vmatpush2.bf16.msra.mxu0 0
  %256 = vmatprep.subr.bf16.mxu0 0
  %257 = vmatpush2.bf16.msra.mxu0 0
  %258 = vmatprep.subr.bf16.mxu0 0
  %259 = vmatpush2.bf16.msra.mxu0 0
  %260 = vmatprep.subr.bf16.mxu0 0
  %261 = vmatpush2.bf16.msra.mxu0 0
  %262 = vmatprep.mubr.bf16.mxu0 0
  %263 = vmatmul.mubr.bf16.gmra.mxu0 %v228
  %v264 = vpop.f32.mrf.mxu0
  %v265 = vadd.f32 0.0, %v264
  %v266 = vpop.f32.mrf.mxu0
  %v267 = vpop.f32.mrf.mxu0
  %v268 = vadd.f32 0.0, %v267
  %v269 = vpop.f32.mrf.mxu0
  %270 = vdwg.mxu0
  %v271 = vld [vmem:[#allocation2 + $0x2] sm:$0xff]
  %v272 = vld [vmem:[#allocation2 + $0x12] sm:$0xff]
  %v273 = vpack.c.bf16 %v272, %v271
  %s274 = scalar_lea.vmem %s2, 64
  %v275 = vld [vmem:[%s274] sm:$0xf]
  %v276 = vld [vmem:[%s274 + $0x4] sm:$0xf]
  %v277 = vld [vmem:[%s274 + $0x8] sm:$0xf]
  %v278 = vld [vmem:[%s274 + $0xc] sm:$0xf]
  %v279 = vld [vmem:[%s274 + $0x10] sm:$0xf]
  %v280 = vld [vmem:[%s274 + $0x14] sm:$0xf]
  %v281 = vld [vmem:[%s274 + $0x18] sm:$0xf]
  %v282 = vld [vmem:[%s274 + $0x1c] sm:$0xf]
  %v283 = vld [vmem:[#allocation2 + $0x3] sm:$0xff]
  %v284 = vld [vmem:[#allocation2 + $0x13] sm:$0xff]
  %v285 = vpack.c.bf16 %v284, %v283
  %s286 = scalar_lea.vmem %s2, 96
  %v287 = vld [vmem:[%s286] sm:$0xf]
  %v288 = vld [vmem:[%s286 + $0x4] sm:$0xf]
  %v289 = vld [vmem:[%s286 + $0x8] sm:$0xf]
  %v290 = vld [vmem:[%s286 + $0xc] sm:$0xf]
  %v291 = vld [vmem:[%s286 + $0x10] sm:$0xf]
  %v292 = vld [vmem:[%s286 + $0x14] sm:$0xf]
  %v293 = vld [vmem:[%s286 + $0x18] sm:$0xf]
  %v294 = vld [vmem:[%s286 + $0x1c] sm:$0xf]
  %v303 = vunpack.c.l.b16 %v287
  %v304 = vunpack.c.l.b16 %v288
  %v305 = vunpack.c.l.b16 %v289
  %v306 = vunpack.c.l.b16 %v290
  %v307 = vunpack.c.l.b16 %v291
  %v308 = vunpack.c.l.b16 %v292
  %v309 = vunpack.c.l.b16 %v293
  %v310 = vunpack.c.l.b16 %v294
  %v311 = vpack.c.b16 %v304, %v303
  %v312 = vpack.c.b16 %v306, %v305
  %v313 = vpack.c.b16 %v308, %v307
  %v314 = vpack.c.b16 %v310, %v309
  %v320 = vsel %vm175, %v285, 0
  %322 = vmatprep.subr.bf16.mxu0 0
  %323 = vmatpush1.bf16.msra.mxu0 0
  %324 = vmatprep.subr.bf16.mxu0 0
  %325 = vmatpush1.bf16.msra.mxu0 0
  %326 = vmatprep.subr.bf16.mxu0 0
  %327 = vmatpush1.bf16.msra.mxu0 0
  %328 = vmatprep.subr.bf16.mxu0 0
  %329 = vmatpush1.bf16.msra.mxu0 0
  %330 = vmatprep.subr.bf16.mxu0 0
  %331 = vmatpush1.bf16.msra.mxu0 %v314
  %332 = vmatprep.subr.bf16.mxu0 0
  %333 = vmatpush1.bf16.msra.mxu0 %v313
  %334 = vmatprep.subr.bf16.mxu0 0
  %335 = vmatpush1.bf16.msra.mxu0 %v312
  %336 = vmatprep.subr.bf16.mxu0 0
  %337 = vmatpush1.bf16.msra.mxu0 %v311
  %338 = vmatprep.subr.bf16.mxu0 0
  %339 = vmatpush2.bf16.msra.mxu0 0
  %340 = vmatprep.subr.bf16.mxu0 0
  %341 = vmatpush2.bf16.msra.mxu0 0
  %342 = vmatprep.subr.bf16.mxu0 0
  %343 = vmatpush2.bf16.msra.mxu0 0
  %344 = vmatprep.subr.bf16.mxu0 0
  %345 = vmatpush2.bf16.msra.mxu0 0
  %346 = vmatprep.subr.bf16.mxu0 0
  %347 = vmatpush2.bf16.msra.mxu0 0
  %348 = vmatprep.subr.bf16.mxu0 0
  %349 = vmatpush2.bf16.msra.mxu0 0
  %350 = vmatprep.subr.bf16.mxu0 0
  %351 = vmatpush2.bf16.msra.mxu0 0
  %352 = vmatprep.subr.bf16.mxu0 0
  %353 = vmatpush2.bf16.msra.mxu0 0
  %354 = vmatprep.mubr.bf16.mxu0 0
  %355 = vmatmul.mubr.bf16.gmra.mxu0 %v320
  %v356 = vpop.f32.mrf.mxu0
  %v357 = vadd.f32 0.0, %v356
  %v358 = vpop.f32.mrf.mxu0
  %v359 = vpop.f32.mrf.mxu0
  %v360 = vadd.f32 0.0, %v359
  %v361 = vpop.f32.mrf.mxu0
  %362 = vdwg.mxu0
  %v363 = vpack.c.bf16 %v179, %v178
  %s364 = scalar_lea.vmem %s2, 128
  %v365 = vld [vmem:[%s364] sm:$0xf]
  %v366 = vld [vmem:[%s364 + $0x4] sm:$0xf]
  %v367 = vld [vmem:[%s364 + $0x8] sm:$0xf]
  %v368 = vld [vmem:[%s364 + $0xc] sm:$0xf]
  %v369 = vld [vmem:[%s364 + $0x10] sm:$0xf]
  %v370 = vld [vmem:[%s364 + $0x14] sm:$0xf]
  %v371 = vld [vmem:[%s364 + $0x18] sm:$0xf]
  %v372 = vld [vmem:[%s364 + $0x1c] sm:$0xf]
  %v373 = vld [vmem:[#allocation2 + $0x5] sm:$0xff]
  %v374 = vld [vmem:[#allocation2 + $0x15] sm:$0xff]
  %v375 = vpack.c.bf16 %v374, %v373
  %s376 = scalar_lea.vmem %s2, 160
  %v377 = vld [vmem:[%s376] sm:$0xf]
  %v378 = vld [vmem:[%s376 + $0x4] sm:$0xf]
  %v379 = vld [vmem:[%s376 + $0x8] sm:$0xf]
  %v380 = vld [vmem:[%s376 + $0xc] sm:$0xf]
  %v381 = vld [vmem:[%s376 + $0x10] sm:$0xf]
  %v382 = vld [vmem:[%s376 + $0x14] sm:$0xf]
  %v383 = vld [vmem:[%s376 + $0x18] sm:$0xf]
  %v384 = vld [vmem:[%s376 + $0x1c] sm:$0xf]
  %v393 = vunpack.c.l.b16 %v377
  %v394 = vunpack.c.l.b16 %v378
  %v395 = vunpack.c.l.b16 %v379
  %v396 = vunpack.c.l.b16 %v380
  %v397 = vunpack.c.l.b16 %v381
  %v398 = vunpack.c.l.b16 %v382
  %v399 = vunpack.c.l.b16 %v383
  %v400 = vunpack.c.l.b16 %v384
  %v401 = vpack.c.b16 %v394, %v393
  %v402 = vpack.c.b16 %v396, %v395
  %v403 = vpack.c.b16 %v398, %v397
  %v404 = vpack.c.b16 %v400, %v399
  %v410 = vsel %vm175, %v375, 0
  %412 = vmatprep.subr.bf16.mxu0 0
  %413 = vmatpush1.bf16.msra.mxu0 0
  %414 = vmatprep.subr.bf16.mxu0 0
  %415 = vmatpush1.bf16.msra.mxu0 0
  %416 = vmatprep.subr.bf16.mxu0 0
  %417 = vmatpush1.bf16.msra.mxu0 0
  %418 = vmatprep.subr.bf16.mxu0 0
  %419 = vmatpush1.bf16.msra.mxu0 0
  %420 = vmatprep.subr.bf16.mxu0 0
  %421 = vmatpush1.bf16.msra.mxu0 %v404
  %422 = vmatprep.subr.bf16.mxu0 0
  %423 = vmatpush1.bf16.msra.mxu0 %v403
  %424 = vmatprep.subr.bf16.mxu0 0
  %425 = vmatpush1.bf16.msra.mxu0 %v402
  %426 = vmatprep.subr.bf16.mxu0 0
  %427 = vmatpush1.bf16.msra.mxu0 %v401
  %428 = vmatprep.subr.bf16.mxu0 0
  %429 = vmatpush2.bf16.msra.mxu0 0
  %430 = vmatprep.subr.bf16.mxu0 0
  %431 = vmatpush2.bf16.msra.mxu0 0
  %432 = vmatprep.subr.bf16.mxu0 0
  %433 = vmatpush2.bf16.msra.mxu0 0
  %434 = vmatprep.subr.bf16.mxu0 0
  %435 = vmatpush2.bf16.msra.mxu0 0
  %436 = vmatprep.subr.bf16.mxu0 0
  %437 = vmatpush2.bf16.msra.mxu0 0
  %438 = vmatprep.subr.bf16.mxu0 0
  %439 = vmatpush2.bf16.msra.mxu0 0
  %440 = vmatprep.subr.bf16.mxu0 0
  %441 = vmatpush2.bf16.msra.mxu0 0
  %442 = vmatprep.subr.bf16.mxu0 0
  %443 = vmatpush2.bf16.msra.mxu0 0
  %444 = vmatprep.mubr.bf16.mxu0 0
  %445 = vmatmul.mubr.bf16.gmra.mxu0 %v410
  %v446 = vpop.f32.mrf.mxu0
  %v447 = vadd.f32 0.0, %v446
  %v448 = vpop.f32.mrf.mxu0
  %v449 = vpop.f32.mrf.mxu0
  %v450 = vadd.f32 0.0, %v449
  %v451 = vpop.f32.mrf.mxu0
  %452 = vdwg.mxu0
  %v453 = vld [vmem:[#allocation2 + $0x6] sm:$0xff]
  %v454 = vld [vmem:[#allocation2 + $0x16] sm:$0xff]
  %v455 = vpack.c.bf16 %v454, %v453
  %s456 = scalar_lea.vmem %s2, 192
  %v457 = vld [vmem:[%s456] sm:$0xf]
  %v458 = vld [vmem:[%s456 + $0x4] sm:$0xf]
  %v459 = vld [vmem:[%s456 + $0x8] sm:$0xf]
  %v460 = vld [vmem:[%s456 + $0xc] sm:$0xf]
  %v461 = vld [vmem:[%s456 + $0x10] sm:$0xf]
  %v462 = vld [vmem:[%s456 + $0x14] sm:$0xf]
  %v463 = vld [vmem:[%s456 + $0x18] sm:$0xf]
  %v464 = vld [vmem:[%s456 + $0x1c] sm:$0xf]
  %v465 = vld [vmem:[#allocation2 + $0x7] sm:$0xff]
  %v466 = vld [vmem:[#allocation2 + $0x17] sm:$0xff]
  %v467 = vpack.c.bf16 %v466, %v465
  %s468 = scalar_lea.vmem %s2, 224
  %v469 = vld [vmem:[%s468] sm:$0xf]
  %v470 = vld [vmem:[%s468 + $0x4] sm:$0xf]
  %v471 = vld [vmem:[%s468 + $0x8] sm:$0xf]
  %v472 = vld [vmem:[%s468 + $0xc] sm:$0xf]
  %v473 = vld [vmem:[%s468 + $0x10] sm:$0xf]
  %v474 = vld [vmem:[%s468 + $0x14] sm:$0xf]
  %v475 = vld [vmem:[%s468 + $0x18] sm:$0xf]
  %v476 = vld [vmem:[%s468 + $0x1c] sm:$0xf]
  %v485 = vunpack.c.l.b16 %v469
  %v486 = vunpack.c.l.b16 %v470
  %v487 = vunpack.c.l.b16 %v471
  %v488 = vunpack.c.l.b16 %v472
  %v489 = vunpack.c.l.b16 %v473
  %v490 = vunpack.c.l.b16 %v474
  %v491 = vunpack.c.l.b16 %v475
  %v492 = vunpack.c.l.b16 %v476
  %v493 = vpack.c.b16 %v486, %v485
  %v494 = vpack.c.b16 %v488, %v487
  %v495 = vpack.c.b16 %v490, %v489
  %v496 = vpack.c.b16 %v492, %v491
  %v502 = vsel %vm175, %v467, 0
  %504 = vmatprep.subr.bf16.mxu0 0
  %505 = vmatpush1.bf16.msra.mxu0 0
  %506 = vmatprep.subr.bf16.mxu0 0
  %507 = vmatpush1.bf16.msra.mxu0 0
  %508 = vmatprep.subr.bf16.mxu0 0
  %509 = vmatpush1.bf16.msra.mxu0 0
  %510 = vmatprep.subr.bf16.mxu0 0
  %511 = vmatpush1.bf16.msra.mxu0 0
  %512 = vmatprep.subr.bf16.mxu0 0
  %513 = vmatpush1.bf16.msra.mxu0 %v496
  %514 = vmatprep.subr.bf16.mxu0 0
  %515 = vmatpush1.bf16.msra.mxu0 %v495
  %516 = vmatprep.subr.bf16.mxu0 0
  %517 = vmatpush1.bf16.msra.mxu0 %v494
  %518 = vmatprep.subr.bf16.mxu0 0
  %519 = vmatpush1.bf16.msra.mxu0 %v493
  %520 = vmatprep.subr.bf16.mxu0 0
  %521 = vmatpush2.bf16.msra.mxu0 0
  %522 = vmatprep.subr.bf16.mxu0 0
  %523 = vmatpush2.bf16.msra.mxu0 0
  %524 = vmatprep.subr.bf16.mxu0 0
  %525 = vmatpush2.bf16.msra.mxu0 0
  %526 = vmatprep.subr.bf16.mxu0 0
  %527 = vmatpush2.bf16.msra.mxu0 0
  %528 = vmatprep.subr.bf16.mxu0 0
  %529 = vmatpush2.bf16.msra.mxu0 0
  %530 = vmatprep.subr.bf16.mxu0 0
  %531 = vmatpush2.bf16.msra.mxu0 0
  %532 = vmatprep.subr.bf16.mxu0 0
  %533 = vmatpush2.bf16.msra.mxu0 0
  %534 = vmatprep.subr.bf16.mxu0 0
  %535 = vmatpush2.bf16.msra.mxu0 0
  %536 = vmatprep.mubr.bf16.mxu0 0
  %537 = vmatmul.mubr.bf16.gmra.mxu0 %v502
  %v538 = vpop.f32.mrf.mxu0
  %v539 = vadd.f32 0.0, %v538
  %v540 = vpop.f32.mrf.mxu0
  %v541 = vpop.f32.mrf.mxu0
  %v542 = vadd.f32 0.0, %v541
  %v543 = vpop.f32.mrf.mxu0
  %544 = vdwg.mxu0
  %v545 = vld [vmem:[#allocation2 + $0x8] sm:$0xff]
  %v546 = vld [vmem:[#allocation2 + $0x18] sm:$0xff]
  %v547 = vpack.c.bf16 %v546, %v545
  %s548 = scalar_lea.vmem %s2, 256
  %v549 = vld [vmem:[%s548] sm:$0xf]
  %v550 = vld [vmem:[%s548 + $0x4] sm:$0xf]
  %v551 = vld [vmem:[%s548 + $0x8] sm:$0xf]
  %v552 = vld [vmem:[%s548 + $0xc] sm:$0xf]
  %v553 = vld [vmem:[%s548 + $0x10] sm:$0xf]
  %v554 = vld [vmem:[%s548 + $0x14] sm:$0xf]
  %v555 = vld [vmem:[%s548 + $0x18] sm:$0xf]
  %v556 = vld [vmem:[%s548 + $0x1c] sm:$0xf]
  %v565 = vunpack.c.l.b16 %v549
  %v566 = vunpack.c.l.b16 %v550
  %v567 = vunpack.c.l.b16 %v551
  %v568 = vunpack.c.l.b16 %v552
  %v569 = vunpack.c.l.b16 %v553
  %v570 = vunpack.c.l.b16 %v554
  %v571 = vunpack.c.l.b16 %v555
  %v572 = vunpack.c.l.b16 %v556
  %v573 = vpack.c.b16 %v566, %v565
  %v574 = vpack.c.b16 %v568, %v567
  %v575 = vpack.c.b16 %v570, %v569
  %v576 = vpack.c.b16 %v572, %v571
  %v582 = vsel %vm175, %v547, 0
  %584 = vmatprep.subr.bf16.mxu0 0
  %585 = vmatpush1.bf16.msra.mxu0 0
  %586 = vmatprep.subr.bf16.mxu0 0
  %587 = vmatpush1.bf16.msra.mxu0 0
  %588 = vmatprep.subr.bf16.mxu0 0
  %589 = vmatpush1.bf16.msra.mxu0 0
  %590 = vmatprep.subr.bf16.mxu0 0
  %591 = vmatpush1.bf16.msra.mxu0 0
  %592 = vmatprep.subr.bf16.mxu0 0
  %593 = vmatpush1.bf16.msra.mxu0 %v576
  %594 = vmatprep.subr.bf16.mxu0 0
  %595 = vmatpush1.bf16.msra.mxu0 %v575
  %596 = vmatprep.subr.bf16.mxu0 0
  %597 = vmatpush1.bf16.msra.mxu0 %v574
  %598 = vmatprep.subr.bf16.mxu0 0
  %599 = vmatpush1.bf16.msra.mxu0 %v573
  %600 = vmatprep.subr.bf16.mxu0 0
  %601 = vmatpush2.bf16.msra.mxu0 0
  %602 = vmatprep.subr.bf16.mxu0 0
  %603 = vmatpush2.bf16.msra.mxu0 0
  %604 = vmatprep.subr.bf16.mxu0 0
  %605 = vmatpush2.bf16.msra.mxu0 0
  %606 = vmatprep.subr.bf16.mxu0 0
  %607 = vmatpush2.bf16.msra.mxu0 0
  %608 = vmatprep.subr.bf16.mxu0 0
  %609 = vmatpush2.bf16.msra.mxu0 0
  %610 = vmatprep.subr.bf16.mxu0 0
  %611 = vmatpush2.bf16.msra.mxu0 0
  %612 = vmatprep.subr.bf16.mxu0 0
  %613 = vmatpush2.bf16.msra.mxu0 0
  %614 = vmatprep.subr.bf16.mxu0 0
  %615 = vmatpush2.bf16.msra.mxu0 0
  %616 = vmatprep.mubr.bf16.mxu0 0
  %617 = vmatmul.mubr.bf16.gmra.mxu0 %v582
  %v618 = vpop.f32.mrf.mxu0
  %v619 = vadd.f32 0.0, %v618
  %v620 = vpop.f32.mrf.mxu0
  %v621 = vpop.f32.mrf.mxu0
  %v622 = vadd.f32 0.0, %v621
  %v623 = vpop.f32.mrf.mxu0
  %624 = vdwg.mxu0
  %v633 = vunpack.c.l.b16 %v183
  %v634 = vunpack.c.l.b16 %v184
  %v635 = vunpack.c.l.b16 %v185
  %v636 = vunpack.c.l.b16 %v186
  %v637 = vunpack.c.l.b16 %v187
  %v638 = vunpack.c.l.b16 %v188
  %v639 = vunpack.c.l.b16 %v189
  %v640 = vunpack.c.l.b16 %v190
  %v641 = vpack.c.b16 %v634, %v633
  %v642 = vpack.c.b16 %v636, %v635
  %v643 = vpack.c.b16 %v638, %v637
  %v644 = vpack.c.b16 %v640, %v639
  %v650 = vsel %vm175, %v182, 0
  %652 = vmatprep.subr.bf16.mxu0 0
  %653 = vmatpush1.bf16.msra.mxu0 0
  %654 = vmatprep.subr.bf16.mxu0 0
  %655 = vmatpush1.bf16.msra.mxu0 0
  %656 = vmatprep.subr.bf16.mxu0 0
  %657 = vmatpush1.bf16.msra.mxu0 0
  %658 = vmatprep.subr.bf16.mxu0 0
  %659 = vmatpush1.bf16.msra.mxu0 0
  %660 = vmatprep.subr.bf16.mxu0 0
  %661 = vmatpush1.bf16.msra.mxu0 %v644
  %662 = vmatprep.subr.bf16.mxu0 0
  %663 = vmatpush1.bf16.msra.mxu0 %v643
  %664 = vmatprep.subr.bf16.mxu0 0
  %665 = vmatpush1.bf16.msra.mxu0 %v642
  %666 = vmatprep.subr.bf16.mxu0 0
  %667 = vmatpush1.bf16.msra.mxu0 %v641
  %668 = vmatprep.subr.bf16.mxu0 0
  %669 = vmatpush2.bf16.msra.mxu0 0
  %670 = vmatprep.subr.bf16.mxu0 0
  %671 = vmatpush2.bf16.msra.mxu0 0
  %672 = vmatprep.subr.bf16.mxu0 0
  %673 = vmatpush2.bf16.msra.mxu0 0
  %674 = vmatprep.subr.bf16.mxu0 0
  %675 = vmatpush2.bf16.msra.mxu0 0
  %676 = vmatprep.subr.bf16.mxu0 0
  %677 = vmatpush2.bf16.msra.mxu0 0
  %678 = vmatprep.subr.bf16.mxu0 0
  %679 = vmatpush2.bf16.msra.mxu0 0
  %680 = vmatprep.subr.bf16.mxu0 0
  %681 = vmatpush2.bf16.msra.mxu0 0
  %682 = vmatprep.subr.bf16.mxu0 0
  %683 = vmatpush2.bf16.msra.mxu0 0
  %684 = vmatprep.mubr.bf16.mxu0 0
  %685 = vmatmul.mubr.bf16.gmra.mxu0 %v650
  %v686 = vpop.f32.mrf.mxu0
  %v687 = vadd.f32 %v265, %v686
  %v688 = vpop.f32.mrf.mxu0
  %v689 = vpop.f32.mrf.mxu0
  %v690 = vadd.f32 %v268, %v689
  %v691 = vpop.f32.mrf.mxu0
  %692 = vdwg.mxu0
  %v701 = vunpack.c.l.b16 %v275
  %v702 = vunpack.c.l.b16 %v276
  %v703 = vunpack.c.l.b16 %v277
  %v704 = vunpack.c.l.b16 %v278
  %v705 = vunpack.c.l.b16 %v279
  %v706 = vunpack.c.l.b16 %v280
  %v707 = vunpack.c.l.b16 %v281
  %v708 = vunpack.c.l.b16 %v282
  %v709 = vpack.c.b16 %v702, %v701
  %v710 = vpack.c.b16 %v704, %v703
  %v711 = vpack.c.b16 %v706, %v705
  %v712 = vpack.c.b16 %v708, %v707
  %v718 = vsel %vm175, %v273, 0
  %720 = vmatprep.subr.bf16.mxu0 0
  %721 = vmatpush1.bf16.msra.mxu0 0
  %722 = vmatprep.subr.bf16.mxu0 0
  %723 = vmatpush1.bf16.msra.mxu0 0
  %724 = vmatprep.subr.bf16.mxu0 0
  %725 = vmatpush1.bf16.msra.mxu0 0
  %726 = vmatprep.subr.bf16.mxu0 0
  %727 = vmatpush1.bf16.msra.mxu0 0
  %728 = vmatprep.subr.bf16.mxu0 0
  %729 = vmatpush1.bf16.msra.mxu0 %v712
  %730 = vmatprep.subr.bf16.mxu0 0
  %731 = vmatpush1.bf16.msra.mxu0 %v711
  %732 = vmatprep.subr.bf16.mxu0 0
  %733 = vmatpush1.bf16.msra.mxu0 %v710
  %734 = vmatprep.subr.bf16.mxu0 0
  %735 = vmatpush1.bf16.msra.mxu0 %v709
  %736 = vmatprep.subr.bf16.mxu0 0
  %737 = vmatpush2.bf16.msra.mxu0 0
  %738 = vmatprep.subr.bf16.mxu0 0
  %739 = vmatpush2.bf16.msra.mxu0 0
  %740 = vmatprep.subr.bf16.mxu0 0
  %741 = vmatpush2.bf16.msra.mxu0 0
  %742 = vmatprep.subr.bf16.mxu0 0
  %743 = vmatpush2.bf16.msra.mxu0 0
  %744 = vmatprep.subr.bf16.mxu0 0
  %745 = vmatpush2.bf16.msra.mxu0 0
  %746 = vmatprep.subr.bf16.mxu0 0
  %747 = vmatpush2.bf16.msra.mxu0 0
  %748 = vmatprep.subr.bf16.mxu0 0
  %749 = vmatpush2.bf16.msra.mxu0 0
  %750 = vmatprep.subr.bf16.mxu0 0
  %751 = vmatpush2.bf16.msra.mxu0 0
  %752 = vmatprep.mubr.bf16.mxu0 0
  %753 = vmatmul.mubr.bf16.gmra.mxu0 %v718
  %v754 = vpop.f32.mrf.mxu0
  %v755 = vadd.f32 %v357, %v754
  %v756 = vpop.f32.mrf.mxu0
  %v757 = vpop.f32.mrf.mxu0
  %v758 = vadd.f32 %v360, %v757
  %v759 = vpop.f32.mrf.mxu0
  %760 = vdwg.mxu0
  %v769 = vunpack.c.l.b16 %v365
  %v770 = vunpack.c.l.b16 %v366
  %v771 = vunpack.c.l.b16 %v367
  %v772 = vunpack.c.l.b16 %v368
  %v773 = vunpack.c.l.b16 %v369
  %v774 = vunpack.c.l.b16 %v370
  %v775 = vunpack.c.l.b16 %v371
  %v776 = vunpack.c.l.b16 %v372
  %v777 = vpack.c.b16 %v770, %v769
  %v778 = vpack.c.b16 %v772, %v771
  %v779 = vpack.c.b16 %v774, %v773
  %v780 = vpack.c.b16 %v776, %v775
  %v786 = vsel %vm175, %v363, 0
  %788 = vmatprep.subr.bf16.mxu0 0
  %789 = vmatpush1.bf16.msra.mxu0 0
  %790 = vmatprep.subr.bf16.mxu0 0
  %791 = vmatpush1.bf16.msra.mxu0 0
  %792 = vmatprep.subr.bf16.mxu0 0
  %793 = vmatpush1.bf16.msra.mxu0 0
  %794 = vmatprep.subr.bf16.mxu0 0
  %795 = vmatpush1.bf16.msra.mxu0 0
  %796 = vmatprep.subr.bf16.mxu0 0
  %797 = vmatpush1.bf16.msra.mxu0 %v780
  %798 = vmatprep.subr.bf16.mxu0 0
  %799 = vmatpush1.bf16.msra.mxu0 %v779
  %800 = vmatprep.subr.bf16.mxu0 0
  %801 = vmatpush1.bf16.msra.mxu0 %v778
  %802 = vmatprep.subr.bf16.mxu0 0
  %803 = vmatpush1.bf16.msra.mxu0 %v777
  %804 = vmatprep.subr.bf16.mxu0 0
  %805 = vmatpush2.bf16.msra.mxu0 0
  %806 = vmatprep.subr.bf16.mxu0 0
  %807 = vmatpush2.bf16.msra.mxu0 0
  %808 = vmatprep.subr.bf16.mxu0 0
  %809 = vmatpush2.bf16.msra.mxu0 0
  %810 = vmatprep.subr.bf16.mxu0 0
  %811 = vmatpush2.bf16.msra.mxu0 0
  %812 = vmatprep.subr.bf16.mxu0 0
  %813 = vmatpush2.bf16.msra.mxu0 0
  %814 = vmatprep.subr.bf16.mxu0 0
  %815 = vmatpush2.bf16.msra.mxu0 0
  %816 = vmatprep.subr.bf16.mxu0 0
  %817 = vmatpush2.bf16.msra.mxu0 0
  %818 = vmatprep.subr.bf16.mxu0 0
  %819 = vmatpush2.bf16.msra.mxu0 0
  %820 = vmatprep.mubr.bf16.mxu0 0
  %821 = vmatmul.mubr.bf16.gmra.mxu0 %v786
  %v822 = vpop.f32.mrf.mxu0
  %v823 = vadd.f32 %v447, %v822
  %v824 = vpop.f32.mrf.mxu0
  %v825 = vpop.f32.mrf.mxu0
  %v826 = vadd.f32 %v450, %v825
  %v827 = vpop.f32.mrf.mxu0
  %828 = vdwg.mxu0
  %v837 = vunpack.c.l.b16 %v457
  %v838 = vunpack.c.l.b16 %v458
  %v839 = vunpack.c.l.b16 %v459
  %v840 = vunpack.c.l.b16 %v460
  %v841 = vunpack.c.l.b16 %v461
  %v842 = vunpack.c.l.b16 %v462
  %v843 = vunpack.c.l.b16 %v463
  %v844 = vunpack.c.l.b16 %v464
  %v845 = vpack.c.b16 %v838, %v837
  %v846 = vpack.c.b16 %v840, %v839
  %v847 = vpack.c.b16 %v842, %v841
  %v848 = vpack.c.b16 %v844, %v843
  %v854 = vsel %vm175, %v455, 0
  %856 = vmatprep.subr.bf16.mxu0 0
  %857 = vmatpush1.bf16.msra.mxu0 0
  %858 = vmatprep.subr.bf16.mxu0 0
  %859 = vmatpush1.bf16.msra.mxu0 0
  %860 = vmatprep.subr.bf16.mxu0 0
  %861 = vmatpush1.bf16.msra.mxu0 0
  %862 = vmatprep.subr.bf16.mxu0 0
  %863 = vmatpush1.bf16.msra.mxu0 0
  %864 = vmatprep.subr.bf16.mxu0 0
  %865 = vmatpush1.bf16.msra.mxu0 %v848
  %866 = vmatprep.subr.bf16.mxu0 0
  %867 = vmatpush1.bf16.msra.mxu0 %v847
  %868 = vmatprep.subr.bf16.mxu0 0
  %869 = vmatpush1.bf16.msra.mxu0 %v846
  %870 = vmatprep.subr.bf16.mxu0 0
  %871 = vmatpush1.bf16.msra.mxu0 %v845
  %872 = vmatprep.subr.bf16.mxu0 0
  %873 = vmatpush2.bf16.msra.mxu0 0
  %874 = vmatprep.subr.bf16.mxu0 0
  %875 = vmatpush2.bf16.msra.mxu0 0
  %876 = vmatprep.subr.bf16.mxu0 0
  %877 = vmatpush2.bf16.msra.mxu0 0
  %878 = vmatprep.subr.bf16.mxu0 0
  %879 = vmatpush2.bf16.msra.mxu0 0
  %880 = vmatprep.subr.bf16.mxu0 0
  %881 = vmatpush2.bf16.msra.mxu0 0
  %882 = vmatprep.subr.bf16.mxu0 0
  %883 = vmatpush2.bf16.msra.mxu0 0
  %884 = vmatprep.subr.bf16.mxu0 0
  %885 = vmatpush2.bf16.msra.mxu0 0
  %886 = vmatprep.subr.bf16.mxu0 0
  %887 = vmatpush2.bf16.msra.mxu0 0
  %888 = vmatprep.mubr.bf16.mxu0 0
  %889 = vmatmul.mubr.bf16.gmra.mxu0 %v854
  %v890 = vpop.f32.mrf.mxu0
  %v891 = vadd.f32 %v539, %v890
  %v892 = vpop.f32.mrf.mxu0
  %v893 = vpop.f32.mrf.mxu0
  %v894 = vadd.f32 %v542, %v893
  %v895 = vpop.f32.mrf.mxu0
  %896 = vdwg.mxu0
  %v897 = vadd.f32 %v687, %v755
  %v898 = vadd.f32 %v690, %v758
  %v899 = vadd.f32 %v823, %v891
  %v900 = vadd.f32 %v826, %v894
  %v901 = vadd.f32 %v897, %v899
  %v902 = vadd.f32 %v898, %v900
  %v903 = vadd.f32 %v901, %v619
  %v904 = vadd.f32 %v902, %v622
  %v905 = vld [vmem:[%s3] sm:$0x1]
  %v907 = vlaneseq
  %v908 = vshrl.u32 %v907, 7
  %v909 = vsub.s32 0, %v908
  %v910 = vrot.slane %v905, %v909
  %v912 = vadd.f32 %v903, %v910
  %v913 = vadd.f32 %v904, %v910
  %v914 = vsel %vm175, %v912, 0.0
  %v915 = vrot.slane %v914, 4
  %v916 = vadd.f32 %v914, %v915
  %v917 = vrot.slane %v916, 2
  %v918 = vadd.f32 %v916, %v917
  %v919 = vrot.slane %v918, 1
  %v920 = vadd.f32 %v918, %v919
  %v921 = vsel %vm175, %v913, 0.0
  %v922 = vrot.slane %v921, 4
  %v923 = vadd.f32 %v921, %v922
  %v924 = vrot.slane %v923, 2
  %v925 = vadd.f32 %v923, %v924
  %v926 = vrot.slane %v925, 1
  %v927 = vadd.f32 %v925, %v926
  %v928 = vmul.f32 %v912, %v912
  %v929 = vmul.f32 %v913, %v913
  %v930 = vsel %vm175, %v928, 0.0
  %v931 = vrot.slane %v930, 4
  %v932 = vadd.f32 %v930, %v931
  %v933 = vrot.slane %v932, 2
  %v934 = vadd.f32 %v932, %v933
  %v935 = vrot.slane %v934, 1
  %v936 = vadd.f32 %v934, %v935
  %v937 = vsel %vm175, %v929, 0.0
  %v938 = vrot.slane %v937, 4
  %v939 = vadd.f32 %v937, %v938
  %v940 = vrot.slane %v939, 2
  %v941 = vadd.f32 %v939, %v940
  %v942 = vrot.slane %v941, 1
  %v943 = vadd.f32 %v941, %v942
  %v944 = vmul.f32 %v920, 0.125
  %v945 = vmul.f32 %v927, 0.125
  %v946 = vmul.f32 %v936, 0.125
  %v947 = vmul.f32 %v943, 0.125
  %v948 = vmul.f32 %v944, %v944
  %v949 = vmul.f32 %v945, %v945
  %v950 = vsub.f32 %v946, %v948
  %v951 = vsub.f32 %v947, %v949
  %v952 = vsub.f32 %v912, %v944
  %v953 = vsub.f32 %v913, %v945
  %v954 = vadd.f32 %v950, 1e-05
  %v955 = vadd.f32 %v951, 1e-05
  %v956 = vrsqrt.pop %v954
  %v957 = vrsqrt.pop %v955
  %v958 = vmul.f32 %v952, %v956
  %v959 = vmul.f32 %v953, %v957
  %v960 = vmax.f32 %v958, 0.0
  %v961 = vmax.f32 %v959, 0.0
  %962 = vst.msk [vmem:[#allocation2 + $0x4] sm:$0xff] %vm175, %v960
  %963 = vst.msk [vmem:[#allocation2 + $0x14] sm:$0xff] %vm175, %v961
  %v964 = vld [vmem:[#allocation2] sm:$0xff]
  %v965 = vld [vmem:[#allocation2 + $0x10] sm:$0xff]
  %v966 = vpack.c.bf16 %v965, %v964
  %s967 = scalar_lea.vmem %s2, 288
  %v968 = vld [vmem:[%s967] sm:$0xf]
  %v969 = vld [vmem:[%s967 + $0x4] sm:$0xf]
  %v970 = vld [vmem:[%s967 + $0x8] sm:$0xf]
  %v971 = vld [vmem:[%s967 + $0xc] sm:$0xf]
  %v972 = vld [vmem:[%s967 + $0x10] sm:$0xf]
  %v973 = vld [vmem:[%s967 + $0x14] sm:$0xf]
  %v974 = vld [vmem:[%s967 + $0x18] sm:$0xf]
  %v975 = vld [vmem:[%s967 + $0x1c] sm:$0xf]
  %v976 = vld [vmem:[#allocation2 + $0x1] sm:$0xff]
  %v977 = vld [vmem:[#allocation2 + $0x11] sm:$0xff]
  %v978 = vpack.c.bf16 %v977, %v976
  %s979 = scalar_lea.vmem %s2, 320
  %v980 = vld [vmem:[%s979] sm:$0xf]
  %v981 = vld [vmem:[%s979 + $0x4] sm:$0xf]
  %v982 = vld [vmem:[%s979 + $0x8] sm:$0xf]
  %v983 = vld [vmem:[%s979 + $0xc] sm:$0xf]
  %v984 = vld [vmem:[%s979 + $0x10] sm:$0xf]
  %v985 = vld [vmem:[%s979 + $0x14] sm:$0xf]
  %v986 = vld [vmem:[%s979 + $0x18] sm:$0xf]
  %v987 = vld [vmem:[%s979 + $0x1c] sm:$0xf]
  %v996 = vunpack.c.l.b16 %v980
  %v997 = vunpack.c.l.b16 %v981
  %v998 = vunpack.c.l.b16 %v982
  %v999 = vunpack.c.l.b16 %v983
  %v1000 = vunpack.c.l.b16 %v984
  %v1001 = vunpack.c.l.b16 %v985
  %v1002 = vunpack.c.l.b16 %v986
  %v1003 = vunpack.c.l.b16 %v987
  %v1004 = vpack.c.b16 %v997, %v996
  %v1005 = vpack.c.b16 %v999, %v998
  %v1006 = vpack.c.b16 %v1001, %v1000
  %v1007 = vpack.c.b16 %v1003, %v1002
  %v1013 = vsel %vm175, %v978, 0
  %1015 = vmatprep.subr.bf16.mxu0 0
  %1016 = vmatpush1.bf16.msra.mxu0 0
  %1017 = vmatprep.subr.bf16.mxu0 0
  %1018 = vmatpush1.bf16.msra.mxu0 0
  %1019 = vmatprep.subr.bf16.mxu0 0
  %1020 = vmatpush1.bf16.msra.mxu0 0
  %1021 = vmatprep.subr.bf16.mxu0 0
  %1022 = vmatpush1.bf16.msra.mxu0 0
  %1023 = vmatprep.subr.bf16.mxu0 0
  %1024 = vmatpush1.bf16.msra.mxu0 %v1007
  %1025 = vmatprep.subr.bf16.mxu0 0
  %1026 = vmatpush1.bf16.msra.mxu0 %v1006
  %1027 = vmatprep.subr.bf16.mxu0 0
  %1028 = vmatpush1.bf16.msra.mxu0 %v1005
  %1029 = vmatprep.subr.bf16.mxu0 0
  %1030 = vmatpush1.bf16.msra.mxu0 %v1004
  %1031 = vmatprep.subr.bf16.mxu0 0
  %1032 = vmatpush2.bf16.msra.mxu0 0
  %1033 = vmatprep.subr.bf16.mxu0 0
  %1034 = vmatpush2.bf16.msra.mxu0 0
  %1035 = vmatprep.subr.bf16.mxu0 0
  %1036 = vmatpush2.bf16.msra.mxu0 0
  %1037 = vmatprep.subr.bf16.mxu0 0
  %1038 = vmatpush2.bf16.msra.mxu0 0
  %1039 = vmatprep.subr.bf16.mxu0 0
  %1040 = vmatpush2.bf16.msra.mxu0 0
  %1041 = vmatprep.subr.bf16.mxu0 0
  %1042 = vmatpush2.bf16.msra.mxu0 0
  %1043 = vmatprep.subr.bf16.mxu0 0
  %1044 = vmatpush2.bf16.msra.mxu0 0
  %1045 = vmatprep.subr.bf16.mxu0 0
  %1046 = vmatpush2.bf16.msra.mxu0 0
  %1047 = vmatprep.mubr.bf16.mxu0 0
  %1048 = vmatmul.mubr.bf16.gmra.mxu0 %v1013
  %v1049 = vpop.f32.mrf.mxu0
  %v1050 = vadd.f32 0.0, %v1049
  %v1051 = vpop.f32.mrf.mxu0
  %v1052 = vpop.f32.mrf.mxu0
  %v1053 = vadd.f32 0.0, %v1052
  %v1054 = vpop.f32.mrf.mxu0
  %1055 = vdwg.mxu0
  %v1056 = vld [vmem:[#allocation2 + $0x2] sm:$0xff]
  %v1057 = vld [vmem:[#allocation2 + $0x12] sm:$0xff]
  %v1058 = vpack.c.bf16 %v1057, %v1056
  %s1059 = scalar_lea.vmem %s2, 352
  %v1060 = vld [vmem:[%s1059] sm:$0xf]
  %v1061 = vld [vmem:[%s1059 + $0x4] sm:$0xf]
  %v1062 = vld [vmem:[%s1059 + $0x8] sm:$0xf]
  %v1063 = vld [vmem:[%s1059 + $0xc] sm:$0xf]
  %v1064 = vld [vmem:[%s1059 + $0x10] sm:$0xf]
  %v1065 = vld [vmem:[%s1059 + $0x14] sm:$0xf]
  %v1066 = vld [vmem:[%s1059 + $0x18] sm:$0xf]
  %v1067 = vld [vmem:[%s1059 + $0x1c] sm:$0xf]
  %v1068 = vld [vmem:[#allocation2 + $0x3] sm:$0xff]
  %v1069 = vld [vmem:[#allocation2 + $0x13] sm:$0xff]
  %v1070 = vpack.c.bf16 %v1069, %v1068
  %s1071 = scalar_lea.vmem %s2, 384
  %v1072 = vld [vmem:[%s1071] sm:$0xf]
  %v1073 = vld [vmem:[%s1071 + $0x4] sm:$0xf]
  %v1074 = vld [vmem:[%s1071 + $0x8] sm:$0xf]
  %v1075 = vld [vmem:[%s1071 + $0xc] sm:$0xf]
  %v1076 = vld [vmem:[%s1071 + $0x10] sm:$0xf]
  %v1077 = vld [vmem:[%s1071 + $0x14] sm:$0xf]
  %v1078 = vld [vmem:[%s1071 + $0x18] sm:$0xf]
  %v1079 = vld [vmem:[%s1071 + $0x1c] sm:$0xf]
  %v1088 = vunpack.c.l.b16 %v1072
  %v1089 = vunpack.c.l.b16 %v1073
  %v1090 = vunpack.c.l.b16 %v1074
  %v1091 = vunpack.c.l.b16 %v1075
  %v1092 = vunpack.c.l.b16 %v1076
  %v1093 = vunpack.c.l.b16 %v1077
  %v1094 = vunpack.c.l.b16 %v1078
  %v1095 = vunpack.c.l.b16 %v1079
  %v1096 = vpack.c.b16 %v1089, %v1088
  %v1097 = vpack.c.b16 %v1091, %v1090
  %v1098 = vpack.c.b16 %v1093, %v1092
  %v1099 = vpack.c.b16 %v1095, %v1094
  %v1105 = vsel %vm175, %v1070, 0
  %1107 = vmatprep.subr.bf16.mxu0 0
  %1108 = vmatpush1.bf16.msra.mxu0 0
  %1109 = vmatprep.subr.bf16.mxu0 0
  %1110 = vmatpush1.bf16.msra.mxu0 0
  %1111 = vmatprep.subr.bf16.mxu0 0
  %1112 = vmatpush1.bf16.msra.mxu0 0
  %1113 = vmatprep.subr.bf16.mxu0 0
  %1114 = vmatpush1.bf16.msra.mxu0 0
  %1115 = vmatprep.subr.bf16.mxu0 0
  %1116 = vmatpush1.bf16.msra.mxu0 %v1099
  %1117 = vmatprep.subr.bf16.mxu0 0
  %1118 = vmatpush1.bf16.msra.mxu0 %v1098
  %1119 = vmatprep.subr.bf16.mxu0 0
  %1120 = vmatpush1.bf16.msra.mxu0 %v1097
  %1121 = vmatprep.subr.bf16.mxu0 0
  %1122 = vmatpush1.bf16.msra.mxu0 %v1096
  %1123 = vmatprep.subr.bf16.mxu0 0
  %1124 = vmatpush2.bf16.msra.mxu0 0
  %1125 = vmatprep.subr.bf16.mxu0 0
  %1126 = vmatpush2.bf16.msra.mxu0 0
  %1127 = vmatprep.subr.bf16.mxu0 0
  %1128 = vmatpush2.bf16.msra.mxu0 0
  %1129 = vmatprep.subr.bf16.mxu0 0
  %1130 = vmatpush2.bf16.msra.mxu0 0
  %1131 = vmatprep.subr.bf16.mxu0 0
  %1132 = vmatpush2.bf16.msra.mxu0 0
  %1133 = vmatprep.subr.bf16.mxu0 0
  %1134 = vmatpush2.bf16.msra.mxu0 0
  %1135 = vmatprep.subr.bf16.mxu0 0
  %1136 = vmatpush2.bf16.msra.mxu0 0
  %1137 = vmatprep.subr.bf16.mxu0 0
  %1138 = vmatpush2.bf16.msra.mxu0 0
  %1139 = vmatprep.mubr.bf16.mxu0 0
  %1140 = vmatmul.mubr.bf16.gmra.mxu0 %v1105
  %v1141 = vpop.f32.mrf.mxu0
  %v1142 = vadd.f32 0.0, %v1141
  %v1143 = vpop.f32.mrf.mxu0
  %v1144 = vpop.f32.mrf.mxu0
  %v1145 = vadd.f32 0.0, %v1144
  %v1146 = vpop.f32.mrf.mxu0
  %1147 = vdwg.mxu0
  %v1148 = vld [vmem:[#allocation2 + $0x4] sm:$0xff]
  %v1149 = vld [vmem:[#allocation2 + $0x14] sm:$0xff]
  %v1150 = vpack.c.bf16 %v1149, %v1148
  %s1151 = scalar_lea.vmem %s2, 416
  %v1152 = vld [vmem:[%s1151] sm:$0xf]
  %v1153 = vld [vmem:[%s1151 + $0x4] sm:$0xf]
  %v1154 = vld [vmem:[%s1151 + $0x8] sm:$0xf]
  %v1155 = vld [vmem:[%s1151 + $0xc] sm:$0xf]
  %v1156 = vld [vmem:[%s1151 + $0x10] sm:$0xf]
  %v1157 = vld [vmem:[%s1151 + $0x14] sm:$0xf]
  %v1158 = vld [vmem:[%s1151 + $0x18] sm:$0xf]
  %v1159 = vld [vmem:[%s1151 + $0x1c] sm:$0xf]
  %v1160 = vld [vmem:[#allocation2 + $0x5] sm:$0xff]
  %v1161 = vld [vmem:[#allocation2 + $0x15] sm:$0xff]
  %v1162 = vpack.c.bf16 %v1161, %v1160
  %s1163 = scalar_lea.vmem %s2, 448
  %v1164 = vld [vmem:[%s1163] sm:$0xf]
  %v1165 = vld [vmem:[%s1163 + $0x4] sm:$0xf]
  %v1166 = vld [vmem:[%s1163 + $0x8] sm:$0xf]
  %v1167 = vld [vmem:[%s1163 + $0xc] sm:$0xf]
  %v1168 = vld [vmem:[%s1163 + $0x10] sm:$0xf]
  %v1169 = vld [vmem:[%s1163 + $0x14] sm:$0xf]
  %v1170 = vld [vmem:[%s1163 + $0x18] sm:$0xf]
  %v1171 = vld [vmem:[%s1163 + $0x1c] sm:$0xf]
  %v1180 = vunpack.c.l.b16 %v1164
  %v1181 = vunpack.c.l.b16 %v1165
  %v1182 = vunpack.c.l.b16 %v1166
  %v1183 = vunpack.c.l.b16 %v1167
  %v1184 = vunpack.c.l.b16 %v1168
  %v1185 = vunpack.c.l.b16 %v1169
  %v1186 = vunpack.c.l.b16 %v1170
  %v1187 = vunpack.c.l.b16 %v1171
  %v1188 = vpack.c.b16 %v1181, %v1180
  %v1189 = vpack.c.b16 %v1183, %v1182
  %v1190 = vpack.c.b16 %v1185, %v1184
  %v1191 = vpack.c.b16 %v1187, %v1186
  %v1197 = vsel %vm175, %v1162, 0
  %1199 = vmatprep.subr.bf16.mxu0 0
  %1200 = vmatpush1.bf16.msra.mxu0 0
  %1201 = vmatprep.subr.bf16.mxu0 0
  %1202 = vmatpush1.bf16.msra.mxu0 0
  %1203 = vmatprep.subr.bf16.mxu0 0
  %1204 = vmatpush1.bf16.msra.mxu0 0
  %1205 = vmatprep.subr.bf16.mxu0 0
  %1206 = vmatpush1.bf16.msra.mxu0 0
  %1207 = vmatprep.subr.bf16.mxu0 0
  %1208 = vmatpush1.bf16.msra.mxu0 %v1191
  %1209 = vmatprep.subr.bf16.mxu0 0
  %1210 = vmatpush1.bf16.msra.mxu0 %v1190
  %1211 = vmatprep.subr.bf16.mxu0 0
  %1212 = vmatpush1.bf16.msra.mxu0 %v1189
  %1213 = vmatprep.subr.bf16.mxu0 0
  %1214 = vmatpush1.bf16.msra.mxu0 %v1188
  %1215 = vmatprep.subr.bf16.mxu0 0
  %1216 = vmatpush2.bf16.msra.mxu0 0
  %1217 = vmatprep.subr.bf16.mxu0 0
  %1218 = vmatpush2.bf16.msra.mxu0 0
  %1219 = vmatprep.subr.bf16.mxu0 0
  %1220 = vmatpush2.bf16.msra.mxu0 0
  %1221 = vmatprep.subr.bf16.mxu0 0
  %1222 = vmatpush2.bf16.msra.mxu0 0
  %1223 = vmatprep.subr.bf16.mxu0 0
  %1224 = vmatpush2.bf16.msra.mxu0 0
  %1225 = vmatprep.subr.bf16.mxu0 0
  %1226 = vmatpush2.bf16.msra.mxu0 0
  %1227 = vmatprep.subr.bf16.mxu0 0
  %1228 = vmatpush2.bf16.msra.mxu0 0
  %1229 = vmatprep.subr.bf16.mxu0 0
  %1230 = vmatpush2.bf16.msra.mxu0 0
  %1231 = vmatprep.mubr.bf16.mxu0 0
  %1232 = vmatmul.mubr.bf16.gmra.mxu0 %v1197
  %v1233 = vpop.f32.mrf.mxu0
  %v1234 = vadd.f32 0.0, %v1233
  %v1235 = vpop.f32.mrf.mxu0
  %v1236 = vpop.f32.mrf.mxu0
  %v1237 = vadd.f32 0.0, %v1236
  %v1238 = vpop.f32.mrf.mxu0
  %1239 = vdwg.mxu0
  %v1240 = vld [vmem:[#allocation2 + $0x6] sm:$0xff]
  %v1241 = vld [vmem:[#allocation2 + $0x16] sm:$0xff]
  %v1242 = vpack.c.bf16 %v1241, %v1240
  %s1243 = scalar_lea.vmem %s2, 480
  %v1244 = vld [vmem:[%s1243] sm:$0xf]
  %v1245 = vld [vmem:[%s1243 + $0x4] sm:$0xf]
  %v1246 = vld [vmem:[%s1243 + $0x8] sm:$0xf]
  %v1247 = vld [vmem:[%s1243 + $0xc] sm:$0xf]
  %v1248 = vld [vmem:[%s1243 + $0x10] sm:$0xf]
  %v1249 = vld [vmem:[%s1243 + $0x14] sm:$0xf]
  %v1250 = vld [vmem:[%s1243 + $0x18] sm:$0xf]
  %v1251 = vld [vmem:[%s1243 + $0x1c] sm:$0xf]
  %v1252 = vld [vmem:[#allocation2 + $0x7] sm:$0xff]
  %v1253 = vld [vmem:[#allocation2 + $0x17] sm:$0xff]
  %v1254 = vpack.c.bf16 %v1253, %v1252
  %s1255 = scalar_lea.vmem %s2, 512
  %v1256 = vld [vmem:[%s1255] sm:$0xf]
  %v1257 = vld [vmem:[%s1255 + $0x4] sm:$0xf]
  %v1258 = vld [vmem:[%s1255 + $0x8] sm:$0xf]
  %v1259 = vld [vmem:[%s1255 + $0xc] sm:$0xf]
  %v1260 = vld [vmem:[%s1255 + $0x10] sm:$0xf]
  %v1261 = vld [vmem:[%s1255 + $0x14] sm:$0xf]
  %v1262 = vld [vmem:[%s1255 + $0x18] sm:$0xf]
  %v1263 = vld [vmem:[%s1255 + $0x1c] sm:$0xf]
  %v1272 = vunpack.c.l.b16 %v1256
  %v1273 = vunpack.c.l.b16 %v1257
  %v1274 = vunpack.c.l.b16 %v1258
  %v1275 = vunpack.c.l.b16 %v1259
  %v1276 = vunpack.c.l.b16 %v1260
  %v1277 = vunpack.c.l.b16 %v1261
  %v1278 = vunpack.c.l.b16 %v1262
  %v1279 = vunpack.c.l.b16 %v1263
  %v1280 = vpack.c.b16 %v1273, %v1272
  %v1281 = vpack.c.b16 %v1275, %v1274
  %v1282 = vpack.c.b16 %v1277, %v1276
  %v1283 = vpack.c.b16 %v1279, %v1278
  %v1289 = vsel %vm175, %v1254, 0
  %1291 = vmatprep.subr.bf16.mxu0 0
  %1292 = vmatpush1.bf16.msra.mxu0 0
  %1293 = vmatprep.subr.bf16.mxu0 0
  %1294 = vmatpush1.bf16.msra.mxu0 0
  %1295 = vmatprep.subr.bf16.mxu0 0
  %1296 = vmatpush1.bf16.msra.mxu0 0
  %1297 = vmatprep.subr.bf16.mxu0 0
  %1298 = vmatpush1.bf16.msra.mxu0 0
  %1299 = vmatprep.subr.bf16.mxu0 0
  %1300 = vmatpush1.bf16.msra.mxu0 %v1283
  %1301 = vmatprep.subr.bf16.mxu0 0
  %1302 = vmatpush1.bf16.msra.mxu0 %v1282
  %1303 = vmatprep.subr.bf16.mxu0 0
  %1304 = vmatpush1.bf16.msra.mxu0 %v1281
  %1305 = vmatprep.subr.bf16.mxu0 0
  %1306 = vmatpush1.bf16.msra.mxu0 %v1280
  %1307 = vmatprep.subr.bf16.mxu0 0
  %1308 = vmatpush2.bf16.msra.mxu0 0
  %1309 = vmatprep.subr.bf16.mxu0 0
  %1310 = vmatpush2.bf16.msra.mxu0 0
  %1311 = vmatprep.subr.bf16.mxu0 0
  %1312 = vmatpush2.bf16.msra.mxu0 0
  %1313 = vmatprep.subr.bf16.mxu0 0
  %1314 = vmatpush2.bf16.msra.mxu0 0
  %1315 = vmatprep.subr.bf16.mxu0 0
  %1316 = vmatpush2.bf16.msra.mxu0 0
  %1317 = vmatprep.subr.bf16.mxu0 0
  %1318 = vmatpush2.bf16.msra.mxu0 0
  %1319 = vmatprep.subr.bf16.mxu0 0
  %1320 = vmatpush2.bf16.msra.mxu0 0
  %1321 = vmatprep.subr.bf16.mxu0 0
  %1322 = vmatpush2.bf16.msra.mxu0 0
  %1323 = vmatprep.mubr.bf16.mxu0 0
  %1324 = vmatmul.mubr.bf16.gmra.mxu0 %v1289
  %v1325 = vpop.f32.mrf.mxu0
  %v1326 = vadd.f32 0.0, %v1325
  %v1327 = vpop.f32.mrf.mxu0
  %v1328 = vpop.f32.mrf.mxu0
  %v1329 = vadd.f32 0.0, %v1328
  %v1330 = vpop.f32.mrf.mxu0
  %1331 = vdwg.mxu0
  %v1332 = vld [vmem:[#allocation2 + $0x8] sm:$0xff]
  %v1333 = vld [vmem:[#allocation2 + $0x18] sm:$0xff]
  %v1334 = vpack.c.bf16 %v1333, %v1332
  %s1335 = scalar_lea.vmem %s2, 544
  %v1336 = vld [vmem:[%s1335] sm:$0xf]
  %v1337 = vld [vmem:[%s1335 + $0x4] sm:$0xf]
  %v1338 = vld [vmem:[%s1335 + $0x8] sm:$0xf]
  %v1339 = vld [vmem:[%s1335 + $0xc] sm:$0xf]
  %v1340 = vld [vmem:[%s1335 + $0x10] sm:$0xf]
  %v1341 = vld [vmem:[%s1335 + $0x14] sm:$0xf]
  %v1342 = vld [vmem:[%s1335 + $0x18] sm:$0xf]
  %v1343 = vld [vmem:[%s1335 + $0x1c] sm:$0xf]
  %v1352 = vunpack.c.l.b16 %v1336
  %v1353 = vunpack.c.l.b16 %v1337
  %v1354 = vunpack.c.l.b16 %v1338
  %v1355 = vunpack.c.l.b16 %v1339
  %v1356 = vunpack.c.l.b16 %v1340
  %v1357 = vunpack.c.l.b16 %v1341
  %v1358 = vunpack.c.l.b16 %v1342
  %v1359 = vunpack.c.l.b16 %v1343
  %v1360 = vpack.c.b16 %v1353, %v1352
  %v1361 = vpack.c.b16 %v1355, %v1354
  %v1362 = vpack.c.b16 %v1357, %v1356
  %v1363 = vpack.c.b16 %v1359, %v1358
  %v1369 = vsel %vm175, %v1334, 0
  %1371 = vmatprep.subr.bf16.mxu0 0
  %1372 = vmatpush1.bf16.msra.mxu0 0
  %1373 = vmatprep.subr.bf16.mxu0 0
  %1374 = vmatpush1.bf16.msra.mxu0 0
  %1375 = vmatprep.subr.bf16.mxu0 0
  %1376 = vmatpush1.bf16.msra.mxu0 0
  %1377 = vmatprep.subr.bf16.mxu0 0
  %1378 = vmatpush1.bf16.msra.mxu0 0
  %1379 = vmatprep.subr.bf16.mxu0 0
  %1380 = vmatpush1.bf16.msra.mxu0 %v1363
  %1381 = vmatprep.subr.bf16.mxu0 0
  %1382 = vmatpush1.bf16.msra.mxu0 %v1362
  %1383 = vmatprep.subr.bf16.mxu0 0
  %1384 = vmatpush1.bf16.msra.mxu0 %v1361
  %1385 = vmatprep.subr.bf16.mxu0 0
  %1386 = vmatpush1.bf16.msra.mxu0 %v1360
  %1387 = vmatprep.subr.bf16.mxu0 0
  %1388 = vmatpush2.bf16.msra.mxu0 0
  %1389 = vmatprep.subr.bf16.mxu0 0
  %1390 = vmatpush2.bf16.msra.mxu0 0
  %1391 = vmatprep.subr.bf16.mxu0 0
  %1392 = vmatpush2.bf16.msra.mxu0 0
  %1393 = vmatprep.subr.bf16.mxu0 0
  %1394 = vmatpush2.bf16.msra.mxu0 0
  %1395 = vmatprep.subr.bf16.mxu0 0
  %1396 = vmatpush2.bf16.msra.mxu0 0
  %1397 = vmatprep.subr.bf16.mxu0 0
  %1398 = vmatpush2.bf16.msra.mxu0 0
  %1399 = vmatprep.subr.bf16.mxu0 0
  %1400 = vmatpush2.bf16.msra.mxu0 0
  %1401 = vmatprep.subr.bf16.mxu0 0
  %1402 = vmatpush2.bf16.msra.mxu0 0
  %1403 = vmatprep.mubr.bf16.mxu0 0
  %1404 = vmatmul.mubr.bf16.gmra.mxu0 %v1369
  %v1405 = vpop.f32.mrf.mxu0
  %v1406 = vadd.f32 0.0, %v1405
  %v1407 = vpop.f32.mrf.mxu0
  %v1408 = vpop.f32.mrf.mxu0
  %v1409 = vadd.f32 0.0, %v1408
  %v1410 = vpop.f32.mrf.mxu0
  %1411 = vdwg.mxu0
  %v1420 = vunpack.c.l.b16 %v968
  %v1421 = vunpack.c.l.b16 %v969
  %v1422 = vunpack.c.l.b16 %v970
  %v1423 = vunpack.c.l.b16 %v971
  %v1424 = vunpack.c.l.b16 %v972
  %v1425 = vunpack.c.l.b16 %v973
  %v1426 = vunpack.c.l.b16 %v974
  %v1427 = vunpack.c.l.b16 %v975
  %v1428 = vpack.c.b16 %v1421, %v1420
  %v1429 = vpack.c.b16 %v1423, %v1422
  %v1430 = vpack.c.b16 %v1425, %v1424
  %v1431 = vpack.c.b16 %v1427, %v1426
  %v1437 = vsel %vm175, %v966, 0
  %1439 = vmatprep.subr.bf16.mxu0 0
  %1440 = vmatpush1.bf16.msra.mxu0 0
  %1441 = vmatprep.subr.bf16.mxu0 0
  %1442 = vmatpush1.bf16.msra.mxu0 0
  %1443 = vmatprep.subr.bf16.mxu0 0
  %1444 = vmatpush1.bf16.msra.mxu0 0
  %1445 = vmatprep.subr.bf16.mxu0 0
  %1446 = vmatpush1.bf16.msra.mxu0 0
  %1447 = vmatprep.subr.bf16.mxu0 0
  %1448 = vmatpush1.bf16.msra.mxu0 %v1431
  %1449 = vmatprep.subr.bf16.mxu0 0
  %1450 = vmatpush1.bf16.msra.mxu0 %v1430
  %1451 = vmatprep.subr.bf16.mxu0 0
  %1452 = vmatpush1.bf16.msra.mxu0 %v1429
  %1453 = vmatprep.subr.bf16.mxu0 0
  %1454 = vmatpush1.bf16.msra.mxu0 %v1428
  %1455 = vmatprep.subr.bf16.mxu0 0
  %1456 = vmatpush2.bf16.msra.mxu0 0
  %1457 = vmatprep.subr.bf16.mxu0 0
  %1458 = vmatpush2.bf16.msra.mxu0 0
  %1459 = vmatprep.subr.bf16.mxu0 0
  %1460 = vmatpush2.bf16.msra.mxu0 0
  %1461 = vmatprep.subr.bf16.mxu0 0
  %1462 = vmatpush2.bf16.msra.mxu0 0
  %1463 = vmatprep.subr.bf16.mxu0 0
  %1464 = vmatpush2.bf16.msra.mxu0 0
  %1465 = vmatprep.subr.bf16.mxu0 0
  %1466 = vmatpush2.bf16.msra.mxu0 0
  %1467 = vmatprep.subr.bf16.mxu0 0
  %1468 = vmatpush2.bf16.msra.mxu0 0
  %1469 = vmatprep.subr.bf16.mxu0 0
  %1470 = vmatpush2.bf16.msra.mxu0 0
  %1471 = vmatprep.mubr.bf16.mxu0 0
  %1472 = vmatmul.mubr.bf16.gmra.mxu0 %v1437
  %v1473 = vpop.f32.mrf.mxu0
  %v1474 = vadd.f32 %v1050, %v1473
  %v1475 = vpop.f32.mrf.mxu0
  %v1476 = vpop.f32.mrf.mxu0
  %v1477 = vadd.f32 %v1053, %v1476
  %v1478 = vpop.f32.mrf.mxu0
  %1479 = vdwg.mxu0
  %v1488 = vunpack.c.l.b16 %v1060
  %v1489 = vunpack.c.l.b16 %v1061
  %v1490 = vunpack.c.l.b16 %v1062
  %v1491 = vunpack.c.l.b16 %v1063
  %v1492 = vunpack.c.l.b16 %v1064
  %v1493 = vunpack.c.l.b16 %v1065
  %v1494 = vunpack.c.l.b16 %v1066
  %v1495 = vunpack.c.l.b16 %v1067
  %v1496 = vpack.c.b16 %v1489, %v1488
  %v1497 = vpack.c.b16 %v1491, %v1490
  %v1498 = vpack.c.b16 %v1493, %v1492
  %v1499 = vpack.c.b16 %v1495, %v1494
  %v1505 = vsel %vm175, %v1058, 0
  %1507 = vmatprep.subr.bf16.mxu0 0
  %1508 = vmatpush1.bf16.msra.mxu0 0
  %1509 = vmatprep.subr.bf16.mxu0 0
  %1510 = vmatpush1.bf16.msra.mxu0 0
  %1511 = vmatprep.subr.bf16.mxu0 0
  %1512 = vmatpush1.bf16.msra.mxu0 0
  %1513 = vmatprep.subr.bf16.mxu0 0
  %1514 = vmatpush1.bf16.msra.mxu0 0
  %1515 = vmatprep.subr.bf16.mxu0 0
  %1516 = vmatpush1.bf16.msra.mxu0 %v1499
  %1517 = vmatprep.subr.bf16.mxu0 0
  %1518 = vmatpush1.bf16.msra.mxu0 %v1498
  %1519 = vmatprep.subr.bf16.mxu0 0
  %1520 = vmatpush1.bf16.msra.mxu0 %v1497
  %1521 = vmatprep.subr.bf16.mxu0 0
  %1522 = vmatpush1.bf16.msra.mxu0 %v1496
  %1523 = vmatprep.subr.bf16.mxu0 0
  %1524 = vmatpush2.bf16.msra.mxu0 0
  %1525 = vmatprep.subr.bf16.mxu0 0
  %1526 = vmatpush2.bf16.msra.mxu0 0
  %1527 = vmatprep.subr.bf16.mxu0 0
  %1528 = vmatpush2.bf16.msra.mxu0 0
  %1529 = vmatprep.subr.bf16.mxu0 0
  %1530 = vmatpush2.bf16.msra.mxu0 0
  %1531 = vmatprep.subr.bf16.mxu0 0
  %1532 = vmatpush2.bf16.msra.mxu0 0
  %1533 = vmatprep.subr.bf16.mxu0 0
  %1534 = vmatpush2.bf16.msra.mxu0 0
  %1535 = vmatprep.subr.bf16.mxu0 0
  %1536 = vmatpush2.bf16.msra.mxu0 0
  %1537 = vmatprep.subr.bf16.mxu0 0
  %1538 = vmatpush2.bf16.msra.mxu0 0
  %1539 = vmatprep.mubr.bf16.mxu0 0
  %1540 = vmatmul.mubr.bf16.gmra.mxu0 %v1505
  %v1541 = vpop.f32.mrf.mxu0
  %v1542 = vadd.f32 %v1142, %v1541
  %v1543 = vpop.f32.mrf.mxu0
  %v1544 = vpop.f32.mrf.mxu0
  %v1545 = vadd.f32 %v1145, %v1544
  %v1546 = vpop.f32.mrf.mxu0
  %1547 = vdwg.mxu0
  %v1556 = vunpack.c.l.b16 %v1152
  %v1557 = vunpack.c.l.b16 %v1153
  %v1558 = vunpack.c.l.b16 %v1154
  %v1559 = vunpack.c.l.b16 %v1155
  %v1560 = vunpack.c.l.b16 %v1156
  %v1561 = vunpack.c.l.b16 %v1157
  %v1562 = vunpack.c.l.b16 %v1158
  %v1563 = vunpack.c.l.b16 %v1159
  %v1564 = vpack.c.b16 %v1557, %v1556
  %v1565 = vpack.c.b16 %v1559, %v1558
  %v1566 = vpack.c.b16 %v1561, %v1560
  %v1567 = vpack.c.b16 %v1563, %v1562
  %v1573 = vsel %vm175, %v1150, 0
  %1575 = vmatprep.subr.bf16.mxu0 0
  %1576 = vmatpush1.bf16.msra.mxu0 0
  %1577 = vmatprep.subr.bf16.mxu0 0
  %1578 = vmatpush1.bf16.msra.mxu0 0
  %1579 = vmatprep.subr.bf16.mxu0 0
  %1580 = vmatpush1.bf16.msra.mxu0 0
  %1581 = vmatprep.subr.bf16.mxu0 0
  %1582 = vmatpush1.bf16.msra.mxu0 0
  %1583 = vmatprep.subr.bf16.mxu0 0
  %1584 = vmatpush1.bf16.msra.mxu0 %v1567
  %1585 = vmatprep.subr.bf16.mxu0 0
  %1586 = vmatpush1.bf16.msra.mxu0 %v1566
  %1587 = vmatprep.subr.bf16.mxu0 0
  %1588 = vmatpush1.bf16.msra.mxu0 %v1565
  %1589 = vmatprep.subr.bf16.mxu0 0
  %1590 = vmatpush1.bf16.msra.mxu0 %v1564
  %1591 = vmatprep.subr.bf16.mxu0 0
  %1592 = vmatpush2.bf16.msra.mxu0 0
  %1593 = vmatprep.subr.bf16.mxu0 0
  %1594 = vmatpush2.bf16.msra.mxu0 0
  %1595 = vmatprep.subr.bf16.mxu0 0
  %1596 = vmatpush2.bf16.msra.mxu0 0
  %1597 = vmatprep.subr.bf16.mxu0 0
  %1598 = vmatpush2.bf16.msra.mxu0 0
  %1599 = vmatprep.subr.bf16.mxu0 0
  %1600 = vmatpush2.bf16.msra.mxu0 0
  %1601 = vmatprep.subr.bf16.mxu0 0
  %1602 = vmatpush2.bf16.msra.mxu0 0
  %1603 = vmatprep.subr.bf16.mxu0 0
  %1604 = vmatpush2.bf16.msra.mxu0 0
  %1605 = vmatprep.subr.bf16.mxu0 0
  %1606 = vmatpush2.bf16.msra.mxu0 0
  %1607 = vmatprep.mubr.bf16.mxu0 0
  %1608 = vmatmul.mubr.bf16.gmra.mxu0 %v1573
  %v1609 = vpop.f32.mrf.mxu0
  %v1610 = vadd.f32 %v1234, %v1609
  %v1611 = vpop.f32.mrf.mxu0
  %v1612 = vpop.f32.mrf.mxu0
  %v1613 = vadd.f32 %v1237, %v1612
  %v1614 = vpop.f32.mrf.mxu0
  %1615 = vdwg.mxu0
  %v1624 = vunpack.c.l.b16 %v1244
  %v1625 = vunpack.c.l.b16 %v1245
  %v1626 = vunpack.c.l.b16 %v1246
  %v1627 = vunpack.c.l.b16 %v1247
  %v1628 = vunpack.c.l.b16 %v1248
  %v1629 = vunpack.c.l.b16 %v1249
  %v1630 = vunpack.c.l.b16 %v1250
  %v1631 = vunpack.c.l.b16 %v1251
  %v1632 = vpack.c.b16 %v1625, %v1624
  %v1633 = vpack.c.b16 %v1627, %v1626
  %v1634 = vpack.c.b16 %v1629, %v1628
  %v1635 = vpack.c.b16 %v1631, %v1630
  %v1641 = vsel %vm175, %v1242, 0
  %1643 = vmatprep.subr.bf16.mxu0 0
  %1644 = vmatpush1.bf16.msra.mxu0 0
  %1645 = vmatprep.subr.bf16.mxu0 0
  %1646 = vmatpush1.bf16.msra.mxu0 0
  %1647 = vmatprep.subr.bf16.mxu0 0
  %1648 = vmatpush1.bf16.msra.mxu0 0
  %1649 = vmatprep.subr.bf16.mxu0 0
  %1650 = vmatpush1.bf16.msra.mxu0 0
  %1651 = vmatprep.subr.bf16.mxu0 0
  %1652 = vmatpush1.bf16.msra.mxu0 %v1635
  %1653 = vmatprep.subr.bf16.mxu0 0
  %1654 = vmatpush1.bf16.msra.mxu0 %v1634
  %1655 = vmatprep.subr.bf16.mxu0 0
  %1656 = vmatpush1.bf16.msra.mxu0 %v1633
  %1657 = vmatprep.subr.bf16.mxu0 0
  %1658 = vmatpush1.bf16.msra.mxu0 %v1632
  %1659 = vmatprep.subr.bf16.mxu0 0
  %1660 = vmatpush2.bf16.msra.mxu0 0
  %1661 = vmatprep.subr.bf16.mxu0 0
  %1662 = vmatpush2.bf16.msra.mxu0 0
  %1663 = vmatprep.subr.bf16.mxu0 0
  %1664 = vmatpush2.bf16.msra.mxu0 0
  %1665 = vmatprep.subr.bf16.mxu0 0
  %1666 = vmatpush2.bf16.msra.mxu0 0
  %1667 = vmatprep.subr.bf16.mxu0 0
  %1668 = vmatpush2.bf16.msra.mxu0 0
  %1669 = vmatprep.subr.bf16.mxu0 0
  %1670 = vmatpush2.bf16.msra.mxu0 0
  %1671 = vmatprep.subr.bf16.mxu0 0
  %1672 = vmatpush2.bf16.msra.mxu0 0
  %1673 = vmatprep.subr.bf16.mxu0 0
  %1674 = vmatpush2.bf16.msra.mxu0 0
  %1675 = vmatprep.mubr.bf16.mxu0 0
  %1676 = vmatmul.mubr.bf16.gmra.mxu0 %v1641
  %v1677 = vpop.f32.mrf.mxu0
  %v1678 = vadd.f32 %v1326, %v1677
  %v1679 = vpop.f32.mrf.mxu0
  %v1680 = vpop.f32.mrf.mxu0
  %v1681 = vadd.f32 %v1329, %v1680
  %v1682 = vpop.f32.mrf.mxu0
  %1683 = vdwg.mxu0
  %v1684 = vadd.f32 %v1474, %v1542
  %v1685 = vadd.f32 %v1477, %v1545
  %v1686 = vadd.f32 %v1610, %v1678
  %v1687 = vadd.f32 %v1613, %v1681
  %v1688 = vadd.f32 %v1684, %v1686
  %v1689 = vadd.f32 %v1685, %v1687
  %v1690 = vadd.f32 %v1688, %v1406
  %v1691 = vadd.f32 %v1689, %v1409
  %s1692 = scalar_lea.vmem %s3, 1
  %v1693 = vld [vmem:[%s1692] sm:$0x1]
  %v1695 = vlaneseq
  %v1696 = vshrl.u32 %v1695, 7
  %v1697 = vsub.s32 0, %v1696
  %v1698 = vrot.slane %v1693, %v1697
  %v1700 = vadd.f32 %v1690, %v1698
  %v1701 = vadd.f32 %v1691, %v1698
  %v1702 = vsel %vm175, %v1700, 0.0
  %v1703 = vrot.slane %v1702, 4
  %v1704 = vadd.f32 %v1702, %v1703
  %v1705 = vrot.slane %v1704, 2
  %v1706 = vadd.f32 %v1704, %v1705
  %v1707 = vrot.slane %v1706, 1
  %v1708 = vadd.f32 %v1706, %v1707
  %v1709 = vsel %vm175, %v1701, 0.0
  %v1710 = vrot.slane %v1709, 4
  %v1711 = vadd.f32 %v1709, %v1710
  %v1712 = vrot.slane %v1711, 2
  %v1713 = vadd.f32 %v1711, %v1712
  %v1714 = vrot.slane %v1713, 1
  %v1715 = vadd.f32 %v1713, %v1714
  %v1716 = vmul.f32 %v1700, %v1700
  %v1717 = vmul.f32 %v1701, %v1701
  %v1718 = vsel %vm175, %v1716, 0.0
  %v1719 = vrot.slane %v1718, 4
  %v1720 = vadd.f32 %v1718, %v1719
  %v1721 = vrot.slane %v1720, 2
  %v1722 = vadd.f32 %v1720, %v1721
  %v1723 = vrot.slane %v1722, 1
  %v1724 = vadd.f32 %v1722, %v1723
  %v1725 = vsel %vm175, %v1717, 0.0
  %v1726 = vrot.slane %v1725, 4
  %v1727 = vadd.f32 %v1725, %v1726
  %v1728 = vrot.slane %v1727, 2
  %v1729 = vadd.f32 %v1727, %v1728
  %v1730 = vrot.slane %v1729, 1
  %v1731 = vadd.f32 %v1729, %v1730
  %v1732 = vmul.f32 %v1708, 0.125
  %v1733 = vmul.f32 %v1715, 0.125
  %v1734 = vmul.f32 %v1724, 0.125
  %v1735 = vmul.f32 %v1731, 0.125
  %v1736 = vmul.f32 %v1732, %v1732
  %v1737 = vmul.f32 %v1733, %v1733
  %v1738 = vsub.f32 %v1734, %v1736
  %v1739 = vsub.f32 %v1735, %v1737
  %v1740 = vsub.f32 %v1700, %v1732
  %v1741 = vsub.f32 %v1701, %v1733
  %v1742 = vadd.f32 %v1738, 1e-05
  %v1743 = vadd.f32 %v1739, 1e-05
  %v1744 = vrsqrt.pop %v1742
  %v1745 = vrsqrt.pop %v1743
  %v1746 = vmul.f32 %v1740, %v1744
  %v1747 = vmul.f32 %v1741, %v1745
  %v1748 = vadd.f32 %v178, %v1746
  %v1749 = vadd.f32 %v179, %v1747
  %v1750 = vmax.f32 %v1748, 0.0
  %v1751 = vmax.f32 %v1749, 0.0
  %1752 = vst.msk [vmem:[#allocation2 + $0x4] sm:$0xff] %vm175, %v1750
  %1753 = vst.msk [vmem:[#allocation2 + $0x14] sm:$0xff] %vm175, %v1751
  %v1754 = vld [vmem:[#allocation2 + $0x3] sm:$0xff]
  %v1755 = vld [vmem:[#allocation2 + $0x13] sm:$0xff]
  %v1756 = vpack.c.bf16 %v1755, %v1754
  %v1757 = vld [vmem:[#allocation2 + $0x4] sm:$0xff]
  %v1758 = vld [vmem:[#allocation2 + $0x14] sm:$0xff]
  %v1759 = vpack.c.bf16 %v1758, %v1757
  %v1760 = vld [vmem:[#allocation2 + $0x5] sm:$0xff]
  %v1761 = vld [vmem:[#allocation2 + $0x15] sm:$0xff]
  %v1762 = vpack.c.bf16 %v1761, %v1760
  %v1763 = vld [vmem:[%s5] sm:$0x1]
  %s1764 = scalar_lea.vmem %s4, 32
  %v1765 = vld [vmem:[%s1764] sm:$0xf]
  %v1766 = vld [vmem:[%s1764 + $0x4] sm:$0xf]
  %v1767 = vld [vmem:[%s1764 + $0x8] sm:$0xf]
  %v1768 = vld [vmem:[%s1764 + $0xc] sm:$0xf]
  %v1769 = vld [vmem:[%s1764 + $0x10] sm:$0xf]
  %v1770 = vld [vmem:[%s1764 + $0x14] sm:$0xf]
  %v1771 = vld [vmem:[%s1764 + $0x18] sm:$0xf]
  %v1772 = vld [vmem:[%s1764 + $0x1c] sm:$0xf]
  %s1773 = scalar_lea.vmem %s4, 96
  %v1774 = vld [vmem:[%s1773] sm:$0xf]
  %v1775 = vld [vmem:[%s1773 + $0x4] sm:$0xf]
  %v1776 = vld [vmem:[%s1773 + $0x8] sm:$0xf]
  %v1777 = vld [vmem:[%s1773 + $0xc] sm:$0xf]
  %v1778 = vld [vmem:[%s1773 + $0x10] sm:$0xf]
  %v1779 = vld [vmem:[%s1773 + $0x14] sm:$0xf]
  %v1780 = vld [vmem:[%s1773 + $0x18] sm:$0xf]
  %v1781 = vld [vmem:[%s1773 + $0x1c] sm:$0xf]
  %v1790 = vunpack.c.l.b16 %v1774
  %v1791 = vunpack.c.l.b16 %v1775
  %v1792 = vunpack.c.l.b16 %v1776
  %v1793 = vunpack.c.l.b16 %v1777
  %v1794 = vunpack.c.l.b16 %v1778
  %v1795 = vunpack.c.l.b16 %v1779
  %v1796 = vunpack.c.l.b16 %v1780
  %v1797 = vunpack.c.l.b16 %v1781
  %v1798 = vpack.c.b16 %v1791, %v1790
  %v1799 = vpack.c.b16 %v1793, %v1792
  %v1800 = vpack.c.b16 %v1795, %v1794
  %v1801 = vpack.c.b16 %v1797, %v1796
  %v1807 = vsel %vm175, %v1756, 0
  %1809 = vmatprep.subr.bf16.mxu0 0
  %1810 = vmatpush1.bf16.msra.mxu0 0
  %1811 = vmatprep.subr.bf16.mxu0 0
  %1812 = vmatpush1.bf16.msra.mxu0 0
  %1813 = vmatprep.subr.bf16.mxu0 0
  %1814 = vmatpush1.bf16.msra.mxu0 0
  %1815 = vmatprep.subr.bf16.mxu0 0
  %1816 = vmatpush1.bf16.msra.mxu0 0
  %1817 = vmatprep.subr.bf16.mxu0 0
  %1818 = vmatpush1.bf16.msra.mxu0 %v1801
  %1819 = vmatprep.subr.bf16.mxu0 0
  %1820 = vmatpush1.bf16.msra.mxu0 %v1800
  %1821 = vmatprep.subr.bf16.mxu0 0
  %1822 = vmatpush1.bf16.msra.mxu0 %v1799
  %1823 = vmatprep.subr.bf16.mxu0 0
  %1824 = vmatpush1.bf16.msra.mxu0 %v1798
  %1825 = vmatprep.subr.bf16.mxu0 0
  %1826 = vmatpush2.bf16.msra.mxu0 0
  %1827 = vmatprep.subr.bf16.mxu0 0
  %1828 = vmatpush2.bf16.msra.mxu0 0
  %1829 = vmatprep.subr.bf16.mxu0 0
  %1830 = vmatpush2.bf16.msra.mxu0 0
  %1831 = vmatprep.subr.bf16.mxu0 0
  %1832 = vmatpush2.bf16.msra.mxu0 0
  %1833 = vmatprep.subr.bf16.mxu0 0
  %1834 = vmatpush2.bf16.msra.mxu0 0
  %1835 = vmatprep.subr.bf16.mxu0 0
  %1836 = vmatpush2.bf16.msra.mxu0 0
  %1837 = vmatprep.subr.bf16.mxu0 0
  %1838 = vmatpush2.bf16.msra.mxu0 0
  %1839 = vmatprep.subr.bf16.mxu0 0
  %1840 = vmatpush2.bf16.msra.mxu0 0
  %1841 = vmatprep.mubr.bf16.mxu0 0
  %1842 = vmatmul.mubr.bf16.gmra.mxu0 %v1807
  %v1843 = vpop.f32.mrf.mxu0
  %v1844 = vadd.f32 0.0, %v1843
  %v1845 = vpop.f32.mrf.mxu0
  %v1846 = vpop.f32.mrf.mxu0
  %v1847 = vadd.f32 0.0, %v1846
  %v1848 = vpop.f32.mrf.mxu0
  %1849 = vdwg.mxu0
  %v1858 = vunpack.c.l.b16 %v1765
  %v1859 = vunpack.c.l.b16 %v1766
  %v1860 = vunpack.c.l.b16 %v1767
  %v1861 = vunpack.c.l.b16 %v1768
  %v1862 = vunpack.c.l.b16 %v1769
  %v1863 = vunpack.c.l.b16 %v1770
  %v1864 = vunpack.c.l.b16 %v1771
  %v1865 = vunpack.c.l.b16 %v1772
  %v1866 = vpack.c.b16 %v1859, %v1858
  %v1867 = vpack.c.b16 %v1861, %v1860
  %v1868 = vpack.c.b16 %v1863, %v1862
  %v1869 = vpack.c.b16 %v1865, %v1864
  %v1875 = vsel %vm175, %v1759, 0
  %1877 = vmatprep.subr.bf16.mxu0 0
  %1878 = vmatpush1.bf16.msra.mxu0 0
  %1879 = vmatprep.subr.bf16.mxu0 0
  %1880 = vmatpush1.bf16.msra.mxu0 0
  %1881 = vmatprep.subr.bf16.mxu0 0
  %1882 = vmatpush1.bf16.msra.mxu0 0
  %1883 = vmatprep.subr.bf16.mxu0 0
  %1884 = vmatpush1.bf16.msra.mxu0 0
  %1885 = vmatprep.subr.bf16.mxu0 0
  %1886 = vmatpush1.bf16.msra.mxu0 %v1869
  %1887 = vmatprep.subr.bf16.mxu0 0
  %1888 = vmatpush1.bf16.msra.mxu0 %v1868
  %1889 = vmatprep.subr.bf16.mxu0 0
  %1890 = vmatpush1.bf16.msra.mxu0 %v1867
  %1891 = vmatprep.subr.bf16.mxu0 0
  %1892 = vmatpush1.bf16.msra.mxu0 %v1866
  %1893 = vmatprep.subr.bf16.mxu0 0
  %1894 = vmatpush2.bf16.msra.mxu0 0
  %1895 = vmatprep.subr.bf16.mxu0 0
  %1896 = vmatpush2.bf16.msra.mxu0 0
  %1897 = vmatprep.subr.bf16.mxu0 0
  %1898 = vmatpush2.bf16.msra.mxu0 0
  %1899 = vmatprep.subr.bf16.mxu0 0
  %1900 = vmatpush2.bf16.msra.mxu0 0
  %1901 = vmatprep.subr.bf16.mxu0 0
  %1902 = vmatpush2.bf16.msra.mxu0 0
  %1903 = vmatprep.subr.bf16.mxu0 0
  %1904 = vmatpush2.bf16.msra.mxu0 0
  %1905 = vmatprep.subr.bf16.mxu0 0
  %1906 = vmatpush2.bf16.msra.mxu0 0
  %1907 = vmatprep.subr.bf16.mxu0 0
  %1908 = vmatpush2.bf16.msra.mxu0 0
  %1909 = vmatprep.mubr.bf16.mxu0 0
  %1910 = vmatmul.mubr.bf16.gmra.mxu0 %v1875
  %v1911 = vpop.f32.mrf.mxu0
  %v1912 = vadd.f32 %v1844, %v1911
  %v1913 = vpop.f32.mrf.mxu0
  %v1914 = vpop.f32.mrf.mxu0
  %v1915 = vadd.f32 %v1847, %v1914
  %v1916 = vpop.f32.mrf.mxu0
  %1917 = vdwg.mxu0
  %v1919 = vlaneseq
  %v1920 = vshrl.u32 %v1919, 7
  %v1921 = vsub.s32 0, %v1920
  %v1922 = vrot.slane %v1763, %v1921
  %v1924 = vadd.f32 %v1912, %v1922
  %v1925 = vadd.f32 %v1915, %v1922
  %v1926 = vld [vmem:[%s4] sm:$0xf]
  %v1927 = vld [vmem:[%s4 + $0x4] sm:$0xf]
  %v1928 = vld [vmem:[%s4 + $0x8] sm:$0xf]
  %v1929 = vld [vmem:[%s4 + $0xc] sm:$0xf]
  %v1930 = vld [vmem:[%s4 + $0x10] sm:$0xf]
  %v1931 = vld [vmem:[%s4 + $0x14] sm:$0xf]
  %v1932 = vld [vmem:[%s4 + $0x18] sm:$0xf]
  %v1933 = vld [vmem:[%s4 + $0x1c] sm:$0xf]
  %s1934 = scalar_lea.vmem %s4, 64
  %v1935 = vld [vmem:[%s1934] sm:$0xf]
  %v1936 = vld [vmem:[%s1934 + $0x4] sm:$0xf]
  %v1937 = vld [vmem:[%s1934 + $0x8] sm:$0xf]
  %v1938 = vld [vmem:[%s1934 + $0xc] sm:$0xf]
  %v1939 = vld [vmem:[%s1934 + $0x10] sm:$0xf]
  %v1940 = vld [vmem:[%s1934 + $0x14] sm:$0xf]
  %v1941 = vld [vmem:[%s1934 + $0x18] sm:$0xf]
  %v1942 = vld [vmem:[%s1934 + $0x1c] sm:$0xf]
  %v1951 = vunpack.c.l.b16 %v1935
  %v1952 = vunpack.c.l.b16 %v1936
  %v1953 = vunpack.c.l.b16 %v1937
  %v1954 = vunpack.c.l.b16 %v1938
  %v1955 = vunpack.c.l.b16 %v1939
  %v1956 = vunpack.c.l.b16 %v1940
  %v1957 = vunpack.c.l.b16 %v1941
  %v1958 = vunpack.c.l.b16 %v1942
  %v1959 = vpack.c.b16 %v1952, %v1951
  %v1960 = vpack.c.b16 %v1954, %v1953
  %v1961 = vpack.c.b16 %v1956, %v1955
  %v1962 = vpack.c.b16 %v1958, %v1957
  %1967 = vmatprep.subr.bf16.mxu0 0
  %1968 = vmatpush1.bf16.msra.mxu0 0
  %1969 = vmatprep.subr.bf16.mxu0 0
  %1970 = vmatpush1.bf16.msra.mxu0 0
  %1971 = vmatprep.subr.bf16.mxu0 0
  %1972 = vmatpush1.bf16.msra.mxu0 0
  %1973 = vmatprep.subr.bf16.mxu0 0
  %1974 = vmatpush1.bf16.msra.mxu0 0
  %1975 = vmatprep.subr.bf16.mxu0 0
  %1976 = vmatpush1.bf16.msra.mxu0 %v1962
  %1977 = vmatprep.subr.bf16.mxu0 0
  %1978 = vmatpush1.bf16.msra.mxu0 %v1961
  %1979 = vmatprep.subr.bf16.mxu0 0
  %1980 = vmatpush1.bf16.msra.mxu0 %v1960
  %1981 = vmatprep.subr.bf16.mxu0 0
  %1982 = vmatpush1.bf16.msra.mxu0 %v1959
  %1983 = vmatprep.subr.bf16.mxu0 0
  %1984 = vmatpush2.bf16.msra.mxu0 0
  %1985 = vmatprep.subr.bf16.mxu0 0
  %1986 = vmatpush2.bf16.msra.mxu0 0
  %1987 = vmatprep.subr.bf16.mxu0 0
  %1988 = vmatpush2.bf16.msra.mxu0 0
  %1989 = vmatprep.subr.bf16.mxu0 0
  %1990 = vmatpush2.bf16.msra.mxu0 0
  %1991 = vmatprep.subr.bf16.mxu0 0
  %1992 = vmatpush2.bf16.msra.mxu0 0
  %1993 = vmatprep.subr.bf16.mxu0 0
  %1994 = vmatpush2.bf16.msra.mxu0 0
  %1995 = vmatprep.subr.bf16.mxu0 0
  %1996 = vmatpush2.bf16.msra.mxu0 0
  %1997 = vmatprep.subr.bf16.mxu0 0
  %1998 = vmatpush2.bf16.msra.mxu0 0
  %1999 = vmatprep.mubr.bf16.mxu0 0
  %2000 = vmatmul.mubr.bf16.gmra.mxu0 %v1875
  %v2001 = vpop.f32.mrf.mxu0
  %v2002 = vadd.f32 0.0, %v2001
  %v2003 = vpop.f32.mrf.mxu0
  %v2004 = vpop.f32.mrf.mxu0
  %v2005 = vadd.f32 0.0, %v2004
  %v2006 = vpop.f32.mrf.mxu0
  %2007 = vdwg.mxu0
  %v2016 = vunpack.c.l.b16 %v1926
  %v2017 = vunpack.c.l.b16 %v1927
  %v2018 = vunpack.c.l.b16 %v1928
  %v2019 = vunpack.c.l.b16 %v1929
  %v2020 = vunpack.c.l.b16 %v1930
  %v2021 = vunpack.c.l.b16 %v1931
  %v2022 = vunpack.c.l.b16 %v1932
  %v2023 = vunpack.c.l.b16 %v1933
  %v2024 = vpack.c.b16 %v2017, %v2016
  %v2025 = vpack.c.b16 %v2019, %v2018
  %v2026 = vpack.c.b16 %v2021, %v2020
  %v2027 = vpack.c.b16 %v2023, %v2022
  %v2033 = vsel %vm175, %v1762, 0
  %2035 = vmatprep.subr.bf16.mxu0 0
  %2036 = vmatpush1.bf16.msra.mxu0 0
  %2037 = vmatprep.subr.bf16.mxu0 0
  %2038 = vmatpush1.bf16.msra.mxu0 0
  %2039 = vmatprep.subr.bf16.mxu0 0
  %2040 = vmatpush1.bf16.msra.mxu0 0
  %2041 = vmatprep.subr.bf16.mxu0 0
  %2042 = vmatpush1.bf16.msra.mxu0 0
  %2043 = vmatprep.subr.bf16.mxu0 0
  %2044 = vmatpush1.bf16.msra.mxu0 %v2027
  %2045 = vmatprep.subr.bf16.mxu0 0
  %2046 = vmatpush1.bf16.msra.mxu0 %v2026
  %2047 = vmatprep.subr.bf16.mxu0 0
  %2048 = vmatpush1.bf16.msra.mxu0 %v2025
  %2049 = vmatprep.subr.bf16.mxu0 0
  %2050 = vmatpush1.bf16.msra.mxu0 %v2024
  %2051 = vmatprep.subr.bf16.mxu0 0
  %2052 = vmatpush2.bf16.msra.mxu0 0
  %2053 = vmatprep.subr.bf16.mxu0 0
  %2054 = vmatpush2.bf16.msra.mxu0 0
  %2055 = vmatprep.subr.bf16.mxu0 0
  %2056 = vmatpush2.bf16.msra.mxu0 0
  %2057 = vmatprep.subr.bf16.mxu0 0
  %2058 = vmatpush2.bf16.msra.mxu0 0
  %2059 = vmatprep.subr.bf16.mxu0 0
  %2060 = vmatpush2.bf16.msra.mxu0 0
  %2061 = vmatprep.subr.bf16.mxu0 0
  %2062 = vmatpush2.bf16.msra.mxu0 0
  %2063 = vmatprep.subr.bf16.mxu0 0
  %2064 = vmatpush2.bf16.msra.mxu0 0
  %2065 = vmatprep.subr.bf16.mxu0 0
  %2066 = vmatpush2.bf16.msra.mxu0 0
  %2067 = vmatprep.mubr.bf16.mxu0 0
  %2068 = vmatmul.mubr.bf16.gmra.mxu0 %v2033
  %v2069 = vpop.f32.mrf.mxu0
  %v2070 = vadd.f32 %v2002, %v2069
  %v2071 = vpop.f32.mrf.mxu0
  %v2072 = vpop.f32.mrf.mxu0
  %v2073 = vadd.f32 %v2005, %v2072
  %v2074 = vpop.f32.mrf.mxu0
  %2075 = vdwg.mxu0
  %v2076 = vadd.f32 %v2070, %v1922
  %v2077 = vadd.f32 %v2073, %v1922
  %s2078 = scalar_lea.vmem [#allocation3], 4
  %2079 = vst [vmem:[%s2078] ss:$2 sm:$0xff] %v1924
  %s2080 = scalar_lea.vmem [#allocation3], 28
  %2081 = vst [vmem:[%s2080] ss:$2 sm:$0xff] %v1925
  %s2082 = scalar_lea.vmem [#allocation3], 5
  %2083 = vst [vmem:[%s2082] ss:$2 sm:$0xff] %v2076
  %s2084 = scalar_lea.vmem [#allocation3], 29
  %2085 = vst [vmem:[%s2084] ss:$2 sm:$0xff] %v2077
  %v2086 = vld [vmem:[#allocation3 + $0x4] sm:$0xff]
  %v2087 = vld [vmem:[#allocation3 + $0xc] sm:$0xff]
  %v2088 = vld [vmem:[#allocation3 + $0x1c] sm:$0xff]
  %v2089 = vld [vmem:[#allocation3 + $0x24] sm:$0xff]
  %v2090 = vld [vmem:[#allocation3] sm:$0xff]
  %v2091 = vld [vmem:[#allocation3 + $0x8] sm:$0xff]
  %v2092 = vld [vmem:[#allocation3 + $0x18] sm:$0xff]
  %v2093 = vld [vmem:[#allocation3 + $0x20] sm:$0xff]
  %v2094 = vpack.c.bf16 %v2091, %v2090
  %v2095 = vpack.c.bf16 %v2093, %v2092
  %s2096 = scalar_lea.vmem %s2, 576
  %v2097 = vld [vmem:[%s2096] sm:$0xf]
  %v2098 = vld [vmem:[%s2096 + $0x4] sm:$0xf]
  %v2099 = vld [vmem:[%s2096 + $0x8] sm:$0xf]
  %v2100 = vld [vmem:[%s2096 + $0xc] sm:$0xf]
  %v2101 = vld [vmem:[#allocation3 + $0x1] sm:$0xff]
  %v2102 = vld [vmem:[#allocation3 + $0x9] sm:$0xff]
  %v2103 = vld [vmem:[#allocation3 + $0x19] sm:$0xff]
  %v2104 = vld [vmem:[#allocation3 + $0x21] sm:$0xff]
  %v2105 = vpack.c.bf16 %v2102, %v2101
  %v2106 = vpack.c.bf16 %v2104, %v2103
  %s2107 = scalar_lea.vmem %s2, 608
  %v2108 = vld [vmem:[%s2107] sm:$0xf]
  %v2109 = vld [vmem:[%s2107 + $0x4] sm:$0xf]
  %v2110 = vld [vmem:[%s2107 + $0x8] sm:$0xf]
  %v2111 = vld [vmem:[%s2107 + $0xc] sm:$0xf]
  %v2116 = vunpack.c.l.b16 %v2108
  %v2117 = vunpack.c.l.b16 %v2109
  %v2118 = vunpack.c.l.b16 %v2110
  %v2119 = vunpack.c.l.b16 %v2111
  %v2120 = vpack.c.b16 %v2117, %v2116
  %v2121 = vpack.c.b16 %v2119, %v2118
  %vm2124 = vcmask 261120
  %v2126 = vsel %vm2124, %v2105, 0
  %v2129 = vsel %vm2124, %v2106, 0
  %2131 = vmatprep.subr.bf16.mxu0 0
  %2132 = vmatpush1.bf16.msra.mxu0 0
  %2133 = vmatprep.subr.bf16.mxu0 0
  %2134 = vmatpush1.bf16.msra.mxu0 0
  %2135 = vmatprep.subr.bf16.mxu0 0
  %2136 = vmatpush1.bf16.msra.mxu0 0
  %2137 = vmatprep.subr.bf16.mxu0 0
  %2138 = vmatpush1.bf16.msra.mxu0 0
  %2139 = vmatprep.subr.bf16.mxu0 0
  %2140 = vmatpush1.bf16.msra.mxu0 0
  %2141 = vmatprep.subr.bf16.mxu0 0
  %2142 = vmatpush1.bf16.msra.mxu0 0
  %2143 = vmatprep.subr.bf16.mxu0 0
  %2144 = vmatpush1.bf16.msra.mxu0 %v2121
  %2145 = vmatprep.subr.bf16.mxu0 0
  %2146 = vmatpush1.bf16.msra.mxu0 %v2120
  %2147 = vmatprep.subr.bf16.mxu0 0
  %2148 = vmatpush2.bf16.msra.mxu0 0
  %2149 = vmatprep.subr.bf16.mxu0 0
  %2150 = vmatpush2.bf16.msra.mxu0 0
  %2151 = vmatprep.subr.bf16.mxu0 0
  %2152 = vmatpush2.bf16.msra.mxu0 0
  %2153 = vmatprep.subr.bf16.mxu0 0
  %2154 = vmatpush2.bf16.msra.mxu0 0
  %2155 = vmatprep.subr.bf16.mxu0 0
  %2156 = vmatpush2.bf16.msra.mxu0 0
  %2157 = vmatprep.subr.bf16.mxu0 0
  %2158 = vmatpush2.bf16.msra.mxu0 0
  %2159 = vmatprep.subr.bf16.mxu0 0
  %2160 = vmatpush2.bf16.msra.mxu0 0
  %2161 = vmatprep.subr.bf16.mxu0 0
  %2162 = vmatpush2.bf16.msra.mxu0 0
  %2163 = vmatprep.mubr.bf16.mxu0 0
  %2164 = vmatmul.mubr.bf16.gmra.mxu0 %v2126
  %v2165 = vpop.f32.mrf.mxu0
  %v2166 = vadd.f32 0.0, %v2165
  %v2167 = vpop.f32.mrf.mxu0
  %v2168 = vpop.f32.mrf.mxu0
  %v2169 = vadd.f32 0.0, %v2168
  %v2170 = vpop.f32.mrf.mxu0
  %2171 = vmatprep.mubr.bf16.mxu0 0
  %2172 = vmatmul.mubr.bf16.gmra.mxu0 %v2129
  %v2173 = vpop.f32.mrf.mxu0
  %v2174 = vadd.f32 0.0, %v2173
  %v2175 = vpop.f32.mrf.mxu0
  %v2176 = vpop.f32.mrf.mxu0
  %v2177 = vadd.f32 0.0, %v2176
  %v2178 = vpop.f32.mrf.mxu0
  %2179 = vdwg.mxu0
  %v2180 = vld [vmem:[#allocation3 + $0x2] sm:$0xff]
  %v2181 = vld [vmem:[#allocation3 + $0xa] sm:$0xff]
  %v2182 = vld [vmem:[#allocation3 + $0x1a] sm:$0xff]
  %v2183 = vld [vmem:[#allocation3 + $0x22] sm:$0xff]
  %v2184 = vpack.c.bf16 %v2181, %v2180
  %v2185 = vpack.c.bf16 %v2183, %v2182
  %s2186 = scalar_lea.vmem %s2, 640
  %v2187 = vld [vmem:[%s2186] sm:$0xf]
  %v2188 = vld [vmem:[%s2186 + $0x4] sm:$0xf]
  %v2189 = vld [vmem:[%s2186 + $0x8] sm:$0xf]
  %v2190 = vld [vmem:[%s2186 + $0xc] sm:$0xf]
  %v2191 = vld [vmem:[#allocation3 + $0x3] sm:$0xff]
  %v2192 = vld [vmem:[#allocation3 + $0xb] sm:$0xff]
  %v2193 = vld [vmem:[#allocation3 + $0x1b] sm:$0xff]
  %v2194 = vld [vmem:[#allocation3 + $0x23] sm:$0xff]
  %v2195 = vpack.c.bf16 %v2192, %v2191
  %v2196 = vpack.c.bf16 %v2194, %v2193
  %s2197 = scalar_lea.vmem %s2, 672
  %v2198 = vld [vmem:[%s2197] sm:$0xf]
  %v2199 = vld [vmem:[%s2197 + $0x4] sm:$0xf]
  %v2200 = vld [vmem:[%s2197 + $0x8] sm:$0xf]
  %v2201 = vld [vmem:[%s2197 + $0xc] sm:$0xf]
  %v2206 = vunpack.c.l.b16 %v2198
  %v2207 = vunpack.c.l.b16 %v2199
  %v2208 = vunpack.c.l.b16 %v2200
  %v2209 = vunpack.c.l.b16 %v2201
  %v2210 = vpack.c.b16 %v2207, %v2206
  %v2211 = vpack.c.b16 %v2209, %v2208
  %v2215 = vsel %vm2124, %v2195, 0
  %v2218 = vsel %vm2124, %v2196, 0
  %2220 = vmatprep.subr.bf16.mxu0 0
  %2221 = vmatpush1.bf16.msra.mxu0 0
  %2222 = vmatprep.subr.bf16.mxu0 0
  %2223 = vmatpush1.bf16.msra.mxu0 0
  %2224 = vmatprep.subr.bf16.mxu0 0
  %2225 = vmatpush1.bf16.msra.mxu0 0
  %2226 = vmatprep.subr.bf16.mxu0 0
  %2227 = vmatpush1.bf16.msra.mxu0 0
  %2228 = vmatprep.subr.bf16.mxu0 0
  %2229 = vmatpush1.bf16.msra.mxu0 0
  %2230 = vmatprep.subr.bf16.mxu0 0
  %2231 = vmatpush1.bf16.msra.mxu0 0
  %2232 = vmatprep.subr.bf16.mxu0 0
  %2233 = vmatpush1.bf16.msra.mxu0 %v2211
  %2234 = vmatprep.subr.bf16.mxu0 0
  %2235 = vmatpush1.bf16.msra.mxu0 %v2210
  %2236 = vmatprep.subr.bf16.mxu0 0
  %2237 = vmatpush2.bf16.msra.mxu0 0
  %2238 = vmatprep.subr.bf16.mxu0 0
  %2239 = vmatpush2.bf16.msra.mxu0 0
  %2240 = vmatprep.subr.bf16.mxu0 0
  %2241 = vmatpush2.bf16.msra.mxu0 0
  %2242 = vmatprep.subr.bf16.mxu0 0
  %2243 = vmatpush2.bf16.msra.mxu0 0
  %2244 = vmatprep.subr.bf16.mxu0 0
  %2245 = vmatpush2.bf16.msra.mxu0 0
  %2246 = vmatprep.subr.bf16.mxu0 0
  %2247 = vmatpush2.bf16.msra.mxu0 0
  %2248 = vmatprep.subr.bf16.mxu0 0
  %2249 = vmatpush2.bf16.msra.mxu0 0
  %2250 = vmatprep.subr.bf16.mxu0 0
  %2251 = vmatpush2.bf16.msra.mxu0 0
  %2252 = vmatprep.mubr.bf16.mxu0 0
  %2253 = vmatmul.mubr.bf16.gmra.mxu0 %v2215
  %v2254 = vpop.f32.mrf.mxu0
  %v2255 = vadd.f32 0.0, %v2254
  %v2256 = vpop.f32.mrf.mxu0
  %v2257 = vpop.f32.mrf.mxu0
  %v2258 = vadd.f32 0.0, %v2257
  %v2259 = vpop.f32.mrf.mxu0
  %2260 = vmatprep.mubr.bf16.mxu0 0
  %2261 = vmatmul.mubr.bf16.gmra.mxu0 %v2218
  %v2262 = vpop.f32.mrf.mxu0
  %v2263 = vadd.f32 0.0, %v2262
  %v2264 = vpop.f32.mrf.mxu0
  %v2265 = vpop.f32.mrf.mxu0
  %v2266 = vadd.f32 0.0, %v2265
  %v2267 = vpop.f32.mrf.mxu0
  %2268 = vdwg.mxu0
  %v2269 = vpack.c.bf16 %v2087, %v2086
  %v2270 = vpack.c.bf16 %v2089, %v2088
  %s2271 = scalar_lea.vmem %s2, 704
  %v2272 = vld [vmem:[%s2271] sm:$0xf]
  %v2273 = vld [vmem:[%s2271 + $0x4] sm:$0xf]
  %v2274 = vld [vmem:[%s2271 + $0x8] sm:$0xf]
  %v2275 = vld [vmem:[%s2271 + $0xc] sm:$0xf]
  %v2276 = vld [vmem:[#allocation3 + $0x5] sm:$0xff]
  %v2277 = vld [vmem:[#allocation3 + $0xd] sm:$0xff]
  %v2278 = vld [vmem:[#allocation3 + $0x1d] sm:$0xff]
  %v2279 = vld [vmem:[#allocation3 + $0x25] sm:$0xff]
  %v2280 = vpack.c.bf16 %v2277, %v2276
  %v2281 = vpack.c.bf16 %v2279, %v2278
  %s2282 = scalar_lea.vmem %s2, 736
  %v2283 = vld [vmem:[%s2282] sm:$0xf]
  %v2284 = vld [vmem:[%s2282 + $0x4] sm:$0xf]
  %v2285 = vld [vmem:[%s2282 + $0x8] sm:$0xf]
  %v2286 = vld [vmem:[%s2282 + $0xc] sm:$0xf]
  %v2291 = vunpack.c.l.b16 %v2283
  %v2292 = vunpack.c.l.b16 %v2284
  %v2293 = vunpack.c.l.b16 %v2285
  %v2294 = vunpack.c.l.b16 %v2286
  %v2295 = vpack.c.b16 %v2292, %v2291
  %v2296 = vpack.c.b16 %v2294, %v2293
  %v2300 = vsel %vm2124, %v2280, 0
  %v2303 = vsel %vm2124, %v2281, 0
  %2305 = vmatprep.subr.bf16.mxu0 0
  %2306 = vmatpush1.bf16.msra.mxu0 0
  %2307 = vmatprep.subr.bf16.mxu0 0
  %2308 = vmatpush1.bf16.msra.mxu0 0
  %2309 = vmatprep.subr.bf16.mxu0 0
  %2310 = vmatpush1.bf16.msra.mxu0 0
  %2311 = vmatprep.subr.bf16.mxu0 0
  %2312 = vmatpush1.bf16.msra.mxu0 0
  %2313 = vmatprep.subr.bf16.mxu0 0
  %2314 = vmatpush1.bf16.msra.mxu0 0
  %2315 = vmatprep.subr.bf16.mxu0 0
  %2316 = vmatpush1.bf16.msra.mxu0 0
  %2317 = vmatprep.subr.bf16.mxu0 0
  %2318 = vmatpush1.bf16.msra.mxu0 %v2296
  %2319 = vmatprep.subr.bf16.mxu0 0
  %2320 = vmatpush1.bf16.msra.mxu0 %v2295
  %2321 = vmatprep.subr.bf16.mxu0 0
  %2322 = vmatpush2.bf16.msra.mxu0 0
  %2323 = vmatprep.subr.bf16.mxu0 0
  %2324 = vmatpush2.bf16.msra.mxu0 0
  %2325 = vmatprep.subr.bf16.mxu0 0
  %2326 = vmatpush2.bf16.msra.mxu0 0
  %2327 = vmatprep.subr.bf16.mxu0 0
  %2328 = vmatpush2.bf16.msra.mxu0 0
  %2329 = vmatprep.subr.bf16.mxu0 0
  %2330 = vmatpush2.bf16.msra.mxu0 0
  %2331 = vmatprep.subr.bf16.mxu0 0
  %2332 = vmatpush2.bf16.msra.mxu0 0
  %2333 = vmatprep.subr.bf16.mxu0 0
  %2334 = vmatpush2.bf16.msra.mxu0 0
  %2335 = vmatprep.subr.bf16.mxu0 0
  %2336 = vmatpush2.bf16.msra.mxu0 0
  %2337 = vmatprep.mubr.bf16.mxu0 0
  %2338 = vmatmul.mubr.bf16.gmra.mxu0 %v2300
  %v2339 = vpop.f32.mrf.mxu0
  %v2340 = vadd.f32 0.0, %v2339
  %v2341 = vpop.f32.mrf.mxu0
  %v2342 = vpop.f32.mrf.mxu0
  %v2343 = vadd.f32 0.0, %v2342
  %v2344 = vpop.f32.mrf.mxu0
  %2345 = vmatprep.mubr.bf16.mxu0 0
  %2346 = vmatmul.mubr.bf16.gmra.mxu0 %v2303
  %v2347 = vpop.f32.mrf.mxu0
  %v2348 = vadd.f32 0.0, %v2347
  %v2349 = vpop.f32.mrf.mxu0
  %v2350 = vpop.f32.mrf.mxu0
  %v2351 = vadd.f32 0.0, %v2350
  %v2352 = vpop.f32.mrf.mxu0
  %2353 = vdwg.mxu0
  %v2354 = vld [vmem:[#allocation3 + $0x6] sm:$0xff]
  %v2355 = vld [vmem:[#allocation3 + $0xe] sm:$0xff]
  %v2356 = vld [vmem:[#allocation3 + $0x1e] sm:$0xff]
  %v2357 = vld [vmem:[#allocation3 + $0x26] sm:$0xff]
  %v2358 = vpack.c.bf16 %v2355, %v2354
  %v2359 = vpack.c.bf16 %v2357, %v2356
  %s2360 = scalar_lea.vmem %s2, 768
  %v2361 = vld [vmem:[%s2360] sm:$0xf]
  %v2362 = vld [vmem:[%s2360 + $0x4] sm:$0xf]
  %v2363 = vld [vmem:[%s2360 + $0x8] sm:$0xf]
  %v2364 = vld [vmem:[%s2360 + $0xc] sm:$0xf]
  %v2365 = vld [vmem:[#allocation3 + $0x7] sm:$0xff]
  %v2366 = vld [vmem:[#allocation3 + $0xf] sm:$0xff]
  %v2367 = vld [vmem:[#allocation3 + $0x1f] sm:$0xff]
  %v2368 = vld [vmem:[#allocation3 + $0x27] sm:$0xff]
  %v2369 = vpack.c.bf16 %v2366, %v2365
  %v2370 = vpack.c.bf16 %v2368, %v2367
  %s2371 = scalar_lea.vmem %s2, 800
  %v2372 = vld [vmem:[%s2371] sm:$0xf]
  %v2373 = vld [vmem:[%s2371 + $0x4] sm:$0xf]
  %v2374 = vld [vmem:[%s2371 + $0x8] sm:$0xf]
  %v2375 = vld [vmem:[%s2371 + $0xc] sm:$0xf]
  %v2380 = vunpack.c.l.b16 %v2372
  %v2381 = vunpack.c.l.b16 %v2373
  %v2382 = vunpack.c.l.b16 %v2374
  %v2383 = vunpack.c.l.b16 %v2375
  %v2384 = vpack.c.b16 %v2381, %v2380
  %v2385 = vpack.c.b16 %v2383, %v2382
  %v2389 = vsel %vm2124, %v2369, 0
  %v2392 = vsel %vm2124, %v2370, 0
  %2394 = vmatprep.subr.bf16.mxu0 0
  %2395 = vmatpush1.bf16.msra.mxu0 0
  %2396 = vmatprep.subr.bf16.mxu0 0
  %2397 = vmatpush1.bf16.msra.mxu0 0
  %2398 = vmatprep.subr.bf16.mxu0 0
  %2399 = vmatpush1.bf16.msra.mxu0 0
  %2400 = vmatprep.subr.bf16.mxu0 0
  %2401 = vmatpush1.bf16.msra.mxu0 0
  %2402 = vmatprep.subr.bf16.mxu0 0
  %2403 = vmatpush1.bf16.msra.mxu0 0
  %2404 = vmatprep.subr.bf16.mxu0 0
  %2405 = vmatpush1.bf16.msra.mxu0 0
  %2406 = vmatprep.subr.bf16.mxu0 0
  %2407 = vmatpush1.bf16.msra.mxu0 %v2385
  %2408 = vmatprep.subr.bf16.mxu0 0
  %2409 = vmatpush1.bf16.msra.mxu0 %v2384
  %2410 = vmatprep.subr.bf16.mxu0 0
  %2411 = vmatpush2.bf16.msra.mxu0 0
  %2412 = vmatprep.subr.bf16.mxu0 0
  %2413 = vmatpush2.bf16.msra.mxu0 0
  %2414 = vmatprep.subr.bf16.mxu0 0
  %2415 = vmatpush2.bf16.msra.mxu0 0
  %2416 = vmatprep.subr.bf16.mxu0 0
  %2417 = vmatpush2.bf16.msra.mxu0 0
  %2418 = vmatprep.subr.bf16.mxu0 0
  %2419 = vmatpush2.bf16.msra.mxu0 0
  %2420 = vmatprep.subr.bf16.mxu0 0
  %2421 = vmatpush2.bf16.msra.mxu0 0
  %2422 = vmatprep.subr.bf16.mxu0 0
  %2423 = vmatpush2.bf16.msra.mxu0 0
  %2424 = vmatprep.subr.bf16.mxu0 0
  %2425 = vmatpush2.bf16.msra.mxu0 0
  %2426 = vmatprep.mubr.bf16.mxu0 0
  %2427 = vmatmul.mubr.bf16.gmra.mxu0 %v2389
  %v2428 = vpop.f32.mrf.mxu0
  %v2429 = vadd.f32 0.0, %v2428
  %v2430 = vpop.f32.mrf.mxu0
  %v2431 = vpop.f32.mrf.mxu0
  %v2432 = vadd.f32 0.0, %v2431
  %v2433 = vpop.f32.mrf.mxu0
  %2434 = vmatprep.mubr.bf16.mxu0 0
  %2435 = vmatmul.mubr.bf16.gmra.mxu0 %v2392
  %v2436 = vpop.f32.mrf.mxu0
  %v2437 = vadd.f32 0.0, %v2436
  %v2438 = vpop.f32.mrf.mxu0
  %v2439 = vpop.f32.mrf.mxu0
  %v2440 = vadd.f32 0.0, %v2439
  %v2441 = vpop.f32.mrf.mxu0
  %2442 = vdwg.mxu0
  %v2443 = vld [vmem:[#allocation3 + $0x8] sm:$0xff]
  %v2444 = vld [vmem:[#allocation3 + $0x10] sm:$0xff]
  %v2445 = vld [vmem:[#allocation3 + $0x20] sm:$0xff]
  %v2446 = vld [vmem:[#allocation3 + $0x28] sm:$0xff]
  %v2447 = vpack.c.bf16 %v2444, %v2443
  %v2448 = vpack.c.bf16 %v2446, %v2445
  %s2449 = scalar_lea.vmem %s2, 832
  %v2450 = vld [vmem:[%s2449] sm:$0xf]
  %v2451 = vld [vmem:[%s2449 + $0x4] sm:$0xf]
  %v2452 = vld [vmem:[%s2449 + $0x8] sm:$0xf]
  %v2453 = vld [vmem:[%s2449 + $0xc] sm:$0xf]
  %v2458 = vunpack.c.l.b16 %v2450
  %v2459 = vunpack.c.l.b16 %v2451
  %v2460 = vunpack.c.l.b16 %v2452
  %v2461 = vunpack.c.l.b16 %v2453
  %v2462 = vpack.c.b16 %v2459, %v2458
  %v2463 = vpack.c.b16 %v2461, %v2460
  %v2467 = vsel %vm2124, %v2447, 0
  %v2470 = vsel %vm2124, %v2448, 0
  %2472 = vmatprep.subr.bf16.mxu0 0
  %2473 = vmatpush1.bf16.msra.mxu0 0
  %2474 = vmatprep.subr.bf16.mxu0 0
  %2475 = vmatpush1.bf16.msra.mxu0 0
  %2476 = vmatprep.subr.bf16.mxu0 0
  %2477 = vmatpush1.bf16.msra.mxu0 0
  %2478 = vmatprep.subr.bf16.mxu0 0
  %2479 = vmatpush1.bf16.msra.mxu0 0
  %2480 = vmatprep.subr.bf16.mxu0 0
  %2481 = vmatpush1.bf16.msra.mxu0 0
  %2482 = vmatprep.subr.bf16.mxu0 0
  %2483 = vmatpush1.bf16.msra.mxu0 0
  %2484 = vmatprep.subr.bf16.mxu0 0
  %2485 = vmatpush1.bf16.msra.mxu0 %v2463
  %2486 = vmatprep.subr.bf16.mxu0 0
  %2487 = vmatpush1.bf16.msra.mxu0 %v2462
  %2488 = vmatprep.subr.bf16.mxu0 0
  %2489 = vmatpush2.bf16.msra.mxu0 0
  %2490 = vmatprep.subr.bf16.mxu0 0
  %2491 = vmatpush2.bf16.msra.mxu0 0
  %2492 = vmatprep.subr.bf16.mxu0 0
  %2493 = vmatpush2.bf16.msra.mxu0 0
  %2494 = vmatprep.subr.bf16.mxu0 0
  %2495 = vmatpush2.bf16.msra.mxu0 0
  %2496 = vmatprep.subr.bf16.mxu0 0
  %2497 = vmatpush2.bf16.msra.mxu0 0
  %2498 = vmatprep.subr.bf16.mxu0 0
  %2499 = vmatpush2.bf16.msra.mxu0 0
  %2500 = vmatprep.subr.bf16.mxu0 0
  %2501 = vmatpush2.bf16.msra.mxu0 0
  %2502 = vmatprep.subr.bf16.mxu0 0
  %2503 = vmatpush2.bf16.msra.mxu0 0
  %2504 = vmatprep.mubr.bf16.mxu0 0
  %2505 = vmatmul.mubr.bf16.gmra.mxu0 %v2467
  %v2506 = vpop.f32.mrf.mxu0
  %v2507 = vadd.f32 0.0, %v2506
  %v2508 = vpop.f32.mrf.mxu0
  %v2509 = vpop.f32.mrf.mxu0
  %v2510 = vadd.f32 0.0, %v2509
  %v2511 = vpop.f32.mrf.mxu0
  %2512 = vmatprep.mubr.bf16.mxu0 0
  %2513 = vmatmul.mubr.bf16.gmra.mxu0 %v2470
  %v2514 = vpop.f32.mrf.mxu0
  %v2515 = vadd.f32 0.0, %v2514
  %v2516 = vpop.f32.mrf.mxu0
  %v2517 = vpop.f32.mrf.mxu0
  %v2518 = vadd.f32 0.0, %v2517
  %v2519 = vpop.f32.mrf.mxu0
  %2520 = vdwg.mxu0
  %v2525 = vunpack.c.l.b16 %v2097
  %v2526 = vunpack.c.l.b16 %v2098
  %v2527 = vunpack.c.l.b16 %v2099
  %v2528 = vunpack.c.l.b16 %v2100
  %v2529 = vpack.c.b16 %v2526, %v2525
  %v2530 = vpack.c.b16 %v2528, %v2527
  %v2534 = vsel %vm2124, %v2094, 0
  %v2537 = vsel %vm2124, %v2095, 0
  %2539 = vmatprep.subr.bf16.mxu0 0
  %2540 = vmatpush1.bf16.msra.mxu0 0
  %2541 = vmatprep.subr.bf16.mxu0 0
  %2542 = vmatpush1.bf16.msra.mxu0 0
  %2543 = vmatprep.subr.bf16.mxu0 0
  %2544 = vmatpush1.bf16.msra.mxu0 0
  %2545 = vmatprep.subr.bf16.mxu0 0
  %2546 = vmatpush1.bf16.msra.mxu0 0
  %2547 = vmatprep.subr.bf16.mxu0 0
  %2548 = vmatpush1.bf16.msra.mxu0 0
  %2549 = vmatprep.subr.bf16.mxu0 0
  %2550 = vmatpush1.bf16.msra.mxu0 0
  %2551 = vmatprep.subr.bf16.mxu0 0
  %2552 = vmatpush1.bf16.msra.mxu0 %v2530
  %2553 = vmatprep.subr.bf16.mxu0 0
  %2554 = vmatpush1.bf16.msra.mxu0 %v2529
  %2555 = vmatprep.subr.bf16.mxu0 0
  %2556 = vmatpush2.bf16.msra.mxu0 0
  %2557 = vmatprep.subr.bf16.mxu0 0
  %2558 = vmatpush2.bf16.msra.mxu0 0
  %2559 = vmatprep.subr.bf16.mxu0 0
  %2560 = vmatpush2.bf16.msra.mxu0 0
  %2561 = vmatprep.subr.bf16.mxu0 0
  %2562 = vmatpush2.bf16.msra.mxu0 0
  %2563 = vmatprep.subr.bf16.mxu0 0
  %2564 = vmatpush2.bf16.msra.mxu0 0
  %2565 = vmatprep.subr.bf16.mxu0 0
  %2566 = vmatpush2.bf16.msra.mxu0 0
  %2567 = vmatprep.subr.bf16.mxu0 0
  %2568 = vmatpush2.bf16.msra.mxu0 0
  %2569 = vmatprep.subr.bf16.mxu0 0
  %2570 = vmatpush2.bf16.msra.mxu0 0
  %2571 = vmatprep.mubr.bf16.mxu0 0
  %2572 = vmatmul.mubr.bf16.gmra.mxu0 %v2534
  %v2573 = vpop.f32.mrf.mxu0
  %v2574 = vadd.f32 %v2166, %v2573
  %v2575 = vpop.f32.mrf.mxu0
  %v2576 = vpop.f32.mrf.mxu0
  %v2577 = vadd.f32 %v2169, %v2576
  %v2578 = vpop.f32.mrf.mxu0
  %2579 = vmatprep.mubr.bf16.mxu0 0
  %2580 = vmatmul.mubr.bf16.gmra.mxu0 %v2537
  %v2581 = vpop.f32.mrf.mxu0
  %v2582 = vadd.f32 %v2174, %v2581
  %v2583 = vpop.f32.mrf.mxu0
  %v2584 = vpop.f32.mrf.mxu0
  %v2585 = vadd.f32 %v2177, %v2584
  %v2586 = vpop.f32.mrf.mxu0
  %2587 = vdwg.mxu0
  %v2592 = vunpack.c.l.b16 %v2187
  %v2593 = vunpack.c.l.b16 %v2188
  %v2594 = vunpack.c.l.b16 %v2189
  %v2595 = vunpack.c.l.b16 %v2190
  %v2596 = vpack.c.b16 %v2593, %v2592
  %v2597 = vpack.c.b16 %v2595, %v2594
  %v2601 = vsel %vm2124, %v2184, 0
  %v2604 = vsel %vm2124, %v2185, 0
  %2606 = vmatprep.subr.bf16.mxu0 0
  %2607 = vmatpush1.bf16.msra.mxu0 0
  %2608 = vmatprep.subr.bf16.mxu0 0
  %2609 = vmatpush1.bf16.msra.mxu0 0
  %2610 = vmatprep.subr.bf16.mxu0 0
  %2611 = vmatpush1.bf16.msra.mxu0 0
  %2612 = vmatprep.subr.bf16.mxu0 0
  %2613 = vmatpush1.bf16.msra.mxu0 0
  %2614 = vmatprep.subr.bf16.mxu0 0
  %2615 = vmatpush1.bf16.msra.mxu0 0
  %2616 = vmatprep.subr.bf16.mxu0 0
  %2617 = vmatpush1.bf16.msra.mxu0 0
  %2618 = vmatprep.subr.bf16.mxu0 0
  %2619 = vmatpush1.bf16.msra.mxu0 %v2597
  %2620 = vmatprep.subr.bf16.mxu0 0
  %2621 = vmatpush1.bf16.msra.mxu0 %v2596
  %2622 = vmatprep.subr.bf16.mxu0 0
  %2623 = vmatpush2.bf16.msra.mxu0 0
  %2624 = vmatprep.subr.bf16.mxu0 0
  %2625 = vmatpush2.bf16.msra.mxu0 0
  %2626 = vmatprep.subr.bf16.mxu0 0
  %2627 = vmatpush2.bf16.msra.mxu0 0
  %2628 = vmatprep.subr.bf16.mxu0 0
  %2629 = vmatpush2.bf16.msra.mxu0 0
  %2630 = vmatprep.subr.bf16.mxu0 0
  %2631 = vmatpush2.bf16.msra.mxu0 0
  %2632 = vmatprep.subr.bf16.mxu0 0
  %2633 = vmatpush2.bf16.msra.mxu0 0
  %2634 = vmatprep.subr.bf16.mxu0 0
  %2635 = vmatpush2.bf16.msra.mxu0 0
  %2636 = vmatprep.subr.bf16.mxu0 0
  %2637 = vmatpush2.bf16.msra.mxu0 0
  %2638 = vmatprep.mubr.bf16.mxu0 0
  %2639 = vmatmul.mubr.bf16.gmra.mxu0 %v2601
  %v2640 = vpop.f32.mrf.mxu0
  %v2641 = vadd.f32 %v2255, %v2640
  %v2642 = vpop.f32.mrf.mxu0
  %v2643 = vpop.f32.mrf.mxu0
  %v2644 = vadd.f32 %v2258, %v2643
  %v2645 = vpop.f32.mrf.mxu0
  %2646 = vmatprep.mubr.bf16.mxu0 0
  %2647 = vmatmul.mubr.bf16.gmra.mxu0 %v2604
  %v2648 = vpop.f32.mrf.mxu0
  %v2649 = vadd.f32 %v2263, %v2648
  %v2650 = vpop.f32.mrf.mxu0
  %v2651 = vpop.f32.mrf.mxu0
  %v2652 = vadd.f32 %v2266, %v2651
  %v2653 = vpop.f32.mrf.mxu0
  %2654 = vdwg.mxu0
  %v2659 = vunpack.c.l.b16 %v2272
  %v2660 = vunpack.c.l.b16 %v2273
  %v2661 = vunpack.c.l.b16 %v2274
  %v2662 = vunpack.c.l.b16 %v2275
  %v2663 = vpack.c.b16 %v2660, %v2659
  %v2664 = vpack.c.b16 %v2662, %v2661
  %v2668 = vsel %vm2124, %v2269, 0
  %v2671 = vsel %vm2124, %v2270, 0
  %2673 = vmatprep.subr.bf16.mxu0 0
  %2674 = vmatpush1.bf16.msra.mxu0 0
  %2675 = vmatprep.subr.bf16.mxu0 0
  %2676 = vmatpush1.bf16.msra.mxu0 0
  %2677 = vmatprep.subr.bf16.mxu0 0
  %2678 = vmatpush1.bf16.msra.mxu0 0
  %2679 = vmatprep.subr.bf16.mxu0 0
  %2680 = vmatpush1.bf16.msra.mxu0 0
  %2681 = vmatprep.subr.bf16.mxu0 0
  %2682 = vmatpush1.bf16.msra.mxu0 0
  %2683 = vmatprep.subr.bf16.mxu0 0
  %2684 = vmatpush1.bf16.msra.mxu0 0
  %2685 = vmatprep.subr.bf16.mxu0 0
  %2686 = vmatpush1.bf16.msra.mxu0 %v2664
  %2687 = vmatprep.subr.bf16.mxu0 0
  %2688 = vmatpush1.bf16.msra.mxu0 %v2663
  %2689 = vmatprep.subr.bf16.mxu0 0
  %2690 = vmatpush2.bf16.msra.mxu0 0
  %2691 = vmatprep.subr.bf16.mxu0 0
  %2692 = vmatpush2.bf16.msra.mxu0 0
  %2693 = vmatprep.subr.bf16.mxu0 0
  %2694 = vmatpush2.bf16.msra.mxu0 0
  %2695 = vmatprep.subr.bf16.mxu0 0
  %2696 = vmatpush2.bf16.msra.mxu0 0
  %2697 = vmatprep.subr.bf16.mxu0 0
  %2698 = vmatpush2.bf16.msra.mxu0 0
  %2699 = vmatprep.subr.bf16.mxu0 0
  %2700 = vmatpush2.bf16.msra.mxu0 0
  %2701 = vmatprep.subr.bf16.mxu0 0
  %2702 = vmatpush2.bf16.msra.mxu0 0
  %2703 = vmatprep.subr.bf16.mxu0 0
  %2704 = vmatpush2.bf16.msra.mxu0 0
  %2705 = vmatprep.mubr.bf16.mxu0 0
  %2706 = vmatmul.mubr.bf16.gmra.mxu0 %v2668
  %v2707 = vpop.f32.mrf.mxu0
  %v2708 = vadd.f32 %v2340, %v2707
  %v2709 = vpop.f32.mrf.mxu0
  %v2710 = vpop.f32.mrf.mxu0
  %v2711 = vadd.f32 %v2343, %v2710
  %v2712 = vpop.f32.mrf.mxu0
  %2713 = vmatprep.mubr.bf16.mxu0 0
  %2714 = vmatmul.mubr.bf16.gmra.mxu0 %v2671
  %v2715 = vpop.f32.mrf.mxu0
  %v2716 = vadd.f32 %v2348, %v2715
  %v2717 = vpop.f32.mrf.mxu0
  %v2718 = vpop.f32.mrf.mxu0
  %v2719 = vadd.f32 %v2351, %v2718
  %v2720 = vpop.f32.mrf.mxu0
  %2721 = vdwg.mxu0
  %v2726 = vunpack.c.l.b16 %v2361
  %v2727 = vunpack.c.l.b16 %v2362
  %v2728 = vunpack.c.l.b16 %v2363
  %v2729 = vunpack.c.l.b16 %v2364
  %v2730 = vpack.c.b16 %v2727, %v2726
  %v2731 = vpack.c.b16 %v2729, %v2728
  %v2735 = vsel %vm2124, %v2358, 0
  %v2738 = vsel %vm2124, %v2359, 0
  %2740 = vmatprep.subr.bf16.mxu0 0
  %2741 = vmatpush1.bf16.msra.mxu0 0
  %2742 = vmatprep.subr.bf16.mxu0 0
  %2743 = vmatpush1.bf16.msra.mxu0 0
  %2744 = vmatprep.subr.bf16.mxu0 0
  %2745 = vmatpush1.bf16.msra.mxu0 0
  %2746 = vmatprep.subr.bf16.mxu0 0
  %2747 = vmatpush1.bf16.msra.mxu0 0
  %2748 = vmatprep.subr.bf16.mxu0 0
  %2749 = vmatpush1.bf16.msra.mxu0 0
  %2750 = vmatprep.subr.bf16.mxu0 0
  %2751 = vmatpush1.bf16.msra.mxu0 0
  %2752 = vmatprep.subr.bf16.mxu0 0
  %2753 = vmatpush1.bf16.msra.mxu0 %v2731
  %2754 = vmatprep.subr.bf16.mxu0 0
  %2755 = vmatpush1.bf16.msra.mxu0 %v2730
  %2756 = vmatprep.subr.bf16.mxu0 0
  %2757 = vmatpush2.bf16.msra.mxu0 0
  %2758 = vmatprep.subr.bf16.mxu0 0
  %2759 = vmatpush2.bf16.msra.mxu0 0
  %2760 = vmatprep.subr.bf16.mxu0 0
  %2761 = vmatpush2.bf16.msra.mxu0 0
  %2762 = vmatprep.subr.bf16.mxu0 0
  %2763 = vmatpush2.bf16.msra.mxu0 0
  %2764 = vmatprep.subr.bf16.mxu0 0
  %2765 = vmatpush2.bf16.msra.mxu0 0
  %2766 = vmatprep.subr.bf16.mxu0 0
  %2767 = vmatpush2.bf16.msra.mxu0 0
  %2768 = vmatprep.subr.bf16.mxu0 0
  %2769 = vmatpush2.bf16.msra.mxu0 0
  %2770 = vmatprep.subr.bf16.mxu0 0
  %2771 = vmatpush2.bf16.msra.mxu0 0
  %2772 = vmatprep.mubr.bf16.mxu0 0
  %2773 = vmatmul.mubr.bf16.gmra.mxu0 %v2735
  %v2774 = vpop.f32.mrf.mxu0
  %v2775 = vadd.f32 %v2429, %v2774
  %v2776 = vpop.f32.mrf.mxu0
  %v2777 = vpop.f32.mrf.mxu0
  %v2778 = vadd.f32 %v2432, %v2777
  %v2779 = vpop.f32.mrf.mxu0
  %2780 = vmatprep.mubr.bf16.mxu0 0
  %2781 = vmatmul.mubr.bf16.gmra.mxu0 %v2738
  %v2782 = vpop.f32.mrf.mxu0
  %v2783 = vadd.f32 %v2437, %v2782
  %v2784 = vpop.f32.mrf.mxu0
  %v2785 = vpop.f32.mrf.mxu0
  %v2786 = vadd.f32 %v2440, %v2785
  %v2787 = vpop.f32.mrf.mxu0
  %2788 = vdwg.mxu0
  %v2789 = vadd.f32 %v2574, %v2641
  %v2790 = vadd.f32 %v2577, %v2644
  %v2791 = vadd.f32 %v2582, %v2649
  %v2792 = vadd.f32 %v2585, %v2652
  %v2793 = vadd.f32 %v2708, %v2775
  %v2794 = vadd.f32 %v2711, %v2778
  %v2795 = vadd.f32 %v2716, %v2783
  %v2796 = vadd.f32 %v2719, %v2786
  %v2797 = vadd.f32 %v2789, %v2793
  %v2798 = vadd.f32 %v2790, %v2794
  %v2799 = vadd.f32 %v2791, %v2795
  %v2800 = vadd.f32 %v2792, %v2796
  %v2801 = vadd.f32 %v2797, %v2507
  %v2802 = vadd.f32 %v2798, %v2510
  %v2803 = vadd.f32 %v2799, %v2515
  %v2804 = vadd.f32 %v2800, %v2518
  %s2805 = scalar_lea.vmem %s3, 2
  %v2806 = vld [vmem:[%s2805] sm:$0x1]
  %v2808 = vlaneseq
  %v2809 = vshrl.u32 %v2808, 7
  %v2810 = vsub.s32 0, %v2809
  %v2811 = vrot.slane %v2806, %v2810
  %v2813 = vadd.f32 %v2801, %v2811
  %v2814 = vadd.f32 %v2802, %v2811
  %v2815 = vadd.f32 %v2803, %v2811
  %v2816 = vadd.f32 %v2804, %v2811
  %v2817 = vsel %vm2124, %v2813, 0.0
  %v2818 = vsel %vm2124, %v2814, 0.0
  %v2819 = vadd.f32 %v2817, %v2818
  %v2820 = vrot.slane %v2819, 4
  %v2821 = vadd.f32 %v2819, %v2820
  %v2822 = vrot.slane %v2821, 2
  %v2823 = vadd.f32 %v2821, %v2822
  %v2824 = vrot.slane %v2823, 1
  %v2825 = vadd.f32 %v2823, %v2824
  %v2826 = vsel %vm2124, %v2815, 0.0
  %v2827 = vsel %vm2124, %v2816, 0.0
  %v2828 = vadd.f32 %v2826, %v2827
  %v2829 = vrot.slane %v2828, 4
  %v2830 = vadd.f32 %v2828, %v2829
  %v2831 = vrot.slane %v2830, 2
  %v2832 = vadd.f32 %v2830, %v2831
  %v2833 = vrot.slane %v2832, 1
  %v2834 = vadd.f32 %v2832, %v2833
  %v2835 = vmul.f32 %v2813, %v2813
  %v2836 = vmul.f32 %v2814, %v2814
  %v2837 = vmul.f32 %v2815, %v2815
  %v2838 = vmul.f32 %v2816, %v2816
  %v2839 = vsel %vm2124, %v2835, 0.0
  %v2840 = vsel %vm2124, %v2836, 0.0
  %v2841 = vadd.f32 %v2839, %v2840
  %v2842 = vrot.slane %v2841, 4
  %v2843 = vadd.f32 %v2841, %v2842
  %v2844 = vrot.slane %v2843, 2
  %v2845 = vadd.f32 %v2843, %v2844
  %v2846 = vrot.slane %v2845, 1
  %v2847 = vadd.f32 %v2845, %v2846
  %v2848 = vsel %vm2124, %v2837, 0.0
  %v2849 = vsel %vm2124, %v2838, 0.0
  %v2850 = vadd.f32 %v2848, %v2849
  %v2851 = vrot.slane %v2850, 4
  %v2852 = vadd.f32 %v2850, %v2851
  %v2853 = vrot.slane %v2852, 2
  %v2854 = vadd.f32 %v2852, %v2853
  %v2855 = vrot.slane %v2854, 1
  %v2856 = vadd.f32 %v2854, %v2855
  %v2857 = vmul.f32 %v2825, 0.0625
  %v2858 = vmul.f32 %v2834, 0.0625
  %v2859 = vmul.f32 %v2847, 0.0625
  %v2860 = vmul.f32 %v2856, 0.0625
  %v2861 = vmul.f32 %v2857, %v2857
  %v2862 = vmul.f32 %v2858, %v2858
  %v2863 = vsub.f32 %v2859, %v2861
  %v2864 = vsub.f32 %v2860, %v2862
  %v2865 = vsub.f32 %v2813, %v2857
  %v2866 = vsub.f32 %v2814, %v2857
  %v2867 = vsub.f32 %v2815, %v2858
  %v2868 = vsub.f32 %v2816, %v2858
  %v2869 = vadd.f32 %v2863, 1e-05
  %v2870 = vadd.f32 %v2864, 1e-05
  %v2871 = vrsqrt.pop %v2869
  %v2872 = vrsqrt.pop %v2870
  %v2873 = vmul.f32 %v2865, %v2871
  %v2874 = vmul.f32 %v2866, %v2871
  %v2875 = vmul.f32 %v2867, %v2872
  %v2876 = vmul.f32 %v2868, %v2872
  %v2877 = vmax.f32 %v2873, 0.0
  %v2878 = vmax.f32 %v2874, 0.0
  %v2879 = vmax.f32 %v2875, 0.0
  %v2880 = vmax.f32 %v2876, 0.0
  %2881 = vst.msk [vmem:[#allocation3 + $0x4] sm:$0xff] %vm2124, %v2877
  %2882 = vst.msk [vmem:[#allocation3 + $0xc] sm:$0xff] %vm2124, %v2878
  %2883 = vst.msk [vmem:[#allocation3 + $0x1c] sm:$0xff] %vm2124, %v2879
  %2884 = vst.msk [vmem:[#allocation3 + $0x24] sm:$0xff] %vm2124, %v2880
  %v2885 = vld [vmem:[#allocation3] sm:$0xff]
  %v2886 = vld [vmem:[#allocation3 + $0x8] sm:$0xff]
  %v2887 = vld [vmem:[#allocation3 + $0x18] sm:$0xff]
  %v2888 = vld [vmem:[#allocation3 + $0x20] sm:$0xff]
  %v2889 = vpack.c.bf16 %v2886, %v2885
  %v2890 = vpack.c.bf16 %v2888, %v2887
  %s2891 = scalar_lea.vmem %s2, 864
  %v2892 = vld [vmem:[%s2891] sm:$0xf]
  %v2893 = vld [vmem:[%s2891 + $0x4] sm:$0xf]
  %v2894 = vld [vmem:[%s2891 + $0x8] sm:$0xf]
  %v2895 = vld [vmem:[%s2891 + $0xc] sm:$0xf]
  %v2896 = vld [vmem:[#allocation3 + $0x1] sm:$0xff]
  %v2897 = vld [vmem:[#allocation3 + $0x9] sm:$0xff]
  %v2898 = vld [vmem:[#allocation3 + $0x19] sm:$0xff]
  %v2899 = vld [vmem:[#allocation3 + $0x21] sm:$0xff]
  %v2900 = vpack.c.bf16 %v2897, %v2896
  %v2901 = vpack.c.bf16 %v2899, %v2898
  %s2902 = scalar_lea.vmem %s2, 896
  %v2903 = vld [vmem:[%s2902] sm:$0xf]
  %v2904 = vld [vmem:[%s2902 + $0x4] sm:$0xf]
  %v2905 = vld [vmem:[%s2902 + $0x8] sm:$0xf]
  %v2906 = vld [vmem:[%s2902 + $0xc] sm:$0xf]
  %v2911 = vunpack.c.l.b16 %v2903
  %v2912 = vunpack.c.l.b16 %v2904
  %v2913 = vunpack.c.l.b16 %v2905
  %v2914 = vunpack.c.l.b16 %v2906
  %v2915 = vpack.c.b16 %v2912, %v2911
  %v2916 = vpack.c.b16 %v2914, %v2913
  %v2920 = vsel %vm2124, %v2900, 0
  %v2923 = vsel %vm2124, %v2901, 0
  %2925 = vmatprep.subr.bf16.mxu0 0
  %2926 = vmatpush1.bf16.msra.mxu0 0
  %2927 = vmatprep.subr.bf16.mxu0 0
  %2928 = vmatpush1.bf16.msra.mxu0 0
  %2929 = vmatprep.subr.bf16.mxu0 0
  %2930 = vmatpush1.bf16.msra.mxu0 0
  %2931 = vmatprep.subr.bf16.mxu0 0
  %2932 = vmatpush1.bf16.msra.mxu0 0
  %2933 = vmatprep.subr.bf16.mxu0 0
  %2934 = vmatpush1.bf16.msra.mxu0 0
  %2935 = vmatprep.subr.bf16.mxu0 0
  %2936 = vmatpush1.bf16.msra.mxu0 0
  %2937 = vmatprep.subr.bf16.mxu0 0
  %2938 = vmatpush1.bf16.msra.mxu0 %v2916
  %2939 = vmatprep.subr.bf16.mxu0 0
  %2940 = vmatpush1.bf16.msra.mxu0 %v2915
  %2941 = vmatprep.subr.bf16.mxu0 0
  %2942 = vmatpush2.bf16.msra.mxu0 0
  %2943 = vmatprep.subr.bf16.mxu0 0
  %2944 = vmatpush2.bf16.msra.mxu0 0
  %2945 = vmatprep.subr.bf16.mxu0 0
  %2946 = vmatpush2.bf16.msra.mxu0 0
  %2947 = vmatprep.subr.bf16.mxu0 0
  %2948 = vmatpush2.bf16.msra.mxu0 0
  %2949 = vmatprep.subr.bf16.mxu0 0
  %2950 = vmatpush2.bf16.msra.mxu0 0
  %2951 = vmatprep.subr.bf16.mxu0 0
  %2952 = vmatpush2.bf16.msra.mxu0 0
  %2953 = vmatprep.subr.bf16.mxu0 0
  %2954 = vmatpush2.bf16.msra.mxu0 0
  %2955 = vmatprep.subr.bf16.mxu0 0
  %2956 = vmatpush2.bf16.msra.mxu0 0
  %2957 = vmatprep.mubr.bf16.mxu0 0
  %2958 = vmatmul.mubr.bf16.gmra.mxu0 %v2920
  %v2959 = vpop.f32.mrf.mxu0
  %v2960 = vadd.f32 0.0, %v2959
  %v2961 = vpop.f32.mrf.mxu0
  %v2962 = vpop.f32.mrf.mxu0
  %v2963 = vadd.f32 0.0, %v2962
  %v2964 = vpop.f32.mrf.mxu0
  %2965 = vmatprep.mubr.bf16.mxu0 0
  %2966 = vmatmul.mubr.bf16.gmra.mxu0 %v2923
  %v2967 = vpop.f32.mrf.mxu0
  %v2968 = vadd.f32 0.0, %v2967
  %v2969 = vpop.f32.mrf.mxu0
  %v2970 = vpop.f32.mrf.mxu0
  %v2971 = vadd.f32 0.0, %v2970
  %v2972 = vpop.f32.mrf.mxu0
  %2973 = vdwg.mxu0
  %v2974 = vld [vmem:[#allocation3 + $0x2] sm:$0xff]
  %v2975 = vld [vmem:[#allocation3 + $0xa] sm:$0xff]
  %v2976 = vld [vmem:[#allocation3 + $0x1a] sm:$0xff]
  %v2977 = vld [vmem:[#allocation3 + $0x22] sm:$0xff]
  %v2978 = vpack.c.bf16 %v2975, %v2974
  %v2979 = vpack.c.bf16 %v2977, %v2976
  %s2980 = scalar_lea.vmem %s2, 928
  %v2981 = vld [vmem:[%s2980] sm:$0xf]
  %v2982 = vld [vmem:[%s2980 + $0x4] sm:$0xf]
  %v2983 = vld [vmem:[%s2980 + $0x8] sm:$0xf]
  %v2984 = vld [vmem:[%s2980 + $0xc] sm:$0xf]
  %v2985 = vld [vmem:[#allocation3 + $0x3] sm:$0xff]
  %v2986 = vld [vmem:[#allocation3 + $0xb] sm:$0xff]
  %v2987 = vld [vmem:[#allocation3 + $0x1b] sm:$0xff]
  %v2988 = vld [vmem:[#allocation3 + $0x23] sm:$0xff]
  %v2989 = vpack.c.bf16 %v2986, %v2985
  %v2990 = vpack.c.bf16 %v2988, %v2987
  %s2991 = scalar_lea.vmem %s2, 960
  %v2992 = vld [vmem:[%s2991] sm:$0xf]
  %v2993 = vld [vmem:[%s2991 + $0x4] sm:$0xf]
  %v2994 = vld [vmem:[%s2991 + $0x8] sm:$0xf]
  %v2995 = vld [vmem:[%s2991 + $0xc] sm:$0xf]
  %v3000 = vunpack.c.l.b16 %v2992
  %v3001 = vunpack.c.l.b16 %v2993
  %v3002 = vunpack.c.l.b16 %v2994
  %v3003 = vunpack.c.l.b16 %v2995
  %v3004 = vpack.c.b16 %v3001, %v3000
  %v3005 = vpack.c.b16 %v3003, %v3002
  %v3009 = vsel %vm2124, %v2989, 0
  %v3012 = vsel %vm2124, %v2990, 0
  %3014 = vmatprep.subr.bf16.mxu0 0
  %3015 = vmatpush1.bf16.msra.mxu0 0
  %3016 = vmatprep.subr.bf16.mxu0 0
  %3017 = vmatpush1.bf16.msra.mxu0 0
  %3018 = vmatprep.subr.bf16.mxu0 0
  %3019 = vmatpush1.bf16.msra.mxu0 0
  %3020 = vmatprep.subr.bf16.mxu0 0
  %3021 = vmatpush1.bf16.msra.mxu0 0
  %3022 = vmatprep.subr.bf16.mxu0 0
  %3023 = vmatpush1.bf16.msra.mxu0 0
  %3024 = vmatprep.subr.bf16.mxu0 0
  %3025 = vmatpush1.bf16.msra.mxu0 0
  %3026 = vmatprep.subr.bf16.mxu0 0
  %3027 = vmatpush1.bf16.msra.mxu0 %v3005
  %3028 = vmatprep.subr.bf16.mxu0 0
  %3029 = vmatpush1.bf16.msra.mxu0 %v3004
  %3030 = vmatprep.subr.bf16.mxu0 0
  %3031 = vmatpush2.bf16.msra.mxu0 0
  %3032 = vmatprep.subr.bf16.mxu0 0
  %3033 = vmatpush2.bf16.msra.mxu0 0
  %3034 = vmatprep.subr.bf16.mxu0 0
  %3035 = vmatpush2.bf16.msra.mxu0 0
  %3036 = vmatprep.subr.bf16.mxu0 0
  %3037 = vmatpush2.bf16.msra.mxu0 0
  %3038 = vmatprep.subr.bf16.mxu0 0
  %3039 = vmatpush2.bf16.msra.mxu0 0
  %3040 = vmatprep.subr.bf16.mxu0 0
  %3041 = vmatpush2.bf16.msra.mxu0 0
  %3042 = vmatprep.subr.bf16.mxu0 0
  %3043 = vmatpush2.bf16.msra.mxu0 0
  %3044 = vmatprep.subr.bf16.mxu0 0
  %3045 = vmatpush2.bf16.msra.mxu0 0
  %3046 = vmatprep.mubr.bf16.mxu0 0
  %3047 = vmatmul.mubr.bf16.gmra.mxu0 %v3009
  %v3048 = vpop.f32.mrf.mxu0
  %v3049 = vadd.f32 0.0, %v3048
  %v3050 = vpop.f32.mrf.mxu0
  %v3051 = vpop.f32.mrf.mxu0
  %v3052 = vadd.f32 0.0, %v3051
  %v3053 = vpop.f32.mrf.mxu0
  %3054 = vmatprep.mubr.bf16.mxu0 0
  %3055 = vmatmul.mubr.bf16.gmra.mxu0 %v3012
  %v3056 = vpop.f32.mrf.mxu0
  %v3057 = vadd.f32 0.0, %v3056
  %v3058 = vpop.f32.mrf.mxu0
  %v3059 = vpop.f32.mrf.mxu0
  %v3060 = vadd.f32 0.0, %v3059
  %v3061 = vpop.f32.mrf.mxu0
  %3062 = vdwg.mxu0
  %v3063 = vld [vmem:[#allocation3 + $0x4] sm:$0xff]
  %v3064 = vld [vmem:[#allocation3 + $0xc] sm:$0xff]
  %v3065 = vld [vmem:[#allocation3 + $0x1c] sm:$0xff]
  %v3066 = vld [vmem:[#allocation3 + $0x24] sm:$0xff]
  %v3067 = vpack.c.bf16 %v3064, %v3063
  %v3068 = vpack.c.bf16 %v3066, %v3065
  %s3069 = scalar_lea.vmem %s2, 992
  %v3070 = vld [vmem:[%s3069] sm:$0xf]
  %v3071 = vld [vmem:[%s3069 + $0x4] sm:$0xf]
  %v3072 = vld [vmem:[%s3069 + $0x8] sm:$0xf]
  %v3073 = vld [vmem:[%s3069 + $0xc] sm:$0xf]
  %v3074 = vld [vmem:[#allocation3 + $0x5] sm:$0xff]
  %v3075 = vld [vmem:[#allocation3 + $0xd] sm:$0xff]
  %v3076 = vld [vmem:[#allocation3 + $0x1d] sm:$0xff]
  %v3077 = vld [vmem:[#allocation3 + $0x25] sm:$0xff]
  %v3078 = vpack.c.bf16 %v3075, %v3074
  %v3079 = vpack.c.bf16 %v3077, %v3076
  %s3080 = scalar_lea.vmem %s2, 1024
  %v3081 = vld [vmem:[%s3080] sm:$0xf]
  %v3082 = vld [vmem:[%s3080 + $0x4] sm:$0xf]
  %v3083 = vld [vmem:[%s3080 + $0x8] sm:$0xf]
  %v3084 = vld [vmem:[%s3080 + $0xc] sm:$0xf]
  %v3089 = vunpack.c.l.b16 %v3081
  %v3090 = vunpack.c.l.b16 %v3082
  %v3091 = vunpack.c.l.b16 %v3083
  %v3092 = vunpack.c.l.b16 %v3084
  %v3093 = vpack.c.b16 %v3090, %v3089
  %v3094 = vpack.c.b16 %v3092, %v3091
  %v3098 = vsel %vm2124, %v3078, 0
  %v3101 = vsel %vm2124, %v3079, 0
  %3103 = vmatprep.subr.bf16.mxu0 0
  %3104 = vmatpush1.bf16.msra.mxu0 0
  %3105 = vmatprep.subr.bf16.mxu0 0
  %3106 = vmatpush1.bf16.msra.mxu0 0
  %3107 = vmatprep.subr.bf16.mxu0 0
  %3108 = vmatpush1.bf16.msra.mxu0 0
  %3109 = vmatprep.subr.bf16.mxu0 0
  %3110 = vmatpush1.bf16.msra.mxu0 0
  %3111 = vmatprep.subr.bf16.mxu0 0
  %3112 = vmatpush1.bf16.msra.mxu0 0
  %3113 = vmatprep.subr.bf16.mxu0 0
  %3114 = vmatpush1.bf16.msra.mxu0 0
  %3115 = vmatprep.subr.bf16.mxu0 0
  %3116 = vmatpush1.bf16.msra.mxu0 %v3094
  %3117 = vmatprep.subr.bf16.mxu0 0
  %3118 = vmatpush1.bf16.msra.mxu0 %v3093
  %3119 = vmatprep.subr.bf16.mxu0 0
  %3120 = vmatpush2.bf16.msra.mxu0 0
  %3121 = vmatprep.subr.bf16.mxu0 0
  %3122 = vmatpush2.bf16.msra.mxu0 0
  %3123 = vmatprep.subr.bf16.mxu0 0
  %3124 = vmatpush2.bf16.msra.mxu0 0
  %3125 = vmatprep.subr.bf16.mxu0 0
  %3126 = vmatpush2.bf16.msra.mxu0 0
  %3127 = vmatprep.subr.bf16.mxu0 0
  %3128 = vmatpush2.bf16.msra.mxu0 0
  %3129 = vmatprep.subr.bf16.mxu0 0
  %3130 = vmatpush2.bf16.msra.mxu0 0
  %3131 = vmatprep.subr.bf16.mxu0 0
  %3132 = vmatpush2.bf16.msra.mxu0 0
  %3133 = vmatprep.subr.bf16.mxu0 0
  %3134 = vmatpush2.bf16.msra.mxu0 0
  %3135 = vmatprep.mubr.bf16.mxu0 0
  %3136 = vmatmul.mubr.bf16.gmra.mxu0 %v3098
  %v3137 = vpop.f32.mrf.mxu0
  %v3138 = vadd.f32 0.0, %v3137
  %v3139 = vpop.f32.mrf.mxu0
  %v3140 = vpop.f32.mrf.mxu0
  %v3141 = vadd.f32 0.0, %v3140
  %v3142 = vpop.f32.mrf.mxu0
  %3143 = vmatprep.mubr.bf16.mxu0 0
  %3144 = vmatmul.mubr.bf16.gmra.mxu0 %v3101
  %v3145 = vpop.f32.mrf.mxu0
  %v3146 = vadd.f32 0.0, %v3145
  %v3147 = vpop.f32.mrf.mxu0
  %v3148 = vpop.f32.mrf.mxu0
  %v3149 = vadd.f32 0.0, %v3148
  %v3150 = vpop.f32.mrf.mxu0
  %3151 = vdwg.mxu0
  %v3152 = vld [vmem:[#allocation3 + $0x6] sm:$0xff]
  %v3153 = vld [vmem:[#allocation3 + $0xe] sm:$0xff]
  %v3154 = vld [vmem:[#allocation3 + $0x1e] sm:$0xff]
  %v3155 = vld [vmem:[#allocation3 + $0x26] sm:$0xff]
  %v3156 = vpack.c.bf16 %v3153, %v3152
  %v3157 = vpack.c.bf16 %v3155, %v3154
  %s3158 = scalar_lea.vmem %s2, 1056
  %v3159 = vld [vmem:[%s3158] sm:$0xf]
  %v3160 = vld [vmem:[%s3158 + $0x4] sm:$0xf]
  %v3161 = vld [vmem:[%s3158 + $0x8] sm:$0xf]
  %v3162 = vld [vmem:[%s3158 + $0xc] sm:$0xf]
  %v3163 = vld [vmem:[#allocation3 + $0x7] sm:$0xff]
  %v3164 = vld [vmem:[#allocation3 + $0xf] sm:$0xff]
  %v3165 = vld [vmem:[#allocation3 + $0x1f] sm:$0xff]
  %v3166 = vld [vmem:[#allocation3 + $0x27] sm:$0xff]
  %v3167 = vpack.c.bf16 %v3164, %v3163
  %v3168 = vpack.c.bf16 %v3166, %v3165
  %s3169 = scalar_lea.vmem %s2, 1088
  %v3170 = vld [vmem:[%s3169] sm:$0xf]
  %v3171 = vld [vmem:[%s3169 + $0x4] sm:$0xf]
  %v3172 = vld [vmem:[%s3169 + $0x8] sm:$0xf]
  %v3173 = vld [vmem:[%s3169 + $0xc] sm:$0xf]
  %v3178 = vunpack.c.l.b16 %v3170
  %v3179 = vunpack.c.l.b16 %v3171
  %v3180 = vunpack.c.l.b16 %v3172
  %v3181 = vunpack.c.l.b16 %v3173
  %v3182 = vpack.c.b16 %v3179, %v3178
  %v3183 = vpack.c.b16 %v3181, %v3180
  %v3187 = vsel %vm2124, %v3167, 0
  %v3190 = vsel %vm2124, %v3168, 0
  %3192 = vmatprep.subr.bf16.mxu0 0
  %3193 = vmatpush1.bf16.msra.mxu0 0
  %3194 = vmatprep.subr.bf16.mxu0 0
  %3195 = vmatpush1.bf16.msra.mxu0 0
  %3196 = vmatprep.subr.bf16.mxu0 0
  %3197 = vmatpush1.bf16.msra.mxu0 0
  %3198 = vmatprep.subr.bf16.mxu0 0
  %3199 = vmatpush1.bf16.msra.mxu0 0
  %3200 = vmatprep.subr.bf16.mxu0 0
  %3201 = vmatpush1.bf16.msra.mxu0 0
  %3202 = vmatprep.subr.bf16.mxu0 0
  %3203 = vmatpush1.bf16.msra.mxu0 0
  %3204 = vmatprep.subr.bf16.mxu0 0
  %3205 = vmatpush1.bf16.msra.mxu0 %v3183
  %3206 = vmatprep.subr.bf16.mxu0 0
  %3207 = vmatpush1.bf16.msra.mxu0 %v3182
  %3208 = vmatprep.subr.bf16.mxu0 0
  %3209 = vmatpush2.bf16.msra.mxu0 0
  %3210 = vmatprep.subr.bf16.mxu0 0
  %3211 = vmatpush2.bf16.msra.mxu0 0
  %3212 = vmatprep.subr.bf16.mxu0 0
  %3213 = vmatpush2.bf16.msra.mxu0 0
  %3214 = vmatprep.subr.bf16.mxu0 0
  %3215 = vmatpush2.bf16.msra.mxu0 0
  %3216 = vmatprep.subr.bf16.mxu0 0
  %3217 = vmatpush2.bf16.msra.mxu0 0
  %3218 = vmatprep.subr.bf16.mxu0 0
  %3219 = vmatpush2.bf16.msra.mxu0 0
  %3220 = vmatprep.subr.bf16.mxu0 0
  %3221 = vmatpush2.bf16.msra.mxu0 0
  %3222 = vmatprep.subr.bf16.mxu0 0
  %3223 = vmatpush2.bf16.msra.mxu0 0
  %3224 = vmatprep.mubr.bf16.mxu0 0
  %3225 = vmatmul.mubr.bf16.gmra.mxu0 %v3187
  %v3226 = vpop.f32.mrf.mxu0
  %v3227 = vadd.f32 0.0, %v3226
  %v3228 = vpop.f32.mrf.mxu0
  %v3229 = vpop.f32.mrf.mxu0
  %v3230 = vadd.f32 0.0, %v3229
  %v3231 = vpop.f32.mrf.mxu0
  %3232 = vmatprep.mubr.bf16.mxu0 0
  %3233 = vmatmul.mubr.bf16.gmra.mxu0 %v3190
  %v3234 = vpop.f32.mrf.mxu0
  %v3235 = vadd.f32 0.0, %v3234
  %v3236 = vpop.f32.mrf.mxu0
  %v3237 = vpop.f32.mrf.mxu0
  %v3238 = vadd.f32 0.0, %v3237
  %v3239 = vpop.f32.mrf.mxu0
  %3240 = vdwg.mxu0
  %v3241 = vld [vmem:[#allocation3 + $0x8] sm:$0xff]
  %v3242 = vld [vmem:[#allocation3 + $0x10] sm:$0xff]
  %v3243 = vld [vmem:[#allocation3 + $0x20] sm:$0xff]
  %v3244 = vld [vmem:[#allocation3 + $0x28] sm:$0xff]
  %v3245 = vpack.c.bf16 %v3242, %v3241
  %v3246 = vpack.c.bf16 %v3244, %v3243
  %s3247 = scalar_lea.vmem %s2, 1120
  %v3248 = vld [vmem:[%s3247] sm:$0xf]
  %v3249 = vld [vmem:[%s3247 + $0x4] sm:$0xf]
  %v3250 = vld [vmem:[%s3247 + $0x8] sm:$0xf]
  %v3251 = vld [vmem:[%s3247 + $0xc] sm:$0xf]
  %v3256 = vunpack.c.l.b16 %v3248
  %v3257 = vunpack.c.l.b16 %v3249
  %v3258 = vunpack.c.l.b16 %v3250
  %v3259 = vunpack.c.l.b16 %v3251
  %v3260 = vpack.c.b16 %v3257, %v3256
  %v3261 = vpack.c.b16 %v3259, %v3258
  %v3265 = vsel %vm2124, %v3245, 0
  %v3268 = vsel %vm2124, %v3246, 0
  %3270 = vmatprep.subr.bf16.mxu0 0
  %3271 = vmatpush1.bf16.msra.mxu0 0
  %3272 = vmatprep.subr.bf16.mxu0 0
  %3273 = vmatpush1.bf16.msra.mxu0 0
  %3274 = vmatprep.subr.bf16.mxu0 0
  %3275 = vmatpush1.bf16.msra.mxu0 0
  %3276 = vmatprep.subr.bf16.mxu0 0
  %3277 = vmatpush1.bf16.msra.mxu0 0
  %3278 = vmatprep.subr.bf16.mxu0 0
  %3279 = vmatpush1.bf16.msra.mxu0 0
  %3280 = vmatprep.subr.bf16.mxu0 0
  %3281 = vmatpush1.bf16.msra.mxu0 0
  %3282 = vmatprep.subr.bf16.mxu0 0
  %3283 = vmatpush1.bf16.msra.mxu0 %v3261
  %3284 = vmatprep.subr.bf16.mxu0 0
  %3285 = vmatpush1.bf16.msra.mxu0 %v3260
  %3286 = vmatprep.subr.bf16.mxu0 0
  %3287 = vmatpush2.bf16.msra.mxu0 0
  %3288 = vmatprep.subr.bf16.mxu0 0
  %3289 = vmatpush2.bf16.msra.mxu0 0
  %3290 = vmatprep.subr.bf16.mxu0 0
  %3291 = vmatpush2.bf16.msra.mxu0 0
  %3292 = vmatprep.subr.bf16.mxu0 0
  %3293 = vmatpush2.bf16.msra.mxu0 0
  %3294 = vmatprep.subr.bf16.mxu0 0
  %3295 = vmatpush2.bf16.msra.mxu0 0
  %3296 = vmatprep.subr.bf16.mxu0 0
  %3297 = vmatpush2.bf16.msra.mxu0 0
  %3298 = vmatprep.subr.bf16.mxu0 0
  %3299 = vmatpush2.bf16.msra.mxu0 0
  %3300 = vmatprep.subr.bf16.mxu0 0
  %3301 = vmatpush2.bf16.msra.mxu0 0
  %3302 = vmatprep.mubr.bf16.mxu0 0
  %3303 = vmatmul.mubr.bf16.gmra.mxu0 %v3265
  %v3304 = vpop.f32.mrf.mxu0
  %v3305 = vadd.f32 0.0, %v3304
  %v3306 = vpop.f32.mrf.mxu0
  %v3307 = vpop.f32.mrf.mxu0
  %v3308 = vadd.f32 0.0, %v3307
  %v3309 = vpop.f32.mrf.mxu0
  %3310 = vmatprep.mubr.bf16.mxu0 0
  %3311 = vmatmul.mubr.bf16.gmra.mxu0 %v3268
  %v3312 = vpop.f32.mrf.mxu0
  %v3313 = vadd.f32 0.0, %v3312
  %v3314 = vpop.f32.mrf.mxu0
  %v3315 = vpop.f32.mrf.mxu0
  %v3316 = vadd.f32 0.0, %v3315
  %v3317 = vpop.f32.mrf.mxu0
  %3318 = vdwg.mxu0
  %v3323 = vunpack.c.l.b16 %v2892
  %v3324 = vunpack.c.l.b16 %v2893
  %v3325 = vunpack.c.l.b16 %v2894
  %v3326 = vunpack.c.l.b16 %v2895
  %v3327 = vpack.c.b16 %v3324, %v3323
  %v3328 = vpack.c.b16 %v3326, %v3325
  %v3332 = vsel %vm2124, %v2889, 0
  %v3335 = vsel %vm2124, %v2890, 0
  %3337 = vmatprep.subr.bf16.mxu0 0
  %3338 = vmatpush1.bf16.msra.mxu0 0
  %3339 = vmatprep.subr.bf16.mxu0 0
  %3340 = vmatpush1.bf16.msra.mxu0 0
  %3341 = vmatprep.subr.bf16.mxu0 0
  %3342 = vmatpush1.bf16.msra.mxu0 0
  %3343 = vmatprep.subr.bf16.mxu0 0
  %3344 = vmatpush1.bf16.msra.mxu0 0
  %3345 = vmatprep.subr.bf16.mxu0 0
  %3346 = vmatpush1.bf16.msra.mxu0 0
  %3347 = vmatprep.subr.bf16.mxu0 0
  %3348 = vmatpush1.bf16.msra.mxu0 0
  %3349 = vmatprep.subr.bf16.mxu0 0
  %3350 = vmatpush1.bf16.msra.mxu0 %v3328
  %3351 = vmatprep.subr.bf16.mxu0 0
  %3352 = vmatpush1.bf16.msra.mxu0 %v3327
  %3353 = vmatprep.subr.bf16.mxu0 0
  %3354 = vmatpush2.bf16.msra.mxu0 0
  %3355 = vmatprep.subr.bf16.mxu0 0
  %3356 = vmatpush2.bf16.msra.mxu0 0
  %3357 = vmatprep.subr.bf16.mxu0 0
  %3358 = vmatpush2.bf16.msra.mxu0 0
  %3359 = vmatprep.subr.bf16.mxu0 0
  %3360 = vmatpush2.bf16.msra.mxu0 0
  %3361 = vmatprep.subr.bf16.mxu0 0
  %3362 = vmatpush2.bf16.msra.mxu0 0
  %3363 = vmatprep.subr.bf16.mxu0 0
  %3364 = vmatpush2.bf16.msra.mxu0 0
  %3365 = vmatprep.subr.bf16.mxu0 0
  %3366 = vmatpush2.bf16.msra.mxu0 0
  %3367 = vmatprep.subr.bf16.mxu0 0
  %3368 = vmatpush2.bf16.msra.mxu0 0
  %3369 = vmatprep.mubr.bf16.mxu0 0
  %3370 = vmatmul.mubr.bf16.gmra.mxu0 %v3332
  %v3371 = vpop.f32.mrf.mxu0
  %v3372 = vadd.f32 %v2960, %v3371
  %v3373 = vpop.f32.mrf.mxu0
  %v3374 = vpop.f32.mrf.mxu0
  %v3375 = vadd.f32 %v2963, %v3374
  %v3376 = vpop.f32.mrf.mxu0
  %3377 = vmatprep.mubr.bf16.mxu0 0
  %3378 = vmatmul.mubr.bf16.gmra.mxu0 %v3335
  %v3379 = vpop.f32.mrf.mxu0
  %v3380 = vadd.f32 %v2968, %v3379
  %v3381 = vpop.f32.mrf.mxu0
  %v3382 = vpop.f32.mrf.mxu0
  %v3383 = vadd.f32 %v2971, %v3382
  %v3384 = vpop.f32.mrf.mxu0
  %3385 = vdwg.mxu0
  %v3390 = vunpack.c.l.b16 %v2981
  %v3391 = vunpack.c.l.b16 %v2982
  %v3392 = vunpack.c.l.b16 %v2983
  %v3393 = vunpack.c.l.b16 %v2984
  %v3394 = vpack.c.b16 %v3391, %v3390
  %v3395 = vpack.c.b16 %v3393, %v3392
  %v3399 = vsel %vm2124, %v2978, 0
  %v3402 = vsel %vm2124, %v2979, 0
  %3404 = vmatprep.subr.bf16.mxu0 0
  %3405 = vmatpush1.bf16.msra.mxu0 0
  %3406 = vmatprep.subr.bf16.mxu0 0
  %3407 = vmatpush1.bf16.msra.mxu0 0
  %3408 = vmatprep.subr.bf16.mxu0 0
  %3409 = vmatpush1.bf16.msra.mxu0 0
  %3410 = vmatprep.subr.bf16.mxu0 0
  %3411 = vmatpush1.bf16.msra.mxu0 0
  %3412 = vmatprep.subr.bf16.mxu0 0
  %3413 = vmatpush1.bf16.msra.mxu0 0
  %3414 = vmatprep.subr.bf16.mxu0 0
  %3415 = vmatpush1.bf16.msra.mxu0 0
  %3416 = vmatprep.subr.bf16.mxu0 0
  %3417 = vmatpush1.bf16.msra.mxu0 %v3395
  %3418 = vmatprep.subr.bf16.mxu0 0
  %3419 = vmatpush1.bf16.msra.mxu0 %v3394
  %3420 = vmatprep.subr.bf16.mxu0 0
  %3421 = vmatpush2.bf16.msra.mxu0 0
  %3422 = vmatprep.subr.bf16.mxu0 0
  %3423 = vmatpush2.bf16.msra.mxu0 0
  %3424 = vmatprep.subr.bf16.mxu0 0
  %3425 = vmatpush2.bf16.msra.mxu0 0
  %3426 = vmatprep.subr.bf16.mxu0 0
  %3427 = vmatpush2.bf16.msra.mxu0 0
  %3428 = vmatprep.subr.bf16.mxu0 0
  %3429 = vmatpush2.bf16.msra.mxu0 0
  %3430 = vmatprep.subr.bf16.mxu0 0
  %3431 = vmatpush2.bf16.msra.mxu0 0
  %3432 = vmatprep.subr.bf16.mxu0 0
  %3433 = vmatpush2.bf16.msra.mxu0 0
  %3434 = vmatprep.subr.bf16.mxu0 0
  %3435 = vmatpush2.bf16.msra.mxu0 0
  %3436 = vmatprep.mubr.bf16.mxu0 0
  %3437 = vmatmul.mubr.bf16.gmra.mxu0 %v3399
  %v3438 = vpop.f32.mrf.mxu0
  %v3439 = vadd.f32 %v3049, %v3438
  %v3440 = vpop.f32.mrf.mxu0
  %v3441 = vpop.f32.mrf.mxu0
  %v3442 = vadd.f32 %v3052, %v3441
  %v3443 = vpop.f32.mrf.mxu0
  %3444 = vmatprep.mubr.bf16.mxu0 0
  %3445 = vmatmul.mubr.bf16.gmra.mxu0 %v3402
  %v3446 = vpop.f32.mrf.mxu0
  %v3447 = vadd.f32 %v3057, %v3446
  %v3448 = vpop.f32.mrf.mxu0
  %v3449 = vpop.f32.mrf.mxu0
  %v3450 = vadd.f32 %v3060, %v3449
  %v3451 = vpop.f32.mrf.mxu0
  %3452 = vdwg.mxu0
  %v3457 = vunpack.c.l.b16 %v3070
  %v3458 = vunpack.c.l.b16 %v3071
  %v3459 = vunpack.c.l.b16 %v3072
  %v3460 = vunpack.c.l.b16 %v3073
  %v3461 = vpack.c.b16 %v3458, %v3457
  %v3462 = vpack.c.b16 %v3460, %v3459
  %v3466 = vsel %vm2124, %v3067, 0
  %v3469 = vsel %vm2124, %v3068, 0
  %3471 = vmatprep.subr.bf16.mxu0 0
  %3472 = vmatpush1.bf16.msra.mxu0 0
  %3473 = vmatprep.subr.bf16.mxu0 0
  %3474 = vmatpush1.bf16.msra.mxu0 0
  %3475 = vmatprep.subr.bf16.mxu0 0
  %3476 = vmatpush1.bf16.msra.mxu0 0
  %3477 = vmatprep.subr.bf16.mxu0 0
  %3478 = vmatpush1.bf16.msra.mxu0 0
  %3479 = vmatprep.subr.bf16.mxu0 0
  %3480 = vmatpush1.bf16.msra.mxu0 0
  %3481 = vmatprep.subr.bf16.mxu0 0
  %3482 = vmatpush1.bf16.msra.mxu0 0
  %3483 = vmatprep.subr.bf16.mxu0 0
  %3484 = vmatpush1.bf16.msra.mxu0 %v3462
  %3485 = vmatprep.subr.bf16.mxu0 0
  %3486 = vmatpush1.bf16.msra.mxu0 %v3461
  %3487 = vmatprep.subr.bf16.mxu0 0
  %3488 = vmatpush2.bf16.msra.mxu0 0
  %3489 = vmatprep.subr.bf16.mxu0 0
  %3490 = vmatpush2.bf16.msra.mxu0 0
  %3491 = vmatprep.subr.bf16.mxu0 0
  %3492 = vmatpush2.bf16.msra.mxu0 0
  %3493 = vmatprep.subr.bf16.mxu0 0
  %3494 = vmatpush2.bf16.msra.mxu0 0
  %3495 = vmatprep.subr.bf16.mxu0 0
  %3496 = vmatpush2.bf16.msra.mxu0 0
  %3497 = vmatprep.subr.bf16.mxu0 0
  %3498 = vmatpush2.bf16.msra.mxu0 0
  %3499 = vmatprep.subr.bf16.mxu0 0
  %3500 = vmatpush2.bf16.msra.mxu0 0
  %3501 = vmatprep.subr.bf16.mxu0 0
  %3502 = vmatpush2.bf16.msra.mxu0 0
  %3503 = vmatprep.mubr.bf16.mxu0 0
  %3504 = vmatmul.mubr.bf16.gmra.mxu0 %v3466
  %v3505 = vpop.f32.mrf.mxu0
  %v3506 = vadd.f32 %v3138, %v3505
  %v3507 = vpop.f32.mrf.mxu0
  %v3508 = vpop.f32.mrf.mxu0
  %v3509 = vadd.f32 %v3141, %v3508
  %v3510 = vpop.f32.mrf.mxu0
  %3511 = vmatprep.mubr.bf16.mxu0 0
  %3512 = vmatmul.mubr.bf16.gmra.mxu0 %v3469
  %v3513 = vpop.f32.mrf.mxu0
  %v3514 = vadd.f32 %v3146, %v3513
  %v3515 = vpop.f32.mrf.mxu0
  %v3516 = vpop.f32.mrf.mxu0
  %v3517 = vadd.f32 %v3149, %v3516
  %v3518 = vpop.f32.mrf.mxu0
  %3519 = vdwg.mxu0
  %v3524 = vunpack.c.l.b16 %v3159
  %v3525 = vunpack.c.l.b16 %v3160
  %v3526 = vunpack.c.l.b16 %v3161
  %v3527 = vunpack.c.l.b16 %v3162
  %v3528 = vpack.c.b16 %v3525, %v3524
  %v3529 = vpack.c.b16 %v3527, %v3526
  %v3533 = vsel %vm2124, %v3156, 0
  %v3536 = vsel %vm2124, %v3157, 0
  %3538 = vmatprep.subr.bf16.mxu0 0
  %3539 = vmatpush1.bf16.msra.mxu0 0
  %3540 = vmatprep.subr.bf16.mxu0 0
  %3541 = vmatpush1.bf16.msra.mxu0 0
  %3542 = vmatprep.subr.bf16.mxu0 0
  %3543 = vmatpush1.bf16.msra.mxu0 0
  %3544 = vmatprep.subr.bf16.mxu0 0
  %3545 = vmatpush1.bf16.msra.mxu0 0
  %3546 = vmatprep.subr.bf16.mxu0 0
  %3547 = vmatpush1.bf16.msra.mxu0 0
  %3548 = vmatprep.subr.bf16.mxu0 0
  %3549 = vmatpush1.bf16.msra.mxu0 0
  %3550 = vmatprep.subr.bf16.mxu0 0
  %3551 = vmatpush1.bf16.msra.mxu0 %v3529
  %3552 = vmatprep.subr.bf16.mxu0 0
  %3553 = vmatpush1.bf16.msra.mxu0 %v3528
  %3554 = vmatprep.subr.bf16.mxu0 0
  %3555 = vmatpush2.bf16.msra.mxu0 0
  %3556 = vmatprep.subr.bf16.mxu0 0
  %3557 = vmatpush2.bf16.msra.mxu0 0
  %3558 = vmatprep.subr.bf16.mxu0 0
  %3559 = vmatpush2.bf16.msra.mxu0 0
  %3560 = vmatprep.subr.bf16.mxu0 0
  %3561 = vmatpush2.bf16.msra.mxu0 0
  %3562 = vmatprep.subr.bf16.mxu0 0
  %3563 = vmatpush2.bf16.msra.mxu0 0
  %3564 = vmatprep.subr.bf16.mxu0 0
  %3565 = vmatpush2.bf16.msra.mxu0 0
  %3566 = vmatprep.subr.bf16.mxu0 0
  %3567 = vmatpush2.bf16.msra.mxu0 0
  %3568 = vmatprep.subr.bf16.mxu0 0
  %3569 = vmatpush2.bf16.msra.mxu0 0
  %3570 = vmatprep.mubr.bf16.mxu0 0
  %3571 = vmatmul.mubr.bf16.gmra.mxu0 %v3533
  %v3572 = vpop.f32.mrf.mxu0
  %v3573 = vadd.f32 %v3227, %v3572
  %v3574 = vpop.f32.mrf.mxu0
  %v3575 = vpop.f32.mrf.mxu0
  %v3576 = vadd.f32 %v3230, %v3575
  %v3577 = vpop.f32.mrf.mxu0
  %3578 = vmatprep.mubr.bf16.mxu0 0
  %3579 = vmatmul.mubr.bf16.gmra.mxu0 %v3536
  %v3580 = vpop.f32.mrf.mxu0
  %v3581 = vadd.f32 %v3235, %v3580
  %v3582 = vpop.f32.mrf.mxu0
  %v3583 = vpop.f32.mrf.mxu0
  %v3584 = vadd.f32 %v3238, %v3583
  %v3585 = vpop.f32.mrf.mxu0
  %3586 = vdwg.mxu0
  %v3587 = vadd.f32 %v3372, %v3439
  %v3588 = vadd.f32 %v3375, %v3442
  %v3589 = vadd.f32 %v3380, %v3447
  %v3590 = vadd.f32 %v3383, %v3450
  %v3591 = vadd.f32 %v3506, %v3573
  %v3592 = vadd.f32 %v3509, %v3576
  %v3593 = vadd.f32 %v3514, %v3581
  %v3594 = vadd.f32 %v3517, %v3584
  %v3595 = vadd.f32 %v3587, %v3591
  %v3596 = vadd.f32 %v3588, %v3592
  %v3597 = vadd.f32 %v3589, %v3593
  %v3598 = vadd.f32 %v3590, %v3594
  %v3599 = vadd.f32 %v3595, %v3305
  %v3600 = vadd.f32 %v3596, %v3308
  %v3601 = vadd.f32 %v3597, %v3313
  %v3602 = vadd.f32 %v3598, %v3316
  %s3603 = scalar_lea.vmem %s3, 3
  %v3604 = vld [vmem:[%s3603] sm:$0x1]
  %v3606 = vlaneseq
  %v3607 = vshrl.u32 %v3606, 7
  %v3608 = vsub.s32 0, %v3607
  %v3609 = vrot.slane %v3604, %v3608
  %v3611 = vadd.f32 %v3599, %v3609
  %v3612 = vadd.f32 %v3600, %v3609
  %v3613 = vadd.f32 %v3601, %v3609
  %v3614 = vadd.f32 %v3602, %v3609
  %v3615 = vsel %vm2124, %v3611, 0.0
  %v3616 = vsel %vm2124, %v3612, 0.0
  %v3617 = vadd.f32 %v3615, %v3616
  %v3618 = vrot.slane %v3617, 4
  %v3619 = vadd.f32 %v3617, %v3618
  %v3620 = vrot.slane %v3619, 2
  %v3621 = vadd.f32 %v3619, %v3620
  %v3622 = vrot.slane %v3621, 1
  %v3623 = vadd.f32 %v3621, %v3622
  %v3624 = vsel %vm2124, %v3613, 0.0
  %v3625 = vsel %vm2124, %v3614, 0.0
  %v3626 = vadd.f32 %v3624, %v3625
  %v3627 = vrot.slane %v3626, 4
  %v3628 = vadd.f32 %v3626, %v3627
  %v3629 = vrot.slane %v3628, 2
  %v3630 = vadd.f32 %v3628, %v3629
  %v3631 = vrot.slane %v3630, 1
  %v3632 = vadd.f32 %v3630, %v3631
  %v3633 = vmul.f32 %v3611, %v3611
  %v3634 = vmul.f32 %v3612, %v3612
  %v3635 = vmul.f32 %v3613, %v3613
  %v3636 = vmul.f32 %v3614, %v3614
  %v3637 = vsel %vm2124, %v3633, 0.0
  %v3638 = vsel %vm2124, %v3634, 0.0
  %v3639 = vadd.f32 %v3637, %v3638
  %v3640 = vrot.slane %v3639, 4
  %v3641 = vadd.f32 %v3639, %v3640
  %v3642 = vrot.slane %v3641, 2
  %v3643 = vadd.f32 %v3641, %v3642
  %v3644 = vrot.slane %v3643, 1
  %v3645 = vadd.f32 %v3643, %v3644
  %v3646 = vsel %vm2124, %v3635, 0.0
  %v3647 = vsel %vm2124, %v3636, 0.0
  %v3648 = vadd.f32 %v3646, %v3647
  %v3649 = vrot.slane %v3648, 4
  %v3650 = vadd.f32 %v3648, %v3649
  %v3651 = vrot.slane %v3650, 2
  %v3652 = vadd.f32 %v3650, %v3651
  %v3653 = vrot.slane %v3652, 1
  %v3654 = vadd.f32 %v3652, %v3653
  %v3655 = vmul.f32 %v3623, 0.0625
  %v3656 = vmul.f32 %v3632, 0.0625
  %v3657 = vmul.f32 %v3645, 0.0625
  %v3658 = vmul.f32 %v3654, 0.0625
  %v3659 = vmul.f32 %v3655, %v3655
  %v3660 = vmul.f32 %v3656, %v3656
  %v3661 = vsub.f32 %v3657, %v3659
  %v3662 = vsub.f32 %v3658, %v3660
  %v3663 = vsub.f32 %v3611, %v3655
  %v3664 = vsub.f32 %v3612, %v3655
  %v3665 = vsub.f32 %v3613, %v3656
  %v3666 = vsub.f32 %v3614, %v3656
  %v3667 = vadd.f32 %v3661, 1e-05
  %v3668 = vadd.f32 %v3662, 1e-05
  %v3669 = vrsqrt.pop %v3667
  %v3670 = vrsqrt.pop %v3668
  %v3671 = vmul.f32 %v3663, %v3669
  %v3672 = vmul.f32 %v3664, %v3669
  %v3673 = vmul.f32 %v3665, %v3670
  %v3674 = vmul.f32 %v3666, %v3670
  %v3675 = vadd.f32 %v2086, %v3671
  %v3676 = vadd.f32 %v2087, %v3672
  %v3677 = vadd.f32 %v2088, %v3673
  %v3678 = vadd.f32 %v2089, %v3674
  %v3679 = vmax.f32 %v3675, 0.0
  %v3680 = vmax.f32 %v3676, 0.0
  %v3681 = vmax.f32 %v3677, 0.0
  %v3682 = vmax.f32 %v3678, 0.0
  %3683 = vst.msk [vmem:[#allocation3 + $0x4] sm:$0xff] %vm2124, %v3679
  %3684 = vst.msk [vmem:[#allocation3 + $0xc] sm:$0xff] %vm2124, %v3680
  %3685 = vst.msk [vmem:[#allocation3 + $0x1c] sm:$0xff] %vm2124, %v3681
  %3686 = vst.msk [vmem:[#allocation3 + $0x24] sm:$0xff] %vm2124, %v3682
  %v3687 = vld [vmem:[#allocation3 + $0x3] sm:$0xff]
  %v3688 = vld [vmem:[#allocation3 + $0xb] sm:$0xff]
  %v3689 = vld [vmem:[#allocation3 + $0x1b] sm:$0xff]
  %v3690 = vld [vmem:[#allocation3 + $0x23] sm:$0xff]
  %v3691 = vpack.c.bf16 %v3688, %v3687
  %v3692 = vpack.c.bf16 %v3690, %v3689
  %v3693 = vld [vmem:[#allocation3 + $0x4] sm:$0xff]
  %v3694 = vld [vmem:[#allocation3 + $0xc] sm:$0xff]
  %v3695 = vld [vmem:[#allocation3 + $0x1c] sm:$0xff]
  %v3696 = vld [vmem:[#allocation3 + $0x24] sm:$0xff]
  %v3697 = vpack.c.bf16 %v3694, %v3693
  %v3698 = vpack.c.bf16 %v3696, %v3695
  %v3699 = vld [vmem:[#allocation3 + $0x5] sm:$0xff]
  %v3700 = vld [vmem:[#allocation3 + $0xd] sm:$0xff]
  %v3701 = vld [vmem:[#allocation3 + $0x1d] sm:$0xff]
  %v3702 = vld [vmem:[#allocation3 + $0x25] sm:$0xff]
  %v3703 = vpack.c.bf16 %v3700, %v3699
  %v3704 = vpack.c.bf16 %v3702, %v3701
  %s3705 = scalar_lea.vmem %s5, 1
  %v3706 = vld [vmem:[%s3705] sm:$0x1]
  %s3707 = scalar_lea.vmem %s4, 160
  %v3708 = vld [vmem:[%s3707] sm:$0xf]
  %v3709 = vld [vmem:[%s3707 + $0x4] sm:$0xf]
  %v3710 = vld [vmem:[%s3707 + $0x8] sm:$0xf]
  %v3711 = vld [vmem:[%s3707 + $0xc] sm:$0xf]
  %s3712 = scalar_lea.vmem %s4, 224
  %v3713 = vld [vmem:[%s3712] sm:$0xf]
  %v3714 = vld [vmem:[%s3712 + $0x4] sm:$0xf]
  %v3715 = vld [vmem:[%s3712 + $0x8] sm:$0xf]
  %v3716 = vld [vmem:[%s3712 + $0xc] sm:$0xf]
  %v3721 = vunpack.c.l.b16 %v3713
  %v3722 = vunpack.c.l.b16 %v3714
  %v3723 = vunpack.c.l.b16 %v3715
  %v3724 = vunpack.c.l.b16 %v3716
  %v3725 = vpack.c.b16 %v3722, %v3721
  %v3726 = vpack.c.b16 %v3724, %v3723
  %v3730 = vsel %vm2124, %v3691, 0
  %v3733 = vsel %vm2124, %v3692, 0
  %3735 = vmatprep.subr.bf16.mxu0 0
  %3736 = vmatpush1.bf16.msra.mxu0 0
  %3737 = vmatprep.subr.bf16.mxu0 0
  %3738 = vmatpush1.bf16.msra.mxu0 0
  %3739 = vmatprep.subr.bf16.mxu0 0
  %3740 = vmatpush1.bf16.msra.mxu0 0
  %3741 = vmatprep.subr.bf16.mxu0 0
  %3742 = vmatpush1.bf16.msra.mxu0 0
  %3743 = vmatprep.subr.bf16.mxu0 0
  %3744 = vmatpush1.bf16.msra.mxu0 0
  %3745 = vmatprep.subr.bf16.mxu0 0
  %3746 = vmatpush1.bf16.msra.mxu0 0
  %3747 = vmatprep.subr.bf16.mxu0 0
  %3748 = vmatpush1.bf16.msra.mxu0 %v3726
  %3749 = vmatprep.subr.bf16.mxu0 0
  %3750 = vmatpush1.bf16.msra.mxu0 %v3725
  %3751 = vmatprep.subr.bf16.mxu0 0
  %3752 = vmatpush2.bf16.msra.mxu0 0
  %3753 = vmatprep.subr.bf16.mxu0 0
  %3754 = vmatpush2.bf16.msra.mxu0 0
  %3755 = vmatprep.subr.bf16.mxu0 0
  %3756 = vmatpush2.bf16.msra.mxu0 0
  %3757 = vmatprep.subr.bf16.mxu0 0
  %3758 = vmatpush2.bf16.msra.mxu0 0
  %3759 = vmatprep.subr.bf16.mxu0 0
  %3760 = vmatpush2.bf16.msra.mxu0 0
  %3761 = vmatprep.subr.bf16.mxu0 0
  %3762 = vmatpush2.bf16.msra.mxu0 0
  %3763 = vmatprep.subr.bf16.mxu0 0
  %3764 = vmatpush2.bf16.msra.mxu0 0
  %3765 = vmatprep.subr.bf16.mxu0 0
  %3766 = vmatpush2.bf16.msra.mxu0 0
  %3767 = vmatprep.mubr.bf16.mxu0 0
  %3768 = vmatmul.mubr.bf16.gmra.mxu0 %v3730
  %v3769 = vpop.f32.mrf.mxu0
  %v3770 = vadd.f32 0.0, %v3769
  %v3771 = vpop.f32.mrf.mxu0
  %v3772 = vpop.f32.mrf.mxu0
  %v3773 = vadd.f32 0.0, %v3772
  %v3774 = vpop.f32.mrf.mxu0
  %3775 = vmatprep.mubr.bf16.mxu0 0
  %3776 = vmatmul.mubr.bf16.gmra.mxu0 %v3733
  %v3777 = vpop.f32.mrf.mxu0
  %v3778 = vadd.f32 0.0, %v3777
  %v3779 = vpop.f32.mrf.mxu0
  %v3780 = vpop.f32.mrf.mxu0
  %v3781 = vadd.f32 0.0, %v3780
  %v3782 = vpop.f32.mrf.mxu0
  %3783 = vdwg.mxu0
  %v3788 = vunpack.c.l.b16 %v3708
  %v3789 = vunpack.c.l.b16 %v3709
  %v3790 = vunpack.c.l.b16 %v3710
  %v3791 = vunpack.c.l.b16 %v3711
  %v3792 = vpack.c.b16 %v3789, %v3788
  %v3793 = vpack.c.b16 %v3791, %v3790
  %v3797 = vsel %vm2124, %v3697, 0
  %v3800 = vsel %vm2124, %v3698, 0
  %3802 = vmatprep.subr.bf16.mxu0 0
  %3803 = vmatpush1.bf16.msra.mxu0 0
  %3804 = vmatprep.subr.bf16.mxu0 0
  %3805 = vmatpush1.bf16.msra.mxu0 0
  %3806 = vmatprep.subr.bf16.mxu0 0
  %3807 = vmatpush1.bf16.msra.mxu0 0
  %3808 = vmatprep.subr.bf16.mxu0 0
  %3809 = vmatpush1.bf16.msra.mxu0 0
  %3810 = vmatprep.subr.bf16.mxu0 0
  %3811 = vmatpush1.bf16.msra.mxu0 0
  %3812 = vmatprep.subr.bf16.mxu0 0
  %3813 = vmatpush1.bf16.msra.mxu0 0
  %3814 = vmatprep.subr.bf16.mxu0 0
  %3815 = vmatpush1.bf16.msra.mxu0 %v3793
  %3816 = vmatprep.subr.bf16.mxu0 0
  %3817 = vmatpush1.bf16.msra.mxu0 %v3792
  %3818 = vmatprep.subr.bf16.mxu0 0
  %3819 = vmatpush2.bf16.msra.mxu0 0
  %3820 = vmatprep.subr.bf16.mxu0 0
  %3821 = vmatpush2.bf16.msra.mxu0 0
  %3822 = vmatprep.subr.bf16.mxu0 0
  %3823 = vmatpush2.bf16.msra.mxu0 0
  %3824 = vmatprep.subr.bf16.mxu0 0
  %3825 = vmatpush2.bf16.msra.mxu0 0
  %3826 = vmatprep.subr.bf16.mxu0 0
  %3827 = vmatpush2.bf16.msra.mxu0 0
  %3828 = vmatprep.subr.bf16.mxu0 0
  %3829 = vmatpush2.bf16.msra.mxu0 0
  %3830 = vmatprep.subr.bf16.mxu0 0
  %3831 = vmatpush2.bf16.msra.mxu0 0
  %3832 = vmatprep.subr.bf16.mxu0 0
  %3833 = vmatpush2.bf16.msra.mxu0 0
  %3834 = vmatprep.mubr.bf16.mxu0 0
  %3835 = vmatmul.mubr.bf16.gmra.mxu0 %v3797
  %v3836 = vpop.f32.mrf.mxu0
  %v3837 = vadd.f32 %v3770, %v3836
  %v3838 = vpop.f32.mrf.mxu0
  %v3839 = vpop.f32.mrf.mxu0
  %v3840 = vadd.f32 %v3773, %v3839
  %v3841 = vpop.f32.mrf.mxu0
  %3842 = vmatprep.mubr.bf16.mxu0 0
  %3843 = vmatmul.mubr.bf16.gmra.mxu0 %v3800
  %v3844 = vpop.f32.mrf.mxu0
  %v3845 = vadd.f32 %v3778, %v3844
  %v3846 = vpop.f32.mrf.mxu0
  %v3847 = vpop.f32.mrf.mxu0
  %v3848 = vadd.f32 %v3781, %v3847
  %v3849 = vpop.f32.mrf.mxu0
  %3850 = vdwg.mxu0
  %v3852 = vlaneseq
  %v3853 = vshrl.u32 %v3852, 7
  %v3854 = vsub.s32 0, %v3853
  %v3855 = vrot.slane %v3706, %v3854
  %v3857 = vadd.f32 %v3837, %v3855
  %v3858 = vadd.f32 %v3840, %v3855
  %v3859 = vadd.f32 %v3845, %v3855
  %v3860 = vadd.f32 %v3848, %v3855
  %s3861 = scalar_lea.vmem %s4, 128
  %v3862 = vld [vmem:[%s3861] sm:$0xf]
  %v3863 = vld [vmem:[%s3861 + $0x4] sm:$0xf]
  %v3864 = vld [vmem:[%s3861 + $0x8] sm:$0xf]
  %v3865 = vld [vmem:[%s3861 + $0xc] sm:$0xf]
  %s3866 = scalar_lea.vmem %s4, 192
  %v3867 = vld [vmem:[%s3866] sm:$0xf]
  %v3868 = vld [vmem:[%s3866 + $0x4] sm:$0xf]
  %v3869 = vld [vmem:[%s3866 + $0x8] sm:$0xf]
  %v3870 = vld [vmem:[%s3866 + $0xc] sm:$0xf]
  %v3875 = vunpack.c.l.b16 %v3867
  %v3876 = vunpack.c.l.b16 %v3868
  %v3877 = vunpack.c.l.b16 %v3869
  %v3878 = vunpack.c.l.b16 %v3870
  %v3879 = vpack.c.b16 %v3876, %v3875
  %v3880 = vpack.c.b16 %v3878, %v3877
  %3883 = vmatprep.subr.bf16.mxu0 0
  %3884 = vmatpush1.bf16.msra.mxu0 0
  %3885 = vmatprep.subr.bf16.mxu0 0
  %3886 = vmatpush1.bf16.msra.mxu0 0
  %3887 = vmatprep.subr.bf16.mxu0 0
  %3888 = vmatpush1.bf16.msra.mxu0 0
  %3889 = vmatprep.subr.bf16.mxu0 0
  %3890 = vmatpush1.bf16.msra.mxu0 0
  %3891 = vmatprep.subr.bf16.mxu0 0
  %3892 = vmatpush1.bf16.msra.mxu0 0
  %3893 = vmatprep.subr.bf16.mxu0 0
  %3894 = vmatpush1.bf16.msra.mxu0 0
  %3895 = vmatprep.subr.bf16.mxu0 0
  %3896 = vmatpush1.bf16.msra.mxu0 %v3880
  %3897 = vmatprep.subr.bf16.mxu0 0
  %3898 = vmatpush1.bf16.msra.mxu0 %v3879
  %3899 = vmatprep.subr.bf16.mxu0 0
  %3900 = vmatpush2.bf16.msra.mxu0 0
  %3901 = vmatprep.subr.bf16.mxu0 0
  %3902 = vmatpush2.bf16.msra.mxu0 0
  %3903 = vmatprep.subr.bf16.mxu0 0
  %3904 = vmatpush2.bf16.msra.mxu0 0
  %3905 = vmatprep.subr.bf16.mxu0 0
  %3906 = vmatpush2.bf16.msra.mxu0 0
  %3907 = vmatprep.subr.bf16.mxu0 0
  %3908 = vmatpush2.bf16.msra.mxu0 0
  %3909 = vmatprep.subr.bf16.mxu0 0
  %3910 = vmatpush2.bf16.msra.mxu0 0
  %3911 = vmatprep.subr.bf16.mxu0 0
  %3912 = vmatpush2.bf16.msra.mxu0 0
  %3913 = vmatprep.subr.bf16.mxu0 0
  %3914 = vmatpush2.bf16.msra.mxu0 0
  %3915 = vmatprep.mubr.bf16.mxu0 0
  %3916 = vmatmul.mubr.bf16.gmra.mxu0 %v3797
  %v3917 = vpop.f32.mrf.mxu0
  %v3918 = vadd.f32 0.0, %v3917
  %v3919 = vpop.f32.mrf.mxu0
  %v3920 = vpop.f32.mrf.mxu0
  %v3921 = vadd.f32 0.0, %v3920
  %v3922 = vpop.f32.mrf.mxu0
  %3923 = vmatprep.mubr.bf16.mxu0 0
  %3924 = vmatmul.mubr.bf16.gmra.mxu0 %v3800
  %v3925 = vpop.f32.mrf.mxu0
  %v3926 = vadd.f32 0.0, %v3925
  %v3927 = vpop.f32.mrf.mxu0
  %v3928 = vpop.f32.mrf.mxu0
  %v3929 = vadd.f32 0.0, %v3928
  %v3930 = vpop.f32.mrf.mxu0
  %3931 = vdwg.mxu0
  %v3936 = vunpack.c.l.b16 %v3862
  %v3937 = vunpack.c.l.b16 %v3863
  %v3938 = vunpack.c.l.b16 %v3864
  %v3939 = vunpack.c.l.b16 %v3865
  %v3940 = vpack.c.b16 %v3937, %v3936
  %v3941 = vpack.c.b16 %v3939, %v3938
  %v3945 = vsel %vm2124, %v3703, 0
  %v3948 = vsel %vm2124, %v3704, 0
  %3950 = vmatprep.subr.bf16.mxu0 0
  %3951 = vmatpush1.bf16.msra.mxu0 0
  %3952 = vmatprep.subr.bf16.mxu0 0
  %3953 = vmatpush1.bf16.msra.mxu0 0
  %3954 = vmatprep.subr.bf16.mxu0 0
  %3955 = vmatpush1.bf16.msra.mxu0 0
  %3956 = vmatprep.subr.bf16.mxu0 0
  %3957 = vmatpush1.bf16.msra.mxu0 0
  %3958 = vmatprep.subr.bf16.mxu0 0
  %3959 = vmatpush1.bf16.msra.mxu0 0
  %3960 = vmatprep.subr.bf16.mxu0 0
  %3961 = vmatpush1.bf16.msra.mxu0 0
  %3962 = vmatprep.subr.bf16.mxu0 0
  %3963 = vmatpush1.bf16.msra.mxu0 %v3941
  %3964 = vmatprep.subr.bf16.mxu0 0
  %3965 = vmatpush1.bf16.msra.mxu0 %v3940
  %3966 = vmatprep.subr.bf16.mxu0 0
  %3967 = vmatpush2.bf16.msra.mxu0 0
  %3968 = vmatprep.subr.bf16.mxu0 0
  %3969 = vmatpush2.bf16.msra.mxu0 0
  %3970 = vmatprep.subr.bf16.mxu0 0
  %3971 = vmatpush2.bf16.msra.mxu0 0
  %3972 = vmatprep.subr.bf16.mxu0 0
  %3973 = vmatpush2.bf16.msra.mxu0 0
  %3974 = vmatprep.subr.bf16.mxu0 0
  %3975 = vmatpush2.bf16.msra.mxu0 0
  %3976 = vmatprep.subr.bf16.mxu0 0
  %3977 = vmatpush2.bf16.msra.mxu0 0
  %3978 = vmatprep.subr.bf16.mxu0 0
  %3979 = vmatpush2.bf16.msra.mxu0 0
  %3980 = vmatprep.subr.bf16.mxu0 0
  %3981 = vmatpush2.bf16.msra.mxu0 0
  %3982 = vmatprep.mubr.bf16.mxu0 0
  %3983 = vmatmul.mubr.bf16.gmra.mxu0 %v3945
  %v3984 = vpop.f32.mrf.mxu0
  %v3985 = vadd.f32 %v3918, %v3984
  %v3986 = vpop.f32.mrf.mxu0
  %v3987 = vpop.f32.mrf.mxu0
  %v3988 = vadd.f32 %v3921, %v3987
  %v3989 = vpop.f32.mrf.mxu0
  %3990 = vmatprep.mubr.bf16.mxu0 0
  %3991 = vmatmul.mubr.bf16.gmra.mxu0 %v3948
  %v3992 = vpop.f32.mrf.mxu0
  %v3993 = vadd.f32 %v3926, %v3992
  %v3994 = vpop.f32.mrf.mxu0
  %v3995 = vpop.f32.mrf.mxu0
  %v3996 = vadd.f32 %v3929, %v3995
  %v3997 = vpop.f32.mrf.mxu0
  %3998 = vdwg.mxu0
  %v3999 = vadd.f32 %v3985, %v3855
  %v4000 = vadd.f32 %v3988, %v3855
  %v4001 = vadd.f32 %v3993, %v3855
  %v4002 = vadd.f32 %v3996, %v3855
  %s4003 = scalar_lea.vmem [#allocation4], 4
  %4004 = vst [vmem:[%s4003] ss:$2 sm:$0xff] %v3857
  %s4005 = scalar_lea.vmem [#allocation4], 20
  %4006 = vst [vmem:[%s4005] ss:$2 sm:$0xff] %v3858
  %s4007 = scalar_lea.vmem [#allocation4], 44
  %4008 = vst [vmem:[%s4007] ss:$2 sm:$0xff] %v3859
  %s4009 = scalar_lea.vmem [#allocation4], 60
  %4010 = vst [vmem:[%s4009] ss:$2 sm:$0xff] %v3860
  %s4011 = scalar_lea.vmem [#allocation4], 5
  %4012 = vst [vmem:[%s4011] ss:$2 sm:$0xff] %v3999
  %s4013 = scalar_lea.vmem [#allocation4], 21
  %4014 = vst [vmem:[%s4013] ss:$2 sm:$0xff] %v4000
  %s4015 = scalar_lea.vmem [#allocation4], 45
  %4016 = vst [vmem:[%s4015] ss:$2 sm:$0xff] %v4001
  %s4017 = scalar_lea.vmem [#allocation4], 61
  %4018 = vst [vmem:[%s4017] ss:$2 sm:$0xff] %v4002
  %v4019 = vld [vmem:[#allocation4 + $0x4] sm:$0xff]
  %v4020 = vld [vmem:[#allocation4 + $0xc] sm:$0xff]
  %v4021 = vld [vmem:[#allocation4 + $0x14] sm:$0xff]
  %v4022 = vld [vmem:[#allocation4 + $0x1c] sm:$0xff]
  %v4023 = vld [vmem:[#allocation4 + $0x2c] sm:$0xff]
  %v4024 = vld [vmem:[#allocation4 + $0x34] sm:$0xff]
  %v4025 = vld [vmem:[#allocation4 + $0x3c] sm:$0xff]
  %v4026 = vld [vmem:[#allocation4 + $0x44] sm:$0xff]
  %v4027 = vld [vmem:[#allocation4] sm:$0xff]
  %v4028 = vld [vmem:[#allocation4 + $0x8] sm:$0xff]
  %v4029 = vld [vmem:[#allocation4 + $0x10] sm:$0xff]
  %v4030 = vld [vmem:[#allocation4 + $0x18] sm:$0xff]
  %v4031 = vld [vmem:[#allocation4 + $0x28] sm:$0xff]
  %v4032 = vld [vmem:[#allocation4 + $0x30] sm:$0xff]
  %v4033 = vld [vmem:[#allocation4 + $0x38] sm:$0xff]
  %v4034 = vld [vmem:[#allocation4 + $0x40] sm:$0xff]
  %v4035 = vpack.c.bf16 %v4028, %v4027
  %v4036 = vpack.c.bf16 %v4030, %v4029
  %v4037 = vpack.c.bf16 %v4032, %v4031
  %v4038 = vpack.c.bf16 %v4034, %v4033
  %s4039 = scalar_lea.vmem %s2, 1152
  %v4040 = vld [vmem:[%s4039] sm:$0xf]
  %v4041 = vld [vmem:[%s4039 + $0x4] sm:$0xf]
  %v4042 = vld [vmem:[#allocation4 + $0x1] sm:$0xff]
  %v4043 = vld [vmem:[#allocation4 + $0x9] sm:$0xff]
  %v4044 = vld [vmem:[#allocation4 + $0x11] sm:$0xff]
  %v4045 = vld [vmem:[#allocation4 + $0x19] sm:$0xff]
  %v4046 = vld [vmem:[#allocation4 + $0x29] sm:$0xff]
  %v4047 = vld [vmem:[#allocation4 + $0x31] sm:$0xff]
  %v4048 = vld [vmem:[#allocation4 + $0x39] sm:$0xff]
  %v4049 = vld [vmem:[#allocation4 + $0x41] sm:$0xff]
  %v4050 = vpack.c.bf16 %v4043, %v4042
  %v4051 = vpack.c.bf16 %v4045, %v4044
  %v4052 = vpack.c.bf16 %v4047, %v4046
  %v4053 = vpack.c.bf16 %v4049, %v4048
  %s4054 = scalar_lea.vmem %s2, 1184
  %v4055 = vld [vmem:[%s4054] sm:$0xf]
  %v4056 = vld [vmem:[%s4054 + $0x4] sm:$0xf]
  %v4059 = vunpack.c.l.b16 %v4055
  %v4060 = vunpack.c.l.b16 %v4056
  %v4061 = vpack.c.b16 %v4060, %v4059
  %vm4063 = vcmask 130048
  %v4065 = vsel %vm4063, %v4050, 0
  %v4068 = vsel %vm4063, %v4051, 0
  %v4071 = vsel %vm4063, %v4052, 0
  %v4074 = vsel %vm4063, %v4053, 0
  %4076 = vmatprep.subr.bf16.mxu0 0
  %4077 = vmatpush1.bf16.msra.mxu0 0
  %4078 = vmatprep.subr.bf16.mxu0 0
  %4079 = vmatpush1.bf16.msra.mxu0 0
  %4080 = vmatprep.subr.bf16.mxu0 0
  %4081 = vmatpush1.bf16.msra.mxu0 0
  %4082 = vmatprep.subr.bf16.mxu0 0
  %4083 = vmatpush1.bf16.msra.mxu0 0
  %4084 = vmatprep.subr.bf16.mxu0 0
  %4085 = vmatpush1.bf16.msra.mxu0 0
  %4086 = vmatprep.subr.bf16.mxu0 0
  %4087 = vmatpush1.bf16.msra.mxu0 0
  %4088 = vmatprep.subr.bf16.mxu0 0
  %4089 = vmatpush1.bf16.msra.mxu0 0
  %4090 = vmatprep.subr.bf16.mxu0 0
  %4091 = vmatpush1.bf16.msra.mxu0 %v4061
  %4092 = vmatprep.subr.bf16.mxu0 0
  %4093 = vmatpush2.bf16.msra.mxu0 0
  %4094 = vmatprep.subr.bf16.mxu0 0
  %4095 = vmatpush2.bf16.msra.mxu0 0
  %4096 = vmatprep.subr.bf16.mxu0 0
  %4097 = vmatpush2.bf16.msra.mxu0 0
  %4098 = vmatprep.subr.bf16.mxu0 0
  %4099 = vmatpush2.bf16.msra.mxu0 0
  %4100 = vmatprep.subr.bf16.mxu0 0
  %4101 = vmatpush2.bf16.msra.mxu0 0
  %4102 = vmatprep.subr.bf16.mxu0 0
  %4103 = vmatpush2.bf16.msra.mxu0 0
  %4104 = vmatprep.subr.bf16.mxu0 0
  %4105 = vmatpush2.bf16.msra.mxu0 0
  %4106 = vmatprep.subr.bf16.mxu0 0
  %4107 = vmatpush2.bf16.msra.mxu0 0
  %4108 = vmatprep.mubr.bf16.mxu0 0
  %4109 = vmatmul.mubr.bf16.gmra.mxu0 %v4065
  %v4110 = vpop.f32.mrf.mxu0
  %v4111 = vadd.f32 0.0, %v4110
  %v4112 = vpop.f32.mrf.mxu0
  %v4113 = vpop.f32.mrf.mxu0
  %v4114 = vadd.f32 0.0, %v4113
  %v4115 = vpop.f32.mrf.mxu0
  %4116 = vmatprep.mubr.bf16.mxu0 0
  %4117 = vmatmul.mubr.bf16.gmra.mxu0 %v4068
  %v4118 = vpop.f32.mrf.mxu0
  %v4119 = vadd.f32 0.0, %v4118
  %v4120 = vpop.f32.mrf.mxu0
  %v4121 = vpop.f32.mrf.mxu0
  %v4122 = vadd.f32 0.0, %v4121
  %v4123 = vpop.f32.mrf.mxu0
  %4124 = vmatprep.mubr.bf16.mxu0 0
  %4125 = vmatmul.mubr.bf16.gmra.mxu0 %v4071
  %v4126 = vpop.f32.mrf.mxu0
  %v4127 = vadd.f32 0.0, %v4126
  %v4128 = vpop.f32.mrf.mxu0
  %v4129 = vpop.f32.mrf.mxu0
  %v4130 = vadd.f32 0.0, %v4129
  %v4131 = vpop.f32.mrf.mxu0
  %4132 = vmatprep.mubr.bf16.mxu0 0
  %4133 = vmatmul.mubr.bf16.gmra.mxu0 %v4074
  %v4134 = vpop.f32.mrf.mxu0
  %v4135 = vadd.f32 0.0, %v4134
  %v4136 = vpop.f32.mrf.mxu0
  %v4137 = vpop.f32.mrf.mxu0
  %v4138 = vadd.f32 0.0, %v4137
  %v4139 = vpop.f32.mrf.mxu0
  %4140 = vdwg.mxu0
  %v4141 = vld [vmem:[#allocation4 + $0x2] sm:$0xff]
  %v4142 = vld [vmem:[#allocation4 + $0xa] sm:$0xff]
  %v4143 = vld [vmem:[#allocation4 + $0x12] sm:$0xff]
  %v4144 = vld [vmem:[#allocation4 + $0x1a] sm:$0xff]
  %v4145 = vld [vmem:[#allocation4 + $0x2a] sm:$0xff]
  %v4146 = vld [vmem:[#allocation4 + $0x32] sm:$0xff]
  %v4147 = vld [vmem:[#allocation4 + $0x3a] sm:$0xff]
  %v4148 = vld [vmem:[#allocation4 + $0x42] sm:$0xff]
  %v4149 = vpack.c.bf16 %v4142, %v4141
  %v4150 = vpack.c.bf16 %v4144, %v4143
  %v4151 = vpack.c.bf16 %v4146, %v4145
  %v4152 = vpack.c.bf16 %v4148, %v4147
  %s4153 = scalar_lea.vmem %s2, 1216
  %v4154 = vld [vmem:[%s4153] sm:$0xf]
  %v4155 = vld [vmem:[%s4153 + $0x4] sm:$0xf]
  %v4156 = vld [vmem:[#allocation4 + $0x3] sm:$0xff]
  %v4157 = vld [vmem:[#allocation4 + $0xb] sm:$0xff]
  %v4158 = vld [vmem:[#allocation4 + $0x13] sm:$0xff]
  %v4159 = vld [vmem:[#allocation4 + $0x1b] sm:$0xff]
  %v4160 = vld [vmem:[#allocation4 + $0x2b] sm:$0xff]
  %v4161 = vld [vmem:[#allocation4 + $0x33] sm:$0xff]
  %v4162 = vld [vmem:[#allocation4 + $0x3b] sm:$0xff]
  %v4163 = vld [vmem:[#allocation4 + $0x43] sm:$0xff]
  %v4164 = vpack.c.bf16 %v4157, %v4156
  %v4165 = vpack.c.bf16 %v4159, %v4158
  %v4166 = vpack.c.bf16 %v4161, %v4160
  %v4167 = vpack.c.bf16 %v4163, %v4162
  %s4168 = scalar_lea.vmem %s2, 1248
  %v4169 = vld [vmem:[%s4168] sm:$0xf]
  %v4170 = vld [vmem:[%s4168 + $0x4] sm:$0xf]
  %v4173 = vunpack.c.l.b16 %v4169
  %v4174 = vunpack.c.l.b16 %v4170
  %v4175 = vpack.c.b16 %v4174, %v4173
  %v4178 = vsel %vm4063, %v4164, 0
  %v4181 = vsel %vm4063, %v4165, 0
  %v4184 = vsel %vm4063, %v4166, 0
  %v4187 = vsel %vm4063, %v4167, 0
  %4189 = vmatprep.subr.bf16.mxu0 0
  %4190 = vmatpush1.bf16.msra.mxu0 0
  %4191 = vmatprep.subr.bf16.mxu0 0
  %4192 = vmatpush1.bf16.msra.mxu0 0
  %4193 = vmatprep.subr.bf16.mxu0 0
  %4194 = vmatpush1.bf16.msra.mxu0 0
  %4195 = vmatprep.subr.bf16.mxu0 0
  %4196 = vmatpush1.bf16.msra.mxu0 0
  %4197 = vmatprep.subr.bf16.mxu0 0
  %4198 = vmatpush1.bf16.msra.mxu0 0
  %4199 = vmatprep.subr.bf16.mxu0 0
  %4200 = vmatpush1.bf16.msra.mxu0 0
  %4201 = vmatprep.subr.bf16.mxu0 0
  %4202 = vmatpush1.bf16.msra.mxu0 0
  %4203 = vmatprep.subr.bf16.mxu0 0
  %4204 = vmatpush1.bf16.msra.mxu0 %v4175
  %4205 = vmatprep.subr.bf16.mxu0 0
  %4206 = vmatpush2.bf16.msra.mxu0 0
  %4207 = vmatprep.subr.bf16.mxu0 0
  %4208 = vmatpush2.bf16.msra.mxu0 0
  %4209 = vmatprep.subr.bf16.mxu0 0
  %4210 = vmatpush2.bf16.msra.mxu0 0
  %4211 = vmatprep.subr.bf16.mxu0 0
  %4212 = vmatpush2.bf16.msra.mxu0 0
  %4213 = vmatprep.subr.bf16.mxu0 0
  %4214 = vmatpush2.bf16.msra.mxu0 0
  %4215 = vmatprep.subr.bf16.mxu0 0
  %4216 = vmatpush2.bf16.msra.mxu0 0
  %4217 = vmatprep.subr.bf16.mxu0 0
  %4218 = vmatpush2.bf16.msra.mxu0 0
  %4219 = vmatprep.subr.bf16.mxu0 0
  %4220 = vmatpush2.bf16.msra.mxu0 0
  %4221 = vmatprep.mubr.bf16.mxu0 0
  %4222 = vmatmul.mubr.bf16.gmra.mxu0 %v4178
  %v4223 = vpop.f32.mrf.mxu0
  %v4224 = vadd.f32 0.0, %v4223
  %v4225 = vpop.f32.mrf.mxu0
  %v4226 = vpop.f32.mrf.mxu0
  %v4227 = vadd.f32 0.0, %v4226
  %v4228 = vpop.f32.mrf.mxu0
  %4229 = vmatprep.mubr.bf16.mxu0 0
  %4230 = vmatmul.mubr.bf16.gmra.mxu0 %v4181
  %v4231 = vpop.f32.mrf.mxu0
  %v4232 = vadd.f32 0.0, %v4231
  %v4233 = vpop.f32.mrf.mxu0
  %v4234 = vpop.f32.mrf.mxu0
  %v4235 = vadd.f32 0.0, %v4234
  %v4236 = vpop.f32.mrf.mxu0
  %4237 = vmatprep.mubr.bf16.mxu0 0
  %4238 = vmatmul.mubr.bf16.gmra.mxu0 %v4184
  %v4239 = vpop.f32.mrf.mxu0
  %v4240 = vadd.f32 0.0, %v4239
  %v4241 = vpop.f32.mrf.mxu0
  %v4242 = vpop.f32.mrf.mxu0
  %v4243 = vadd.f32 0.0, %v4242
  %v4244 = vpop.f32.mrf.mxu0
  %4245 = vmatprep.mubr.bf16.mxu0 0
  %4246 = vmatmul.mubr.bf16.gmra.mxu0 %v4187
  %v4247 = vpop.f32.mrf.mxu0
  %v4248 = vadd.f32 0.0, %v4247
  %v4249 = vpop.f32.mrf.mxu0
  %v4250 = vpop.f32.mrf.mxu0
  %v4251 = vadd.f32 0.0, %v4250
  %v4252 = vpop.f32.mrf.mxu0
  %4253 = vdwg.mxu0
  %v4254 = vpack.c.bf16 %v4020, %v4019
  %v4255 = vpack.c.bf16 %v4022, %v4021
  %v4256 = vpack.c.bf16 %v4024, %v4023
  %v4257 = vpack.c.bf16 %v4026, %v4025
  %s4258 = scalar_lea.vmem %s2, 1280
  %v4259 = vld [vmem:[%s4258] sm:$0xf]
  %v4260 = vld [vmem:[%s4258 + $0x4] sm:$0xf]
  %v4261 = vld [vmem:[#allocation4 + $0x5] sm:$0xff]
  %v4262 = vld [vmem:[#allocation4 + $0xd] sm:$0xff]
  %v4263 = vld [vmem:[#allocation4 + $0x15] sm:$0xff]
  %v4264 = vld [vmem:[#allocation4 + $0x1d] sm:$0xff]
  %v4265 = vld [vmem:[#allocation4 + $0x2d] sm:$0xff]
  %v4266 = vld [vmem:[#allocation4 + $0x35] sm:$0xff]
  %v4267 = vld [vmem:[#allocation4 + $0x3d] sm:$0xff]
  %v4268 = vld [vmem:[#allocation4 + $0x45] sm:$0xff]
  %v4269 = vpack.c.bf16 %v4262, %v4261
  %v4270 = vpack.c.bf16 %v4264, %v4263
  %v4271 = vpack.c.bf16 %v4266, %v4265
  %v4272 = vpack.c.bf16 %v4268, %v4267
  %s4273 = scalar_lea.vmem %s2, 1312
  %v4274 = vld [vmem:[%s4273] sm:$0xf]
  %v4275 = vld [vmem:[%s4273 + $0x4] sm:$0xf]
  %v4278 = vunpack.c.l.b16 %v4274
  %v4279 = vunpack.c.l.b16 %v4275
  %v4280 = vpack.c.b16 %v4279, %v4278
  %v4283 = vsel %vm4063, %v4269, 0
  %v4286 = vsel %vm4063, %v4270, 0
  %v4289 = vsel %vm4063, %v4271, 0
  %v4292 = vsel %vm4063, %v4272, 0
  %4294 = vmatprep.subr.bf16.mxu0 0
  %4295 = vmatpush1.bf16.msra.mxu0 0
  %4296 = vmatprep.subr.bf16.mxu0 0
  %4297 = vmatpush1.bf16.msra.mxu0 0
  %4298 = vmatprep.subr.bf16.mxu0 0
  %4299 = vmatpush1.bf16.msra.mxu0 0
  %4300 = vmatprep.subr.bf16.mxu0 0
  %4301 = vmatpush1.bf16.msra.mxu0 0
  %4302 = vmatprep.subr.bf16.mxu0 0
  %4303 = vmatpush1.bf16.msra.mxu0 0
  %4304 = vmatprep.subr.bf16.mxu0 0
  %4305 = vmatpush1.bf16.msra.mxu0 0
  %4306 = vmatprep.subr.bf16.mxu0 0
  %4307 = vmatpush1.bf16.msra.mxu0 0
  %4308 = vmatprep.subr.bf16.mxu0 0
  %4309 = vmatpush1.bf16.msra.mxu0 %v4280
  %4310 = vmatprep.subr.bf16.mxu0 0
  %4311 = vmatpush2.bf16.msra.mxu0 0
  %4312 = vmatprep.subr.bf16.mxu0 0
  %4313 = vmatpush2.bf16.msra.mxu0 0
  %4314 = vmatprep.subr.bf16.mxu0 0
  %4315 = vmatpush2.bf16.msra.mxu0 0
  %4316 = vmatprep.subr.bf16.mxu0 0
  %4317 = vmatpush2.bf16.msra.mxu0 0
  %4318 = vmatprep.subr.bf16.mxu0 0
  %4319 = vmatpush2.bf16.msra.mxu0 0
  %4320 = vmatprep.subr.bf16.mxu0 0
  %4321 = vmatpush2.bf16.msra.mxu0 0
  %4322 = vmatprep.subr.bf16.mxu0 0
  %4323 = vmatpush2.bf16.msra.mxu0 0
  %4324 = vmatprep.subr.bf16.mxu0 0
  %4325 = vmatpush2.bf16.msra.mxu0 0
  %4326 = vmatprep.mubr.bf16.mxu0 0
  %4327 = vmatmul.mubr.bf16.gmra.mxu0 %v4283
  %v4328 = vpop.f32.mrf.mxu0
  %v4329 = vadd.f32 0.0, %v4328
  %v4330 = vpop.f32.mrf.mxu0
  %v4331 = vpop.f32.mrf.mxu0
  %v4332 = vadd.f32 0.0, %v4331
  %v4333 = vpop.f32.mrf.mxu0
  %4334 = vmatprep.mubr.bf16.mxu0 0
  %4335 = vmatmul.mubr.bf16.gmra.mxu0 %v4286
  %v4336 = vpop.f32.mrf.mxu0
  %v4337 = vadd.f32 0.0, %v4336
  %v4338 = vpop.f32.mrf.mxu0
  %v4339 = vpop.f32.mrf.mxu0
  %v4340 = vadd.f32 0.0, %v4339
  %v4341 = vpop.f32.mrf.mxu0
  %4342 = vmatprep.mubr.bf16.mxu0 0
  %4343 = vmatmul.mubr.bf16.gmra.mxu0 %v4289
  %v4344 = vpop.f32.mrf.mxu0
  %v4345 = vadd.f32 0.0, %v4344
  %v4346 = vpop.f32.mrf.mxu0
  %v4347 = vpop.f32.mrf.mxu0
  %v4348 = vadd.f32 0.0, %v4347
  %v4349 = vpop.f32.mrf.mxu0
  %4350 = vmatprep.mubr.bf16.mxu0 0
  %4351 = vmatmul.mubr.bf16.gmra.mxu0 %v4292
  %v4352 = vpop.f32.mrf.mxu0
  %v4353 = vadd.f32 0.0, %v4352
  %v4354 = vpop.f32.mrf.mxu0
  %v4355 = vpop.f32.mrf.mxu0
  %v4356 = vadd.f32 0.0, %v4355
  %v4357 = vpop.f32.mrf.mxu0
  %4358 = vdwg.mxu0
  %v4359 = vld [vmem:[#allocation4 + $0x6] sm:$0xff]
  %v4360 = vld [vmem:[#allocation4 + $0xe] sm:$0xff]
  %v4361 = vld [vmem:[#allocation4 + $0x16] sm:$0xff]
  %v4362 = vld [vmem:[#allocation4 + $0x1e] sm:$0xff]
  %v4363 = vld [vmem:[#allocation4 + $0x2e] sm:$0xff]
  %v4364 = vld [vmem:[#allocation4 + $0x36] sm:$0xff]
  %v4365 = vld [vmem:[#allocation4 + $0x3e] sm:$0xff]
  %v4366 = vld [vmem:[#allocation4 + $0x46] sm:$0xff]
  %v4367 = vpack.c.bf16 %v4360, %v4359
  %v4368 = vpack.c.bf16 %v4362, %v4361
  %v4369 = vpack.c.bf16 %v4364, %v4363
  %v4370 = vpack.c.bf16 %v4366, %v4365
  %s4371 = scalar_lea.vmem %s2, 1344
  %v4372 = vld [vmem:[%s4371] sm:$0xf]
  %v4373 = vld [vmem:[%s4371 + $0x4] sm:$0xf]
  %v4374 = vld [vmem:[#allocation4 + $0x7] sm:$0xff]
  %v4375 = vld [vmem:[#allocation4 + $0xf] sm:$0xff]
  %v4376 = vld [vmem:[#allocation4 + $0x17] sm:$0xff]
  %v4377 = vld [vmem:[#allocation4 + $0x1f] sm:$0xff]
  %v4378 = vld [vmem:[#allocation4 + $0x2f] sm:$0xff]
  %v4379 = vld [vmem:[#allocation4 + $0x37] sm:$0xff]
  %v4380 = vld [vmem:[#allocation4 + $0x3f] sm:$0xff]
  %v4381 = vld [vmem:[#allocation4 + $0x47] sm:$0xff]
  %v4382 = vpack.c.bf16 %v4375, %v4374
  %v4383 = vpack.c.bf16 %v4377, %v4376
  %v4384 = vpack.c.bf16 %v4379, %v4378
  %v4385 = vpack.c.bf16 %v4381, %v4380
  %s4386 = scalar_lea.vmem %s2, 1376
  %v4387 = vld [vmem:[%s4386] sm:$0xf]
  %v4388 = vld [vmem:[%s4386 + $0x4] sm:$0xf]
  %v4391 = vunpack.c.l.b16 %v4387
  %v4392 = vunpack.c.l.b16 %v4388
  %v4393 = vpack.c.b16 %v4392, %v4391
  %v4396 = vsel %vm4063, %v4382, 0
  %v4399 = vsel %vm4063, %v4383, 0
  %v4402 = vsel %vm4063, %v4384, 0
  %v4405 = vsel %vm4063, %v4385, 0
  %4407 = vmatprep.subr.bf16.mxu0 0
  %4408 = vmatpush1.bf16.msra.mxu0 0
  %4409 = vmatprep.subr.bf16.mxu0 0
  %4410 = vmatpush1.bf16.msra.mxu0 0
  %4411 = vmatprep.subr.bf16.mxu0 0
  %4412 = vmatpush1.bf16.msra.mxu0 0
  %4413 = vmatprep.subr.bf16.mxu0 0
  %4414 = vmatpush1.bf16.msra.mxu0 0
  %4415 = vmatprep.subr.bf16.mxu0 0
  %4416 = vmatpush1.bf16.msra.mxu0 0
  %4417 = vmatprep.subr.bf16.mxu0 0
  %4418 = vmatpush1.bf16.msra.mxu0 0
  %4419 = vmatprep.subr.bf16.mxu0 0
  %4420 = vmatpush1.bf16.msra.mxu0 0
  %4421 = vmatprep.subr.bf16.mxu0 0
  %4422 = vmatpush1.bf16.msra.mxu0 %v4393
  %4423 = vmatprep.subr.bf16.mxu0 0
  %4424 = vmatpush2.bf16.msra.mxu0 0
  %4425 = vmatprep.subr.bf16.mxu0 0
  %4426 = vmatpush2.bf16.msra.mxu0 0
  %4427 = vmatprep.subr.bf16.mxu0 0
  %4428 = vmatpush2.bf16.msra.mxu0 0
  %4429 = vmatprep.subr.bf16.mxu0 0
  %4430 = vmatpush2.bf16.msra.mxu0 0
  %4431 = vmatprep.subr.bf16.mxu0 0
  %4432 = vmatpush2.bf16.msra.mxu0 0
  %4433 = vmatprep.subr.bf16.mxu0 0
  %4434 = vmatpush2.bf16.msra.mxu0 0
  %4435 = vmatprep.subr.bf16.mxu0 0
  %4436 = vmatpush2.bf16.msra.mxu0 0
  %4437 = vmatprep.subr.bf16.mxu0 0
  %4438 = vmatpush2.bf16.msra.mxu0 0
  %4439 = vmatprep.mubr.bf16.mxu0 0
  %4440 = vmatmul.mubr.bf16.gmra.mxu0 %v4396
  %v4441 = vpop.f32.mrf.mxu0
  %v4442 = vadd.f32 0.0, %v4441
  %v4443 = vpop.f32.mrf.mxu0
  %v4444 = vpop.f32.mrf.mxu0
  %v4445 = vadd.f32 0.0, %v4444
  %v4446 = vpop.f32.mrf.mxu0
  %4447 = vmatprep.mubr.bf16.mxu0 0
  %4448 = vmatmul.mubr.bf16.gmra.mxu0 %v4399
  %v4449 = vpop.f32.mrf.mxu0
  %v4450 = vadd.f32 0.0, %v4449
  %v4451 = vpop.f32.mrf.mxu0
  %v4452 = vpop.f32.mrf.mxu0
  %v4453 = vadd.f32 0.0, %v4452
  %v4454 = vpop.f32.mrf.mxu0
  %4455 = vmatprep.mubr.bf16.mxu0 0
  %4456 = vmatmul.mubr.bf16.gmra.mxu0 %v4402
  %v4457 = vpop.f32.mrf.mxu0
  %v4458 = vadd.f32 0.0, %v4457
  %v4459 = vpop.f32.mrf.mxu0
  %v4460 = vpop.f32.mrf.mxu0
  %v4461 = vadd.f32 0.0, %v4460
  %v4462 = vpop.f32.mrf.mxu0
  %4463 = vmatprep.mubr.bf16.mxu0 0
  %4464 = vmatmul.mubr.bf16.gmra.mxu0 %v4405
  %v4465 = vpop.f32.mrf.mxu0
  %v4466 = vadd.f32 0.0, %v4465
  %v4467 = vpop.f32.mrf.mxu0
  %v4468 = vpop.f32.mrf.mxu0
  %v4469 = vadd.f32 0.0, %v4468
  %v4470 = vpop.f32.mrf.mxu0
  %4471 = vdwg.mxu0
  %v4472 = vld [vmem:[#allocation4 + $0x8] sm:$0xff]
  %v4473 = vld [vmem:[#allocation4 + $0x10] sm:$0xff]
  %v4474 = vld [vmem:[#allocation4 + $0x18] sm:$0xff]
  %v4475 = vld [vmem:[#allocation4 + $0x20] sm:$0xff]
  %v4476 = vld [vmem:[#allocation4 + $0x30] sm:$0xff]
  %v4477 = vld [vmem:[#allocation4 + $0x38] sm:$0xff]
  %v4478 = vld [vmem:[#allocation4 + $0x40] sm:$0xff]
  %v4479 = vld [vmem:[#allocation4 + $0x48] sm:$0xff]
  %v4480 = vpack.c.bf16 %v4473, %v4472
  %v4481 = vpack.c.bf16 %v4475, %v4474
  %v4482 = vpack.c.bf16 %v4477, %v4476
  %v4483 = vpack.c.bf16 %v4479, %v4478
  %s4484 = scalar_lea.vmem %s2, 1408
  %v4485 = vld [vmem:[%s4484] sm:$0xf]
  %v4486 = vld [vmem:[%s4484 + $0x4] sm:$0xf]
  %v4489 = vunpack.c.l.b16 %v4485
  %v4490 = vunpack.c.l.b16 %v4486
  %v4491 = vpack.c.b16 %v4490, %v4489
  %v4494 = vsel %vm4063, %v4480, 0
  %v4497 = vsel %vm4063, %v4481, 0
  %v4500 = vsel %vm4063, %v4482, 0
  %v4503 = vsel %vm4063, %v4483, 0
  %4505 = vmatprep.subr.bf16.mxu0 0
  %4506 = vmatpush1.bf16.msra.mxu0 0
  %4507 = vmatprep.subr.bf16.mxu0 0
  %4508 = vmatpush1.bf16.msra.mxu0 0
  %4509 = vmatprep.subr.bf16.mxu0 0
  %4510 = vmatpush1.bf16.msra.mxu0 0
  %4511 = vmatprep.subr.bf16.mxu0 0
  %4512 = vmatpush1.bf16.msra.mxu0 0
  %4513 = vmatprep.subr.bf16.mxu0 0
  %4514 = vmatpush1.bf16.msra.mxu0 0
  %4515 = vmatprep.subr.bf16.mxu0 0
  %4516 = vmatpush1.bf16.msra.mxu0 0
  %4517 = vmatprep.subr.bf16.mxu0 0
  %4518 = vmatpush1.bf16.msra.mxu0 0
  %4519 = vmatprep.subr.bf16.mxu0 0
  %4520 = vmatpush1.bf16.msra.mxu0 %v4491
  %4521 = vmatprep.subr.bf16.mxu0 0
  %4522 = vmatpush2.bf16.msra.mxu0 0
  %4523 = vmatprep.subr.bf16.mxu0 0
  %4524 = vmatpush2.bf16.msra.mxu0 0
  %4525 = vmatprep.subr.bf16.mxu0 0
  %4526 = vmatpush2.bf16.msra.mxu0 0
  %4527 = vmatprep.subr.bf16.mxu0 0
  %4528 = vmatpush2.bf16.msra.mxu0 0
  %4529 = vmatprep.subr.bf16.mxu0 0
  %4530 = vmatpush2.bf16.msra.mxu0 0
  %4531 = vmatprep.subr.bf16.mxu0 0
  %4532 = vmatpush2.bf16.msra.mxu0 0
  %4533 = vmatprep.subr.bf16.mxu0 0
  %4534 = vmatpush2.bf16.msra.mxu0 0
  %4535 = vmatprep.subr.bf16.mxu0 0
  %4536 = vmatpush2.bf16.msra.mxu0 0
  %4537 = vmatprep.mubr.bf16.mxu0 0
  %4538 = vmatmul.mubr.bf16.gmra.mxu0 %v4494
  %v4539 = vpop.f32.mrf.mxu0
  %v4540 = vadd.f32 0.0, %v4539
  %v4541 = vpop.f32.mrf.mxu0
  %v4542 = vpop.f32.mrf.mxu0
  %v4543 = vadd.f32 0.0, %v4542
  %v4544 = vpop.f32.mrf.mxu0
  %4545 = vmatprep.mubr.bf16.mxu0 0
  %4546 = vmatmul.mubr.bf16.gmra.mxu0 %v4497
  %v4547 = vpop.f32.mrf.mxu0
  %v4548 = vadd.f32 0.0, %v4547
  %v4549 = vpop.f32.mrf.mxu0
  %v4550 = vpop.f32.mrf.mxu0
  %v4551 = vadd.f32 0.0, %v4550
  %v4552 = vpop.f32.mrf.mxu0
  %4553 = vmatprep.mubr.bf16.mxu0 0
  %4554 = vmatmul.mubr.bf16.gmra.mxu0 %v4500
  %v4555 = vpop.f32.mrf.mxu0
  %v4556 = vadd.f32 0.0, %v4555
  %v4557 = vpop.f32.mrf.mxu0
  %v4558 = vpop.f32.mrf.mxu0
  %v4559 = vadd.f32 0.0, %v4558
  %v4560 = vpop.f32.mrf.mxu0
  %4561 = vmatprep.mubr.bf16.mxu0 0
  %4562 = vmatmul.mubr.bf16.gmra.mxu0 %v4503
  %v4563 = vpop.f32.mrf.mxu0
  %v4564 = vadd.f32 0.0, %v4563
  %v4565 = vpop.f32.mrf.mxu0
  %v4566 = vpop.f32.mrf.mxu0
  %v4567 = vadd.f32 0.0, %v4566
  %v4568 = vpop.f32.mrf.mxu0
  %4569 = vdwg.mxu0
  %v4572 = vunpack.c.l.b16 %v4040
  %v4573 = vunpack.c.l.b16 %v4041
  %v4574 = vpack.c.b16 %v4573, %v4572
  %v4577 = vsel %vm4063, %v4035, 0
  %v4580 = vsel %vm4063, %v4036, 0
  %v4583 = vsel %vm4063, %v4037, 0
  %v4586 = vsel %vm4063, %v4038, 0
  %4588 = vmatprep.subr.bf16.mxu0 0
  %4589 = vmatpush1.bf16.msra.mxu0 0
  %4590 = vmatprep.subr.bf16.mxu0 0
  %4591 = vmatpush1.bf16.msra.mxu0 0
  %4592 = vmatprep.subr.bf16.mxu0 0
  %4593 = vmatpush1.bf16.msra.mxu0 0
  %4594 = vmatprep.subr.bf16.mxu0 0
  %4595 = vmatpush1.bf16.msra.mxu0 0
  %4596 = vmatprep.subr.bf16.mxu0 0
  %4597 = vmatpush1.bf16.msra.mxu0 0
  %4598 = vmatprep.subr.bf16.mxu0 0
  %4599 = vmatpush1.bf16.msra.mxu0 0
  %4600 = vmatprep.subr.bf16.mxu0 0
  %4601 = vmatpush1.bf16.msra.mxu0 0
  %4602 = vmatprep.subr.bf16.mxu0 0
  %4603 = vmatpush1.bf16.msra.mxu0 %v4574
  %4604 = vmatprep.subr.bf16.mxu0 0
  %4605 = vmatpush2.bf16.msra.mxu0 0
  %4606 = vmatprep.subr.bf16.mxu0 0
  %4607 = vmatpush2.bf16.msra.mxu0 0
  %4608 = vmatprep.subr.bf16.mxu0 0
  %4609 = vmatpush2.bf16.msra.mxu0 0
  %4610 = vmatprep.subr.bf16.mxu0 0
  %4611 = vmatpush2.bf16.msra.mxu0 0
  %4612 = vmatprep.subr.bf16.mxu0 0
  %4613 = vmatpush2.bf16.msra.mxu0 0
  %4614 = vmatprep.subr.bf16.mxu0 0
  %4615 = vmatpush2.bf16.msra.mxu0 0
  %4616 = vmatprep.subr.bf16.mxu0 0
  %4617 = vmatpush2.bf16.msra.mxu0 0
  %4618 = vmatprep.subr.bf16.mxu0 0
  %4619 = vmatpush2.bf16.msra.mxu0 0
  %4620 = vmatprep.mubr.bf16.mxu0 0
  %4621 = vmatmul.mubr.bf16.gmra.mxu0 %v4577
  %v4622 = vpop.f32.mrf.mxu0
  %v4623 = vadd.f32 %v4111, %v4622
  %v4624 = vpop.f32.mrf.mxu0
  %v4625 = vpop.f32.mrf.mxu0
  %v4626 = vadd.f32 %v4114, %v4625
  %v4627 = vpop.f32.mrf.mxu0
  %4628 = vmatprep.mubr.bf16.mxu0 0
  %4629 = vmatmul.mubr.bf16.gmra.mxu0 %v4580
  %v4630 = vpop.f32.mrf.mxu0
  %v4631 = vadd.f32 %v4119, %v4630
  %v4632 = vpop.f32.mrf.mxu0
  %v4633 = vpop.f32.mrf.mxu0
  %v4634 = vadd.f32 %v4122, %v4633
  %v4635 = vpop.f32.mrf.mxu0
  %4636 = vmatprep.mubr.bf16.mxu0 0
  %4637 = vmatmul.mubr.bf16.gmra.mxu0 %v4583
  %v4638 = vpop.f32.mrf.mxu0
  %v4639 = vadd.f32 %v4127, %v4638
  %v4640 = vpop.f32.mrf.mxu0
  %v4641 = vpop.f32.mrf.mxu0
  %v4642 = vadd.f32 %v4130, %v4641
  %v4643 = vpop.f32.mrf.mxu0
  %4644 = vmatprep.mubr.bf16.mxu0 0
  %4645 = vmatmul.mubr.bf16.gmra.mxu0 %v4586
  %v4646 = vpop.f32.mrf.mxu0
  %v4647 = vadd.f32 %v4135, %v4646
  %v4648 = vpop.f32.mrf.mxu0
  %v4649 = vpop.f32.mrf.mxu0
  %v4650 = vadd.f32 %v4138, %v4649
  %v4651 = vpop.f32.mrf.mxu0
  %4652 = vdwg.mxu0
  %v4655 = vunpack.c.l.b16 %v4154
  %v4656 = vunpack.c.l.b16 %v4155
  %v4657 = vpack.c.b16 %v4656, %v4655
  %v4660 = vsel %vm4063, %v4149, 0
  %v4663 = vsel %vm4063, %v4150, 0
  %v4666 = vsel %vm4063, %v4151, 0
  %v4669 = vsel %vm4063, %v4152, 0
  %4671 = vmatprep.subr.bf16.mxu0 0
  %4672 = vmatpush1.bf16.msra.mxu0 0
  %4673 = vmatprep.subr.bf16.mxu0 0
  %4674 = vmatpush1.bf16.msra.mxu0 0
  %4675 = vmatprep.subr.bf16.mxu0 0
  %4676 = vmatpush1.bf16.msra.mxu0 0
  %4677 = vmatprep.subr.bf16.mxu0 0
  %4678 = vmatpush1.bf16.msra.mxu0 0
  %4679 = vmatprep.subr.bf16.mxu0 0
  %4680 = vmatpush1.bf16.msra.mxu0 0
  %4681 = vmatprep.subr.bf16.mxu0 0
  %4682 = vmatpush1.bf16.msra.mxu0 0
  %4683 = vmatprep.subr.bf16.mxu0 0
  %4684 = vmatpush1.bf16.msra.mxu0 0
  %4685 = vmatprep.subr.bf16.mxu0 0
  %4686 = vmatpush1.bf16.msra.mxu0 %v4657
  %4687 = vmatprep.subr.bf16.mxu0 0
  %4688 = vmatpush2.bf16.msra.mxu0 0
  %4689 = vmatprep.subr.bf16.mxu0 0
  %4690 = vmatpush2.bf16.msra.mxu0 0
  %4691 = vmatprep.subr.bf16.mxu0 0
  %4692 = vmatpush2.bf16.msra.mxu0 0
  %4693 = vmatprep.subr.bf16.mxu0 0
  %4694 = vmatpush2.bf16.msra.mxu0 0
  %4695 = vmatprep.subr.bf16.mxu0 0
  %4696 = vmatpush2.bf16.msra.mxu0 0
  %4697 = vmatprep.subr.bf16.mxu0 0
  %4698 = vmatpush2.bf16.msra.mxu0 0
  %4699 = vmatprep.subr.bf16.mxu0 0
  %4700 = vmatpush2.bf16.msra.mxu0 0
  %4701 = vmatprep.subr.bf16.mxu0 0
  %4702 = vmatpush2.bf16.msra.mxu0 0
  %4703 = vmatprep.mubr.bf16.mxu0 0
  %4704 = vmatmul.mubr.bf16.gmra.mxu0 %v4660
  %v4705 = vpop.f32.mrf.mxu0
  %v4706 = vadd.f32 %v4224, %v4705
  %v4707 = vpop.f32.mrf.mxu0
  %v4708 = vpop.f32.mrf.mxu0
  %v4709 = vadd.f32 %v4227, %v4708
  %v4710 = vpop.f32.mrf.mxu0
  %4711 = vmatprep.mubr.bf16.mxu0 0
  %4712 = vmatmul.mubr.bf16.gmra.mxu0 %v4663
  %v4713 = vpop.f32.mrf.mxu0
  %v4714 = vadd.f32 %v4232, %v4713
  %v4715 = vpop.f32.mrf.mxu0
  %v4716 = vpop.f32.mrf.mxu0
  %v4717 = vadd.f32 %v4235, %v4716
  %v4718 = vpop.f32.mrf.mxu0
  %4719 = vmatprep.mubr.bf16.mxu0 0
  %4720 = vmatmul.mubr.bf16.gmra.mxu0 %v4666
  %v4721 = vpop.f32.mrf.mxu0
  %v4722 = vadd.f32 %v4240, %v4721
  %v4723 = vpop.f32.mrf.mxu0
  %v4724 = vpop.f32.mrf.mxu0
  %v4725 = vadd.f32 %v4243, %v4724
  %v4726 = vpop.f32.mrf.mxu0
  %4727 = vmatprep.mubr.bf16.mxu0 0
  %4728 = vmatmul.mubr.bf16.gmra.mxu0 %v4669
  %v4729 = vpop.f32.mrf.mxu0
  %v4730 = vadd.f32 %v4248, %v4729
  %v4731 = vpop.f32.mrf.mxu0
  %v4732 = vpop.f32.mrf.mxu0
  %v4733 = vadd.f32 %v4251, %v4732
  %v4734 = vpop.f32.mrf.mxu0
  %4735 = vdwg.mxu0
  %v4738 = vunpack.c.l.b16 %v4259
  %v4739 = vunpack.c.l.b16 %v4260
  %v4740 = vpack.c.b16 %v4739, %v4738
  %v4743 = vsel %vm4063, %v4254, 0
  %v4746 = vsel %vm4063, %v4255, 0
  %v4749 = vsel %vm4063, %v4256, 0
  %v4752 = vsel %vm4063, %v4257, 0
  %4754 = vmatprep.subr.bf16.mxu0 0
  %4755 = vmatpush1.bf16.msra.mxu0 0
  %4756 = vmatprep.subr.bf16.mxu0 0
  %4757 = vmatpush1.bf16.msra.mxu0 0
  %4758 = vmatprep.subr.bf16.mxu0 0
  %4759 = vmatpush1.bf16.msra.mxu0 0
  %4760 = vmatprep.subr.bf16.mxu0 0
  %4761 = vmatpush1.bf16.msra.mxu0 0
  %4762 = vmatprep.subr.bf16.mxu0 0
  %4763 = vmatpush1.bf16.msra.mxu0 0
  %4764 = vmatprep.subr.bf16.mxu0 0
  %4765 = vmatpush1.bf16.msra.mxu0 0
  %4766 = vmatprep.subr.bf16.mxu0 0
  %4767 = vmatpush1.bf16.msra.mxu0 0
  %4768 = vmatprep.subr.bf16.mxu0 0
  %4769 = vmatpush1.bf16.msra.mxu0 %v4740
  %4770 = vmatprep.subr.bf16.mxu0 0
  %4771 = vmatpush2.bf16.msra.mxu0 0
  %4772 = vmatprep.subr.bf16.mxu0 0
  %4773 = vmatpush2.bf16.msra.mxu0 0
  %4774 = vmatprep.subr.bf16.mxu0 0
  %4775 = vmatpush2.bf16.msra.mxu0 0
  %4776 = vmatprep.subr.bf16.mxu0 0
  %4777 = vmatpush2.bf16.msra.mxu0 0
  %4778 = vmatprep.subr.bf16.mxu0 0
  %4779 = vmatpush2.bf16.msra.mxu0 0
  %4780 = vmatprep.subr.bf16.mxu0 0
  %4781 = vmatpush2.bf16.msra.mxu0 0
  %4782 = vmatprep.subr.bf16.mxu0 0
  %4783 = vmatpush2.bf16.msra.mxu0 0
  %4784 = vmatprep.subr.bf16.mxu0 0
  %4785 = vmatpush2.bf16.msra.mxu0 0
  %4786 = vmatprep.mubr.bf16.mxu0 0
  %4787 = vmatmul.mubr.bf16.gmra.mxu0 %v4743
  %v4788 = vpop.f32.mrf.mxu0
  %v4789 = vadd.f32 %v4329, %v4788
  %v4790 = vpop.f32.mrf.mxu0
  %v4791 = vpop.f32.mrf.mxu0
  %v4792 = vadd.f32 %v4332, %v4791
  %v4793 = vpop.f32.mrf.mxu0
  %4794 = vmatprep.mubr.bf16.mxu0 0
  %4795 = vmatmul.mubr.bf16.gmra.mxu0 %v4746
  %v4796 = vpop.f32.mrf.mxu0
  %v4797 = vadd.f32 %v4337, %v4796
  %v4798 = vpop.f32.mrf.mxu0
  %v4799 = vpop.f32.mrf.mxu0
  %v4800 = vadd.f32 %v4340, %v4799
  %v4801 = vpop.f32.mrf.mxu0
  %4802 = vmatprep.mubr.bf16.mxu0 0
  %4803 = vmatmul.mubr.bf16.gmra.mxu0 %v4749
  %v4804 = vpop.f32.mrf.mxu0
  %v4805 = vadd.f32 %v4345, %v4804
  %v4806 = vpop.f32.mrf.mxu0
  %v4807 = vpop.f32.mrf.mxu0
  %v4808 = vadd.f32 %v4348, %v4807
  %v4809 = vpop.f32.mrf.mxu0
  %4810 = vmatprep.mubr.bf16.mxu0 0
  %4811 = vmatmul.mubr.bf16.gmra.mxu0 %v4752
  %v4812 = vpop.f32.mrf.mxu0
  %v4813 = vadd.f32 %v4353, %v4812
  %v4814 = vpop.f32.mrf.mxu0
  %v4815 = vpop.f32.mrf.mxu0
  %v4816 = vadd.f32 %v4356, %v4815
  %v4817 = vpop.f32.mrf.mxu0
  %4818 = vdwg.mxu0
  %v4821 = vunpack.c.l.b16 %v4372
  %v4822 = vunpack.c.l.b16 %v4373
  %v4823 = vpack.c.b16 %v4822, %v4821
  %v4826 = vsel %vm4063, %v4367, 0
  %v4829 = vsel %vm4063, %v4368, 0
  %v4832 = vsel %vm4063, %v4369, 0
  %v4835 = vsel %vm4063, %v4370, 0
  %4837 = vmatprep.subr.bf16.mxu0 0
  %4838 = vmatpush1.bf16.msra.mxu0 0
  %4839 = vmatprep.subr.bf16.mxu0 0
  %4840 = vmatpush1.bf16.msra.mxu0 0
  %4841 = vmatprep.subr.bf16.mxu0 0
  %4842 = vmatpush1.bf16.msra.mxu0 0
  %4843 = vmatprep.subr.bf16.mxu0 0
  %4844 = vmatpush1.bf16.msra.mxu0 0
  %4845 = vmatprep.subr.bf16.mxu0 0
  %4846 = vmatpush1.bf16.msra.mxu0 0
  %4847 = vmatprep.subr.bf16.mxu0 0
  %4848 = vmatpush1.bf16.msra.mxu0 0
  %4849 = vmatprep.subr.bf16.mxu0 0
  %4850 = vmatpush1.bf16.msra.mxu0 0
  %4851 = vmatprep.subr.bf16.mxu0 0
  %4852 = vmatpush1.bf16.msra.mxu0 %v4823
  %4853 = vmatprep.subr.bf16.mxu0 0
  %4854 = vmatpush2.bf16.msra.mxu0 0
  %4855 = vmatprep.subr.bf16.mxu0 0
  %4856 = vmatpush2.bf16.msra.mxu0 0
  %4857 = vmatprep.subr.bf16.mxu0 0
  %4858 = vmatpush2.bf16.msra.mxu0 0
  %4859 = vmatprep.subr.bf16.mxu0 0
  %4860 = vmatpush2.bf16.msra.mxu0 0
  %4861 = vmatprep.subr.bf16.mxu0 0
  %4862 = vmatpush2.bf16.msra.mxu0 0
  %4863 = vmatprep.subr.bf16.mxu0 0
  %4864 = vmatpush2.bf16.msra.mxu0 0
  %4865 = vmatprep.subr.bf16.mxu0 0
  %4866 = vmatpush2.bf16.msra.mxu0 0
  %4867 = vmatprep.subr.bf16.mxu0 0
  %4868 = vmatpush2.bf16.msra.mxu0 0
  %4869 = vmatprep.mubr.bf16.mxu0 0
  %4870 = vmatmul.mubr.bf16.gmra.mxu0 %v4826
  %v4871 = vpop.f32.mrf.mxu0
  %v4872 = vadd.f32 %v4442, %v4871
  %v4873 = vpop.f32.mrf.mxu0
  %v4874 = vpop.f32.mrf.mxu0
  %v4875 = vadd.f32 %v4445, %v4874
  %v4876 = vpop.f32.mrf.mxu0
  %4877 = vmatprep.mubr.bf16.mxu0 0
  %4878 = vmatmul.mubr.bf16.gmra.mxu0 %v4829
  %v4879 = vpop.f32.mrf.mxu0
  %v4880 = vadd.f32 %v4450, %v4879
  %v4881 = vpop.f32.mrf.mxu0
  %v4882 = vpop.f32.mrf.mxu0
  %v4883 = vadd.f32 %v4453, %v4882
  %v4884 = vpop.f32.mrf.mxu0
  %4885 = vmatprep.mubr.bf16.mxu0 0
  %4886 = vmatmul.mubr.bf16.gmra.mxu0 %v4832
  %v4887 = vpop.f32.mrf.mxu0
  %v4888 = vadd.f32 %v4458, %v4887
  %v4889 = vpop.f32.mrf.mxu0
  %v4890 = vpop.f32.mrf.mxu0
  %v4891 = vadd.f32 %v4461, %v4890
  %v4892 = vpop.f32.mrf.mxu0
  %4893 = vmatprep.mubr.bf16.mxu0 0
  %4894 = vmatmul.mubr.bf16.gmra.mxu0 %v4835
  %v4895 = vpop.f32.mrf.mxu0
  %v4896 = vadd.f32 %v4466, %v4895
  %v4897 = vpop.f32.mrf.mxu0
  %v4898 = vpop.f32.mrf.mxu0
  %v4899 = vadd.f32 %v4469, %v4898
  %v4900 = vpop.f32.mrf.mxu0
  %4901 = vdwg.mxu0
  %v4902 = vadd.f32 %v4623, %v4706
  %v4903 = vadd.f32 %v4626, %v4709
  %v4904 = vadd.f32 %v4631, %v4714
  %v4905 = vadd.f32 %v4634, %v4717
  %v4906 = vadd.f32 %v4639, %v4722
  %v4907 = vadd.f32 %v4642, %v4725
  %v4908 = vadd.f32 %v4647, %v4730
  %v4909 = vadd.f32 %v4650, %v4733
  %v4910 = vadd.f32 %v4789, %v4872
  %v4911 = vadd.f32 %v4792, %v4875
  %v4912 = vadd.f32 %v4797, %v4880
  %v4913 = vadd.f32 %v4800, %v4883
  %v4914 = vadd.f32 %v4805, %v4888
  %v4915 = vadd.f32 %v4808, %v4891
  %v4916 = vadd.f32 %v4813, %v4896
  %v4917 = vadd.f32 %v4816, %v4899
  %v4918 = vadd.f32 %v4902, %v4910
  %v4919 = vadd.f32 %v4903, %v4911
  %v4920 = vadd.f32 %v4904, %v4912
  %v4921 = vadd.f32 %v4905, %v4913
  %v4922 = vadd.f32 %v4906, %v4914
  %v4923 = vadd.f32 %v4907, %v4915
  %v4924 = vadd.f32 %v4908, %v4916
  %v4925 = vadd.f32 %v4909, %v4917
  %v4926 = vadd.f32 %v4918, %v4540
  %v4927 = vadd.f32 %v4919, %v4543
  %v4928 = vadd.f32 %v4920, %v4548
  %v4929 = vadd.f32 %v4921, %v4551
  %v4930 = vadd.f32 %v4922, %v4556
  %v4931 = vadd.f32 %v4923, %v4559
  %v4932 = vadd.f32 %v4924, %v4564
  %v4933 = vadd.f32 %v4925, %v4567
  %s4934 = scalar_lea.vmem %s3, 4
  %v4935 = vld [vmem:[%s4934] sm:$0x1]
  %v4937 = vlaneseq
  %v4938 = vshrl.u32 %v4937, 7
  %v4939 = vsub.s32 0, %v4938
  %v4940 = vrot.slane %v4935, %v4939
  %v4942 = vadd.f32 %v4926, %v4940
  %v4943 = vadd.f32 %v4927, %v4940
  %v4944 = vadd.f32 %v4928, %v4940
  %v4945 = vadd.f32 %v4929, %v4940
  %v4946 = vadd.f32 %v4930, %v4940
  %v4947 = vadd.f32 %v4931, %v4940
  %v4948 = vadd.f32 %v4932, %v4940
  %v4949 = vadd.f32 %v4933, %v4940
  %v4950 = vsel %vm4063, %v4942, 0.0
  %v4951 = vsel %vm4063, %v4943, 0.0
  %v4952 = vadd.f32 %v4950, %v4951
  %v4953 = vsel %vm4063, %v4944, 0.0
  %v4954 = vadd.f32 %v4952, %v4953
  %v4955 = vsel %vm4063, %v4945, 0.0
  %v4956 = vadd.f32 %v4954, %v4955
  %v4957 = vrot.slane %v4956, 4
  %v4958 = vadd.f32 %v4956, %v4957
  %v4959 = vrot.slane %v4958, 2
  %v4960 = vadd.f32 %v4958, %v4959
  %v4961 = vrot.slane %v4960, 1
  %v4962 = vadd.f32 %v4960, %v4961
  %v4963 = vsel %vm4063, %v4946, 0.0
  %v4964 = vsel %vm4063, %v4947, 0.0
  %v4965 = vadd.f32 %v4963, %v4964
  %v4966 = vsel %vm4063, %v4948, 0.0
  %v4967 = vadd.f32 %v4965, %v4966
  %v4968 = vsel %vm4063, %v4949, 0.0
  %v4969 = vadd.f32 %v4967, %v4968
  %v4970 = vrot.slane %v4969, 4
  %v4971 = vadd.f32 %v4969, %v4970
  %v4972 = vrot.slane %v4971, 2
  %v4973 = vadd.f32 %v4971, %v4972
  %v4974 = vrot.slane %v4973, 1
  %v4975 = vadd.f32 %v4973, %v4974
  %v4976 = vmul.f32 %v4942, %v4942
  %v4977 = vmul.f32 %v4943, %v4943
  %v4978 = vmul.f32 %v4944, %v4944
  %v4979 = vmul.f32 %v4945, %v4945
  %v4980 = vmul.f32 %v4946, %v4946
  %v4981 = vmul.f32 %v4947, %v4947
  %v4982 = vmul.f32 %v4948, %v4948
  %v4983 = vmul.f32 %v4949, %v4949
  %v4984 = vsel %vm4063, %v4976, 0.0
  %v4985 = vsel %vm4063, %v4977, 0.0
  %v4986 = vadd.f32 %v4984, %v4985
  %v4987 = vsel %vm4063, %v4978, 0.0
  %v4988 = vadd.f32 %v4986, %v4987
  %v4989 = vsel %vm4063, %v4979, 0.0
  %v4990 = vadd.f32 %v4988, %v4989
  %v4991 = vrot.slane %v4990, 4
  %v4992 = vadd.f32 %v4990, %v4991
  %v4993 = vrot.slane %v4992, 2
  %v4994 = vadd.f32 %v4992, %v4993
  %v4995 = vrot.slane %v4994, 1
  %v4996 = vadd.f32 %v4994, %v4995
  %v4997 = vsel %vm4063, %v4980, 0.0
  %v4998 = vsel %vm4063, %v4981, 0.0
  %v4999 = vadd.f32 %v4997, %v4998
  %v5000 = vsel %vm4063, %v4982, 0.0
  %v5001 = vadd.f32 %v4999, %v5000
  %v5002 = vsel %vm4063, %v4983, 0.0
  %v5003 = vadd.f32 %v5001, %v5002
  %v5004 = vrot.slane %v5003, 4
  %v5005 = vadd.f32 %v5003, %v5004
  %v5006 = vrot.slane %v5005, 2
  %v5007 = vadd.f32 %v5005, %v5006
  %v5008 = vrot.slane %v5007, 1
  %v5009 = vadd.f32 %v5007, %v5008
  %v5010 = vmul.f32 %v4962, 0.03125
  %v5011 = vmul.f32 %v4975, 0.03125
  %v5012 = vmul.f32 %v4996, 0.03125
  %v5013 = vmul.f32 %v5009, 0.03125
  %v5014 = vmul.f32 %v5010, %v5010
  %v5015 = vmul.f32 %v5011, %v5011
  %v5016 = vsub.f32 %v5012, %v5014
  %v5017 = vsub.f32 %v5013, %v5015
  %v5018 = vsub.f32 %v4942, %v5010
  %v5019 = vsub.f32 %v4943, %v5010
  %v5020 = vsub.f32 %v4944, %v5010
  %v5021 = vsub.f32 %v4945, %v5010
  %v5022 = vsub.f32 %v4946, %v5011
  %v5023 = vsub.f32 %v4947, %v5011
  %v5024 = vsub.f32 %v4948, %v5011
  %v5025 = vsub.f32 %v4949, %v5011
  %v5026 = vadd.f32 %v5016, 1e-05
  %v5027 = vadd.f32 %v5017, 1e-05
  %v5028 = vrsqrt.pop %v5026
  %v5029 = vrsqrt.pop %v5027
  %v5030 = vmul.f32 %v5018, %v5028
  %v5031 = vmul.f32 %v5019, %v5028
  %v5032 = vmul.f32 %v5020, %v5028
  %v5033 = vmul.f32 %v5021, %v5028
  %v5034 = vmul.f32 %v5022, %v5029
  %v5035 = vmul.f32 %v5023, %v5029
  %v5036 = vmul.f32 %v5024, %v5029
  %v5037 = vmul.f32 %v5025, %v5029
  %v5038 = vmax.f32 %v5030, 0.0
  %v5039 = vmax.f32 %v5031, 0.0
  %v5040 = vmax.f32 %v5032, 0.0
  %v5041 = vmax.f32 %v5033, 0.0
  %v5042 = vmax.f32 %v5034, 0.0
  %v5043 = vmax.f32 %v5035, 0.0
  %v5044 = vmax.f32 %v5036, 0.0
  %v5045 = vmax.f32 %v5037, 0.0
  %5046 = vst.msk [vmem:[#allocation4 + $0x4] sm:$0xff] %vm4063, %v5038
  %5047 = vst.msk [vmem:[#allocation4 + $0xc] sm:$0xff] %vm4063, %v5039
  %5048 = vst.msk [vmem:[#allocation4 + $0x14] sm:$0xff] %vm4063, %v5040
  %5049 = vst.msk [vmem:[#allocation4 + $0x1c] sm:$0xff] %vm4063, %v5041
  %5050 = vst.msk [vmem:[#allocation4 + $0x2c] sm:$0xff] %vm4063, %v5042
  %5051 = vst.msk [vmem:[#allocation4 + $0x34] sm:$0xff] %vm4063, %v5043
  %5052 = vst.msk [vmem:[#allocation4 + $0x3c] sm:$0xff] %vm4063, %v5044
  %5053 = vst.msk [vmem:[#allocation4 + $0x44] sm:$0xff] %vm4063, %v5045
  %v5054 = vld [vmem:[#allocation4] sm:$0xff]
  %v5055 = vld [vmem:[#allocation4 + $0x8] sm:$0xff]
  %v5056 = vld [vmem:[#allocation4 + $0x10] sm:$0xff]
  %v5057 = vld [vmem:[#allocation4 + $0x18] sm:$0xff]
  %v5058 = vld [vmem:[#allocation4 + $0x28] sm:$0xff]
  %v5059 = vld [vmem:[#allocation4 + $0x30] sm:$0xff]
  %v5060 = vld [vmem:[#allocation4 + $0x38] sm:$0xff]
  %v5061 = vld [vmem:[#allocation4 + $0x40] sm:$0xff]
  %v5062 = vpack.c.bf16 %v5055, %v5054
  %v5063 = vpack.c.bf16 %v5057, %v5056
  %v5064 = vpack.c.bf16 %v5059, %v5058
  %v5065 = vpack.c.bf16 %v5061, %v5060
  %s5066 = scalar_lea.vmem %s2, 1440
  %v5067 = vld [vmem:[%s5066] sm:$0xf]
  %v5068 = vld [vmem:[%s5066 + $0x4] sm:$0xf]
  %v5069 = vld [vmem:[#allocation4 + $0x1] sm:$0xff]
  %v5070 = vld [vmem:[#allocation4 + $0x9] sm:$0xff]
  %v5071 = vld [vmem:[#allocation4 + $0x11] sm:$0xff]
  %v5072 = vld [vmem:[#allocation4 + $0x19] sm:$0xff]
  %v5073 = vld [vmem:[#allocation4 + $0x29] sm:$0xff]
  %v5074 = vld [vmem:[#allocation4 + $0x31] sm:$0xff]
  %v5075 = vld [vmem:[#allocation4 + $0x39] sm:$0xff]
  %v5076 = vld [vmem:[#allocation4 + $0x41] sm:$0xff]
  %v5077 = vpack.c.bf16 %v5070, %v5069
  %v5078 = vpack.c.bf16 %v5072, %v5071
  %v5079 = vpack.c.bf16 %v5074, %v5073
  %v5080 = vpack.c.bf16 %v5076, %v5075
  %s5081 = scalar_lea.vmem %s2, 1472
  %v5082 = vld [vmem:[%s5081] sm:$0xf]
  %v5083 = vld [vmem:[%s5081 + $0x4] sm:$0xf]
  %v5086 = vunpack.c.l.b16 %v5082
  %v5087 = vunpack.c.l.b16 %v5083
  %v5088 = vpack.c.b16 %v5087, %v5086
  %v5091 = vsel %vm4063, %v5077, 0
  %v5094 = vsel %vm4063, %v5078, 0
  %v5097 = vsel %vm4063, %v5079, 0
  %v5100 = vsel %vm4063, %v5080, 0
  %5102 = vmatprep.subr.bf16.mxu0 0
  %5103 = vmatpush1.bf16.msra.mxu0 0
  %5104 = vmatprep.subr.bf16.mxu0 0
  %5105 = vmatpush1.bf16.msra.mxu0 0
  %5106 = vmatprep.subr.bf16.mxu0 0
  %5107 = vmatpush1.bf16.msra.mxu0 0
  %5108 = vmatprep.subr.bf16.mxu0 0
  %5109 = vmatpush1.bf16.msra.mxu0 0
  %5110 = vmatprep.subr.bf16.mxu0 0
  %5111 = vmatpush1.bf16.msra.mxu0 0
  %5112 = vmatprep.subr.bf16.mxu0 0
  %5113 = vmatpush1.bf16.msra.mxu0 0
  %5114 = vmatprep.subr.bf16.mxu0 0
  %5115 = vmatpush1.bf16.msra.mxu0 0
  %5116 = vmatprep.subr.bf16.mxu0 0
  %5117 = vmatpush1.bf16.msra.mxu0 %v5088
  %5118 = vmatprep.subr.bf16.mxu0 0
  %5119 = vmatpush2.bf16.msra.mxu0 0
  %5120 = vmatprep.subr.bf16.mxu0 0
  %5121 = vmatpush2.bf16.msra.mxu0 0
  %5122 = vmatprep.subr.bf16.mxu0 0
  %5123 = vmatpush2.bf16.msra.mxu0 0
  %5124 = vmatprep.subr.bf16.mxu0 0
  %5125 = vmatpush2.bf16.msra.mxu0 0
  %5126 = vmatprep.subr.bf16.mxu0 0
  %5127 = vmatpush2.bf16.msra.mxu0 0
  %5128 = vmatprep.subr.bf16.mxu0 0
  %5129 = vmatpush2.bf16.msra.mxu0 0
  %5130 = vmatprep.subr.bf16.mxu0 0
  %5131 = vmatpush2.bf16.msra.mxu0 0
  %5132 = vmatprep.subr.bf16.mxu0 0
  %5133 = vmatpush2.bf16.msra.mxu0 0
  %5134 = vmatprep.mubr.bf16.mxu0 0
  %5135 = vmatmul.mubr.bf16.gmra.mxu0 %v5091
  %v5136 = vpop.f32.mrf.mxu0
  %v5137 = vadd.f32 0.0, %v5136
  %v5138 = vpop.f32.mrf.mxu0
  %v5139 = vpop.f32.mrf.mxu0
  %v5140 = vadd.f32 0.0, %v5139
  %v5141 = vpop.f32.mrf.mxu0
  %5142 = vmatprep.mubr.bf16.mxu0 0
  %5143 = vmatmul.mubr.bf16.gmra.mxu0 %v5094
  %v5144 = vpop.f32.mrf.mxu0
  %v5145 = vadd.f32 0.0, %v5144
  %v5146 = vpop.f32.mrf.mxu0
  %v5147 = vpop.f32.mrf.mxu0
  %v5148 = vadd.f32 0.0, %v5147
  %v5149 = vpop.f32.mrf.mxu0
  %5150 = vmatprep.mubr.bf16.mxu0 0
  %5151 = vmatmul.mubr.bf16.gmra.mxu0 %v5097
  %v5152 = vpop.f32.mrf.mxu0
  %v5153 = vadd.f32 0.0, %v5152
  %v5154 = vpop.f32.mrf.mxu0
  %v5155 = vpop.f32.mrf.mxu0
  %v5156 = vadd.f32 0.0, %v5155
  %v5157 = vpop.f32.mrf.mxu0
  %5158 = vmatprep.mubr.bf16.mxu0 0
  %5159 = vmatmul.mubr.bf16.gmra.mxu0 %v5100
  %v5160 = vpop.f32.mrf.mxu0
  %v5161 = vadd.f32 0.0, %v5160
  %v5162 = vpop.f32.mrf.mxu0
  %v5163 = vpop.f32.mrf.mxu0
  %v5164 = vadd.f32 0.0, %v5163
  %v5165 = vpop.f32.mrf.mxu0
  %5166 = vdwg.mxu0
  %v5167 = vld [vmem:[#allocation4 + $0x2] sm:$0xff]
  %v5168 = vld [vmem:[#allocation4 + $0xa] sm:$0xff]
  %v5169 = vld [vmem:[#allocation4 + $0x12] sm:$0xff]
  %v5170 = vld [vmem:[#allocation4 + $0x1a] sm:$0xff]
  %v5171 = vld [vmem:[#allocation4 + $0x2a] sm:$0xff]
  %v5172 = vld [vmem:[#allocation4 + $0x32] sm:$0xff]
  %v5173 = vld [vmem:[#allocation4 + $0x3a] sm:$0xff]
  %v5174 = vld [vmem:[#allocation4 + $0x42] sm:$0xff]
  %v5175 = vpack.c.bf16 %v5168, %v5167
  %v5176 = vpack.c.bf16 %v5170, %v5169
  %v5177 = vpack.c.bf16 %v5172, %v5171
  %v5178 = vpack.c.bf16 %v5174, %v5173
  %s5179 = scalar_lea.vmem %s2, 1504
  %v5180 = vld [vmem:[%s5179] sm:$0xf]
  %v5181 = vld [vmem:[%s5179 + $0x4] sm:$0xf]
  %v5182 = vld [vmem:[#allocation4 + $0x3] sm:$0xff]
  %v5183 = vld [vmem:[#allocation4 + $0xb] sm:$0xff]
  %v5184 = vld [vmem:[#allocation4 + $0x13] sm:$0xff]
  %v5185 = vld [vmem:[#allocation4 + $0x1b] sm:$0xff]
  %v5186 = vld [vmem:[#allocation4 + $0x2b] sm:$0xff]
  %v5187 = vld [vmem:[#allocation4 + $0x33] sm:$0xff]
  %v5188 = vld [vmem:[#allocation4 + $0x3b] sm:$0xff]
  %v5189 = vld [vmem:[#allocation4 + $0x43] sm:$0xff]
  %v5190 = vpack.c.bf16 %v5183, %v5182
  %v5191 = vpack.c.bf16 %v5185, %v5184
  %v5192 = vpack.c.bf16 %v5187, %v5186
  %v5193 = vpack.c.bf16 %v5189, %v5188
  %s5194 = scalar_lea.vmem %s2, 1536
  %v5195 = vld [vmem:[%s5194] sm:$0xf]
  %v5196 = vld [vmem:[%s5194 + $0x4] sm:$0xf]
  %v5199 = vunpack.c.l.b16 %v5195
  %v5200 = vunpack.c.l.b16 %v5196
  %v5201 = vpack.c.b16 %v5200, %v5199
  %v5204 = vsel %vm4063, %v5190, 0
  %v5207 = vsel %vm4063, %v5191, 0
  %v5210 = vsel %vm4063, %v5192, 0
  %v5213 = vsel %vm4063, %v5193, 0
  %5215 = vmatprep.subr.bf16.mxu0 0
  %5216 = vmatpush1.bf16.msra.mxu0 0
  %5217 = vmatprep.subr.bf16.mxu0 0
  %5218 = vmatpush1.bf16.msra.mxu0 0
  %5219 = vmatprep.subr.bf16.mxu0 0
  %5220 = vmatpush1.bf16.msra.mxu0 0
  %5221 = vmatprep.subr.bf16.mxu0 0
  %5222 = vmatpush1.bf16.msra.mxu0 0
  %5223 = vmatprep.subr.bf16.mxu0 0
  %5224 = vmatpush1.bf16.msra.mxu0 0
  %5225 = vmatprep.subr.bf16.mxu0 0
  %5226 = vmatpush1.bf16.msra.mxu0 0
  %5227 = vmatprep.subr.bf16.mxu0 0
  %5228 = vmatpush1.bf16.msra.mxu0 0
  %5229 = vmatprep.subr.bf16.mxu0 0
  %5230 = vmatpush1.bf16.msra.mxu0 %v5201
  %5231 = vmatprep.subr.bf16.mxu0 0
  %5232 = vmatpush2.bf16.msra.mxu0 0
  %5233 = vmatprep.subr.bf16.mxu0 0
  %5234 = vmatpush2.bf16.msra.mxu0 0
  %5235 = vmatprep.subr.bf16.mxu0 0
  %5236 = vmatpush2.bf16.msra.mxu0 0
  %5237 = vmatprep.subr.bf16.mxu0 0
  %5238 = vmatpush2.bf16.msra.mxu0 0
  %5239 = vmatprep.subr.bf16.mxu0 0
  %5240 = vmatpush2.bf16.msra.mxu0 0
  %5241 = vmatprep.subr.bf16.mxu0 0
  %5242 = vmatpush2.bf16.msra.mxu0 0
  %5243 = vmatprep.subr.bf16.mxu0 0
  %5244 = vmatpush2.bf16.msra.mxu0 0
  %5245 = vmatprep.subr.bf16.mxu0 0
  %5246 = vmatpush2.bf16.msra.mxu0 0
  %5247 = vmatprep.mubr.bf16.mxu0 0
  %5248 = vmatmul.mubr.bf16.gmra.mxu0 %v5204
  %v5249 = vpop.f32.mrf.mxu0
  %v5250 = vadd.f32 0.0, %v5249
  %v5251 = vpop.f32.mrf.mxu0
  %v5252 = vpop.f32.mrf.mxu0
  %v5253 = vadd.f32 0.0, %v5252
  %v5254 = vpop.f32.mrf.mxu0
  %5255 = vmatprep.mubr.bf16.mxu0 0
  %5256 = vmatmul.mubr.bf16.gmra.mxu0 %v5207
  %v5257 = vpop.f32.mrf.mxu0
  %v5258 = vadd.f32 0.0, %v5257
  %v5259 = vpop.f32.mrf.mxu0
  %v5260 = vpop.f32.mrf.mxu0
  %v5261 = vadd.f32 0.0, %v5260
  %v5262 = vpop.f32.mrf.mxu0
  %5263 = vmatprep.mubr.bf16.mxu0 0
  %5264 = vmatmul.mubr.bf16.gmra.mxu0 %v5210
  %v5265 = vpop.f32.mrf.mxu0
  %v5266 = vadd.f32 0.0, %v5265
  %v5267 = vpop.f32.mrf.mxu0
  %v5268 = vpop.f32.mrf.mxu0
  %v5269 = vadd.f32 0.0, %v5268
  %v5270 = vpop.f32.mrf.mxu0
  %5271 = vmatprep.mubr.bf16.mxu0 0
  %5272 = vmatmul.mubr.bf16.gmra.mxu0 %v5213
  %v5273 = vpop.f32.mrf.mxu0
  %v5274 = vadd.f32 0.0, %v5273
  %v5275 = vpop.f32.mrf.mxu0
  %v5276 = vpop.f32.mrf.mxu0
  %v5277 = vadd.f32 0.0, %v5276
  %v5278 = vpop.f32.mrf.mxu0
  %5279 = vdwg.mxu0
  %v5280 = vld [vmem:[#allocation4 + $0x4] sm:$0xff]
  %v5281 = vld [vmem:[#allocation4 + $0xc] sm:$0xff]
  %v5282 = vld [vmem:[#allocation4 + $0x14] sm:$0xff]
  %v5283 = vld [vmem:[#allocation4 + $0x1c] sm:$0xff]
  %v5284 = vld [vmem:[#allocation4 + $0x2c] sm:$0xff]
  %v5285 = vld [vmem:[#allocation4 + $0x34] sm:$0xff]
  %v5286 = vld [vmem:[#allocation4 + $0x3c] sm:$0xff]
  %v5287 = vld [vmem:[#allocation4 + $0x44] sm:$0xff]
  %v5288 = vpack.c.bf16 %v5281, %v5280
  %v5289 = vpack.c.bf16 %v5283, %v5282
  %v5290 = vpack.c.bf16 %v5285, %v5284
  %v5291 = vpack.c.bf16 %v5287, %v5286
  %s5292 = scalar_lea.vmem %s2, 1568
  %v5293 = vld [vmem:[%s5292] sm:$0xf]
  %v5294 = vld [vmem:[%s5292 + $0x4] sm:$0xf]
  %v5295 = vld [vmem:[#allocation4 + $0x5] sm:$0xff]
  %v5296 = vld [vmem:[#allocation4 + $0xd] sm:$0xff]
  %v5297 = vld [vmem:[#allocation4 + $0x15] sm:$0xff]
  %v5298 = vld [vmem:[#allocation4 + $0x1d] sm:$0xff]
  %v5299 = vld [vmem:[#allocation4 + $0x2d] sm:$0xff]
  %v5300 = vld [vmem:[#allocation4 + $0x35] sm:$0xff]
  %v5301 = vld [vmem:[#allocation4 + $0x3d] sm:$0xff]
  %v5302 = vld [vmem:[#allocation4 + $0x45] sm:$0xff]
  %v5303 = vpack.c.bf16 %v5296, %v5295
  %v5304 = vpack.c.bf16 %v5298, %v5297
  %v5305 = vpack.c.bf16 %v5300, %v5299
  %v5306 = vpack.c.bf16 %v5302, %v5301
  %s5307 = scalar_lea.vmem %s2, 1600
  %v5308 = vld [vmem:[%s5307] sm:$0xf]
  %v5309 = vld [vmem:[%s5307 + $0x4] sm:$0xf]
  %v5312 = vunpack.c.l.b16 %v5308
  %v5313 = vunpack.c.l.b16 %v5309
  %v5314 = vpack.c.b16 %v5313, %v5312
  %v5317 = vsel %vm4063, %v5303, 0
  %v5320 = vsel %vm4063, %v5304, 0
  %v5323 = vsel %vm4063, %v5305, 0
  %v5326 = vsel %vm4063, %v5306, 0
  %5328 = vmatprep.subr.bf16.mxu0 0
  %5329 = vmatpush1.bf16.msra.mxu0 0
  %5330 = vmatprep.subr.bf16.mxu0 0
  %5331 = vmatpush1.bf16.msra.mxu0 0
  %5332 = vmatprep.subr.bf16.mxu0 0
  %5333 = vmatpush1.bf16.msra.mxu0 0
  %5334 = vmatprep.subr.bf16.mxu0 0
  %5335 = vmatpush1.bf16.msra.mxu0 0
  %5336 = vmatprep.subr.bf16.mxu0 0
  %5337 = vmatpush1.bf16.msra.mxu0 0
  %5338 = vmatprep.subr.bf16.mxu0 0
  %5339 = vmatpush1.bf16.msra.mxu0 0
  %5340 = vmatprep.subr.bf16.mxu0 0
  %5341 = vmatpush1.bf16.msra.mxu0 0
  %5342 = vmatprep.subr.bf16.mxu0 0
  %5343 = vmatpush1.bf16.msra.mxu0 %v5314
  %5344 = vmatprep.subr.bf16.mxu0 0
  %5345 = vmatpush2.bf16.msra.mxu0 0
  %5346 = vmatprep.subr.bf16.mxu0 0
  %5347 = vmatpush2.bf16.msra.mxu0 0
  %5348 = vmatprep.subr.bf16.mxu0 0
  %5349 = vmatpush2.bf16.msra.mxu0 0
  %5350 = vmatprep.subr.bf16.mxu0 0
  %5351 = vmatpush2.bf16.msra.mxu0 0
  %5352 = vmatprep.subr.bf16.mxu0 0
  %5353 = vmatpush2.bf16.msra.mxu0 0
  %5354 = vmatprep.subr.bf16.mxu0 0
  %5355 = vmatpush2.bf16.msra.mxu0 0
  %5356 = vmatprep.subr.bf16.mxu0 0
  %5357 = vmatpush2.bf16.msra.mxu0 0
  %5358 = vmatprep.subr.bf16.mxu0 0
  %5359 = vmatpush2.bf16.msra.mxu0 0
  %5360 = vmatprep.mubr.bf16.mxu0 0
  %5361 = vmatmul.mubr.bf16.gmra.mxu0 %v5317
  %v5362 = vpop.f32.mrf.mxu0
  %v5363 = vadd.f32 0.0, %v5362
  %v5364 = vpop.f32.mrf.mxu0
  %v5365 = vpop.f32.mrf.mxu0
  %v5366 = vadd.f32 0.0, %v5365
  %v5367 = vpop.f32.mrf.mxu0
  %5368 = vmatprep.mubr.bf16.mxu0 0
  %5369 = vmatmul.mubr.bf16.gmra.mxu0 %v5320
  %v5370 = vpop.f32.mrf.mxu0
  %v5371 = vadd.f32 0.0, %v5370
  %v5372 = vpop.f32.mrf.mxu0
  %v5373 = vpop.f32.mrf.mxu0
  %v5374 = vadd.f32 0.0, %v5373
  %v5375 = vpop.f32.mrf.mxu0
  %5376 = vmatprep.mubr.bf16.mxu0 0
  %5377 = vmatmul.mubr.bf16.gmra.mxu0 %v5323
  %v5378 = vpop.f32.mrf.mxu0
  %v5379 = vadd.f32 0.0, %v5378
  %v5380 = vpop.f32.mrf.mxu0
  %v5381 = vpop.f32.mrf.mxu0
  %v5382 = vadd.f32 0.0, %v5381
  %v5383 = vpop.f32.mrf.mxu0
  %5384 = vmatprep.mubr.bf16.mxu0 0
  %5385 = vmatmul.mubr.bf16.gmra.mxu0 %v5326
  %v5386 = vpop.f32.mrf.mxu0
  %v5387 = vadd.f32 0.0, %v5386
  %v5388 = vpop.f32.mrf.mxu0
  %v5389 = vpop.f32.mrf.mxu0
  %v5390 = vadd.f32 0.0, %v5389
  %v5391 = vpop.f32.mrf.mxu0
  %5392 = vdwg.mxu0
  %v5393 = vld [vmem:[#allocation4 + $0x6] sm:$0xff]
  %v5394 = vld [vmem:[#allocation4 + $0xe] sm:$0xff]
  %v5395 = vld [vmem:[#allocation4 + $0x16] sm:$0xff]
  %v5396 = vld [vmem:[#allocation4 + $0x1e] sm:$0xff]
  %v5397 = vld [vmem:[#allocation4 + $0x2e] sm:$0xff]
  %v5398 = vld [vmem:[#allocation4 + $0x36] sm:$0xff]
  %v5399 = vld [vmem:[#allocation4 + $0x3e] sm:$0xff]
  %v5400 = vld [vmem:[#allocation4 + $0x46] sm:$0xff]
  %v5401 = vpack.c.bf16 %v5394, %v5393
  %v5402 = vpack.c.bf16 %v5396, %v5395
  %v5403 = vpack.c.bf16 %v5398, %v5397
  %v5404 = vpack.c.bf16 %v5400, %v5399
  %s5405 = scalar_lea.vmem %s2, 1632
  %v5406 = vld [vmem:[%s5405] sm:$0xf]
  %v5407 = vld [vmem:[%s5405 + $0x4] sm:$0xf]
  %v5408 = vld [vmem:[#allocation4 + $0x7] sm:$0xff]
  %v5409 = vld [vmem:[#allocation4 + $0xf] sm:$0xff]
  %v5410 = vld [vmem:[#allocation4 + $0x17] sm:$0xff]
  %v5411 = vld [vmem:[#allocation4 + $0x1f] sm:$0xff]
  %v5412 = vld [vmem:[#allocation4 + $0x2f] sm:$0xff]
  %v5413 = vld [vmem:[#allocation4 + $0x37] sm:$0xff]
  %v5414 = vld [vmem:[#allocation4 + $0x3f] sm:$0xff]
  %v5415 = vld [vmem:[#allocation4 + $0x47] sm:$0xff]
  %v5416 = vpack.c.bf16 %v5409, %v5408
  %v5417 = vpack.c.bf16 %v5411, %v5410
  %v5418 = vpack.c.bf16 %v5413, %v5412
  %v5419 = vpack.c.bf16 %v5415, %v5414
  %s5420 = scalar_lea.vmem %s2, 1664
  %v5421 = vld [vmem:[%s5420] sm:$0xf]
  %v5422 = vld [vmem:[%s5420 + $0x4] sm:$0xf]
  %v5425 = vunpack.c.l.b16 %v5421
  %v5426 = vunpack.c.l.b16 %v5422
  %v5427 = vpack.c.b16 %v5426, %v5425
  %v5430 = vsel %vm4063, %v5416, 0
  %v5433 = vsel %vm4063, %v5417, 0
  %v5436 = vsel %vm4063, %v5418, 0
  %v5439 = vsel %vm4063, %v5419, 0
  %5441 = vmatprep.subr.bf16.mxu0 0
  %5442 = vmatpush1.bf16.msra.mxu0 0
  %5443 = vmatprep.subr.bf16.mxu0 0
  %5444 = vmatpush1.bf16.msra.mxu0 0
  %5445 = vmatprep.subr.bf16.mxu0 0
  %5446 = vmatpush1.bf16.msra.mxu0 0
  %5447 = vmatprep.subr.bf16.mxu0 0
  %5448 = vmatpush1.bf16.msra.mxu0 0
  %5449 = vmatprep.subr.bf16.mxu0 0
  %5450 = vmatpush1.bf16.msra.mxu0 0
  %5451 = vmatprep.subr.bf16.mxu0 0
  %5452 = vmatpush1.bf16.msra.mxu0 0
  %5453 = vmatprep.subr.bf16.mxu0 0
  %5454 = vmatpush1.bf16.msra.mxu0 0
  %5455 = vmatprep.subr.bf16.mxu0 0
  %5456 = vmatpush1.bf16.msra.mxu0 %v5427
  %5457 = vmatprep.subr.bf16.mxu0 0
  %5458 = vmatpush2.bf16.msra.mxu0 0
  %5459 = vmatprep.subr.bf16.mxu0 0
  %5460 = vmatpush2.bf16.msra.mxu0 0
  %5461 = vmatprep.subr.bf16.mxu0 0
  %5462 = vmatpush2.bf16.msra.mxu0 0
  %5463 = vmatprep.subr.bf16.mxu0 0
  %5464 = vmatpush2.bf16.msra.mxu0 0
  %5465 = vmatprep.subr.bf16.mxu0 0
  %5466 = vmatpush2.bf16.msra.mxu0 0
  %5467 = vmatprep.subr.bf16.mxu0 0
  %5468 = vmatpush2.bf16.msra.mxu0 0
  %5469 = vmatprep.subr.bf16.mxu0 0
  %5470 = vmatpush2.bf16.msra.mxu0 0
  %5471 = vmatprep.subr.bf16.mxu0 0
  %5472 = vmatpush2.bf16.msra.mxu0 0
  %5473 = vmatprep.mubr.bf16.mxu0 0
  %5474 = vmatmul.mubr.bf16.gmra.mxu0 %v5430
  %v5475 = vpop.f32.mrf.mxu0
  %v5476 = vadd.f32 0.0, %v5475
  %v5477 = vpop.f32.mrf.mxu0
  %v5478 = vpop.f32.mrf.mxu0
  %v5479 = vadd.f32 0.0, %v5478
  %v5480 = vpop.f32.mrf.mxu0
  %5481 = vmatprep.mubr.bf16.mxu0 0
  %5482 = vmatmul.mubr.bf16.gmra.mxu0 %v5433
  %v5483 = vpop.f32.mrf.mxu0
  %v5484 = vadd.f32 0.0, %v5483
  %v5485 = vpop.f32.mrf.mxu0
  %v5486 = vpop.f32.mrf.mxu0
  %v5487 = vadd.f32 0.0, %v5486
  %v5488 = vpop.f32.mrf.mxu0
  %5489 = vmatprep.mubr.bf16.mxu0 0
  %5490 = vmatmul.mubr.bf16.gmra.mxu0 %v5436
  %v5491 = vpop.f32.mrf.mxu0
  %v5492 = vadd.f32 0.0, %v5491
  %v5493 = vpop.f32.mrf.mxu0
  %v5494 = vpop.f32.mrf.mxu0
  %v5495 = vadd.f32 0.0, %v5494
  %v5496 = vpop.f32.mrf.mxu0
  %5497 = vmatprep.mubr.bf16.mxu0 0
  %5498 = vmatmul.mubr.bf16.gmra.mxu0 %v5439
  %v5499 = vpop.f32.mrf.mxu0
  %v5500 = vadd.f32 0.0, %v5499
  %v5501 = vpop.f32.mrf.mxu0
  %v5502 = vpop.f32.mrf.mxu0
  %v5503 = vadd.f32 0.0, %v5502
  %v5504 = vpop.f32.mrf.mxu0
  %5505 = vdwg.mxu0
  %v5506 = vld [vmem:[#allocation4 + $0x8] sm:$0xff]
  %v5507 = vld [vmem:[#allocation4 + $0x10] sm:$0xff]
  %v5508 = vld [vmem:[#allocation4 + $0x18] sm:$0xff]
  %v5509 = vld [vmem:[#allocation4 + $0x20] sm:$0xff]
  %v5510 = vld [vmem:[#allocation4 + $0x30] sm:$0xff]
  %v5511 = vld [vmem:[#allocation4 + $0x38] sm:$0xff]
  %v5512 = vld [vmem:[#allocation4 + $0x40] sm:$0xff]
  %v5513 = vld [vmem:[#allocation4 + $0x48] sm:$0xff]
  %v5514 = vpack.c.bf16 %v5507, %v5506
  %v5515 = vpack.c.bf16 %v5509, %v5508
  %v5516 = vpack.c.bf16 %v5511, %v5510
  %v5517 = vpack.c.bf16 %v5513, %v5512
  %s5518 = scalar_lea.vmem %s2, 1696
  %v5519 = vld [vmem:[%s5518] sm:$0xf]
  %v5520 = vld [vmem:[%s5518 + $0x4] sm:$0xf]
  %v5523 = vunpack.c.l.b16 %v5519
  %v5524 = vunpack.c.l.b16 %v5520
  %v5525 = vpack.c.b16 %v5524, %v5523
  %v5528 = vsel %vm4063, %v5514, 0
  %v5531 = vsel %vm4063, %v5515, 0
  %v5534 = vsel %vm4063, %v5516, 0
  %v5537 = vsel %vm4063, %v5517, 0
  %5539 = vmatprep.subr.bf16.mxu0 0
  %5540 = vmatpush1.bf16.msra.mxu0 0
  %5541 = vmatprep.subr.bf16.mxu0 0
  %5542 = vmatpush1.bf16.msra.mxu0 0
  %5543 = vmatprep.subr.bf16.mxu0 0
  %5544 = vmatpush1.bf16.msra.mxu0 0
  %5545 = vmatprep.subr.bf16.mxu0 0
  %5546 = vmatpush1.bf16.msra.mxu0 0
  %5547 = vmatprep.subr.bf16.mxu0 0
  %5548 = vmatpush1.bf16.msra.mxu0 0
  %5549 = vmatprep.subr.bf16.mxu0 0
  %5550 = vmatpush1.bf16.msra.mxu0 0
  %5551 = vmatprep.subr.bf16.mxu0 0
  %5552 = vmatpush1.bf16.msra.mxu0 0
  %5553 = vmatprep.subr.bf16.mxu0 0
  %5554 = vmatpush1.bf16.msra.mxu0 %v5525
  %5555 = vmatprep.subr.bf16.mxu0 0
  %5556 = vmatpush2.bf16.msra.mxu0 0
  %5557 = vmatprep.subr.bf16.mxu0 0
  %5558 = vmatpush2.bf16.msra.mxu0 0
  %5559 = vmatprep.subr.bf16.mxu0 0
  %5560 = vmatpush2.bf16.msra.mxu0 0
  %5561 = vmatprep.subr.bf16.mxu0 0
  %5562 = vmatpush2.bf16.msra.mxu0 0
  %5563 = vmatprep.subr.bf16.mxu0 0
  %5564 = vmatpush2.bf16.msra.mxu0 0
  %5565 = vmatprep.subr.bf16.mxu0 0
  %5566 = vmatpush2.bf16.msra.mxu0 0
  %5567 = vmatprep.subr.bf16.mxu0 0
  %5568 = vmatpush2.bf16.msra.mxu0 0
  %5569 = vmatprep.subr.bf16.mxu0 0
  %5570 = vmatpush2.bf16.msra.mxu0 0
  %5571 = vmatprep.mubr.bf16.mxu0 0
  %5572 = vmatmul.mubr.bf16.gmra.mxu0 %v5528
  %v5573 = vpop.f32.mrf.mxu0
  %v5574 = vadd.f32 0.0, %v5573
  %v5575 = vpop.f32.mrf.mxu0
  %v5576 = vpop.f32.mrf.mxu0
  %v5577 = vadd.f32 0.0, %v5576
  %v5578 = vpop.f32.mrf.mxu0
  %5579 = vmatprep.mubr.bf16.mxu0 0
  %5580 = vmatmul.mubr.bf16.gmra.mxu0 %v5531
  %v5581 = vpop.f32.mrf.mxu0
  %v5582 = vadd.f32 0.0, %v5581
  %v5583 = vpop.f32.mrf.mxu0
  %v5584 = vpop.f32.mrf.mxu0
  %v5585 = vadd.f32 0.0, %v5584
  %v5586 = vpop.f32.mrf.mxu0
  %5587 = vmatprep.mubr.bf16.mxu0 0
  %5588 = vmatmul.mubr.bf16.gmra.mxu0 %v5534
  %v5589 = vpop.f32.mrf.mxu0
  %v5590 = vadd.f32 0.0, %v5589
  %v5591 = vpop.f32.mrf.mxu0
  %v5592 = vpop.f32.mrf.mxu0
  %v5593 = vadd.f32 0.0, %v5592
  %v5594 = vpop.f32.mrf.mxu0
  %5595 = vmatprep.mubr.bf16.mxu0 0
  %5596 = vmatmul.mubr.bf16.gmra.mxu0 %v5537
  %v5597 = vpop.f32.mrf.mxu0
  %v5598 = vadd.f32 0.0, %v5597
  %v5599 = vpop.f32.mrf.mxu0
  %v5600 = vpop.f32.mrf.mxu0
  %v5601 = vadd.f32 0.0, %v5600
  %v5602 = vpop.f32.mrf.mxu0
  %5603 = vdwg.mxu0
  %v5606 = vunpack.c.l.b16 %v5067
  %v5607 = vunpack.c.l.b16 %v5068
  %v5608 = vpack.c.b16 %v5607, %v5606
  %v5611 = vsel %vm4063, %v5062, 0
  %v5614 = vsel %vm4063, %v5063, 0
  %v5617 = vsel %vm4063, %v5064, 0
  %v5620 = vsel %vm4063, %v5065, 0
  %5622 = vmatprep.subr.bf16.mxu0 0
  %5623 = vmatpush1.bf16.msra.mxu0 0
  %5624 = vmatprep.subr.bf16.mxu0 0
  %5625 = vmatpush1.bf16.msra.mxu0 0
  %5626 = vmatprep.subr.bf16.mxu0 0
  %5627 = vmatpush1.bf16.msra.mxu0 0
  %5628 = vmatprep.subr.bf16.mxu0 0
  %5629 = vmatpush1.bf16.msra.mxu0 0
  %5630 = vmatprep.subr.bf16.mxu0 0
  %5631 = vmatpush1.bf16.msra.mxu0 0
  %5632 = vmatprep.subr.bf16.mxu0 0
  %5633 = vmatpush1.bf16.msra.mxu0 0
  %5634 = vmatprep.subr.bf16.mxu0 0
  %5635 = vmatpush1.bf16.msra.mxu0 0
  %5636 = vmatprep.subr.bf16.mxu0 0
  %5637 = vmatpush1.bf16.msra.mxu0 %v5608
  %5638 = vmatprep.subr.bf16.mxu0 0
  %5639 = vmatpush2.bf16.msra.mxu0 0
  %5640 = vmatprep.subr.bf16.mxu0 0
  %5641 = vmatpush2.bf16.msra.mxu0 0
  %5642 = vmatprep.subr.bf16.mxu0 0
  %5643 = vmatpush2.bf16.msra.mxu0 0
  %5644 = vmatprep.subr.bf16.mxu0 0
  %5645 = vmatpush2.bf16.msra.mxu0 0
  %5646 = vmatprep.subr.bf16.mxu0 0
  %5647 = vmatpush2.bf16.msra.mxu0 0
  %5648 = vmatprep.subr.bf16.mxu0 0
  %5649 = vmatpush2.bf16.msra.mxu0 0
  %5650 = vmatprep.subr.bf16.mxu0 0
  %5651 = vmatpush2.bf16.msra.mxu0 0
  %5652 = vmatprep.subr.bf16.mxu0 0
  %5653 = vmatpush2.bf16.msra.mxu0 0
  %5654 = vmatprep.mubr.bf16.mxu0 0
  %5655 = vmatmul.mubr.bf16.gmra.mxu0 %v5611
  %v5656 = vpop.f32.mrf.mxu0
  %v5657 = vadd.f32 %v5137, %v5656
  %v5658 = vpop.f32.mrf.mxu0
  %v5659 = vpop.f32.mrf.mxu0
  %v5660 = vadd.f32 %v5140, %v5659
  %v5661 = vpop.f32.mrf.mxu0
  %5662 = vmatprep.mubr.bf16.mxu0 0
  %5663 = vmatmul.mubr.bf16.gmra.mxu0 %v5614
  %v5664 = vpop.f32.mrf.mxu0
  %v5665 = vadd.f32 %v5145, %v5664
  %v5666 = vpop.f32.mrf.mxu0
  %v5667 = vpop.f32.mrf.mxu0
  %v5668 = vadd.f32 %v5148, %v5667
  %v5669 = vpop.f32.mrf.mxu0
  %5670 = vmatprep.mubr.bf16.mxu0 0
  %5671 = vmatmul.mubr.bf16.gmra.mxu0 %v5617
  %v5672 = vpop.f32.mrf.mxu0
  %v5673 = vadd.f32 %v5153, %v5672
  %v5674 = vpop.f32.mrf.mxu0
  %v5675 = vpop.f32.mrf.mxu0
  %v5676 = vadd.f32 %v5156, %v5675
  %v5677 = vpop.f32.mrf.mxu0
  %5678 = vmatprep.mubr.bf16.mxu0 0
  %5679 = vmatmul.mubr.bf16.gmra.mxu0 %v5620
  %v5680 = vpop.f32.mrf.mxu0
  %v5681 = vadd.f32 %v5161, %v5680
  %v5682 = vpop.f32.mrf.mxu0
  %v5683 = vpop.f32.mrf.mxu0
  %v5684 = vadd.f32 %v5164, %v5683
  %v5685 = vpop.f32.mrf.mxu0
  %5686 = vdwg.mxu0
  %v5689 = vunpack.c.l.b16 %v5180
  %v5690 = vunpack.c.l.b16 %v5181
  %v5691 = vpack.c.b16 %v5690, %v5689
  %v5694 = vsel %vm4063, %v5175, 0
  %v5697 = vsel %vm4063, %v5176, 0
  %v5700 = vsel %vm4063, %v5177, 0
  %v5703 = vsel %vm4063, %v5178, 0
  %5705 = vmatprep.subr.bf16.mxu0 0
  %5706 = vmatpush1.bf16.msra.mxu0 0
  %5707 = vmatprep.subr.bf16.mxu0 0
  %5708 = vmatpush1.bf16.msra.mxu0 0
  %5709 = vmatprep.subr.bf16.mxu0 0
  %5710 = vmatpush1.bf16.msra.mxu0 0
  %5711 = vmatprep.subr.bf16.mxu0 0
  %5712 = vmatpush1.bf16.msra.mxu0 0
  %5713 = vmatprep.subr.bf16.mxu0 0
  %5714 = vmatpush1.bf16.msra.mxu0 0
  %5715 = vmatprep.subr.bf16.mxu0 0
  %5716 = vmatpush1.bf16.msra.mxu0 0
  %5717 = vmatprep.subr.bf16.mxu0 0
  %5718 = vmatpush1.bf16.msra.mxu0 0
  %5719 = vmatprep.subr.bf16.mxu0 0
  %5720 = vmatpush1.bf16.msra.mxu0 %v5691
  %5721 = vmatprep.subr.bf16.mxu0 0
  %5722 = vmatpush2.bf16.msra.mxu0 0
  %5723 = vmatprep.subr.bf16.mxu0 0
  %5724 = vmatpush2.bf16.msra.mxu0 0
  %5725 = vmatprep.subr.bf16.mxu0 0
  %5726 = vmatpush2.bf16.msra.mxu0 0
  %5727 = vmatprep.subr.bf16.mxu0 0
  %5728 = vmatpush2.bf16.msra.mxu0 0
  %5729 = vmatprep.subr.bf16.mxu0 0
  %5730 = vmatpush2.bf16.msra.mxu0 0
  %5731 = vmatprep.subr.bf16.mxu0 0
  %5732 = vmatpush2.bf16.msra.mxu0 0
  %5733 = vmatprep.subr.bf16.mxu0 0
  %5734 = vmatpush2.bf16.msra.mxu0 0
  %5735 = vmatprep.subr.bf16.mxu0 0
  %5736 = vmatpush2.bf16.msra.mxu0 0
  %5737 = vmatprep.mubr.bf16.mxu0 0
  %5738 = vmatmul.mubr.bf16.gmra.mxu0 %v5694
  %v5739 = vpop.f32.mrf.mxu0
  %v5740 = vadd.f32 %v5250, %v5739
  %v5741 = vpop.f32.mrf.mxu0
  %v5742 = vpop.f32.mrf.mxu0
  %v5743 = vadd.f32 %v5253, %v5742
  %v5744 = vpop.f32.mrf.mxu0
  %5745 = vmatprep.mubr.bf16.mxu0 0
  %5746 = vmatmul.mubr.bf16.gmra.mxu0 %v5697
  %v5747 = vpop.f32.mrf.mxu0
  %v5748 = vadd.f32 %v5258, %v5747
  %v5749 = vpop.f32.mrf.mxu0
  %v5750 = vpop.f32.mrf.mxu0
  %v5751 = vadd.f32 %v5261, %v5750
  %v5752 = vpop.f32.mrf.mxu0
  %5753 = vmatprep.mubr.bf16.mxu0 0
  %5754 = vmatmul.mubr.bf16.gmra.mxu0 %v5700
  %v5755 = vpop.f32.mrf.mxu0
  %v5756 = vadd.f32 %v5266, %v5755
  %v5757 = vpop.f32.mrf.mxu0
  %v5758 = vpop.f32.mrf.mxu0
  %v5759 = vadd.f32 %v5269, %v5758
  %v5760 = vpop.f32.mrf.mxu0
  %5761 = vmatprep.mubr.bf16.mxu0 0
  %5762 = vmatmul.mubr.bf16.gmra.mxu0 %v5703
  %v5763 = vpop.f32.mrf.mxu0
  %v5764 = vadd.f32 %v5274, %v5763
  %v5765 = vpop.f32.mrf.mxu0
  %v5766 = vpop.f32.mrf.mxu0
  %v5767 = vadd.f32 %v5277, %v5766
  %v5768 = vpop.f32.mrf.mxu0
  %5769 = vdwg.mxu0
  %v5772 = vunpack.c.l.b16 %v5293
  %v5773 = vunpack.c.l.b16 %v5294
  %v5774 = vpack.c.b16 %v5773, %v5772
  %v5777 = vsel %vm4063, %v5288, 0
  %v5780 = vsel %vm4063, %v5289, 0
  %v5783 = vsel %vm4063, %v5290, 0
  %v5786 = vsel %vm4063, %v5291, 0
  %5788 = vmatprep.subr.bf16.mxu0 0
  %5789 = vmatpush1.bf16.msra.mxu0 0
  %5790 = vmatprep.subr.bf16.mxu0 0
  %5791 = vmatpush1.bf16.msra.mxu0 0
  %5792 = vmatprep.subr.bf16.mxu0 0
  %5793 = vmatpush1.bf16.msra.mxu0 0
  %5794 = vmatprep.subr.bf16.mxu0 0
  %5795 = vmatpush1.bf16.msra.mxu0 0
  %5796 = vmatprep.subr.bf16.mxu0 0
  %5797 = vmatpush1.bf16.msra.mxu0 0
  %5798 = vmatprep.subr.bf16.mxu0 0
  %5799 = vmatpush1.bf16.msra.mxu0 0
  %5800 = vmatprep.subr.bf16.mxu0 0
  %5801 = vmatpush1.bf16.msra.mxu0 0
  %5802 = vmatprep.subr.bf16.mxu0 0
  %5803 = vmatpush1.bf16.msra.mxu0 %v5774
  %5804 = vmatprep.subr.bf16.mxu0 0
  %5805 = vmatpush2.bf16.msra.mxu0 0
  %5806 = vmatprep.subr.bf16.mxu0 0
  %5807 = vmatpush2.bf16.msra.mxu0 0
  %5808 = vmatprep.subr.bf16.mxu0 0
  %5809 = vmatpush2.bf16.msra.mxu0 0
  %5810 = vmatprep.subr.bf16.mxu0 0
  %5811 = vmatpush2.bf16.msra.mxu0 0
  %5812 = vmatprep.subr.bf16.mxu0 0
  %5813 = vmatpush2.bf16.msra.mxu0 0
  %5814 = vmatprep.subr.bf16.mxu0 0
  %5815 = vmatpush2.bf16.msra.mxu0 0
  %5816 = vmatprep.subr.bf16.mxu0 0
  %5817 = vmatpush2.bf16.msra.mxu0 0
  %5818 = vmatprep.subr.bf16.mxu0 0
  %5819 = vmatpush2.bf16.msra.mxu0 0
  %5820 = vmatprep.mubr.bf16.mxu0 0
  %5821 = vmatmul.mubr.bf16.gmra.mxu0 %v5777
  %v5822 = vpop.f32.mrf.mxu0
  %v5823 = vadd.f32 %v5363, %v5822
  %v5824 = vpop.f32.mrf.mxu0
  %v5825 = vpop.f32.mrf.mxu0
  %v5826 = vadd.f32 %v5366, %v5825
  %v5827 = vpop.f32.mrf.mxu0
  %5828 = vmatprep.mubr.bf16.mxu0 0
  %5829 = vmatmul.mubr.bf16.gmra.mxu0 %v5780
  %v5830 = vpop.f32.mrf.mxu0
  %v5831 = vadd.f32 %v5371, %v5830
  %v5832 = vpop.f32.mrf.mxu0
  %v5833 = vpop.f32.mrf.mxu0
  %v5834 = vadd.f32 %v5374, %v5833
  %v5835 = vpop.f32.mrf.mxu0
  %5836 = vmatprep.mubr.bf16.mxu0 0
  %5837 = vmatmul.mubr.bf16.gmra.mxu0 %v5783
  %v5838 = vpop.f32.mrf.mxu0
  %v5839 = vadd.f32 %v5379, %v5838
  %v5840 = vpop.f32.mrf.mxu0
  %v5841 = vpop.f32.mrf.mxu0
  %v5842 = vadd.f32 %v5382, %v5841
  %v5843 = vpop.f32.mrf.mxu0
  %5844 = vmatprep.mubr.bf16.mxu0 0
  %5845 = vmatmul.mubr.bf16.gmra.mxu0 %v5786
  %v5846 = vpop.f32.mrf.mxu0
  %v5847 = vadd.f32 %v5387, %v5846
  %v5848 = vpop.f32.mrf.mxu0
  %v5849 = vpop.f32.mrf.mxu0
  %v5850 = vadd.f32 %v5390, %v5849
  %v5851 = vpop.f32.mrf.mxu0
  %5852 = vdwg.mxu0
  %v5855 = vunpack.c.l.b16 %v5406
  %v5856 = vunpack.c.l.b16 %v5407
  %v5857 = vpack.c.b16 %v5856, %v5855
  %v5860 = vsel %vm4063, %v5401, 0
  %v5863 = vsel %vm4063, %v5402, 0
  %v5866 = vsel %vm4063, %v5403, 0
  %v5869 = vsel %vm4063, %v5404, 0
  %5871 = vmatprep.subr.bf16.mxu0 0
  %5872 = vmatpush1.bf16.msra.mxu0 0
  %5873 = vmatprep.subr.bf16.mxu0 0
  %5874 = vmatpush1.bf16.msra.mxu0 0
  %5875 = vmatprep.subr.bf16.mxu0 0
  %5876 = vmatpush1.bf16.msra.mxu0 0
  %5877 = vmatprep.subr.bf16.mxu0 0
  %5878 = vmatpush1.bf16.msra.mxu0 0
  %5879 = vmatprep.subr.bf16.mxu0 0
  %5880 = vmatpush1.bf16.msra.mxu0 0
  %5881 = vmatprep.subr.bf16.mxu0 0
  %5882 = vmatpush1.bf16.msra.mxu0 0
  %5883 = vmatprep.subr.bf16.mxu0 0
  %5884 = vmatpush1.bf16.msra.mxu0 0
  %5885 = vmatprep.subr.bf16.mxu0 0
  %5886 = vmatpush1.bf16.msra.mxu0 %v5857
  %5887 = vmatprep.subr.bf16.mxu0 0
  %5888 = vmatpush2.bf16.msra.mxu0 0
  %5889 = vmatprep.subr.bf16.mxu0 0
  %5890 = vmatpush2.bf16.msra.mxu0 0
  %5891 = vmatprep.subr.bf16.mxu0 0
  %5892 = vmatpush2.bf16.msra.mxu0 0
  %5893 = vmatprep.subr.bf16.mxu0 0
  %5894 = vmatpush2.bf16.msra.mxu0 0
  %5895 = vmatprep.subr.bf16.mxu0 0
  %5896 = vmatpush2.bf16.msra.mxu0 0
  %5897 = vmatprep.subr.bf16.mxu0 0
  %5898 = vmatpush2.bf16.msra.mxu0 0
  %5899 = vmatprep.subr.bf16.mxu0 0
  %5900 = vmatpush2.bf16.msra.mxu0 0
  %5901 = vmatprep.subr.bf16.mxu0 0
  %5902 = vmatpush2.bf16.msra.mxu0 0
  %5903 = vmatprep.mubr.bf16.mxu0 0
  %5904 = vmatmul.mubr.bf16.gmra.mxu0 %v5860
  %v5905 = vpop.f32.mrf.mxu0
  %v5906 = vadd.f32 %v5476, %v5905
  %v5907 = vpop.f32.mrf.mxu0
  %v5908 = vpop.f32.mrf.mxu0
  %v5909 = vadd.f32 %v5479, %v5908
  %v5910 = vpop.f32.mrf.mxu0
  %5911 = vmatprep.mubr.bf16.mxu0 0
  %5912 = vmatmul.mubr.bf16.gmra.mxu0 %v5863
  %v5913 = vpop.f32.mrf.mxu0
  %v5914 = vadd.f32 %v5484, %v5913
  %v5915 = vpop.f32.mrf.mxu0
  %v5916 = vpop.f32.mrf.mxu0
  %v5917 = vadd.f32 %v5487, %v5916
  %v5918 = vpop.f32.mrf.mxu0
  %5919 = vmatprep.mubr.bf16.mxu0 0
  %5920 = vmatmul.mubr.bf16.gmra.mxu0 %v5866
  %v5921 = vpop.f32.mrf.mxu0
  %v5922 = vadd.f32 %v5492, %v5921
  %v5923 = vpop.f32.mrf.mxu0
  %v5924 = vpop.f32.mrf.mxu0
  %v5925 = vadd.f32 %v5495, %v5924
  %v5926 = vpop.f32.mrf.mxu0
  %5927 = vmatprep.mubr.bf16.mxu0 0
  %5928 = vmatmul.mubr.bf16.gmra.mxu0 %v5869
  %v5929 = vpop.f32.mrf.mxu0
  %v5930 = vadd.f32 %v5500, %v5929
  %v5931 = vpop.f32.mrf.mxu0
  %v5932 = vpop.f32.mrf.mxu0
  %v5933 = vadd.f32 %v5503, %v5932
  %v5934 = vpop.f32.mrf.mxu0
  %5935 = vdwg.mxu0
  %v5936 = vadd.f32 %v5657, %v5740
  %v5937 = vadd.f32 %v5660, %v5743
  %v5938 = vadd.f32 %v5665, %v5748
  %v5939 = vadd.f32 %v5668, %v5751
  %v5940 = vadd.f32 %v5673, %v5756
  %v5941 = vadd.f32 %v5676, %v5759
  %v5942 = vadd.f32 %v5681, %v5764
  %v5943 = vadd.f32 %v5684, %v5767
  %v5944 = vadd.f32 %v5823, %v5906
  %v5945 = vadd.f32 %v5826, %v5909
  %v5946 = vadd.f32 %v5831, %v5914
  %v5947 = vadd.f32 %v5834, %v5917
  %v5948 = vadd.f32 %v5839, %v5922
  %v5949 = vadd.f32 %v5842, %v5925
  %v5950 = vadd.f32 %v5847, %v5930
  %v5951 = vadd.f32 %v5850, %v5933
  %v5952 = vadd.f32 %v5936, %v5944
  %v5953 = vadd.f32 %v5937, %v5945
  %v5954 = vadd.f32 %v5938, %v5946
  %v5955 = vadd.f32 %v5939, %v5947
  %v5956 = vadd.f32 %v5940, %v5948
  %v5957 = vadd.f32 %v5941, %v5949
  %v5958 = vadd.f32 %v5942, %v5950
  %v5959 = vadd.f32 %v5943, %v5951
  %v5960 = vadd.f32 %v5952, %v5574
  %v5961 = vadd.f32 %v5953, %v5577
  %v5962 = vadd.f32 %v5954, %v5582
  %v5963 = vadd.f32 %v5955, %v5585
  %v5964 = vadd.f32 %v5956, %v5590
  %v5965 = vadd.f32 %v5957, %v5593
  %v5966 = vadd.f32 %v5958, %v5598
  %v5967 = vadd.f32 %v5959, %v5601
  %s5968 = scalar_lea.vmem %s3, 5
  %v5969 = vld [vmem:[%s5968] sm:$0x1]
  %v5971 = vlaneseq
  %v5972 = vshrl.u32 %v5971, 7
  %v5973 = vsub.s32 0, %v5972
  %v5974 = vrot.slane %v5969, %v5973
  %v5976 = vadd.f32 %v5960, %v5974
  %v5977 = vadd.f32 %v5961, %v5974
  %v5978 = vadd.f32 %v5962, %v5974
  %v5979 = vadd.f32 %v5963, %v5974
  %v5980 = vadd.f32 %v5964, %v5974
  %v5981 = vadd.f32 %v5965, %v5974
  %v5982 = vadd.f32 %v5966, %v5974
  %v5983 = vadd.f32 %v5967, %v5974
  %v5984 = vsel %vm4063, %v5976, 0.0
  %v5985 = vsel %vm4063, %v5977, 0.0
  %v5986 = vadd.f32 %v5984, %v5985
  %v5987 = vsel %vm4063, %v5978, 0.0
  %v5988 = vadd.f32 %v5986, %v5987
  %v5989 = vsel %vm4063, %v5979, 0.0
  %v5990 = vadd.f32 %v5988, %v5989
  %v5991 = vrot.slane %v5990, 4
  %v5992 = vadd.f32 %v5990, %v5991
  %v5993 = vrot.slane %v5992, 2
  %v5994 = vadd.f32 %v5992, %v5993
  %v5995 = vrot.slane %v5994, 1
  %v5996 = vadd.f32 %v5994, %v5995
  %v5997 = vsel %vm4063, %v5980, 0.0
  %v5998 = vsel %vm4063, %v5981, 0.0
  %v5999 = vadd.f32 %v5997, %v5998
  %v6000 = vsel %vm4063, %v5982, 0.0
  %v6001 = vadd.f32 %v5999, %v6000
  %v6002 = vsel %vm4063, %v5983, 0.0
  %v6003 = vadd.f32 %v6001, %v6002
  %v6004 = vrot.slane %v6003, 4
  %v6005 = vadd.f32 %v6003, %v6004
  %v6006 = vrot.slane %v6005, 2
  %v6007 = vadd.f32 %v6005, %v6006
  %v6008 = vrot.slane %v6007, 1
  %v6009 = vadd.f32 %v6007, %v6008
  %v6010 = vmul.f32 %v5976, %v5976
  %v6011 = vmul.f32 %v5977, %v5977
  %v6012 = vmul.f32 %v5978, %v5978
  %v6013 = vmul.f32 %v5979, %v5979
  %v6014 = vmul.f32 %v5980, %v5980
  %v6015 = vmul.f32 %v5981, %v5981
  %v6016 = vmul.f32 %v5982, %v5982
  %v6017 = vmul.f32 %v5983, %v5983
  %v6018 = vsel %vm4063, %v6010, 0.0
  %v6019 = vsel %vm4063, %v6011, 0.0
  %v6020 = vadd.f32 %v6018, %v6019
  %v6021 = vsel %vm4063, %v6012, 0.0
  %v6022 = vadd.f32 %v6020, %v6021
  %v6023 = vsel %vm4063, %v6013, 0.0
  %v6024 = vadd.f32 %v6022, %v6023
  %v6025 = vrot.slane %v6024, 4
  %v6026 = vadd.f32 %v6024, %v6025
  %v6027 = vrot.slane %v6026, 2
  %v6028 = vadd.f32 %v6026, %v6027
  %v6029 = vrot.slane %v6028, 1
  %v6030 = vadd.f32 %v6028, %v6029
  %v6031 = vsel %vm4063, %v6014, 0.0
  %v6032 = vsel %vm4063, %v6015, 0.0
  %v6033 = vadd.f32 %v6031, %v6032
  %v6034 = vsel %vm4063, %v6016, 0.0
  %v6035 = vadd.f32 %v6033, %v6034
  %v6036 = vsel %vm4063, %v6017, 0.0
  %v6037 = vadd.f32 %v6035, %v6036
  %v6038 = vrot.slane %v6037, 4
  %v6039 = vadd.f32 %v6037, %v6038
  %v6040 = vrot.slane %v6039, 2
  %v6041 = vadd.f32 %v6039, %v6040
  %v6042 = vrot.slane %v6041, 1
  %v6043 = vadd.f32 %v6041, %v6042
  %v6044 = vmul.f32 %v5996, 0.03125
  %v6045 = vmul.f32 %v6009, 0.03125
  %v6046 = vmul.f32 %v6030, 0.03125
  %v6047 = vmul.f32 %v6043, 0.03125
  %v6048 = vmul.f32 %v6044, %v6044
  %v6049 = vmul.f32 %v6045, %v6045
  %v6050 = vsub.f32 %v6046, %v6048
  %v6051 = vsub.f32 %v6047, %v6049
  %v6052 = vsub.f32 %v5976, %v6044
  %v6053 = vsub.f32 %v5977, %v6044
  %v6054 = vsub.f32 %v5978, %v6044
  %v6055 = vsub.f32 %v5979, %v6044
  %v6056 = vsub.f32 %v5980, %v6045
  %v6057 = vsub.f32 %v5981, %v6045
  %v6058 = vsub.f32 %v5982, %v6045
  %v6059 = vsub.f32 %v5983, %v6045
  %v6060 = vadd.f32 %v6050, 1e-05
  %v6061 = vadd.f32 %v6051, 1e-05
  %v6062 = vrsqrt.pop %v6060
  %v6063 = vrsqrt.pop %v6061
  %v6064 = vmul.f32 %v6052, %v6062
  %v6065 = vmul.f32 %v6053, %v6062
  %v6066 = vmul.f32 %v6054, %v6062
  %v6067 = vmul.f32 %v6055, %v6062
  %v6068 = vmul.f32 %v6056, %v6063
  %v6069 = vmul.f32 %v6057, %v6063
  %v6070 = vmul.f32 %v6058, %v6063
  %v6071 = vmul.f32 %v6059, %v6063
  %v6072 = vadd.f32 %v4019, %v6064
  %v6073 = vadd.f32 %v4020, %v6065
  %v6074 = vadd.f32 %v4021, %v6066
  %v6075 = vadd.f32 %v4022, %v6067
  %v6076 = vadd.f32 %v4023, %v6068
  %v6077 = vadd.f32 %v4024, %v6069
  %v6078 = vadd.f32 %v4025, %v6070
  %v6079 = vadd.f32 %v4026, %v6071
  %v6080 = vmax.f32 %v6072, 0.0
  %v6081 = vmax.f32 %v6073, 0.0
  %v6082 = vmax.f32 %v6074, 0.0
  %v6083 = vmax.f32 %v6075, 0.0
  %v6084 = vmax.f32 %v6076, 0.0
  %v6085 = vmax.f32 %v6077, 0.0
  %v6086 = vmax.f32 %v6078, 0.0
  %v6087 = vmax.f32 %v6079, 0.0
  %6088 = vst.msk [vmem:[#allocation4 + $0x4] sm:$0xff] %vm4063, %v6080
  %6089 = vst.msk [vmem:[#allocation4 + $0xc] sm:$0xff] %vm4063, %v6081
  %6090 = vst.msk [vmem:[#allocation4 + $0x14] sm:$0xff] %vm4063, %v6082
  %6091 = vst.msk [vmem:[#allocation4 + $0x1c] sm:$0xff] %vm4063, %v6083
  %6092 = vst.msk [vmem:[#allocation4 + $0x2c] sm:$0xff] %vm4063, %v6084
  %6093 = vst.msk [vmem:[#allocation4 + $0x34] sm:$0xff] %vm4063, %v6085
  %6094 = vst.msk [vmem:[#allocation4 + $0x3c] sm:$0xff] %vm4063, %v6086
  %6095 = vst.msk [vmem:[#allocation4 + $0x44] sm:$0xff] %vm4063, %v6087
  %v6096 = vld [vmem:[#allocation4 + $0x3] sm:$0xff]
  %v6097 = vld [vmem:[#allocation4 + $0xb] sm:$0xff]
  %v6098 = vld [vmem:[#allocation4 + $0x13] sm:$0xff]
  %v6099 = vld [vmem:[#allocation4 + $0x1b] sm:$0xff]
  %v6100 = vld [vmem:[#allocation4 + $0x2b] sm:$0xff]
  %v6101 = vld [vmem:[#allocation4 + $0x33] sm:$0xff]
  %v6102 = vld [vmem:[#allocation4 + $0x3b] sm:$0xff]
  %v6103 = vld [vmem:[#allocation4 + $0x43] sm:$0xff]
  %v6104 = vpack.c.bf16 %v6097, %v6096
  %v6105 = vpack.c.bf16 %v6099, %v6098
  %v6106 = vpack.c.bf16 %v6101, %v6100
  %v6107 = vpack.c.bf16 %v6103, %v6102
  %v6108 = vld [vmem:[#allocation4 + $0x4] sm:$0xff]
  %v6109 = vld [vmem:[#allocation4 + $0xc] sm:$0xff]
  %v6110 = vld [vmem:[#allocation4 + $0x14] sm:$0xff]
  %v6111 = vld [vmem:[#allocation4 + $0x1c] sm:$0xff]
  %v6112 = vld [vmem:[#allocation4 + $0x2c] sm:$0xff]
  %v6113 = vld [vmem:[#allocation4 + $0x34] sm:$0xff]
  %v6114 = vld [vmem:[#allocation4 + $0x3c] sm:$0xff]
  %v6115 = vld [vmem:[#allocation4 + $0x44] sm:$0xff]
  %v6116 = vpack.c.bf16 %v6109, %v6108
  %v6117 = vpack.c.bf16 %v6111, %v6110
  %v6118 = vpack.c.bf16 %v6113, %v6112
  %v6119 = vpack.c.bf16 %v6115, %v6114
  %v6120 = vld [vmem:[#allocation4 + $0x5] sm:$0xff]
  %v6121 = vld [vmem:[#allocation4 + $0xd] sm:$0xff]
  %v6122 = vld [vmem:[#allocation4 + $0x15] sm:$0xff]
  %v6123 = vld [vmem:[#allocation4 + $0x1d] sm:$0xff]
  %v6124 = vld [vmem:[#allocation4 + $0x2d] sm:$0xff]
  %v6125 = vld [vmem:[#allocation4 + $0x35] sm:$0xff]
  %v6126 = vld [vmem:[#allocation4 + $0x3d] sm:$0xff]
  %v6127 = vld [vmem:[#allocation4 + $0x45] sm:$0xff]
  %v6128 = vpack.c.bf16 %v6121, %v6120
  %v6129 = vpack.c.bf16 %v6123, %v6122
  %v6130 = vpack.c.bf16 %v6125, %v6124
  %v6131 = vpack.c.bf16 %v6127, %v6126
  %s6132 = scalar_lea.vmem %s5, 2
  %v6133 = vld [vmem:[%s6132] sm:$0x1]
  %s6134 = scalar_lea.vmem %s4, 288
  %v6135 = vld [vmem:[%s6134] sm:$0xf]
  %v6136 = vld [vmem:[%s6134 + $0x4] sm:$0xf]
  %s6137 = scalar_lea.vmem %s4, 352
  %v6138 = vld [vmem:[%s6137] sm:$0xf]
  %v6139 = vld [vmem:[%s6137 + $0x4] sm:$0xf]
  %v6142 = vunpack.c.l.b16 %v6138
  %v6143 = vunpack.c.l.b16 %v6139
  %v6144 = vpack.c.b16 %v6143, %v6142
  %v6147 = vsel %vm4063, %v6104, 0
  %v6150 = vsel %vm4063, %v6105, 0
  %v6153 = vsel %vm4063, %v6106, 0
  %v6156 = vsel %vm4063, %v6107, 0
  %6158 = vmatprep.subr.bf16.mxu0 0
  %6159 = vmatpush1.bf16.msra.mxu0 0
  %6160 = vmatprep.subr.bf16.mxu0 0
  %6161 = vmatpush1.bf16.msra.mxu0 0
  %6162 = vmatprep.subr.bf16.mxu0 0
  %6163 = vmatpush1.bf16.msra.mxu0 0
  %6164 = vmatprep.subr.bf16.mxu0 0
  %6165 = vmatpush1.bf16.msra.mxu0 0
  %6166 = vmatprep.subr.bf16.mxu0 0
  %6167 = vmatpush1.bf16.msra.mxu0 0
  %6168 = vmatprep.subr.bf16.mxu0 0
  %6169 = vmatpush1.bf16.msra.mxu0 0
  %6170 = vmatprep.subr.bf16.mxu0 0
  %6171 = vmatpush1.bf16.msra.mxu0 0
  %6172 = vmatprep.subr.bf16.mxu0 0
  %6173 = vmatpush1.bf16.msra.mxu0 %v6144
  %6174 = vmatprep.subr.bf16.mxu0 0
  %6175 = vmatpush2.bf16.msra.mxu0 0
  %6176 = vmatprep.subr.bf16.mxu0 0
  %6177 = vmatpush2.bf16.msra.mxu0 0
  %6178 = vmatprep.subr.bf16.mxu0 0
  %6179 = vmatpush2.bf16.msra.mxu0 0
  %6180 = vmatprep.subr.bf16.mxu0 0
  %6181 = vmatpush2.bf16.msra.mxu0 0
  %6182 = vmatprep.subr.bf16.mxu0 0
  %6183 = vmatpush2.bf16.msra.mxu0 0
  %6184 = vmatprep.subr.bf16.mxu0 0
  %6185 = vmatpush2.bf16.msra.mxu0 0
  %6186 = vmatprep.subr.bf16.mxu0 0
  %6187 = vmatpush2.bf16.msra.mxu0 0
  %6188 = vmatprep.subr.bf16.mxu0 0
  %6189 = vmatpush2.bf16.msra.mxu0 0
  %6190 = vmatprep.mubr.bf16.mxu0 0
  %6191 = vmatmul.mubr.bf16.gmra.mxu0 %v6147
  %v6192 = vpop.f32.mrf.mxu0
  %v6193 = vadd.f32 0.0, %v6192
  %v6194 = vpop.f32.mrf.mxu0
  %v6195 = vpop.f32.mrf.mxu0
  %v6196 = vadd.f32 0.0, %v6195
  %v6197 = vpop.f32.mrf.mxu0
  %6198 = vmatprep.mubr.bf16.mxu0 0
  %6199 = vmatmul.mubr.bf16.gmra.mxu0 %v6150
  %v6200 = vpop.f32.mrf.mxu0
  %v6201 = vadd.f32 0.0, %v6200
  %v6202 = vpop.f32.mrf.mxu0
  %v6203 = vpop.f32.mrf.mxu0
  %v6204 = vadd.f32 0.0, %v6203
  %v6205 = vpop.f32.mrf.mxu0
  %6206 = vmatprep.mubr.bf16.mxu0 0
  %6207 = vmatmul.mubr.bf16.gmra.mxu0 %v6153
  %v6208 = vpop.f32.mrf.mxu0
  %v6209 = vadd.f32 0.0, %v6208
  %v6210 = vpop.f32.mrf.mxu0
  %v6211 = vpop.f32.mrf.mxu0
  %v6212 = vadd.f32 0.0, %v6211
  %v6213 = vpop.f32.mrf.mxu0
  %6214 = vmatprep.mubr.bf16.mxu0 0
  %6215 = vmatmul.mubr.bf16.gmra.mxu0 %v6156
  %v6216 = vpop.f32.mrf.mxu0
  %v6217 = vadd.f32 0.0, %v6216
  %v6218 = vpop.f32.mrf.mxu0
  %v6219 = vpop.f32.mrf.mxu0
  %v6220 = vadd.f32 0.0, %v6219
  %v6221 = vpop.f32.mrf.mxu0
  %6222 = vdwg.mxu0
  %v6225 = vunpack.c.l.b16 %v6135
  %v6226 = vunpack.c.l.b16 %v6136
  %v6227 = vpack.c.b16 %v6226, %v6225
  %v6230 = vsel %vm4063, %v6116, 0
  %v6233 = vsel %vm4063, %v6117, 0
  %v6236 = vsel %vm4063, %v6118, 0
  %v6239 = vsel %vm4063, %v6119, 0
  %6241 = vmatprep.subr.bf16.mxu0 0
  %6242 = vmatpush1.bf16.msra.mxu0 0
  %6243 = vmatprep.subr.bf16.mxu0 0
  %6244 = vmatpush1.bf16.msra.mxu0 0
  %6245 = vmatprep.subr.bf16.mxu0 0
  %6246 = vmatpush1.bf16.msra.mxu0 0
  %6247 = vmatprep.subr.bf16.mxu0 0
  %6248 = vmatpush1.bf16.msra.mxu0 0
  %6249 = vmatprep.subr.bf16.mxu0 0
  %6250 = vmatpush1.bf16.msra.mxu0 0
  %6251 = vmatprep.subr.bf16.mxu0 0
  %6252 = vmatpush1.bf16.msra.mxu0 0
  %6253 = vmatprep.subr.bf16.mxu0 0
  %6254 = vmatpush1.bf16.msra.mxu0 0
  %6255 = vmatprep.subr.bf16.mxu0 0
  %6256 = vmatpush1.bf16.msra.mxu0 %v6227
  %6257 = vmatprep.subr.bf16.mxu0 0
  %6258 = vmatpush2.bf16.msra.mxu0 0
  %6259 = vmatprep.subr.bf16.mxu0 0
  %6260 = vmatpush2.bf16.msra.mxu0 0
  %6261 = vmatprep.subr.bf16.mxu0 0
  %6262 = vmatpush2.bf16.msra.mxu0 0
  %6263 = vmatprep.subr.bf16.mxu0 0
  %6264 = vmatpush2.bf16.msra.mxu0 0
  %6265 = vmatprep.subr.bf16.mxu0 0
  %6266 = vmatpush2.bf16.msra.mxu0 0
  %6267 = vmatprep.subr.bf16.mxu0 0
  %6268 = vmatpush2.bf16.msra.mxu0 0
  %6269 = vmatprep.subr.bf16.mxu0 0
  %6270 = vmatpush2.bf16.msra.mxu0 0
  %6271 = vmatprep.subr.bf16.mxu0 0
  %6272 = vmatpush2.bf16.msra.mxu0 0
  %6273 = vmatprep.mubr.bf16.mxu0 0
  %6274 = vmatmul.mubr.bf16.gmra.mxu0 %v6230
  %v6275 = vpop.f32.mrf.mxu0
  %v6276 = vadd.f32 %v6193, %v6275
  %v6277 = vpop.f32.mrf.mxu0
  %v6278 = vpop.f32.mrf.mxu0
  %v6279 = vadd.f32 %v6196, %v6278
  %v6280 = vpop.f32.mrf.mxu0
  %6281 = vmatprep.mubr.bf16.mxu0 0
  %6282 = vmatmul.mubr.bf16.gmra.mxu0 %v6233
  %v6283 = vpop.f32.mrf.mxu0
  %v6284 = vadd.f32 %v6201, %v6283
  %v6285 = vpop.f32.mrf.mxu0
  %v6286 = vpop.f32.mrf.mxu0
  %v6287 = vadd.f32 %v6204, %v6286
  %v6288 = vpop.f32.mrf.mxu0
  %6289 = vmatprep.mubr.bf16.mxu0 0
  %6290 = vmatmul.mubr.bf16.gmra.mxu0 %v6236
  %v6291 = vpop.f32.mrf.mxu0
  %v6292 = vadd.f32 %v6209, %v6291
  %v6293 = vpop.f32.mrf.mxu0
  %v6294 = vpop.f32.mrf.mxu0
  %v6295 = vadd.f32 %v6212, %v6294
  %v6296 = vpop.f32.mrf.mxu0
  %6297 = vmatprep.mubr.bf16.mxu0 0
  %6298 = vmatmul.mubr.bf16.gmra.mxu0 %v6239
  %v6299 = vpop.f32.mrf.mxu0
  %v6300 = vadd.f32 %v6217, %v6299
  %v6301 = vpop.f32.mrf.mxu0
  %v6302 = vpop.f32.mrf.mxu0
  %v6303 = vadd.f32 %v6220, %v6302
  %v6304 = vpop.f32.mrf.mxu0
  %6305 = vdwg.mxu0
  %v6307 = vlaneseq
  %v6308 = vshrl.u32 %v6307, 7
  %v6309 = vsub.s32 0, %v6308
  %v6310 = vrot.slane %v6133, %v6309
  %v6312 = vadd.f32 %v6276, %v6310
  %v6313 = vadd.f32 %v6279, %v6310
  %v6314 = vadd.f32 %v6284, %v6310
  %v6315 = vadd.f32 %v6287, %v6310
  %v6316 = vadd.f32 %v6292, %v6310
  %v6317 = vadd.f32 %v6295, %v6310
  %v6318 = vadd.f32 %v6300, %v6310
  %v6319 = vadd.f32 %v6303, %v6310
  %s6320 = scalar_lea.vmem %s4, 256
  %v6321 = vld [vmem:[%s6320] sm:$0xf]
  %v6322 = vld [vmem:[%s6320 + $0x4] sm:$0xf]
  %s6323 = scalar_lea.vmem %s4, 320
  %v6324 = vld [vmem:[%s6323] sm:$0xf]
  %v6325 = vld [vmem:[%s6323 + $0x4] sm:$0xf]
  %v6328 = vunpack.c.l.b16 %v6324
  %v6329 = vunpack.c.l.b16 %v6325
  %v6330 = vpack.c.b16 %v6329, %v6328
  %6332 = vmatprep.subr.bf16.mxu0 0
  %6333 = vmatpush1.bf16.msra.mxu0 0
  %6334 = vmatprep.subr.bf16.mxu0 0
  %6335 = vmatpush1.bf16.msra.mxu0 0
  %6336 = vmatprep.subr.bf16.mxu0 0
  %6337 = vmatpush1.bf16.msra.mxu0 0
  %6338 = vmatprep.subr.bf16.mxu0 0
  %6339 = vmatpush1.bf16.msra.mxu0 0
  %6340 = vmatprep.subr.bf16.mxu0 0
  %6341 = vmatpush1.bf16.msra.mxu0 0
  %6342 = vmatprep.subr.bf16.mxu0 0
  %6343 = vmatpush1.bf16.msra.mxu0 0
  %6344 = vmatprep.subr.bf16.mxu0 0
  %6345 = vmatpush1.bf16.msra.mxu0 0
  %6346 = vmatprep.subr.bf16.mxu0 0
  %6347 = vmatpush1.bf16.msra.mxu0 %v6330
  %6348 = vmatprep.subr.bf16.mxu0 0
  %6349 = vmatpush2.bf16.msra.mxu0 0
  %6350 = vmatprep.subr.bf16.mxu0 0
  %6351 = vmatpush2.bf16.msra.mxu0 0
  %6352 = vmatprep.subr.bf16.mxu0 0
  %6353 = vmatpush2.bf16.msra.mxu0 0
  %6354 = vmatprep.subr.bf16.mxu0 0
  %6355 = vmatpush2.bf16.msra.mxu0 0
  %6356 = vmatprep.subr.bf16.mxu0 0
  %6357 = vmatpush2.bf16.msra.mxu0 0
  %6358 = vmatprep.subr.bf16.mxu0 0
  %6359 = vmatpush2.bf16.msra.mxu0 0
  %6360 = vmatprep.subr.bf16.mxu0 0
  %6361 = vmatpush2.bf16.msra.mxu0 0
  %6362 = vmatprep.subr.bf16.mxu0 0
  %6363 = vmatpush2.bf16.msra.mxu0 0
  %6364 = vmatprep.mubr.bf16.mxu0 0
  %6365 = vmatmul.mubr.bf16.gmra.mxu0 %v6230
  %v6366 = vpop.f32.mrf.mxu0
  %v6367 = vadd.f32 0.0, %v6366
  %v6368 = vpop.f32.mrf.mxu0
  %v6369 = vpop.f32.mrf.mxu0
  %v6370 = vadd.f32 0.0, %v6369
  %v6371 = vpop.f32.mrf.mxu0
  %6372 = vmatprep.mubr.bf16.mxu0 0
  %6373 = vmatmul.mubr.bf16.gmra.mxu0 %v6233
  %v6374 = vpop.f32.mrf.mxu0
  %v6375 = vadd.f32 0.0, %v6374
  %v6376 = vpop.f32.mrf.mxu0
  %v6377 = vpop.f32.mrf.mxu0
  %v6378 = vadd.f32 0.0, %v6377
  %v6379 = vpop.f32.mrf.mxu0
  %6380 = vmatprep.mubr.bf16.mxu0 0
  %6381 = vmatmul.mubr.bf16.gmra.mxu0 %v6236
  %v6382 = vpop.f32.mrf.mxu0
  %v6383 = vadd.f32 0.0, %v6382
  %v6384 = vpop.f32.mrf.mxu0
  %v6385 = vpop.f32.mrf.mxu0
  %v6386 = vadd.f32 0.0, %v6385
  %v6387 = vpop.f32.mrf.mxu0
  %6388 = vmatprep.mubr.bf16.mxu0 0
  %6389 = vmatmul.mubr.bf16.gmra.mxu0 %v6239
  %v6390 = vpop.f32.mrf.mxu0
  %v6391 = vadd.f32 0.0, %v6390
  %v6392 = vpop.f32.mrf.mxu0
  %v6393 = vpop.f32.mrf.mxu0
  %v6394 = vadd.f32 0.0, %v6393
  %v6395 = vpop.f32.mrf.mxu0
  %6396 = vdwg.mxu0
  %v6399 = vunpack.c.l.b16 %v6321
  %v6400 = vunpack.c.l.b16 %v6322
  %v6401 = vpack.c.b16 %v6400, %v6399
  %v6404 = vsel %vm4063, %v6128, 0
  %v6407 = vsel %vm4063, %v6129, 0
  %v6410 = vsel %vm4063, %v6130, 0
  %v6413 = vsel %vm4063, %v6131, 0
  %6415 = vmatprep.subr.bf16.mxu0 0
  %6416 = vmatpush1.bf16.msra.mxu0 0
  %6417 = vmatprep.subr.bf16.mxu0 0
  %6418 = vmatpush1.bf16.msra.mxu0 0
  %6419 = vmatprep.subr.bf16.mxu0 0
  %6420 = vmatpush1.bf16.msra.mxu0 0
  %6421 = vmatprep.subr.bf16.mxu0 0
  %6422 = vmatpush1.bf16.msra.mxu0 0
  %6423 = vmatprep.subr.bf16.mxu0 0
  %6424 = vmatpush1.bf16.msra.mxu0 0
  %6425 = vmatprep.subr.bf16.mxu0 0
  %6426 = vmatpush1.bf16.msra.mxu0 0
  %6427 = vmatprep.subr.bf16.mxu0 0
  %6428 = vmatpush1.bf16.msra.mxu0 0
  %6429 = vmatprep.subr.bf16.mxu0 0
  %6430 = vmatpush1.bf16.msra.mxu0 %v6401
  %6431 = vmatprep.subr.bf16.mxu0 0
  %6432 = vmatpush2.bf16.msra.mxu0 0
  %6433 = vmatprep.subr.bf16.mxu0 0
  %6434 = vmatpush2.bf16.msra.mxu0 0
  %6435 = vmatprep.subr.bf16.mxu0 0
  %6436 = vmatpush2.bf16.msra.mxu0 0
  %6437 = vmatprep.subr.bf16.mxu0 0
  %6438 = vmatpush2.bf16.msra.mxu0 0
  %6439 = vmatprep.subr.bf16.mxu0 0
  %6440 = vmatpush2.bf16.msra.mxu0 0
  %6441 = vmatprep.subr.bf16.mxu0 0
  %6442 = vmatpush2.bf16.msra.mxu0 0
  %6443 = vmatprep.subr.bf16.mxu0 0
  %6444 = vmatpush2.bf16.msra.mxu0 0
  %6445 = vmatprep.subr.bf16.mxu0 0
  %6446 = vmatpush2.bf16.msra.mxu0 0
  %6447 = vmatprep.mubr.bf16.mxu0 0
  %6448 = vmatmul.mubr.bf16.gmra.mxu0 %v6404
  %v6449 = vpop.f32.mrf.mxu0
  %v6450 = vadd.f32 %v6367, %v6449
  %v6451 = vpop.f32.mrf.mxu0
  %v6452 = vpop.f32.mrf.mxu0
  %v6453 = vadd.f32 %v6370, %v6452
  %v6454 = vpop.f32.mrf.mxu0
  %6455 = vmatprep.mubr.bf16.mxu0 0
  %6456 = vmatmul.mubr.bf16.gmra.mxu0 %v6407
  %v6457 = vpop.f32.mrf.mxu0
  %v6458 = vadd.f32 %v6375, %v6457
  %v6459 = vpop.f32.mrf.mxu0
  %v6460 = vpop.f32.mrf.mxu0
  %v6461 = vadd.f32 %v6378, %v6460
  %v6462 = vpop.f32.mrf.mxu0
  %6463 = vmatprep.mubr.bf16.mxu0 0
  %6464 = vmatmul.mubr.bf16.gmra.mxu0 %v6410
  %v6465 = vpop.f32.mrf.mxu0
  %v6466 = vadd.f32 %v6383, %v6465
  %v6467 = vpop.f32.mrf.mxu0
  %v6468 = vpop.f32.mrf.mxu0
  %v6469 = vadd.f32 %v6386, %v6468
  %v6470 = vpop.f32.mrf.mxu0
  %6471 = vmatprep.mubr.bf16.mxu0 0
  %6472 = vmatmul.mubr.bf16.gmra.mxu0 %v6413
  %v6473 = vpop.f32.mrf.mxu0
  %v6474 = vadd.f32 %v6391, %v6473
  %v6475 = vpop.f32.mrf.mxu0
  %v6476 = vpop.f32.mrf.mxu0
  %v6477 = vadd.f32 %v6394, %v6476
  %v6478 = vpop.f32.mrf.mxu0
  %6479 = vdwg.mxu0
  %v6480 = vadd.f32 %v6450, %v6310
  %v6481 = vadd.f32 %v6453, %v6310
  %v6482 = vadd.f32 %v6458, %v6310
  %v6483 = vadd.f32 %v6461, %v6310
  %v6484 = vadd.f32 %v6466, %v6310
  %v6485 = vadd.f32 %v6469, %v6310
  %v6486 = vadd.f32 %v6474, %v6310
  %v6487 = vadd.f32 %v6477, %v6310
  %s6488 = scalar_lea.vmem [#allocation5], 4
  %6489 = vst [vmem:[%s6488] ss:$2 sm:$0xff] %v6312
  %s6490 = scalar_lea.vmem [#allocation5], 20
  %6491 = vst [vmem:[%s6490] ss:$2 sm:$0xff] %v6313
  %s6492 = scalar_lea.vmem [#allocation5], 36
  %6493 = vst [vmem:[%s6492] ss:$2 sm:$0xff] %v6314
  %s6494 = scalar_lea.vmem [#allocation5], 52
  %6495 = vst [vmem:[%s6494] ss:$2 sm:$0xff] %v6315
  %s6496 = scalar_lea.vmem [#allocation5], 76
  %6497 = vst [vmem:[%s6496] ss:$2 sm:$0xff] %v6316
  %s6498 = scalar_lea.vmem [#allocation5], 92
  %6499 = vst [vmem:[%s6498] ss:$2 sm:$0xff] %v6317
  %s6500 = scalar_lea.vmem [#allocation5], 108
  %6501 = vst [vmem:[%s6500] ss:$2 sm:$0xff] %v6318
  %s6502 = scalar_lea.vmem [#allocation5], 124
  %6503 = vst [vmem:[%s6502] ss:$2 sm:$0xff] %v6319
  %s6504 = scalar_lea.vmem [#allocation5], 5
  %6505 = vst [vmem:[%s6504] ss:$2 sm:$0xff] %v6480
  %s6506 = scalar_lea.vmem [#allocation5], 21
  %6507 = vst [vmem:[%s6506] ss:$2 sm:$0xff] %v6481
  %s6508 = scalar_lea.vmem [#allocation5], 37
  %6509 = vst [vmem:[%s6508] ss:$2 sm:$0xff] %v6482
  %s6510 = scalar_lea.vmem [#allocation5], 53
  %6511 = vst [vmem:[%s6510] ss:$2 sm:$0xff] %v6483
  %s6512 = scalar_lea.vmem [#allocation5], 77
  %6513 = vst [vmem:[%s6512] ss:$2 sm:$0xff] %v6484
  %s6514 = scalar_lea.vmem [#allocation5], 93
  %6515 = vst [vmem:[%s6514] ss:$2 sm:$0xff] %v6485
  %s6516 = scalar_lea.vmem [#allocation5], 109
  %6517 = vst [vmem:[%s6516] ss:$2 sm:$0xff] %v6486
  %s6518 = scalar_lea.vmem [#allocation5], 125
  %6519 = vst [vmem:[%s6518] ss:$2 sm:$0xff] %v6487
  %v6520 = vld [vmem:[#allocation5 + $0x4] sm:$0xff]
  %v6521 = vld [vmem:[#allocation5 + $0xc] sm:$0xff]
  %v6522 = vld [vmem:[#allocation5 + $0x14] sm:$0xff]
  %v6523 = vld [vmem:[#allocation5 + $0x1c] sm:$0xff]
  %v6524 = vld [vmem:[#allocation5 + $0x24] sm:$0xff]
  %v6525 = vld [vmem:[#allocation5 + $0x2c] sm:$0xff]
  %v6526 = vld [vmem:[#allocation5 + $0x34] sm:$0xff]
  %v6527 = vld [vmem:[#allocation5 + $0x3c] sm:$0xff]
  %v6528 = vld [vmem:[#allocation5 + $0x4c] sm:$0xff]
  %v6529 = vld [vmem:[#allocation5 + $0x54] sm:$0xff]
  %v6530 = vld [vmem:[#allocation5 + $0x5c] sm:$0xff]
  %v6531 = vld [vmem:[#allocation5 + $0x64] sm:$0xff]
  %v6532 = vld [vmem:[#allocation5 + $0x6c] sm:$0xff]
  %v6533 = vld [vmem:[#allocation5 + $0x74] sm:$0xff]
  %v6534 = vld [vmem:[#allocation5 + $0x7c] sm:$0xff]
  %v6535 = vld [vmem:[#allocation5 + $0x84] sm:$0xff]
  %v6536 = vld [vmem:[#allocation5] sm:$0xff]
  %v6537 = vld [vmem:[#allocation5 + $0x8] sm:$0xff]
  %v6538 = vld [vmem:[#allocation5 + $0x10] sm:$0xff]
  %v6539 = vld [vmem:[#allocation5 + $0x18] sm:$0xff]
  %v6540 = vld [vmem:[#allocation5 + $0x20] sm:$0xff]
  %v6541 = vld [vmem:[#allocation5 + $0x28] sm:$0xff]
  %v6542 = vld [vmem:[#allocation5 + $0x30] sm:$0xff]
  %v6543 = vld [vmem:[#allocation5 + $0x38] sm:$0xff]
  %v6544 = vld [vmem:[#allocation5 + $0x48] sm:$0xff]
  %v6545 = vld [vmem:[#allocation5 + $0x50] sm:$0xff]
  %v6546 = vld [vmem:[#allocation5 + $0x58] sm:$0xff]
  %v6547 = vld [vmem:[#allocation5 + $0x60] sm:$0xff]
  %v6548 = vld [vmem:[#allocation5 + $0x68] sm:$0xff]
  %v6549 = vld [vmem:[#allocation5 + $0x70] sm:$0xff]
  %v6550 = vld [vmem:[#allocation5 + $0x78] sm:$0xff]
  %v6551 = vld [vmem:[#allocation5 + $0x80] sm:$0xff]
  %v6552 = vpack.c.bf16 %v6537, %v6536
  %v6553 = vpack.c.bf16 %v6539, %v6538
  %v6554 = vpack.c.bf16 %v6541, %v6540
  %v6555 = vpack.c.bf16 %v6543, %v6542
  %v6556 = vpack.c.bf16 %v6545, %v6544
  %v6557 = vpack.c.bf16 %v6547, %v6546
  %v6558 = vpack.c.bf16 %v6549, %v6548
  %v6559 = vpack.c.bf16 %v6551, %v6550
  %s6560 = scalar_lea.vmem %s2, 1728
  %v6561 = vld [vmem:[%s6560] sm:$0xf]
  %v6562 = vld [vmem:[#allocation5 + $0x1] sm:$0xff]
  %v6563 = vld [vmem:[#allocation5 + $0x9] sm:$0xff]
  %v6564 = vld [vmem:[#allocation5 + $0x11] sm:$0xff]
  %v6565 = vld [vmem:[#allocation5 + $0x19] sm:$0xff]
  %v6566 = vld [vmem:[#allocation5 + $0x21] sm:$0xff]
  %v6567 = vld [vmem:[#allocation5 + $0x29] sm:$0xff]
  %v6568 = vld [vmem:[#allocation5 + $0x31] sm:$0xff]
  %v6569 = vld [vmem:[#allocation5 + $0x39] sm:$0xff]
  %v6570 = vld [vmem:[#allocation5 + $0x49] sm:$0xff]
  %v6571 = vld [vmem:[#allocation5 + $0x51] sm:$0xff]
  %v6572 = vld [vmem:[#allocation5 + $0x59] sm:$0xff]
  %v6573 = vld [vmem:[#allocation5 + $0x61] sm:$0xff]
  %v6574 = vld [vmem:[#allocation5 + $0x69] sm:$0xff]
  %v6575 = vld [vmem:[#allocation5 + $0x71] sm:$0xff]
  %v6576 = vld [vmem:[#allocation5 + $0x79] sm:$0xff]
  %v6577 = vld [vmem:[#allocation5 + $0x81] sm:$0xff]
  %v6578 = vpack.c.bf16 %v6563, %v6562
  %v6579 = vpack.c.bf16 %v6565, %v6564
  %v6580 = vpack.c.bf16 %v6567, %v6566
  %v6581 = vpack.c.bf16 %v6569, %v6568
  %v6582 = vpack.c.bf16 %v6571, %v6570
  %v6583 = vpack.c.bf16 %v6573, %v6572
  %v6584 = vpack.c.bf16 %v6575, %v6574
  %v6585 = vpack.c.bf16 %v6577, %v6576
  %s6586 = scalar_lea.vmem %s2, 1760
  %v6587 = vld [vmem:[%s6586] sm:$0xf]
  %v6589 = vsel %vm124, %v6578, 0
  %v6592 = vsel %vm124, %v6579, 0
  %v6595 = vsel %vm124, %v6580, 0
  %v6598 = vsel %vm124, %v6581, 0
  %v6601 = vsel %vm124, %v6582, 0
  %v6604 = vsel %vm124, %v6583, 0
  %v6607 = vsel %vm124, %v6584, 0
  %v6610 = vsel %vm124, %v6585, 0
  %v6613 = vsel %vm128, %v6587, 0
  %6615 = vmatprep.subr.bf16.mxu0 0
  %6616 = vmatpush1.bf16.msra.mxu0 0
  %6617 = vmatprep.subr.bf16.mxu0 0
  %6618 = vmatpush1.bf16.msra.mxu0 0
  %6619 = vmatprep.subr.bf16.mxu0 0
  %6620 = vmatpush1.bf16.msra.mxu0 0
  %6621 = vmatprep.subr.bf16.mxu0 0
  %6622 = vmatpush1.bf16.msra.mxu0 0
  %6623 = vmatprep.subr.bf16.mxu0 0
  %6624 = vmatpush1.bf16.msra.mxu0 0
  %6625 = vmatprep.subr.bf16.mxu0 0
  %6626 = vmatpush1.bf16.msra.mxu0 0
  %6627 = vmatprep.subr.bf16.mxu0 0
  %6628 = vmatpush1.bf16.msra.mxu0 0
  %6629 = vmatprep.subr.bf16.mxu0 0
  %6630 = vmatpush1.bf16.msra.mxu0 %v6613
  %6631 = vmatprep.subr.bf16.mxu0 0
  %6632 = vmatpush2.bf16.msra.mxu0 0
  %6633 = vmatprep.subr.bf16.mxu0 0
  %6634 = vmatpush2.bf16.msra.mxu0 0
  %6635 = vmatprep.subr.bf16.mxu0 0
  %6636 = vmatpush2.bf16.msra.mxu0 0
  %6637 = vmatprep.subr.bf16.mxu0 0
  %6638 = vmatpush2.bf16.msra.mxu0 0
  %6639 = vmatprep.subr.bf16.mxu0 0
  %6640 = vmatpush2.bf16.msra.mxu0 0
  %6641 = vmatprep.subr.bf16.mxu0 0
  %6642 = vmatpush2.bf16.msra.mxu0 0
  %6643 = vmatprep.subr.bf16.mxu0 0
  %6644 = vmatpush2.bf16.msra.mxu0 0
  %6645 = vmatprep.subr.bf16.mxu0 0
  %6646 = vmatpush2.bf16.msra.mxu0 0
  %6647 = vmatprep.mubr.bf16.mxu0 0
  %6648 = vmatmul.mubr.bf16.gmra.mxu0 %v6589
  %v6649 = vpop.f32.mrf.mxu0
  %v6650 = vadd.f32 0.0, %v6649
  %v6651 = vpop.f32.mrf.mxu0
  %v6652 = vpop.f32.mrf.mxu0
  %v6653 = vadd.f32 0.0, %v6652
  %v6654 = vpop.f32.mrf.mxu0
  %6655 = vmatprep.mubr.bf16.mxu0 0
  %6656 = vmatmul.mubr.bf16.gmra.mxu0 %v6592
  %v6657 = vpop.f32.mrf.mxu0
  %v6658 = vadd.f32 0.0, %v6657
  %v6659 = vpop.f32.mrf.mxu0
  %v6660 = vpop.f32.mrf.mxu0
  %v6661 = vadd.f32 0.0, %v6660
  %v6662 = vpop.f32.mrf.mxu0
  %6663 = vmatprep.mubr.bf16.mxu0 0
  %6664 = vmatmul.mubr.bf16.gmra.mxu0 %v6595
  %v6665 = vpop.f32.mrf.mxu0
  %v6666 = vadd.f32 0.0, %v6665
  %v6667 = vpop.f32.mrf.mxu0
  %v6668 = vpop.f32.mrf.mxu0
  %v6669 = vadd.f32 0.0, %v6668
  %v6670 = vpop.f32.mrf.mxu0
  %6671 = vmatprep.mubr.bf16.mxu0 0
  %6672 = vmatmul.mubr.bf16.gmra.mxu0 %v6598
  %v6673 = vpop.f32.mrf.mxu0
  %v6674 = vadd.f32 0.0, %v6673
  %v6675 = vpop.f32.mrf.mxu0
  %v6676 = vpop.f32.mrf.mxu0
  %v6677 = vadd.f32 0.0, %v6676
  %v6678 = vpop.f32.mrf.mxu0
  %6679 = vmatprep.mubr.bf16.mxu0 0
  %6680 = vmatmul.mubr.bf16.gmra.mxu0 %v6601
  %v6681 = vpop.f32.mrf.mxu0
  %v6682 = vadd.f32 0.0, %v6681
  %v6683 = vpop.f32.mrf.mxu0
  %v6684 = vpop.f32.mrf.mxu0
  %v6685 = vadd.f32 0.0, %v6684
  %v6686 = vpop.f32.mrf.mxu0
  %6687 = vmatprep.mubr.bf16.mxu0 0
  %6688 = vmatmul.mubr.bf16.gmra.mxu0 %v6604
  %v6689 = vpop.f32.mrf.mxu0
  %v6690 = vadd.f32 0.0, %v6689
  %v6691 = vpop.f32.mrf.mxu0
  %v6692 = vpop.f32.mrf.mxu0
  %v6693 = vadd.f32 0.0, %v6692
  %v6694 = vpop.f32.mrf.mxu0
  %6695 = vmatprep.mubr.bf16.mxu0 0
  %6696 = vmatmul.mubr.bf16.gmra.mxu0 %v6607
  %v6697 = vpop.f32.mrf.mxu0
  %v6698 = vadd.f32 0.0, %v6697
  %v6699 = vpop.f32.mrf.mxu0
  %v6700 = vpop.f32.mrf.mxu0
  %v6701 = vadd.f32 0.0, %v6700
  %v6702 = vpop.f32.mrf.mxu0
  %6703 = vmatprep.mubr.bf16.mxu0 0
  %6704 = vmatmul.mubr.bf16.gmra.mxu0 %v6610
  %v6705 = vpop.f32.mrf.mxu0
  %v6706 = vadd.f32 0.0, %v6705
  %v6707 = vpop.f32.mrf.mxu0
  %v6708 = vpop.f32.mrf.mxu0
  %v6709 = vadd.f32 0.0, %v6708
  %v6710 = vpop.f32.mrf.mxu0
  %6711 = vdwg.mxu0
  %v6712 = vld [vmem:[#allocation5 + $0x2] sm:$0xff]
  %v6713 = vld [vmem:[#allocation5 + $0xa] sm:$0xff]
  %v6714 = vld [vmem:[#allocation5 + $0x12] sm:$0xff]
  %v6715 = vld [vmem:[#allocation5 + $0x1a] sm:$0xff]
  %v6716 = vld [vmem:[#allocation5 + $0x22] sm:$0xff]
  %v6717 = vld [vmem:[#allocation5 + $0x2a] sm:$0xff]
  %v6718 = vld [vmem:[#allocation5 + $0x32] sm:$0xff]
  %v6719 = vld [vmem:[#allocation5 + $0x3a] sm:$0xff]
  %v6720 = vld [vmem:[#allocation5 + $0x4a] sm:$0xff]
  %v6721 = vld [vmem:[#allocation5 + $0x52] sm:$0xff]
  %v6722 = vld [vmem:[#allocation5 + $0x5a] sm:$0xff]
  %v6723 = vld [vmem:[#allocation5 + $0x62] sm:$0xff]
  %v6724 = vld [vmem:[#allocation5 + $0x6a] sm:$0xff]
  %v6725 = vld [vmem:[#allocation5 + $0x72] sm:$0xff]
  %v6726 = vld [vmem:[#allocation5 + $0x7a] sm:$0xff]
  %v6727 = vld [vmem:[#allocation5 + $0x82] sm:$0xff]
  %v6728 = vpack.c.bf16 %v6713, %v6712
  %v6729 = vpack.c.bf16 %v6715, %v6714
  %v6730 = vpack.c.bf16 %v6717, %v6716
  %v6731 = vpack.c.bf16 %v6719, %v6718
  %v6732 = vpack.c.bf16 %v6721, %v6720
  %v6733 = vpack.c.bf16 %v6723, %v6722
  %v6734 = vpack.c.bf16 %v6725, %v6724
  %v6735 = vpack.c.bf16 %v6727, %v6726
  %s6736 = scalar_lea.vmem %s2, 1792
  %v6737 = vld [vmem:[%s6736] sm:$0xf]
  %v6738 = vld [vmem:[#allocation5 + $0x3] sm:$0xff]
  %v6739 = vld [vmem:[#allocation5 + $0xb] sm:$0xff]
  %v6740 = vld [vmem:[#allocation5 + $0x13] sm:$0xff]
  %v6741 = vld [vmem:[#allocation5 + $0x1b] sm:$0xff]
  %v6742 = vld [vmem:[#allocation5 + $0x23] sm:$0xff]
  %v6743 = vld [vmem:[#allocation5 + $0x2b] sm:$0xff]
  %v6744 = vld [vmem:[#allocation5 + $0x33] sm:$0xff]
  %v6745 = vld [vmem:[#allocation5 + $0x3b] sm:$0xff]
  %v6746 = vld [vmem:[#allocation5 + $0x4b] sm:$0xff]
  %v6747 = vld [vmem:[#allocation5 + $0x53] sm:$0xff]
  %v6748 = vld [vmem:[#allocation5 + $0x5b] sm:$0xff]
  %v6749 = vld [vmem:[#allocation5 + $0x63] sm:$0xff]
  %v6750 = vld [vmem:[#allocation5 + $0x6b] sm:$0xff]
  %v6751 = vld [vmem:[#allocation5 + $0x73] sm:$0xff]
  %v6752 = vld [vmem:[#allocation5 + $0x7b] sm:$0xff]
  %v6753 = vld [vmem:[#allocation5 + $0x83] sm:$0xff]
  %v6754 = vpack.c.bf16 %v6739, %v6738
  %v6755 = vpack.c.bf16 %v6741, %v6740
  %v6756 = vpack.c.bf16 %v6743, %v6742
  %v6757 = vpack.c.bf16 %v6745, %v6744
  %v6758 = vpack.c.bf16 %v6747, %v6746
  %v6759 = vpack.c.bf16 %v6749, %v6748
  %v6760 = vpack.c.bf16 %v6751, %v6750
  %v6761 = vpack.c.bf16 %v6753, %v6752
  %s6762 = scalar_lea.vmem %s2, 1824
  %v6763 = vld [vmem:[%s6762] sm:$0xf]
  %v6765 = vsel %vm124, %v6754, 0
  %v6768 = vsel %vm124, %v6755, 0
  %v6771 = vsel %vm124, %v6756, 0
  %v6774 = vsel %vm124, %v6757, 0
  %v6777 = vsel %vm124, %v6758, 0
  %v6780 = vsel %vm124, %v6759, 0
  %v6783 = vsel %vm124, %v6760, 0
  %v6786 = vsel %vm124, %v6761, 0
  %v6789 = vsel %vm128, %v6763, 0
  %6791 = vmatprep.subr.bf16.mxu0 0
  %6792 = vmatpush1.bf16.msra.mxu0 0
  %6793 = vmatprep.subr.bf16.mxu0 0
  %6794 = vmatpush1.bf16.msra.mxu0 0
  %6795 = vmatprep.subr.bf16.mxu0 0
  %6796 = vmatpush1.bf16.msra.mxu0 0
  %6797 = vmatprep.subr.bf16.mxu0 0
  %6798 = vmatpush1.bf16.msra.mxu0 0
  %6799 = vmatprep.subr.bf16.mxu0 0
  %6800 = vmatpush1.bf16.msra.mxu0 0
  %6801 = vmatprep.subr.bf16.mxu0 0
  %6802 = vmatpush1.bf16.msra.mxu0 0
  %6803 = vmatprep.subr.bf16.mxu0 0
  %6804 = vmatpush1.bf16.msra.mxu0 0
  %6805 = vmatprep.subr.bf16.mxu0 0
  %6806 = vmatpush1.bf16.msra.mxu0 %v6789
  %6807 = vmatprep.subr.bf16.mxu0 0
  %6808 = vmatpush2.bf16.msra.mxu0 0
  %6809 = vmatprep.subr.bf16.mxu0 0
  %6810 = vmatpush2.bf16.msra.mxu0 0
  %6811 = vmatprep.subr.bf16.mxu0 0
  %6812 = vmatpush2.bf16.msra.mxu0 0
  %6813 = vmatprep.subr.bf16.mxu0 0
  %6814 = vmatpush2.bf16.msra.mxu0 0
  %6815 = vmatprep.subr.bf16.mxu0 0
  %6816 = vmatpush2.bf16.msra.mxu0 0
  %6817 = vmatprep.subr.bf16.mxu0 0
  %6818 = vmatpush2.bf16.msra.mxu0 0
  %6819 = vmatprep.subr.bf16.mxu0 0
  %6820 = vmatpush2.bf16.msra.mxu0 0
  %6821 = vmatprep.subr.bf16.mxu0 0
  %6822 = vmatpush2.bf16.msra.mxu0 0
  %6823 = vmatprep.mubr.bf16.mxu0 0
  %6824 = vmatmul.mubr.bf16.gmra.mxu0 %v6765
  %v6825 = vpop.f32.mrf.mxu0
  %v6826 = vadd.f32 0.0, %v6825
  %v6827 = vpop.f32.mrf.mxu0
  %v6828 = vpop.f32.mrf.mxu0
  %v6829 = vadd.f32 0.0, %v6828
  %v6830 = vpop.f32.mrf.mxu0
  %6831 = vmatprep.mubr.bf16.mxu0 0
  %6832 = vmatmul.mubr.bf16.gmra.mxu0 %v6768
  %v6833 = vpop.f32.mrf.mxu0
  %v6834 = vadd.f32 0.0, %v6833
  %v6835 = vpop.f32.mrf.mxu0
  %v6836 = vpop.f32.mrf.mxu0
  %v6837 = vadd.f32 0.0, %v6836
  %v6838 = vpop.f32.mrf.mxu0
  %6839 = vmatprep.mubr.bf16.mxu0 0
  %6840 = vmatmul.mubr.bf16.gmra.mxu0 %v6771
  %v6841 = vpop.f32.mrf.mxu0
  %v6842 = vadd.f32 0.0, %v6841
  %v6843 = vpop.f32.mrf.mxu0
  %v6844 = vpop.f32.mrf.mxu0
  %v6845 = vadd.f32 0.0, %v6844
  %v6846 = vpop.f32.mrf.mxu0
  %6847 = vmatprep.mubr.bf16.mxu0 0
  %6848 = vmatmul.mubr.bf16.gmra.mxu0 %v6774
  %v6849 = vpop.f32.mrf.mxu0
  %v6850 = vadd.f32 0.0, %v6849
  %v6851 = vpop.f32.mrf.mxu0
  %v6852 = vpop.f32.mrf.mxu0
  %v6853 = vadd.f32 0.0, %v6852
  %v6854 = vpop.f32.mrf.mxu0
  %6855 = vmatprep.mubr.bf16.mxu0 0
  %6856 = vmatmul.mubr.bf16.gmra.mxu0 %v6777
  %v6857 = vpop.f32.mrf.mxu0
  %v6858 = vadd.f32 0.0, %v6857
  %v6859 = vpop.f32.mrf.mxu0
  %v6860 = vpop.f32.mrf.mxu0
  %v6861 = vadd.f32 0.0, %v6860
  %v6862 = vpop.f32.mrf.mxu0
  %6863 = vmatprep.mubr.bf16.mxu0 0
  %6864 = vmatmul.mubr.bf16.gmra.mxu0 %v6780
  %v6865 = vpop.f32.mrf.mxu0
  %v6866 = vadd.f32 0.0, %v6865
  %v6867 = vpop.f32.mrf.mxu0
  %v6868 = vpop.f32.mrf.mxu0
  %v6869 = vadd.f32 0.0, %v6868
  %v6870 = vpop.f32.mrf.mxu0
  %6871 = vmatprep.mubr.bf16.mxu0 0
  %6872 = vmatmul.mubr.bf16.gmra.mxu0 %v6783
  %v6873 = vpop.f32.mrf.mxu0
  %v6874 = vadd.f32 0.0, %v6873
  %v6875 = vpop.f32.mrf.mxu0
  %v6876 = vpop.f32.mrf.mxu0
  %v6877 = vadd.f32 0.0, %v6876
  %v6878 = vpop.f32.mrf.mxu0
  %6879 = vmatprep.mubr.bf16.mxu0 0
  %6880 = vmatmul.mubr.bf16.gmra.mxu0 %v6786
  %v6881 = vpop.f32.mrf.mxu0
  %v6882 = vadd.f32 0.0, %v6881
  %v6883 = vpop.f32.mrf.mxu0
  %v6884 = vpop.f32.mrf.mxu0
  %v6885 = vadd.f32 0.0, %v6884
  %v6886 = vpop.f32.mrf.mxu0
  %6887 = vdwg.mxu0
  %v6888 = vpack.c.bf16 %v6521, %v6520
  %v6889 = vpack.c.bf16 %v6523, %v6522
  %v6890 = vpack.c.bf16 %v6525, %v6524
  %v6891 = vpack.c.bf16 %v6527, %v6526
  %v6892 = vpack.c.bf16 %v6529, %v6528
  %v6893 = vpack.c.bf16 %v6531, %v6530
  %v6894 = vpack.c.bf16 %v6533, %v6532
  %v6895 = vpack.c.bf16 %v6535, %v6534
  %s6896 = scalar_lea.vmem %s2, 1856
  %v6897 = vld [vmem:[%s6896] sm:$0xf]
  %v6898 = vld [vmem:[#allocation5 + $0x5] sm:$0xff]
  %v6899 = vld [vmem:[#allocation5 + $0xd] sm:$0xff]
  %v6900 = vld [vmem:[#allocation5 + $0x15] sm:$0xff]
  %v6901 = vld [vmem:[#allocation5 + $0x1d] sm:$0xff]
  %v6902 = vld [vmem:[#allocation5 + $0x25] sm:$0xff]
  %v6903 = vld [vmem:[#allocation5 + $0x2d] sm:$0xff]
  %v6904 = vld [vmem:[#allocation5 + $0x35] sm:$0xff]
  %v6905 = vld [vmem:[#allocation5 + $0x3d] sm:$0xff]
  %v6906 = vld [vmem:[#allocation5 + $0x4d] sm:$0xff]
  %v6907 = vld [vmem:[#allocation5 + $0x55] sm:$0xff]
  %v6908 = vld [vmem:[#allocation5 + $0x5d] sm:$0xff]
  %v6909 = vld [vmem:[#allocation5 + $0x65] sm:$0xff]
  %v6910 = vld [vmem:[#allocation5 + $0x6d] sm:$0xff]
  %v6911 = vld [vmem:[#allocation5 + $0x75] sm:$0xff]
  %v6912 = vld [vmem:[#allocation5 + $0x7d] sm:$0xff]
  %v6913 = vld [vmem:[#allocation5 + $0x85] sm:$0xff]
  %v6914 = vpack.c.bf16 %v6899, %v6898
  %v6915 = vpack.c.bf16 %v6901, %v6900
  %v6916 = vpack.c.bf16 %v6903, %v6902
  %v6917 = vpack.c.bf16 %v6905, %v6904
  %v6918 = vpack.c.bf16 %v6907, %v6906
  %v6919 = vpack.c.bf16 %v6909, %v6908
  %v6920 = vpack.c.bf16 %v6911, %v6910
  %v6921 = vpack.c.bf16 %v6913, %v6912
  %s6922 = scalar_lea.vmem %s2, 1888
  %v6923 = vld [vmem:[%s6922] sm:$0xf]
  %v6925 = vsel %vm124, %v6914, 0
  %v6928 = vsel %vm124, %v6915, 0
  %v6931 = vsel %vm124, %v6916, 0
  %v6934 = vsel %vm124, %v6917, 0
  %v6937 = vsel %vm124, %v6918, 0
  %v6940 = vsel %vm124, %v6919, 0
  %v6943 = vsel %vm124, %v6920, 0
  %v6946 = vsel %vm124, %v6921, 0
  %v6949 = vsel %vm128, %v6923, 0
  %6951 = vmatprep.subr.bf16.mxu0 0
  %6952 = vmatpush1.bf16.msra.mxu0 0
  %6953 = vmatprep.subr.bf16.mxu0 0
  %6954 = vmatpush1.bf16.msra.mxu0 0
  %6955 = vmatprep.subr.bf16.mxu0 0
  %6956 = vmatpush1.bf16.msra.mxu0 0
  %6957 = vmatprep.subr.bf16.mxu0 0
  %6958 = vmatpush1.bf16.msra.mxu0 0
  %6959 = vmatprep.subr.bf16.mxu0 0
  %6960 = vmatpush1.bf16.msra.mxu0 0
  %6961 = vmatprep.subr.bf16.mxu0 0
  %6962 = vmatpush1.bf16.msra.mxu0 0
  %6963 = vmatprep.subr.bf16.mxu0 0
  %6964 = vmatpush1.bf16.msra.mxu0 0
  %6965 = vmatprep.subr.bf16.mxu0 0
  %6966 = vmatpush1.bf16.msra.mxu0 %v6949
  %6967 = vmatprep.subr.bf16.mxu0 0
  %6968 = vmatpush2.bf16.msra.mxu0 0
  %6969 = vmatprep.subr.bf16.mxu0 0
  %6970 = vmatpush2.bf16.msra.mxu0 0
  %6971 = vmatprep.subr.bf16.mxu0 0
  %6972 = vmatpush2.bf16.msra.mxu0 0
  %6973 = vmatprep.subr.bf16.mxu0 0
  %6974 = vmatpush2.bf16.msra.mxu0 0
  %6975 = vmatprep.subr.bf16.mxu0 0
  %6976 = vmatpush2.bf16.msra.mxu0 0
  %6977 = vmatprep.subr.bf16.mxu0 0
  %6978 = vmatpush2.bf16.msra.mxu0 0
  %6979 = vmatprep.subr.bf16.mxu0 0
  %6980 = vmatpush2.bf16.msra.mxu0 0
  %6981 = vmatprep.subr.bf16.mxu0 0
  %6982 = vmatpush2.bf16.msra.mxu0 0
  %6983 = vmatprep.mubr.bf16.mxu0 0
  %6984 = vmatmul.mubr.bf16.gmra.mxu0 %v6925
  %v6985 = vpop.f32.mrf.mxu0
  %v6986 = vadd.f32 0.0, %v6985
  %v6987 = vpop.f32.mrf.mxu0
  %v6988 = vpop.f32.mrf.mxu0
  %v6989 = vadd.f32 0.0, %v6988
  %v6990 = vpop.f32.mrf.mxu0
  %6991 = vmatprep.mubr.bf16.mxu0 0
  %6992 = vmatmul.mubr.bf16.gmra.mxu0 %v6928
  %v6993 = vpop.f32.mrf.mxu0
  %v6994 = vadd.f32 0.0, %v6993
  %v6995 = vpop.f32.mrf.mxu0
  %v6996 = vpop.f32.mrf.mxu0
  %v6997 = vadd.f32 0.0, %v6996
  %v6998 = vpop.f32.mrf.mxu0
  %6999 = vmatprep.mubr.bf16.mxu0 0
  %7000 = vmatmul.mubr.bf16.gmra.mxu0 %v6931
  %v7001 = vpop.f32.mrf.mxu0
  %v7002 = vadd.f32 0.0, %v7001
  %v7003 = vpop.f32.mrf.mxu0
  %v7004 = vpop.f32.mrf.mxu0
  %v7005 = vadd.f32 0.0, %v7004
  %v7006 = vpop.f32.mrf.mxu0
  %7007 = vmatprep.mubr.bf16.mxu0 0
  %7008 = vmatmul.mubr.bf16.gmra.mxu0 %v6934
  %v7009 = vpop.f32.mrf.mxu0
  %v7010 = vadd.f32 0.0, %v7009
  %v7011 = vpop.f32.mrf.mxu0
  %v7012 = vpop.f32.mrf.mxu0
  %v7013 = vadd.f32 0.0, %v7012
  %v7014 = vpop.f32.mrf.mxu0
  %7015 = vmatprep.mubr.bf16.mxu0 0
  %7016 = vmatmul.mubr.bf16.gmra.mxu0 %v6937
  %v7017 = vpop.f32.mrf.mxu0
  %v7018 = vadd.f32 0.0, %v7017
  %v7019 = vpop.f32.mrf.mxu0
  %v7020 = vpop.f32.mrf.mxu0
  %v7021 = vadd.f32 0.0, %v7020
  %v7022 = vpop.f32.mrf.mxu0
  %7023 = vmatprep.mubr.bf16.mxu0 0
  %7024 = vmatmul.mubr.bf16.gmra.mxu0 %v6940
  %v7025 = vpop.f32.mrf.mxu0
  %v7026 = vadd.f32 0.0, %v7025
  %v7027 = vpop.f32.mrf.mxu0
  %v7028 = vpop.f32.mrf.mxu0
  %v7029 = vadd.f32 0.0, %v7028
  %v7030 = vpop.f32.mrf.mxu0
  %7031 = vmatprep.mubr.bf16.mxu0 0
  %7032 = vmatmul.mubr.bf16.gmra.mxu0 %v6943
  %v7033 = vpop.f32.mrf.mxu0
  %v7034 = vadd.f32 0.0, %v7033
  %v7035 = vpop.f32.mrf.mxu0
  %v7036 = vpop.f32.mrf.mxu0
  %v7037 = vadd.f32 0.0, %v7036
  %v7038 = vpop.f32.mrf.mxu0
  %7039 = vmatprep.mubr.bf16.mxu0 0
  %7040 = vmatmul.mubr.bf16.gmra.mxu0 %v6946
  %v7041 = vpop.f32.mrf.mxu0
  %v7042 = vadd.f32 0.0, %v7041
  %v7043 = vpop.f32.mrf.mxu0
  %v7044 = vpop.f32.mrf.mxu0
  %v7045 = vadd.f32 0.0, %v7044
  %v7046 = vpop.f32.mrf.mxu0
  %7047 = vdwg.mxu0
  %v7048 = vld [vmem:[#allocation5 + $0x6] sm:$0xff]
  %v7049 = vld [vmem:[#allocation5 + $0xe] sm:$0xff]
  %v7050 = vld [vmem:[#allocation5 + $0x16] sm:$0xff]
  %v7051 = vld [vmem:[#allocation5 + $0x1e] sm:$0xff]
  %v7052 = vld [vmem:[#allocation5 + $0x26] sm:$0xff]
  %v7053 = vld [vmem:[#allocation5 + $0x2e] sm:$0xff]
  %v7054 = vld [vmem:[#allocation5 + $0x36] sm:$0xff]
  %v7055 = vld [vmem:[#allocation5 + $0x3e] sm:$0xff]
  %v7056 = vld [vmem:[#allocation5 + $0x4e] sm:$0xff]
  %v7057 = vld [vmem:[#allocation5 + $0x56] sm:$0xff]
  %v7058 = vld [vmem:[#allocation5 + $0x5e] sm:$0xff]
  %v7059 = vld [vmem:[#allocation5 + $0x66] sm:$0xff]
  %v7060 = vld [vmem:[#allocation5 + $0x6e] sm:$0xff]
  %v7061 = vld [vmem:[#allocation5 + $0x76] sm:$0xff]
  %v7062 = vld [vmem:[#allocation5 + $0x7e] sm:$0xff]
  %v7063 = vld [vmem:[#allocation5 + $0x86] sm:$0xff]
  %v7064 = vpack.c.bf16 %v7049, %v7048
  %v7065 = vpack.c.bf16 %v7051, %v7050
  %v7066 = vpack.c.bf16 %v7053, %v7052
  %v7067 = vpack.c.bf16 %v7055, %v7054
  %v7068 = vpack.c.bf16 %v7057, %v7056
  %v7069 = vpack.c.bf16 %v7059, %v7058
  %v7070 = vpack.c.bf16 %v7061, %v7060
  %v7071 = vpack.c.bf16 %v7063, %v7062
  %s7072 = scalar_lea.vmem %s2, 1920
  %v7073 = vld [vmem:[%s7072] sm:$0xf]
  %v7074 = vld [vmem:[#allocation5 + $0x7] sm:$0xff]
  %v7075 = vld [vmem:[#allocation5 + $0xf] sm:$0xff]
  %v7076 = vld [vmem:[#allocation5 + $0x17] sm:$0xff]
  %v7077 = vld [vmem:[#allocation5 + $0x1f] sm:$0xff]
  %v7078 = vld [vmem:[#allocation5 + $0x27] sm:$0xff]
  %v7079 = vld [vmem:[#allocation5 + $0x2f] sm:$0xff]
  %v7080 = vld [vmem:[#allocation5 + $0x37] sm:$0xff]
  %v7081 = vld [vmem:[#allocation5 + $0x3f] sm:$0xff]
  %v7082 = vld [vmem:[#allocation5 + $0x4f] sm:$0xff]
  %v7083 = vld [vmem:[#allocation5 + $0x57] sm:$0xff]
  %v7084 = vld [vmem:[#allocation5 + $0x5f] sm:$0xff]
  %v7085 = vld [vmem:[#allocation5 + $0x67] sm:$0xff]
  %v7086 = vld [vmem:[#allocation5 + $0x6f] sm:$0xff]
  %v7087 = vld [vmem:[#allocation5 + $0x77] sm:$0xff]
  %v7088 = vld [vmem:[#allocation5 + $0x7f] sm:$0xff]
  %v7089 = vld [vmem:[#allocation5 + $0x87] sm:$0xff]
  %v7090 = vpack.c.bf16 %v7075, %v7074
  %v7091 = vpack.c.bf16 %v7077, %v7076
  %v7092 = vpack.c.bf16 %v7079, %v7078
  %v7093 = vpack.c.bf16 %v7081, %v7080
  %v7094 = vpack.c.bf16 %v7083, %v7082
  %v7095 = vpack.c.bf16 %v7085, %v7084
  %v7096 = vpack.c.bf16 %v7087, %v7086
  %v7097 = vpack.c.bf16 %v7089, %v7088
  %s7098 = scalar_lea.vmem %s2, 1952
  %v7099 = vld [vmem:[%s7098] sm:$0xf]
  %v7101 = vsel %vm124, %v7090, 0
  %v7104 = vsel %vm124, %v7091, 0
  %v7107 = vsel %vm124, %v7092, 0
  %v7110 = vsel %vm124, %v7093, 0
  %v7113 = vsel %vm124, %v7094, 0
  %v7116 = vsel %vm124, %v7095, 0
  %v7119 = vsel %vm124, %v7096, 0
  %v7122 = vsel %vm124, %v7097, 0
  %v7125 = vsel %vm128, %v7099, 0
  %7127 = vmatprep.subr.bf16.mxu0 0
  %7128 = vmatpush1.bf16.msra.mxu0 0
  %7129 = vmatprep.subr.bf16.mxu0 0
  %7130 = vmatpush1.bf16.msra.mxu0 0
  %7131 = vmatprep.subr.bf16.mxu0 0
  %7132 = vmatpush1.bf16.msra.mxu0 0
  %7133 = vmatprep.subr.bf16.mxu0 0
  %7134 = vmatpush1.bf16.msra.mxu0 0
  %7135 = vmatprep.subr.bf16.mxu0 0
  %7136 = vmatpush1.bf16.msra.mxu0 0
  %7137 = vmatprep.subr.bf16.mxu0 0
  %7138 = vmatpush1.bf16.msra.mxu0 0
  %7139 = vmatprep.subr.bf16.mxu0 0
  %7140 = vmatpush1.bf16.msra.mxu0 0
  %7141 = vmatprep.subr.bf16.mxu0 0
  %7142 = vmatpush1.bf16.msra.mxu0 %v7125
  %7143 = vmatprep.subr.bf16.mxu0 0
  %7144 = vmatpush2.bf16.msra.mxu0 0
  %7145 = vmatprep.subr.bf16.mxu0 0
  %7146 = vmatpush2.bf16.msra.mxu0 0
  %7147 = vmatprep.subr.bf16.mxu0 0
  %7148 = vmatpush2.bf16.msra.mxu0 0
  %7149 = vmatprep.subr.bf16.mxu0 0
  %7150 = vmatpush2.bf16.msra.mxu0 0
  %7151 = vmatprep.subr.bf16.mxu0 0
  %7152 = vmatpush2.bf16.msra.mxu0 0
  %7153 = vmatprep.subr.bf16.mxu0 0
  %7154 = vmatpush2.bf16.msra.mxu0 0
  %7155 = vmatprep.subr.bf16.mxu0 0
  %7156 = vmatpush2.bf16.msra.mxu0 0
  %7157 = vmatprep.subr.bf16.mxu0 0
  %7158 = vmatpush2.bf16.msra.mxu0 0
  %7159 = vmatprep.mubr.bf16.mxu0 0
  %7160 = vmatmul.mubr.bf16.gmra.mxu0 %v7101
  %v7161 = vpop.f32.mrf.mxu0
  %v7162 = vadd.f32 0.0, %v7161
  %v7163 = vpop.f32.mrf.mxu0
  %v7164 = vpop.f32.mrf.mxu0
  %v7165 = vadd.f32 0.0, %v7164
  %v7166 = vpop.f32.mrf.mxu0
  %7167 = vmatprep.mubr.bf16.mxu0 0
  %7168 = vmatmul.mubr.bf16.gmra.mxu0 %v7104
  %v7169 = vpop.f32.mrf.mxu0
  %v7170 = vadd.f32 0.0, %v7169
  %v7171 = vpop.f32.mrf.mxu0
  %v7172 = vpop.f32.mrf.mxu0
  %v7173 = vadd.f32 0.0, %v7172
  %v7174 = vpop.f32.mrf.mxu0
  %7175 = vmatprep.mubr.bf16.mxu0 0
  %7176 = vmatmul.mubr.bf16.gmra.mxu0 %v7107
  %v7177 = vpop.f32.mrf.mxu0
  %v7178 = vadd.f32 0.0, %v7177
  %v7179 = vpop.f32.mrf.mxu0
  %v7180 = vpop.f32.mrf.mxu0
  %v7181 = vadd.f32 0.0, %v7180
  %v7182 = vpop.f32.mrf.mxu0
  %7183 = vmatprep.mubr.bf16.mxu0 0
  %7184 = vmatmul.mubr.bf16.gmra.mxu0 %v7110
  %v7185 = vpop.f32.mrf.mxu0
  %v7186 = vadd.f32 0.0, %v7185
  %v7187 = vpop.f32.mrf.mxu0
  %v7188 = vpop.f32.mrf.mxu0
  %v7189 = vadd.f32 0.0, %v7188
  %v7190 = vpop.f32.mrf.mxu0
  %7191 = vmatprep.mubr.bf16.mxu0 0
  %7192 = vmatmul.mubr.bf16.gmra.mxu0 %v7113
  %v7193 = vpop.f32.mrf.mxu0
  %v7194 = vadd.f32 0.0, %v7193
  %v7195 = vpop.f32.mrf.mxu0
  %v7196 = vpop.f32.mrf.mxu0
  %v7197 = vadd.f32 0.0, %v7196
  %v7198 = vpop.f32.mrf.mxu0
  %7199 = vmatprep.mubr.bf16.mxu0 0
  %7200 = vmatmul.mubr.bf16.gmra.mxu0 %v7116
  %v7201 = vpop.f32.mrf.mxu0
  %v7202 = vadd.f32 0.0, %v7201
  %v7203 = vpop.f32.mrf.mxu0
  %v7204 = vpop.f32.mrf.mxu0
  %v7205 = vadd.f32 0.0, %v7204
  %v7206 = vpop.f32.mrf.mxu0
  %7207 = vmatprep.mubr.bf16.mxu0 0
  %7208 = vmatmul.mubr.bf16.gmra.mxu0 %v7119
  %v7209 = vpop.f32.mrf.mxu0
  %v7210 = vadd.f32 0.0, %v7209
  %v7211 = vpop.f32.mrf.mxu0
  %v7212 = vpop.f32.mrf.mxu0
  %v7213 = vadd.f32 0.0, %v7212
  %v7214 = vpop.f32.mrf.mxu0
  %7215 = vmatprep.mubr.bf16.mxu0 0
  %7216 = vmatmul.mubr.bf16.gmra.mxu0 %v7122
  %v7217 = vpop.f32.mrf.mxu0
  %v7218 = vadd.f32 0.0, %v7217
  %v7219 = vpop.f32.mrf.mxu0
  %v7220 = vpop.f32.mrf.mxu0
  %v7221 = vadd.f32 0.0, %v7220
  %v7222 = vpop.f32.mrf.mxu0
  %7223 = vdwg.mxu0
  %v7224 = vld [vmem:[#allocation5 + $0x8] sm:$0xff]
  %v7225 = vld [vmem:[#allocation5 + $0x10] sm:$0xff]
  %v7226 = vld [vmem:[#allocation5 + $0x18] sm:$0xff]
  %v7227 = vld [vmem:[#allocation5 + $0x20] sm:$0xff]
  %v7228 = vld [vmem:[#allocation5 + $0x28] sm:$0xff]
  %v7229 = vld [vmem:[#allocation5 + $0x30] sm:$0xff]
  %v7230 = vld [vmem:[#allocation5 + $0x38] sm:$0xff]
  %v7231 = vld [vmem:[#allocation5 + $0x40] sm:$0xff]
  %v7232 = vld [vmem:[#allocation5 + $0x50] sm:$0xff]
  %v7233 = vld [vmem:[#allocation5 + $0x58] sm:$0xff]
  %v7234 = vld [vmem:[#allocation5 + $0x60] sm:$0xff]
  %v7235 = vld [vmem:[#allocation5 + $0x68] sm:$0xff]
  %v7236 = vld [vmem:[#allocation5 + $0x70] sm:$0xff]
  %v7237 = vld [vmem:[#allocation5 + $0x78] sm:$0xff]
  %v7238 = vld [vmem:[#allocation5 + $0x80] sm:$0xff]
  %v7239 = vld [vmem:[#allocation5 + $0x88] sm:$0xff]
  %v7240 = vpack.c.bf16 %v7225, %v7224
  %v7241 = vpack.c.bf16 %v7227, %v7226
  %v7242 = vpack.c.bf16 %v7229, %v7228
  %v7243 = vpack.c.bf16 %v7231, %v7230
  %v7244 = vpack.c.bf16 %v7233, %v7232
  %v7245 = vpack.c.bf16 %v7235, %v7234
  %v7246 = vpack.c.bf16 %v7237, %v7236
  %v7247 = vpack.c.bf16 %v7239, %v7238
  %s7248 = scalar_lea.vmem %s2, 1984
  %v7249 = vld [vmem:[%s7248] sm:$0xf]
  %v7251 = vsel %vm124, %v7240, 0
  %v7254 = vsel %vm124, %v7241, 0
  %v7257 = vsel %vm124, %v7242, 0
  %v7260 = vsel %vm124, %v7243, 0
  %v7263 = vsel %vm124, %v7244, 0
  %v7266 = vsel %vm124, %v7245, 0
  %v7269 = vsel %vm124, %v7246, 0
  %v7272 = vsel %vm124, %v7247, 0
  %v7275 = vsel %vm128, %v7249, 0
  %7277 = vmatprep.subr.bf16.mxu0 0
  %7278 = vmatpush1.bf16.msra.mxu0 0
  %7279 = vmatprep.subr.bf16.mxu0 0
  %7280 = vmatpush1.bf16.msra.mxu0 0
  %7281 = vmatprep.subr.bf16.mxu0 0
  %7282 = vmatpush1.bf16.msra.mxu0 0
  %7283 = vmatprep.subr.bf16.mxu0 0
  %7284 = vmatpush1.bf16.msra.mxu0 0
  %7285 = vmatprep.subr.bf16.mxu0 0
  %7286 = vmatpush1.bf16.msra.mxu0 0
  %7287 = vmatprep.subr.bf16.mxu0 0
  %7288 = vmatpush1.bf16.msra.mxu0 0
  %7289 = vmatprep.subr.bf16.mxu0 0
  %7290 = vmatpush1.bf16.msra.mxu0 0
  %7291 = vmatprep.subr.bf16.mxu0 0
  %7292 = vmatpush1.bf16.msra.mxu0 %v7275
  %7293 = vmatprep.subr.bf16.mxu0 0
  %7294 = vmatpush2.bf16.msra.mxu0 0
  %7295 = vmatprep.subr.bf16.mxu0 0
  %7296 = vmatpush2.bf16.msra.mxu0 0
  %7297 = vmatprep.subr.bf16.mxu0 0
  %7298 = vmatpush2.bf16.msra.mxu0 0
  %7299 = vmatprep.subr.bf16.mxu0 0
  %7300 = vmatpush2.bf16.msra.mxu0 0
  %7301 = vmatprep.subr.bf16.mxu0 0
  %7302 = vmatpush2.bf16.msra.mxu0 0
  %7303 = vmatprep.subr.bf16.mxu0 0
  %7304 = vmatpush2.bf16.msra.mxu0 0
  %7305 = vmatprep.subr.bf16.mxu0 0
  %7306 = vmatpush2.bf16.msra.mxu0 0
  %7307 = vmatprep.subr.bf16.mxu0 0
  %7308 = vmatpush2.bf16.msra.mxu0 0
  %7309 = vmatprep.mubr.bf16.mxu0 0
  %7310 = vmatmul.mubr.bf16.gmra.mxu0 %v7251
  %v7311 = vpop.f32.mrf.mxu0
  %v7312 = vadd.f32 0.0, %v7311
  %v7313 = vpop.f32.mrf.mxu0
  %v7314 = vpop.f32.mrf.mxu0
  %v7315 = vadd.f32 0.0, %v7314
  %v7316 = vpop.f32.mrf.mxu0
  %7317 = vmatprep.mubr.bf16.mxu0 0
  %7318 = vmatmul.mubr.bf16.gmra.mxu0 %v7254
  %v7319 = vpop.f32.mrf.mxu0
  %v7320 = vadd.f32 0.0, %v7319
  %v7321 = vpop.f32.mrf.mxu0
  %v7322 = vpop.f32.mrf.mxu0
  %v7323 = vadd.f32 0.0, %v7322
  %v7324 = vpop.f32.mrf.mxu0
  %7325 = vmatprep.mubr.bf16.mxu0 0
  %7326 = vmatmul.mubr.bf16.gmra.mxu0 %v7257
  %v7327 = vpop.f32.mrf.mxu0
  %v7328 = vadd.f32 0.0, %v7327
  %v7329 = vpop.f32.mrf.mxu0
  %v7330 = vpop.f32.mrf.mxu0
  %v7331 = vadd.f32 0.0, %v7330
  %v7332 = vpop.f32.mrf.mxu0
  %7333 = vmatprep.mubr.bf16.mxu0 0
  %7334 = vmatmul.mubr.bf16.gmra.mxu0 %v7260
  %v7335 = vpop.f32.mrf.mxu0
  %v7336 = vadd.f32 0.0, %v7335
  %v7337 = vpop.f32.mrf.mxu0
  %v7338 = vpop.f32.mrf.mxu0
  %v7339 = vadd.f32 0.0, %v7338
  %v7340 = vpop.f32.mrf.mxu0
  %7341 = vmatprep.mubr.bf16.mxu0 0
  %7342 = vmatmul.mubr.bf16.gmra.mxu0 %v7263
  %v7343 = vpop.f32.mrf.mxu0
  %v7344 = vadd.f32 0.0, %v7343
  %v7345 = vpop.f32.mrf.mxu0
  %v7346 = vpop.f32.mrf.mxu0
  %v7347 = vadd.f32 0.0, %v7346
  %v7348 = vpop.f32.mrf.mxu0
  %7349 = vmatprep.mubr.bf16.mxu0 0
  %7350 = vmatmul.mubr.bf16.gmra.mxu0 %v7266
  %v7351 = vpop.f32.mrf.mxu0
  %v7352 = vadd.f32 0.0, %v7351
  %v7353 = vpop.f32.mrf.mxu0
  %v7354 = vpop.f32.mrf.mxu0
  %v7355 = vadd.f32 0.0, %v7354
  %v7356 = vpop.f32.mrf.mxu0
  %7357 = vmatprep.mubr.bf16.mxu0 0
  %7358 = vmatmul.mubr.bf16.gmra.mxu0 %v7269
  %v7359 = vpop.f32.mrf.mxu0
  %v7360 = vadd.f32 0.0, %v7359
  %v7361 = vpop.f32.mrf.mxu0
  %v7362 = vpop.f32.mrf.mxu0
  %v7363 = vadd.f32 0.0, %v7362
  %v7364 = vpop.f32.mrf.mxu0
  %7365 = vmatprep.mubr.bf16.mxu0 0
  %7366 = vmatmul.mubr.bf16.gmra.mxu0 %v7272
  %v7367 = vpop.f32.mrf.mxu0
  %v7368 = vadd.f32 0.0, %v7367
  %v7369 = vpop.f32.mrf.mxu0
  %v7370 = vpop.f32.mrf.mxu0
  %v7371 = vadd.f32 0.0, %v7370
  %v7372 = vpop.f32.mrf.mxu0
  %7373 = vdwg.mxu0
  %v7375 = vsel %vm124, %v6552, 0
  %v7378 = vsel %vm124, %v6553, 0
  %v7381 = vsel %vm124, %v6554, 0
  %v7384 = vsel %vm124, %v6555, 0
  %v7387 = vsel %vm124, %v6556, 0
  %v7390 = vsel %vm124, %v6557, 0
  %v7393 = vsel %vm124, %v6558, 0
  %v7396 = vsel %vm124, %v6559, 0
  %v7399 = vsel %vm128, %v6561, 0
  %7401 = vmatprep.subr.bf16.mxu0 0
  %7402 = vmatpush1.bf16.msra.mxu0 0
  %7403 = vmatprep.subr.bf16.mxu0 0
  %7404 = vmatpush1.bf16.msra.mxu0 0
  %7405 = vmatprep.subr.bf16.mxu0 0
  %7406 = vmatpush1.bf16.msra.mxu0 0
  %7407 = vmatprep.subr.bf16.mxu0 0
  %7408 = vmatpush1.bf16.msra.mxu0 0
  %7409 = vmatprep.subr.bf16.mxu0 0
  %7410 = vmatpush1.bf16.msra.mxu0 0
  %7411 = vmatprep.subr.bf16.mxu0 0
  %7412 = vmatpush1.bf16.msra.mxu0 0
  %7413 = vmatprep.subr.bf16.mxu0 0
  %7414 = vmatpush1.bf16.msra.mxu0 0
  %7415 = vmatprep.subr.bf16.mxu0 0
  %7416 = vmatpush1.bf16.msra.mxu0 %v7399
  %7417 = vmatprep.subr.bf16.mxu0 0
  %7418 = vmatpush2.bf16.msra.mxu0 0
  %7419 = vmatprep.subr.bf16.mxu0 0
  %7420 = vmatpush2.bf16.msra.mxu0 0
  %7421 = vmatprep.subr.bf16.mxu0 0
  %7422 = vmatpush2.bf16.msra.mxu0 0
  %7423 = vmatprep.subr.bf16.mxu0 0
  %7424 = vmatpush2.bf16.msra.mxu0 0
  %7425 = vmatprep.subr.bf16.mxu0 0
  %7426 = vmatpush2.bf16.msra.mxu0 0
  %7427 = vmatprep.subr.bf16.mxu0 0
  %7428 = vmatpush2.bf16.msra.mxu0 0
  %7429 = vmatprep.subr.bf16.mxu0 0
  %7430 = vmatpush2.bf16.msra.mxu0 0
  %7431 = vmatprep.subr.bf16.mxu0 0
  %7432 = vmatpush2.bf16.msra.mxu0 0
  %7433 = vmatprep.mubr.bf16.mxu0 0
  %7434 = vmatmul.mubr.bf16.gmra.mxu0 %v7375
  %v7435 = vpop.f32.mrf.mxu0
  %v7436 = vadd.f32 %v6650, %v7435
  %v7437 = vpop.f32.mrf.mxu0
  %v7438 = vpop.f32.mrf.mxu0
  %v7439 = vadd.f32 %v6653, %v7438
  %v7440 = vpop.f32.mrf.mxu0
  %7441 = vmatprep.mubr.bf16.mxu0 0
  %7442 = vmatmul.mubr.bf16.gmra.mxu0 %v7378
  %v7443 = vpop.f32.mrf.mxu0
  %v7444 = vadd.f32 %v6658, %v7443
  %v7445 = vpop.f32.mrf.mxu0
  %v7446 = vpop.f32.mrf.mxu0
  %v7447 = vadd.f32 %v6661, %v7446
  %v7448 = vpop.f32.mrf.mxu0
  %7449 = vmatprep.mubr.bf16.mxu0 0
  %7450 = vmatmul.mubr.bf16.gmra.mxu0 %v7381
  %v7451 = vpop.f32.mrf.mxu0
  %v7452 = vadd.f32 %v6666, %v7451
  %v7453 = vpop.f32.mrf.mxu0
  %v7454 = vpop.f32.mrf.mxu0
  %v7455 = vadd.f32 %v6669, %v7454
  %v7456 = vpop.f32.mrf.mxu0
  %7457 = vmatprep.mubr.bf16.mxu0 0
  %7458 = vmatmul.mubr.bf16.gmra.mxu0 %v7384
  %v7459 = vpop.f32.mrf.mxu0
  %v7460 = vadd.f32 %v6674, %v7459
  %v7461 = vpop.f32.mrf.mxu0
  %v7462 = vpop.f32.mrf.mxu0
  %v7463 = vadd.f32 %v6677, %v7462
  %v7464 = vpop.f32.mrf.mxu0
  %7465 = vmatprep.mubr.bf16.mxu0 0
  %7466 = vmatmul.mubr.bf16.gmra.mxu0 %v7387
  %v7467 = vpop.f32.mrf.mxu0
  %v7468 = vadd.f32 %v6682, %v7467
  %v7469 = vpop.f32.mrf.mxu0
  %v7470 = vpop.f32.mrf.mxu0
  %v7471 = vadd.f32 %v6685, %v7470
  %v7472 = vpop.f32.mrf.mxu0
  %7473 = vmatprep.mubr.bf16.mxu0 0
  %7474 = vmatmul.mubr.bf16.gmra.mxu0 %v7390
  %v7475 = vpop.f32.mrf.mxu0
  %v7476 = vadd.f32 %v6690, %v7475
  %v7477 = vpop.f32.mrf.mxu0
  %v7478 = vpop.f32.mrf.mxu0
  %v7479 = vadd.f32 %v6693, %v7478
  %v7480 = vpop.f32.mrf.mxu0
  %7481 = vmatprep.mubr.bf16.mxu0 0
  %7482 = vmatmul.mubr.bf16.gmra.mxu0 %v7393
  %v7483 = vpop.f32.mrf.mxu0
  %v7484 = vadd.f32 %v6698, %v7483
  %v7485 = vpop.f32.mrf.mxu0
  %v7486 = vpop.f32.mrf.mxu0
  %v7487 = vadd.f32 %v6701, %v7486
  %v7488 = vpop.f32.mrf.mxu0
  %7489 = vmatprep.mubr.bf16.mxu0 0
  %7490 = vmatmul.mubr.bf16.gmra.mxu0 %v7396
  %v7491 = vpop.f32.mrf.mxu0
  %v7492 = vadd.f32 %v6706, %v7491
  %v7493 = vpop.f32.mrf.mxu0
  %v7494 = vpop.f32.mrf.mxu0
  %v7495 = vadd.f32 %v6709, %v7494
  %v7496 = vpop.f32.mrf.mxu0
  %7497 = vdwg.mxu0
  %v7499 = vsel %vm124, %v6728, 0
  %v7502 = vsel %vm124, %v6729, 0
  %v7505 = vsel %vm124, %v6730, 0
  %v7508 = vsel %vm124, %v6731, 0
  %v7511 = vsel %vm124, %v6732, 0
  %v7514 = vsel %vm124, %v6733, 0
  %v7517 = vsel %vm124, %v6734, 0
  %v7520 = vsel %vm124, %v6735, 0
  %v7523 = vsel %vm128, %v6737, 0
  %7525 = vmatprep.subr.bf16.mxu0 0
  %7526 = vmatpush1.bf16.msra.mxu0 0
  %7527 = vmatprep.subr.bf16.mxu0 0
  %7528 = vmatpush1.bf16.msra.mxu0 0
  %7529 = vmatprep.subr.bf16.mxu0 0
  %7530 = vmatpush1.bf16.msra.mxu0 0
  %7531 = vmatprep.subr.bf16.mxu0 0
  %7532 = vmatpush1.bf16.msra.mxu0 0
  %7533 = vmatprep.subr.bf16.mxu0 0
  %7534 = vmatpush1.bf16.msra.mxu0 0
  %7535 = vmatprep.subr.bf16.mxu0 0
  %7536 = vmatpush1.bf16.msra.mxu0 0
  %7537 = vmatprep.subr.bf16.mxu0 0
  %7538 = vmatpush1.bf16.msra.mxu0 0
  %7539 = vmatprep.subr.bf16.mxu0 0
  %7540 = vmatpush1.bf16.msra.mxu0 %v7523
  %7541 = vmatprep.subr.bf16.mxu0 0
  %7542 = vmatpush2.bf16.msra.mxu0 0
  %7543 = vmatprep.subr.bf16.mxu0 0
  %7544 = vmatpush2.bf16.msra.mxu0 0
  %7545 = vmatprep.subr.bf16.mxu0 0
  %7546 = vmatpush2.bf16.msra.mxu0 0
  %7547 = vmatprep.subr.bf16.mxu0 0
  %7548 = vmatpush2.bf16.msra.mxu0 0
  %7549 = vmatprep.subr.bf16.mxu0 0
  %7550 = vmatpush2.bf16.msra.mxu0 0
  %7551 = vmatprep.subr.bf16.mxu0 0
  %7552 = vmatpush2.bf16.msra.mxu0 0
  %7553 = vmatprep.subr.bf16.mxu0 0
  %7554 = vmatpush2.bf16.msra.mxu0 0
  %7555 = vmatprep.subr.bf16.mxu0 0
  %7556 = vmatpush2.bf16.msra.mxu0 0
  %7557 = vmatprep.mubr.bf16.mxu0 0
  %7558 = vmatmul.mubr.bf16.gmra.mxu0 %v7499
  %v7559 = vpop.f32.mrf.mxu0
  %v7560 = vadd.f32 %v6826, %v7559
  %v7561 = vpop.f32.mrf.mxu0
  %v7562 = vpop.f32.mrf.mxu0
  %v7563 = vadd.f32 %v6829, %v7562
  %v7564 = vpop.f32.mrf.mxu0
  %7565 = vmatprep.mubr.bf16.mxu0 0
  %7566 = vmatmul.mubr.bf16.gmra.mxu0 %v7502
  %v7567 = vpop.f32.mrf.mxu0
  %v7568 = vadd.f32 %v6834, %v7567
  %v7569 = vpop.f32.mrf.mxu0
  %v7570 = vpop.f32.mrf.mxu0
  %v7571 = vadd.f32 %v6837, %v7570
  %v7572 = vpop.f32.mrf.mxu0
  %7573 = vmatprep.mubr.bf16.mxu0 0
  %7574 = vmatmul.mubr.bf16.gmra.mxu0 %v7505
  %v7575 = vpop.f32.mrf.mxu0
  %v7576 = vadd.f32 %v6842, %v7575
  %v7577 = vpop.f32.mrf.mxu0
  %v7578 = vpop.f32.mrf.mxu0
  %v7579 = vadd.f32 %v6845, %v7578
  %v7580 = vpop.f32.mrf.mxu0
  %7581 = vmatprep.mubr.bf16.mxu0 0
  %7582 = vmatmul.mubr.bf16.gmra.mxu0 %v7508
  %v7583 = vpop.f32.mrf.mxu0
  %v7584 = vadd.f32 %v6850, %v7583
  %v7585 = vpop.f32.mrf.mxu0
  %v7586 = vpop.f32.mrf.mxu0
  %v7587 = vadd.f32 %v6853, %v7586
  %v7588 = vpop.f32.mrf.mxu0
  %7589 = vmatprep.mubr.bf16.mxu0 0
  %7590 = vmatmul.mubr.bf16.gmra.mxu0 %v7511
  %v7591 = vpop.f32.mrf.mxu0
  %v7592 = vadd.f32 %v6858, %v7591
  %v7593 = vpop.f32.mrf.mxu0
  %v7594 = vpop.f32.mrf.mxu0
  %v7595 = vadd.f32 %v6861, %v7594
  %v7596 = vpop.f32.mrf.mxu0
  %7597 = vmatprep.mubr.bf16.mxu0 0
  %7598 = vmatmul.mubr.bf16.gmra.mxu0 %v7514
  %v7599 = vpop.f32.mrf.mxu0
  %v7600 = vadd.f32 %v6866, %v7599
  %v7601 = vpop.f32.mrf.mxu0
  %v7602 = vpop.f32.mrf.mxu0
  %v7603 = vadd.f32 %v6869, %v7602
  %v7604 = vpop.f32.mrf.mxu0
  %7605 = vmatprep.mubr.bf16.mxu0 0
  %7606 = vmatmul.mubr.bf16.gmra.mxu0 %v7517
  %v7607 = vpop.f32.mrf.mxu0
  %v7608 = vadd.f32 %v6874, %v7607
  %v7609 = vpop.f32.mrf.mxu0
  %v7610 = vpop.f32.mrf.mxu0
  %v7611 = vadd.f32 %v6877, %v7610
  %v7612 = vpop.f32.mrf.mxu0
  %7613 = vmatprep.mubr.bf16.mxu0 0
  %7614 = vmatmul.mubr.bf16.gmra.mxu0 %v7520
  %v7615 = vpop.f32.mrf.mxu0
  %v7616 = vadd.f32 %v6882, %v7615
  %v7617 = vpop.f32.mrf.mxu0
  %v7618 = vpop.f32.mrf.mxu0
  %v7619 = vadd.f32 %v6885, %v7618
  %v7620 = vpop.f32.mrf.mxu0
  %7621 = vdwg.mxu0
  %v7623 = vsel %vm124, %v6888, 0
  %v7626 = vsel %vm124, %v6889, 0
  %v7629 = vsel %vm124, %v6890, 0
  %v7632 = vsel %vm124, %v6891, 0
  %v7635 = vsel %vm124, %v6892, 0
  %v7638 = vsel %vm124, %v6893, 0
  %v7641 = vsel %vm124, %v6894, 0
  %v7644 = vsel %vm124, %v6895, 0
  %v7647 = vsel %vm128, %v6897, 0
  %7649 = vmatprep.subr.bf16.mxu0 0
  %7650 = vmatpush1.bf16.msra.mxu0 0
  %7651 = vmatprep.subr.bf16.mxu0 0
  %7652 = vmatpush1.bf16.msra.mxu0 0
  %7653 = vmatprep.subr.bf16.mxu0 0
  %7654 = vmatpush1.bf16.msra.mxu0 0
  %7655 = vmatprep.subr.bf16.mxu0 0
  %7656 = vmatpush1.bf16.msra.mxu0 0
  %7657 = vmatprep.subr.bf16.mxu0 0
  %7658 = vmatpush1.bf16.msra.mxu0 0
  %7659 = vmatprep.subr.bf16.mxu0 0
  %7660 = vmatpush1.bf16.msra.mxu0 0
  %7661 = vmatprep.subr.bf16.mxu0 0
  %7662 = vmatpush1.bf16.msra.mxu0 0
  %7663 = vmatprep.subr.bf16.mxu0 0
  %7664 = vmatpush1.bf16.msra.mxu0 %v7647
  %7665 = vmatprep.subr.bf16.mxu0 0
  %7666 = vmatpush2.bf16.msra.mxu0 0
  %7667 = vmatprep.subr.bf16.mxu0 0
  %7668 = vmatpush2.bf16.msra.mxu0 0
  %7669 = vmatprep.subr.bf16.mxu0 0
  %7670 = vmatpush2.bf16.msra.mxu0 0
  %7671 = vmatprep.subr.bf16.mxu0 0
  %7672 = vmatpush2.bf16.msra.mxu0 0
  %7673 = vmatprep.subr.bf16.mxu0 0
  %7674 = vmatpush2.bf16.msra.mxu0 0
  %7675 = vmatprep.subr.bf16.mxu0 0
  %7676 = vmatpush2.bf16.msra.mxu0 0
  %7677 = vmatprep.subr.bf16.mxu0 0
  %7678 = vmatpush2.bf16.msra.mxu0 0
  %7679 = vmatprep.subr.bf16.mxu0 0
  %7680 = vmatpush2.bf16.msra.mxu0 0
  %7681 = vmatprep.mubr.bf16.mxu0 0
  %7682 = vmatmul.mubr.bf16.gmra.mxu0 %v7623
  %v7683 = vpop.f32.mrf.mxu0
  %v7684 = vadd.f32 %v6986, %v7683
  %v7685 = vpop.f32.mrf.mxu0
  %v7686 = vpop.f32.mrf.mxu0
  %v7687 = vadd.f32 %v6989, %v7686
  %v7688 = vpop.f32.mrf.mxu0
  %7689 = vmatprep.mubr.bf16.mxu0 0
  %7690 = vmatmul.mubr.bf16.gmra.mxu0 %v7626
  %v7691 = vpop.f32.mrf.mxu0
  %v7692 = vadd.f32 %v6994, %v7691
  %v7693 = vpop.f32.mrf.mxu0
  %v7694 = vpop.f32.mrf.mxu0
  %v7695 = vadd.f32 %v6997, %v7694
  %v7696 = vpop.f32.mrf.mxu0
  %7697 = vmatprep.mubr.bf16.mxu0 0
  %7698 = vmatmul.mubr.bf16.gmra.mxu0 %v7629
  %v7699 = vpop.f32.mrf.mxu0
  %v7700 = vadd.f32 %v7002, %v7699
  %v7701 = vpop.f32.mrf.mxu0
  %v7702 = vpop.f32.mrf.mxu0
  %v7703 = vadd.f32 %v7005, %v7702
  %v7704 = vpop.f32.mrf.mxu0
  %7705 = vmatprep.mubr.bf16.mxu0 0
  %7706 = vmatmul.mubr.bf16.gmra.mxu0 %v7632
  %v7707 = vpop.f32.mrf.mxu0
  %v7708 = vadd.f32 %v7010, %v7707
  %v7709 = vpop.f32.mrf.mxu0
  %v7710 = vpop.f32.mrf.mxu0
  %v7711 = vadd.f32 %v7013, %v7710
  %v7712 = vpop.f32.mrf.mxu0
  %7713 = vmatprep.mubr.bf16.mxu0 0
  %7714 = vmatmul.mubr.bf16.gmra.mxu0 %v7635
  %v7715 = vpop.f32.mrf.mxu0
  %v7716 = vadd.f32 %v7018, %v7715
  %v7717 = vpop.f32.mrf.mxu0
  %v7718 = vpop.f32.mrf.mxu0
  %v7719 = vadd.f32 %v7021, %v7718
  %v7720 = vpop.f32.mrf.mxu0
  %7721 = vmatprep.mubr.bf16.mxu0 0
  %7722 = vmatmul.mubr.bf16.gmra.mxu0 %v7638
  %v7723 = vpop.f32.mrf.mxu0
  %v7724 = vadd.f32 %v7026, %v7723
  %v7725 = vpop.f32.mrf.mxu0
  %v7726 = vpop.f32.mrf.mxu0
  %v7727 = vadd.f32 %v7029, %v7726
  %v7728 = vpop.f32.mrf.mxu0
  %7729 = vmatprep.mubr.bf16.mxu0 0
  %7730 = vmatmul.mubr.bf16.gmra.mxu0 %v7641
  %v7731 = vpop.f32.mrf.mxu0
  %v7732 = vadd.f32 %v7034, %v7731
  %v7733 = vpop.f32.mrf.mxu0
  %v7734 = vpop.f32.mrf.mxu0
  %v7735 = vadd.f32 %v7037, %v7734
  %v7736 = vpop.f32.mrf.mxu0
  %7737 = vmatprep.mubr.bf16.mxu0 0
  %7738 = vmatmul.mubr.bf16.gmra.mxu0 %v7644
  %v7739 = vpop.f32.mrf.mxu0
  %v7740 = vadd.f32 %v7042, %v7739
  %v7741 = vpop.f32.mrf.mxu0
  %v7742 = vpop.f32.mrf.mxu0
  %v7743 = vadd.f32 %v7045, %v7742
  %v7744 = vpop.f32.mrf.mxu0
  %7745 = vdwg.mxu0
  %v7747 = vsel %vm124, %v7064, 0
  %v7750 = vsel %vm124, %v7065, 0
  %v7753 = vsel %vm124, %v7066, 0
  %v7756 = vsel %vm124, %v7067, 0
  %v7759 = vsel %vm124, %v7068, 0
  %v7762 = vsel %vm124, %v7069, 0
  %v7765 = vsel %vm124, %v7070, 0
  %v7768 = vsel %vm124, %v7071, 0
  %v7771 = vsel %vm128, %v7073, 0
  %7773 = vmatprep.subr.bf16.mxu0 0
  %7774 = vmatpush1.bf16.msra.mxu0 0
  %7775 = vmatprep.subr.bf16.mxu0 0
  %7776 = vmatpush1.bf16.msra.mxu0 0
  %7777 = vmatprep.subr.bf16.mxu0 0
  %7778 = vmatpush1.bf16.msra.mxu0 0
  %7779 = vmatprep.subr.bf16.mxu0 0
  %7780 = vmatpush1.bf16.msra.mxu0 0
  %7781 = vmatprep.subr.bf16.mxu0 0
  %7782 = vmatpush1.bf16.msra.mxu0 0
  %7783 = vmatprep.subr.bf16.mxu0 0
  %7784 = vmatpush1.bf16.msra.mxu0 0
  %7785 = vmatprep.subr.bf16.mxu0 0
  %7786 = vmatpush1.bf16.msra.mxu0 0
  %7787 = vmatprep.subr.bf16.mxu0 0
  %7788 = vmatpush1.bf16.msra.mxu0 %v7771
  %7789 = vmatprep.subr.bf16.mxu0 0
  %7790 = vmatpush2.bf16.msra.mxu0 0
  %7791 = vmatprep.subr.bf16.mxu0 0
  %7792 = vmatpush2.bf16.msra.mxu0 0
  %7793 = vmatprep.subr.bf16.mxu0 0
  %7794 = vmatpush2.bf16.msra.mxu0 0
  %7795 = vmatprep.subr.bf16.mxu0 0
  %7796 = vmatpush2.bf16.msra.mxu0 0
  %7797 = vmatprep.subr.bf16.mxu0 0
  %7798 = vmatpush2.bf16.msra.mxu0 0
  %7799 = vmatprep.subr.bf16.mxu0 0
  %7800 = vmatpush2.bf16.msra.mxu0 0
  %7801 = vmatprep.subr.bf16.mxu0 0
  %7802 = vmatpush2.bf16.msra.mxu0 0
  %7803 = vmatprep.subr.bf16.mxu0 0
  %7804 = vmatpush2.bf16.msra.mxu0 0
  %7805 = vmatprep.mubr.bf16.mxu0 0
  %7806 = vmatmul.mubr.bf16.gmra.mxu0 %v7747
  %v7807 = vpop.f32.mrf.mxu0
  %v7808 = vadd.f32 %v7162, %v7807
  %v7809 = vpop.f32.mrf.mxu0
  %v7810 = vpop.f32.mrf.mxu0
  %v7811 = vadd.f32 %v7165, %v7810
  %v7812 = vpop.f32.mrf.mxu0
  %7813 = vmatprep.mubr.bf16.mxu0 0
  %7814 = vmatmul.mubr.bf16.gmra.mxu0 %v7750
  %v7815 = vpop.f32.mrf.mxu0
  %v7816 = vadd.f32 %v7170, %v7815
  %v7817 = vpop.f32.mrf.mxu0
  %v7818 = vpop.f32.mrf.mxu0
  %v7819 = vadd.f32 %v7173, %v7818
  %v7820 = vpop.f32.mrf.mxu0
  %7821 = vmatprep.mubr.bf16.mxu0 0
  %7822 = vmatmul.mubr.bf16.gmra.mxu0 %v7753
  %v7823 = vpop.f32.mrf.mxu0
  %v7824 = vadd.f32 %v7178, %v7823
  %v7825 = vpop.f32.mrf.mxu0
  %v7826 = vpop.f32.mrf.mxu0
  %v7827 = vadd.f32 %v7181, %v7826
  %v7828 = vpop.f32.mrf.mxu0
  %7829 = vmatprep.mubr.bf16.mxu0 0
  %7830 = vmatmul.mubr.bf16.gmra.mxu0 %v7756
  %v7831 = vpop.f32.mrf.mxu0
  %v7832 = vadd.f32 %v7186, %v7831
  %v7833 = vpop.f32.mrf.mxu0
  %v7834 = vpop.f32.mrf.mxu0
  %v7835 = vadd.f32 %v7189, %v7834
  %v7836 = vpop.f32.mrf.mxu0
  %7837 = vmatprep.mubr.bf16.mxu0 0
  %7838 = vmatmul.mubr.bf16.gmra.mxu0 %v7759
  %v7839 = vpop.f32.mrf.mxu0
  %v7840 = vadd.f32 %v7194, %v7839
  %v7841 = vpop.f32.mrf.mxu0
  %v7842 = vpop.f32.mrf.mxu0
  %v7843 = vadd.f32 %v7197, %v7842
  %v7844 = vpop.f32.mrf.mxu0
  %7845 = vmatprep.mubr.bf16.mxu0 0
  %7846 = vmatmul.mubr.bf16.gmra.mxu0 %v7762
  %v7847 = vpop.f32.mrf.mxu0
  %v7848 = vadd.f32 %v7202, %v7847
  %v7849 = vpop.f32.mrf.mxu0
  %v7850 = vpop.f32.mrf.mxu0
  %v7851 = vadd.f32 %v7205, %v7850
  %v7852 = vpop.f32.mrf.mxu0
  %7853 = vmatprep.mubr.bf16.mxu0 0
  %7854 = vmatmul.mubr.bf16.gmra.mxu0 %v7765
  %v7855 = vpop.f32.mrf.mxu0
  %v7856 = vadd.f32 %v7210, %v7855
  %v7857 = vpop.f32.mrf.mxu0
  %v7858 = vpop.f32.mrf.mxu0
  %v7859 = vadd.f32 %v7213, %v7858
  %v7860 = vpop.f32.mrf.mxu0
  %7861 = vmatprep.mubr.bf16.mxu0 0
  %7862 = vmatmul.mubr.bf16.gmra.mxu0 %v7768
  %v7863 = vpop.f32.mrf.mxu0
  %v7864 = vadd.f32 %v7218, %v7863
  %v7865 = vpop.f32.mrf.mxu0
  %v7866 = vpop.f32.mrf.mxu0
  %v7867 = vadd.f32 %v7221, %v7866
  %v7868 = vpop.f32.mrf.mxu0
  %7869 = vdwg.mxu0
  %v7870 = vadd.f32 %v7436, %v7560
  %v7871 = vadd.f32 %v7439, %v7563
  %v7872 = vadd.f32 %v7444, %v7568
  %v7873 = vadd.f32 %v7447, %v7571
  %v7874 = vadd.f32 %v7452, %v7576
  %v7875 = vadd.f32 %v7455, %v7579
  %v7876 = vadd.f32 %v7460, %v7584
  %v7877 = vadd.f32 %v7463, %v7587
  %v7878 = vadd.f32 %v7468, %v7592
  %v7879 = vadd.f32 %v7471, %v7595
  %v7880 = vadd.f32 %v7476, %v7600
  %v7881 = vadd.f32 %v7479, %v7603
  %v7882 = vadd.f32 %v7484, %v7608
  %v7883 = vadd.f32 %v7487, %v7611
  %v7884 = vadd.f32 %v7492, %v7616
  %v7885 = vadd.f32 %v7495, %v7619
  %v7886 = vadd.f32 %v7684, %v7808
  %v7887 = vadd.f32 %v7687, %v7811
  %v7888 = vadd.f32 %v7692, %v7816
  %v7889 = vadd.f32 %v7695, %v7819
  %v7890 = vadd.f32 %v7700, %v7824
  %v7891 = vadd.f32 %v7703, %v7827
  %v7892 = vadd.f32 %v7708, %v7832
  %v7893 = vadd.f32 %v7711, %v7835
  %v7894 = vadd.f32 %v7716, %v7840
  %v7895 = vadd.f32 %v7719, %v7843
  %v7896 = vadd.f32 %v7724, %v7848
  %v7897 = vadd.f32 %v7727, %v7851
  %v7898 = vadd.f32 %v7732, %v7856
  %v7899 = vadd.f32 %v7735, %v7859
  %v7900 = vadd.f32 %v7740, %v7864
  %v7901 = vadd.f32 %v7743, %v7867
  %v7902 = vadd.f32 %v7870, %v7886
  %v7903 = vadd.f32 %v7871, %v7887
  %v7904 = vadd.f32 %v7872, %v7888
  %v7905 = vadd.f32 %v7873, %v7889
  %v7906 = vadd.f32 %v7874, %v7890
  %v7907 = vadd.f32 %v7875, %v7891
  %v7908 = vadd.f32 %v7876, %v7892
  %v7909 = vadd.f32 %v7877, %v7893
  %v7910 = vadd.f32 %v7878, %v7894
  %v7911 = vadd.f32 %v7879, %v7895
  %v7912 = vadd.f32 %v7880, %v7896
  %v7913 = vadd.f32 %v7881, %v7897
  %v7914 = vadd.f32 %v7882, %v7898
  %v7915 = vadd.f32 %v7883, %v7899
  %v7916 = vadd.f32 %v7884, %v7900
  %v7917 = vadd.f32 %v7885, %v7901
  %v7918 = vadd.f32 %v7902, %v7312
  %v7919 = vadd.f32 %v7903, %v7315
  %v7920 = vadd.f32 %v7904, %v7320
  %v7921 = vadd.f32 %v7905, %v7323
  %v7922 = vadd.f32 %v7906, %v7328
  %v7923 = vadd.f32 %v7907, %v7331
  %v7924 = vadd.f32 %v7908, %v7336
  %v7925 = vadd.f32 %v7909, %v7339
  %v7926 = vadd.f32 %v7910, %v7344
  %v7927 = vadd.f32 %v7911, %v7347
  %v7928 = vadd.f32 %v7912, %v7352
  %v7929 = vadd.f32 %v7913, %v7355
  %v7930 = vadd.f32 %v7914, %v7360
  %v7931 = vadd.f32 %v7915, %v7363
  %v7932 = vadd.f32 %v7916, %v7368
  %v7933 = vadd.f32 %v7917, %v7371
  %s7934 = scalar_lea.vmem %s3, 6
  %v7935 = vld [vmem:[%s7934] sm:$0x1]
  %v7937 = vlaneseq
  %v7938 = vshrl.u32 %v7937, 7
  %v7939 = vsub.s32 0, %v7938
  %v7940 = vrot.slane %v7935, %v7939
  %v7942 = vadd.f32 %v7918, %v7940
  %v7943 = vadd.f32 %v7919, %v7940
  %v7944 = vadd.f32 %v7920, %v7940
  %v7945 = vadd.f32 %v7921, %v7940
  %v7946 = vadd.f32 %v7922, %v7940
  %v7947 = vadd.f32 %v7923, %v7940
  %v7948 = vadd.f32 %v7924, %v7940
  %v7949 = vadd.f32 %v7925, %v7940
  %v7950 = vadd.f32 %v7926, %v7940
  %v7951 = vadd.f32 %v7927, %v7940
  %v7952 = vadd.f32 %v7928, %v7940
  %v7953 = vadd.f32 %v7929, %v7940
  %v7954 = vadd.f32 %v7930, %v7940
  %v7955 = vadd.f32 %v7931, %v7940
  %v7956 = vadd.f32 %v7932, %v7940
  %v7957 = vadd.f32 %v7933, %v7940
  %v7958 = vsel %vm124, %v7942, 0.0
  %v7959 = vsel %vm124, %v7943, 0.0
  %v7960 = vadd.f32 %v7958, %v7959
  %v7961 = vsel %vm124, %v7944, 0.0
  %v7962 = vadd.f32 %v7960, %v7961
  %v7963 = vsel %vm124, %v7945, 0.0
  %v7964 = vadd.f32 %v7962, %v7963
  %v7965 = vsel %vm124, %v7946, 0.0
  %v7966 = vadd.f32 %v7964, %v7965
  %v7967 = vsel %vm124, %v7947, 0.0
  %v7968 = vadd.f32 %v7966, %v7967
  %v7969 = vsel %vm124, %v7948, 0.0
  %v7970 = vadd.f32 %v7968, %v7969
  %v7971 = vsel %vm124, %v7949, 0.0
  %v7972 = vadd.f32 %v7970, %v7971
  %v7973 = vrot.slane %v7972, 4
  %v7974 = vadd.f32 %v7972, %v7973
  %v7975 = vrot.slane %v7974, 2
  %v7976 = vadd.f32 %v7974, %v7975
  %v7977 = vrot.slane %v7976, 1
  %v7978 = vadd.f32 %v7976, %v7977
  %v7979 = vsel %vm124, %v7950, 0.0
  %v7980 = vsel %vm124, %v7951, 0.0
  %v7981 = vadd.f32 %v7979, %v7980
  %v7982 = vsel %vm124, %v7952, 0.0
  %v7983 = vadd.f32 %v7981, %v7982
  %v7984 = vsel %vm124, %v7953, 0.0
  %v7985 = vadd.f32 %v7983, %v7984
  %v7986 = vsel %vm124, %v7954, 0.0
  %v7987 = vadd.f32 %v7985, %v7986
  %v7988 = vsel %vm124, %v7955, 0.0
  %v7989 = vadd.f32 %v7987, %v7988
  %v7990 = vsel %vm124, %v7956, 0.0
  %v7991 = vadd.f32 %v7989, %v7990
  %v7992 = vsel %vm124, %v7957, 0.0
  %v7993 = vadd.f32 %v7991, %v7992
  %v7994 = vrot.slane %v7993, 4
  %v7995 = vadd.f32 %v7993, %v7994
  %v7996 = vrot.slane %v7995, 2
  %v7997 = vadd.f32 %v7995, %v7996
  %v7998 = vrot.slane %v7997, 1
  %v7999 = vadd.f32 %v7997, %v7998
  %v8000 = vmul.f32 %v7942, %v7942
  %v8001 = vmul.f32 %v7943, %v7943
  %v8002 = vmul.f32 %v7944, %v7944
  %v8003 = vmul.f32 %v7945, %v7945
  %v8004 = vmul.f32 %v7946, %v7946
  %v8005 = vmul.f32 %v7947, %v7947
  %v8006 = vmul.f32 %v7948, %v7948
  %v8007 = vmul.f32 %v7949, %v7949
  %v8008 = vmul.f32 %v7950, %v7950
  %v8009 = vmul.f32 %v7951, %v7951
  %v8010 = vmul.f32 %v7952, %v7952
  %v8011 = vmul.f32 %v7953, %v7953
  %v8012 = vmul.f32 %v7954, %v7954
  %v8013 = vmul.f32 %v7955, %v7955
  %v8014 = vmul.f32 %v7956, %v7956
  %v8015 = vmul.f32 %v7957, %v7957
  %v8016 = vsel %vm124, %v8000, 0.0
  %v8017 = vsel %vm124, %v8001, 0.0
  %v8018 = vadd.f32 %v8016, %v8017
  %v8019 = vsel %vm124, %v8002, 0.0
  %v8020 = vadd.f32 %v8018, %v8019
  %v8021 = vsel %vm124, %v8003, 0.0
  %v8022 = vadd.f32 %v8020, %v8021
  %v8023 = vsel %vm124, %v8004, 0.0
  %v8024 = vadd.f32 %v8022, %v8023
  %v8025 = vsel %vm124, %v8005, 0.0
  %v8026 = vadd.f32 %v8024, %v8025
  %v8027 = vsel %vm124, %v8006, 0.0
  %v8028 = vadd.f32 %v8026, %v8027
  %v8029 = vsel %vm124, %v8007, 0.0
  %v8030 = vadd.f32 %v8028, %v8029
  %v8031 = vrot.slane %v8030, 4
  %v8032 = vadd.f32 %v8030, %v8031
  %v8033 = vrot.slane %v8032, 2
  %v8034 = vadd.f32 %v8032, %v8033
  %v8035 = vrot.slane %v8034, 1
  %v8036 = vadd.f32 %v8034, %v8035
  %v8037 = vsel %vm124, %v8008, 0.0
  %v8038 = vsel %vm124, %v8009, 0.0
  %v8039 = vadd.f32 %v8037, %v8038
  %v8040 = vsel %vm124, %v8010, 0.0
  %v8041 = vadd.f32 %v8039, %v8040
  %v8042 = vsel %vm124, %v8011, 0.0
  %v8043 = vadd.f32 %v8041, %v8042
  %v8044 = vsel %vm124, %v8012, 0.0
  %v8045 = vadd.f32 %v8043, %v8044
  %v8046 = vsel %vm124, %v8013, 0.0
  %v8047 = vadd.f32 %v8045, %v8046
  %v8048 = vsel %vm124, %v8014, 0.0
  %v8049 = vadd.f32 %v8047, %v8048
  %v8050 = vsel %vm124, %v8015, 0.0
  %v8051 = vadd.f32 %v8049, %v8050
  %v8052 = vrot.slane %v8051, 4
  %v8053 = vadd.f32 %v8051, %v8052
  %v8054 = vrot.slane %v8053, 2
  %v8055 = vadd.f32 %v8053, %v8054
  %v8056 = vrot.slane %v8055, 1
  %v8057 = vadd.f32 %v8055, %v8056
  %v8058 = vmul.f32 %v7978, 0.015625
  %v8059 = vmul.f32 %v7999, 0.015625
  %v8060 = vmul.f32 %v8036, 0.015625
  %v8061 = vmul.f32 %v8057, 0.015625
  %v8062 = vmul.f32 %v8058, %v8058
  %v8063 = vmul.f32 %v8059, %v8059
  %v8064 = vsub.f32 %v8060, %v8062
  %v8065 = vsub.f32 %v8061, %v8063
  %v8066 = vsub.f32 %v7942, %v8058
  %v8067 = vsub.f32 %v7943, %v8058
  %v8068 = vsub.f32 %v7944, %v8058
  %v8069 = vsub.f32 %v7945, %v8058
  %v8070 = vsub.f32 %v7946, %v8058
  %v8071 = vsub.f32 %v7947, %v8058
  %v8072 = vsub.f32 %v7948, %v8058
  %v8073 = vsub.f32 %v7949, %v8058
  %v8074 = vsub.f32 %v7950, %v8059
  %v8075 = vsub.f32 %v7951, %v8059
  %v8076 = vsub.f32 %v7952, %v8059
  %v8077 = vsub.f32 %v7953, %v8059
  %v8078 = vsub.f32 %v7954, %v8059
  %v8079 = vsub.f32 %v7955, %v8059
  %v8080 = vsub.f32 %v7956, %v8059
  %v8081 = vsub.f32 %v7957, %v8059
  %v8082 = vadd.f32 %v8064, 1e-05
  %v8083 = vadd.f32 %v8065, 1e-05
  %v8084 = vrsqrt.pop %v8082
  %v8085 = vrsqrt.pop %v8083
  %v8086 = vmul.f32 %v8066, %v8084
  %v8087 = vmul.f32 %v8067, %v8084
  %v8088 = vmul.f32 %v8068, %v8084
  %v8089 = vmul.f32 %v8069, %v8084
  %v8090 = vmul.f32 %v8070, %v8084
  %v8091 = vmul.f32 %v8071, %v8084
  %v8092 = vmul.f32 %v8072, %v8084
  %v8093 = vmul.f32 %v8073, %v8084
  %v8094 = vmul.f32 %v8074, %v8085
  %v8095 = vmul.f32 %v8075, %v8085
  %v8096 = vmul.f32 %v8076, %v8085
  %v8097 = vmul.f32 %v8077, %v8085
  %v8098 = vmul.f32 %v8078, %v8085
  %v8099 = vmul.f32 %v8079, %v8085
  %v8100 = vmul.f32 %v8080, %v8085
  %v8101 = vmul.f32 %v8081, %v8085
  %v8102 = vmax.f32 %v8086, 0.0
  %v8103 = vmax.f32 %v8087, 0.0
  %v8104 = vmax.f32 %v8088, 0.0
  %v8105 = vmax.f32 %v8089, 0.0
  %v8106 = vmax.f32 %v8090, 0.0
  %v8107 = vmax.f32 %v8091, 0.0
  %v8108 = vmax.f32 %v8092, 0.0
  %v8109 = vmax.f32 %v8093, 0.0
  %v8110 = vmax.f32 %v8094, 0.0
  %v8111 = vmax.f32 %v8095, 0.0
  %v8112 = vmax.f32 %v8096, 0.0
  %v8113 = vmax.f32 %v8097, 0.0
  %v8114 = vmax.f32 %v8098, 0.0
  %v8115 = vmax.f32 %v8099, 0.0
  %v8116 = vmax.f32 %v8100, 0.0
  %v8117 = vmax.f32 %v8101, 0.0
  %8118 = vst.msk [vmem:[#allocation5 + $0x4] sm:$0xff] %vm124, %v8102
  %8119 = vst.msk [vmem:[#allocation5 + $0xc] sm:$0xff] %vm124, %v8103
  %8120 = vst.msk [vmem:[#allocation5 + $0x14] sm:$0xff] %vm124, %v8104
  %8121 = vst.msk [vmem:[#allocation5 + $0x1c] sm:$0xff] %vm124, %v8105
  %8122 = vst.msk [vmem:[#allocation5 + $0x24] sm:$0xff] %vm124, %v8106
  %8123 = vst.msk [vmem:[#allocation5 + $0x2c] sm:$0xff] %vm124, %v8107
  %8124 = vst.msk [vmem:[#allocation5 + $0x34] sm:$0xff] %vm124, %v8108
  %8125 = vst.msk [vmem:[#allocation5 + $0x3c] sm:$0xff] %vm124, %v8109
  %8126 = vst.msk [vmem:[#allocation5 + $0x4c] sm:$0xff] %vm124, %v8110
  %8127 = vst.msk [vmem:[#allocation5 + $0x54] sm:$0xff] %vm124, %v8111
  %8128 = vst.msk [vmem:[#allocation5 + $0x5c] sm:$0xff] %vm124, %v8112
  %8129 = vst.msk [vmem:[#allocation5 + $0x64] sm:$0xff] %vm124, %v8113
  %8130 = vst.msk [vmem:[#allocation5 + $0x6c] sm:$0xff] %vm124, %v8114
  %8131 = vst.msk [vmem:[#allocation5 + $0x74] sm:$0xff] %vm124, %v8115
  %8132 = vst.msk [vmem:[#allocation5 + $0x7c] sm:$0xff] %vm124, %v8116
  %8133 = vst.msk [vmem:[#allocation5 + $0x84] sm:$0xff] %vm124, %v8117
  %v8134 = vld [vmem:[#allocation5] sm:$0xff]
  %v8135 = vld [vmem:[#allocation5 + $0x8] sm:$0xff]
  %v8136 = vld [vmem:[#allocation5 + $0x10] sm:$0xff]
  %v8137 = vld [vmem:[#allocation5 + $0x18] sm:$0xff]
  %v8138 = vld [vmem:[#allocation5 + $0x20] sm:$0xff]
  %v8139 = vld [vmem:[#allocation5 + $0x28] sm:$0xff]
  %v8140 = vld [vmem:[#allocation5 + $0x30] sm:$0xff]
  %v8141 = vld [vmem:[#allocation5 + $0x38] sm:$0xff]
  %v8142 = vld [vmem:[#allocation5 + $0x48] sm:$0xff]
  %v8143 = vld [vmem:[#allocation5 + $0x50] sm:$0xff]
  %v8144 = vld [vmem:[#allocation5 + $0x58] sm:$0xff]
  %v8145 = vld [vmem:[#allocation5 + $0x60] sm:$0xff]
  %v8146 = vld [vmem:[#allocation5 + $0x68] sm:$0xff]
  %v8147 = vld [vmem:[#allocation5 + $0x70] sm:$0xff]
  %v8148 = vld [vmem:[#allocation5 + $0x78] sm:$0xff]
  %v8149 = vld [vmem:[#allocation5 + $0x80] sm:$0xff]
  %v8150 = vpack.c.bf16 %v8135, %v8134
  %v8151 = vpack.c.bf16 %v8137, %v8136
  %v8152 = vpack.c.bf16 %v8139, %v8138
  %v8153 = vpack.c.bf16 %v8141, %v8140
  %v8154 = vpack.c.bf16 %v8143, %v8142
  %v8155 = vpack.c.bf16 %v8145, %v8144
  %v8156 = vpack.c.bf16 %v8147, %v8146
  %v8157 = vpack.c.bf16 %v8149, %v8148
  %s8158 = scalar_lea.vmem %s2, 2016
  %v8159 = vld [vmem:[%s8158] sm:$0xf]
  %v8160 = vld [vmem:[#allocation5 + $0x1] sm:$0xff]
  %v8161 = vld [vmem:[#allocation5 + $0x9] sm:$0xff]
  %v8162 = vld [vmem:[#allocation5 + $0x11] sm:$0xff]
  %v8163 = vld [vmem:[#allocation5 + $0x19] sm:$0xff]
  %v8164 = vld [vmem:[#allocation5 + $0x21] sm:$0xff]
  %v8165 = vld [vmem:[#allocation5 + $0x29] sm:$0xff]
  %v8166 = vld [vmem:[#allocation5 + $0x31] sm:$0xff]
  %v8167 = vld [vmem:[#allocation5 + $0x39] sm:$0xff]
  %v8168 = vld [vmem:[#allocation5 + $0x49] sm:$0xff]
  %v8169 = vld [vmem:[#allocation5 + $0x51] sm:$0xff]
  %v8170 = vld [vmem:[#allocation5 + $0x59] sm:$0xff]
  %v8171 = vld [vmem:[#allocation5 + $0x61] sm:$0xff]
  %v8172 = vld [vmem:[#allocation5 + $0x69] sm:$0xff]
  %v8173 = vld [vmem:[#allocation5 + $0x71] sm:$0xff]
  %v8174 = vld [vmem:[#allocation5 + $0x79] sm:$0xff]
  %v8175 = vld [vmem:[#allocation5 + $0x81] sm:$0xff]
  %v8176 = vpack.c.bf16 %v8161, %v8160
  %v8177 = vpack.c.bf16 %v8163, %v8162
  %v8178 = vpack.c.bf16 %v8165, %v8164
  %v8179 = vpack.c.bf16 %v8167, %v8166
  %v8180 = vpack.c.bf16 %v8169, %v8168
  %v8181 = vpack.c.bf16 %v8171, %v8170
  %v8182 = vpack.c.bf16 %v8173, %v8172
  %v8183 = vpack.c.bf16 %v8175, %v8174
  %s8184 = scalar_lea.vmem %s2, 2048
  %v8185 = vld [vmem:[%s8184] sm:$0xf]
  %v8187 = vsel %vm124, %v8176, 0
  %v8190 = vsel %vm124, %v8177, 0
  %v8193 = vsel %vm124, %v8178, 0
  %v8196 = vsel %vm124, %v8179, 0
  %v8199 = vsel %vm124, %v8180, 0
  %v8202 = vsel %vm124, %v8181, 0
  %v8205 = vsel %vm124, %v8182, 0
  %v8208 = vsel %vm124, %v8183, 0
  %v8211 = vsel %vm128, %v8185, 0
  %8213 = vmatprep.subr.bf16.mxu0 0
  %8214 = vmatpush1.bf16.msra.mxu0 0
  %8215 = vmatprep.subr.bf16.mxu0 0
  %8216 = vmatpush1.bf16.msra.mxu0 0
  %8217 = vmatprep.subr.bf16.mxu0 0
  %8218 = vmatpush1.bf16.msra.mxu0 0
  %8219 = vmatprep.subr.bf16.mxu0 0
  %8220 = vmatpush1.bf16.msra.mxu0 0
  %8221 = vmatprep.subr.bf16.mxu0 0
  %8222 = vmatpush1.bf16.msra.mxu0 0
  %8223 = vmatprep.subr.bf16.mxu0 0
  %8224 = vmatpush1.bf16.msra.mxu0 0
  %8225 = vmatprep.subr.bf16.mxu0 0
  %8226 = vmatpush1.bf16.msra.mxu0 0
  %8227 = vmatprep.subr.bf16.mxu0 0
  %8228 = vmatpush1.bf16.msra.mxu0 %v8211
  %8229 = vmatprep.subr.bf16.mxu0 0
  %8230 = vmatpush2.bf16.msra.mxu0 0
  %8231 = vmatprep.subr.bf16.mxu0 0
  %8232 = vmatpush2.bf16.msra.mxu0 0
  %8233 = vmatprep.subr.bf16.mxu0 0
  %8234 = vmatpush2.bf16.msra.mxu0 0
  %8235 = vmatprep.subr.bf16.mxu0 0
  %8236 = vmatpush2.bf16.msra.mxu0 0
  %8237 = vmatprep.subr.bf16.mxu0 0
  %8238 = vmatpush2.bf16.msra.mxu0 0
  %8239 = vmatprep.subr.bf16.mxu0 0
  %8240 = vmatpush2.bf16.msra.mxu0 0
  %8241 = vmatprep.subr.bf16.mxu0 0
  %8242 = vmatpush2.bf16.msra.mxu0 0
  %8243 = vmatprep.subr.bf16.mxu0 0
  %8244 = vmatpush2.bf16.msra.mxu0 0
  %8245 = vmatprep.mubr.bf16.mxu0 0
  %8246 = vmatmul.mubr.bf16.gmra.mxu0 %v8187
  %v8247 = vpop.f32.mrf.mxu0
  %v8248 = vadd.f32 0.0, %v8247
  %v8249 = vpop.f32.mrf.mxu0
  %v8250 = vpop.f32.mrf.mxu0
  %v8251 = vadd.f32 0.0, %v8250
  %v8252 = vpop.f32.mrf.mxu0
  %8253 = vmatprep.mubr.bf16.mxu0 0
  %8254 = vmatmul.mubr.bf16.gmra.mxu0 %v8190
  %v8255 = vpop.f32.mrf.mxu0
  %v8256 = vadd.f32 0.0, %v8255
  %v8257 = vpop.f32.mrf.mxu0
  %v8258 = vpop.f32.mrf.mxu0
  %v8259 = vadd.f32 0.0, %v8258
  %v8260 = vpop.f32.mrf.mxu0
  %8261 = vmatprep.mubr.bf16.mxu0 0
  %8262 = vmatmul.mubr.bf16.gmra.mxu0 %v8193
  %v8263 = vpop.f32.mrf.mxu0
  %v8264 = vadd.f32 0.0, %v8263
  %v8265 = vpop.f32.mrf.mxu0
  %v8266 = vpop.f32.mrf.mxu0
  %v8267 = vadd.f32 0.0, %v8266
  %v8268 = vpop.f32.mrf.mxu0
  %8269 = vmatprep.mubr.bf16.mxu0 0
  %8270 = vmatmul.mubr.bf16.gmra.mxu0 %v8196
  %v8271 = vpop.f32.mrf.mxu0
  %v8272 = vadd.f32 0.0, %v8271
  %v8273 = vpop.f32.mrf.mxu0
  %v8274 = vpop.f32.mrf.mxu0
  %v8275 = vadd.f32 0.0, %v8274
  %v8276 = vpop.f32.mrf.mxu0
  %8277 = vmatprep.mubr.bf16.mxu0 0
  %8278 = vmatmul.mubr.bf16.gmra.mxu0 %v8199
  %v8279 = vpop.f32.mrf.mxu0
  %v8280 = vadd.f32 0.0, %v8279
  %v8281 = vpop.f32.mrf.mxu0
  %v8282 = vpop.f32.mrf.mxu0
  %v8283 = vadd.f32 0.0, %v8282
  %v8284 = vpop.f32.mrf.mxu0
  %8285 = vmatprep.mubr.bf16.mxu0 0
  %8286 = vmatmul.mubr.bf16.gmra.mxu0 %v8202
  %v8287 = vpop.f32.mrf.mxu0
  %v8288 = vadd.f32 0.0, %v8287
  %v8289 = vpop.f32.mrf.mxu0
  %v8290 = vpop.f32.mrf.mxu0
  %v8291 = vadd.f32 0.0, %v8290
  %v8292 = vpop.f32.mrf.mxu0
  %8293 = vmatprep.mubr.bf16.mxu0 0
  %8294 = vmatmul.mubr.bf16.gmra.mxu0 %v8205
  %v8295 = vpop.f32.mrf.mxu0
  %v8296 = vadd.f32 0.0, %v8295
  %v8297 = vpop.f32.mrf.mxu0
  %v8298 = vpop.f32.mrf.mxu0
  %v8299 = vadd.f32 0.0, %v8298
  %v8300 = vpop.f32.mrf.mxu0
  %8301 = vmatprep.mubr.bf16.mxu0 0
  %8302 = vmatmul.mubr.bf16.gmra.mxu0 %v8208
  %v8303 = vpop.f32.mrf.mxu0
  %v8304 = vadd.f32 0.0, %v8303
  %v8305 = vpop.f32.mrf.mxu0
  %v8306 = vpop.f32.mrf.mxu0
  %v8307 = vadd.f32 0.0, %v8306
  %v8308 = vpop.f32.mrf.mxu0
  %8309 = vdwg.mxu0
  %v8310 = vld [vmem:[#allocation5 + $0x2] sm:$0xff]
  %v8311 = vld [vmem:[#allocation5 + $0xa] sm:$0xff]
  %v8312 = vld [vmem:[#allocation5 + $0x12] sm:$0xff]
  %v8313 = vld [vmem:[#allocation5 + $0x1a] sm:$0xff]
  %v8314 = vld [vmem:[#allocation5 + $0x22] sm:$0xff]
  %v8315 = vld [vmem:[#allocation5 + $0x2a] sm:$0xff]
  %v8316 = vld [vmem:[#allocation5 + $0x32] sm:$0xff]
  %v8317 = vld [vmem:[#allocation5 + $0x3a] sm:$0xff]
  %v8318 = vld [vmem:[#allocation5 + $0x4a] sm:$0xff]
  %v8319 = vld [vmem:[#allocation5 + $0x52] sm:$0xff]
  %v8320 = vld [vmem:[#allocation5 + $0x5a] sm:$0xff]
  %v8321 = vld [vmem:[#allocation5 + $0x62] sm:$0xff]
  %v8322 = vld [vmem:[#allocation5 + $0x6a] sm:$0xff]
  %v8323 = vld [vmem:[#allocation5 + $0x72] sm:$0xff]
  %v8324 = vld [vmem:[#allocation5 + $0x7a] sm:$0xff]
  %v8325 = vld [vmem:[#allocation5 + $0x82] sm:$0xff]
  %v8326 = vpack.c.bf16 %v8311, %v8310
  %v8327 = vpack.c.bf16 %v8313, %v8312
  %v8328 = vpack.c.bf16 %v8315, %v8314
  %v8329 = vpack.c.bf16 %v8317, %v8316
  %v8330 = vpack.c.bf16 %v8319, %v8318
  %v8331 = vpack.c.bf16 %v8321, %v8320
  %v8332 = vpack.c.bf16 %v8323, %v8322
  %v8333 = vpack.c.bf16 %v8325, %v8324
  %s8334 = scalar_lea.vmem %s2, 2080
  %v8335 = vld [vmem:[%s8334] sm:$0xf]
  %v8336 = vld [vmem:[#allocation5 + $0x3] sm:$0xff]
  %v8337 = vld [vmem:[#allocation5 + $0xb] sm:$0xff]
  %v8338 = vld [vmem:[#allocation5 + $0x13] sm:$0xff]
  %v8339 = vld [vmem:[#allocation5 + $0x1b] sm:$0xff]
  %v8340 = vld [vmem:[#allocation5 + $0x23] sm:$0xff]
  %v8341 = vld [vmem:[#allocation5 + $0x2b] sm:$0xff]
  %v8342 = vld [vmem:[#allocation5 + $0x33] sm:$0xff]
  %v8343 = vld [vmem:[#allocation5 + $0x3b] sm:$0xff]
  %v8344 = vld [vmem:[#allocation5 + $0x4b] sm:$0xff]
  %v8345 = vld [vmem:[#allocation5 + $0x53] sm:$0xff]
  %v8346 = vld [vmem:[#allocation5 + $0x5b] sm:$0xff]
  %v8347 = vld [vmem:[#allocation5 + $0x63] sm:$0xff]
  %v8348 = vld [vmem:[#allocation5 + $0x6b] sm:$0xff]
  %v8349 = vld [vmem:[#allocation5 + $0x73] sm:$0xff]
  %v8350 = vld [vmem:[#allocation5 + $0x7b] sm:$0xff]
  %v8351 = vld [vmem:[#allocation5 + $0x83] sm:$0xff]
  %v8352 = vpack.c.bf16 %v8337, %v8336
  %v8353 = vpack.c.bf16 %v8339, %v8338
  %v8354 = vpack.c.bf16 %v8341, %v8340
  %v8355 = vpack.c.bf16 %v8343, %v8342
  %v8356 = vpack.c.bf16 %v8345, %v8344
  %v8357 = vpack.c.bf16 %v8347, %v8346
  %v8358 = vpack.c.bf16 %v8349, %v8348
  %v8359 = vpack.c.bf16 %v8351, %v8350
  %s8360 = scalar_lea.vmem %s2, 2112
  %v8361 = vld [vmem:[%s8360] sm:$0xf]
  %v8363 = vsel %vm124, %v8352, 0
  %v8366 = vsel %vm124, %v8353, 0
  %v8369 = vsel %vm124, %v8354, 0
  %v8372 = vsel %vm124, %v8355, 0
  %v8375 = vsel %vm124, %v8356, 0
  %v8378 = vsel %vm124, %v8357, 0
  %v8381 = vsel %vm124, %v8358, 0
  %v8384 = vsel %vm124, %v8359, 0
  %v8387 = vsel %vm128, %v8361, 0
  %8389 = vmatprep.subr.bf16.mxu0 0
  %8390 = vmatpush1.bf16.msra.mxu0 0
  %8391 = vmatprep.subr.bf16.mxu0 0
  %8392 = vmatpush1.bf16.msra.mxu0 0
  %8393 = vmatprep.subr.bf16.mxu0 0
  %8394 = vmatpush1.bf16.msra.mxu0 0
  %8395 = vmatprep.subr.bf16.mxu0 0
  %8396 = vmatpush1.bf16.msra.mxu0 0
  %8397 = vmatprep.subr.bf16.mxu0 0
  %8398 = vmatpush1.bf16.msra.mxu0 0
  %8399 = vmatprep.subr.bf16.mxu0 0
  %8400 = vmatpush1.bf16.msra.mxu0 0
  %8401 = vmatprep.subr.bf16.mxu0 0
  %8402 = vmatpush1.bf16.msra.mxu0 0
  %8403 = vmatprep.subr.bf16.mxu0 0
  %8404 = vmatpush1.bf16.msra.mxu0 %v8387
  %8405 = vmatprep.subr.bf16.mxu0 0
  %8406 = vmatpush2.bf16.msra.mxu0 0
  %8407 = vmatprep.subr.bf16.mxu0 0
  %8408 = vmatpush2.bf16.msra.mxu0 0
  %8409 = vmatprep.subr.bf16.mxu0 0
  %8410 = vmatpush2.bf16.msra.mxu0 0
  %8411 = vmatprep.subr.bf16.mxu0 0
  %8412 = vmatpush2.bf16.msra.mxu0 0
  %8413 = vmatprep.subr.bf16.mxu0 0
  %8414 = vmatpush2.bf16.msra.mxu0 0
  %8415 = vmatprep.subr.bf16.mxu0 0
  %8416 = vmatpush2.bf16.msra.mxu0 0
  %8417 = vmatprep.subr.bf16.mxu0 0
  %8418 = vmatpush2.bf16.msra.mxu0 0
  %8419 = vmatprep.subr.bf16.mxu0 0
  %8420 = vmatpush2.bf16.msra.mxu0 0
  %8421 = vmatprep.mubr.bf16.mxu0 0
  %8422 = vmatmul.mubr.bf16.gmra.mxu0 %v8363
  %v8423 = vpop.f32.mrf.mxu0
  %v8424 = vadd.f32 0.0, %v8423
  %v8425 = vpop.f32.mrf.mxu0
  %v8426 = vpop.f32.mrf.mxu0
  %v8427 = vadd.f32 0.0, %v8426
  %v8428 = vpop.f32.mrf.mxu0
  %8429 = vmatprep.mubr.bf16.mxu0 0
  %8430 = vmatmul.mubr.bf16.gmra.mxu0 %v8366
  %v8431 = vpop.f32.mrf.mxu0
  %v8432 = vadd.f32 0.0, %v8431
  %v8433 = vpop.f32.mrf.mxu0
  %v8434 = vpop.f32.mrf.mxu0
  %v8435 = vadd.f32 0.0, %v8434
  %v8436 = vpop.f32.mrf.mxu0
  %8437 = vmatprep.mubr.bf16.mxu0 0
  %8438 = vmatmul.mubr.bf16.gmra.mxu0 %v8369
  %v8439 = vpop.f32.mrf.mxu0
  %v8440 = vadd.f32 0.0, %v8439
  %v8441 = vpop.f32.mrf.mxu0
  %v8442 = vpop.f32.mrf.mxu0
  %v8443 = vadd.f32 0.0, %v8442
  %v8444 = vpop.f32.mrf.mxu0
  %8445 = vmatprep.mubr.bf16.mxu0 0
  %8446 = vmatmul.mubr.bf16.gmra.mxu0 %v8372
  %v8447 = vpop.f32.mrf.mxu0
  %v8448 = vadd.f32 0.0, %v8447
  %v8449 = vpop.f32.mrf.mxu0
  %v8450 = vpop.f32.mrf.mxu0
  %v8451 = vadd.f32 0.0, %v8450
  %v8452 = vpop.f32.mrf.mxu0
  %8453 = vmatprep.mubr.bf16.mxu0 0
  %8454 = vmatmul.mubr.bf16.gmra.mxu0 %v8375
  %v8455 = vpop.f32.mrf.mxu0
  %v8456 = vadd.f32 0.0, %v8455
  %v8457 = vpop.f32.mrf.mxu0
  %v8458 = vpop.f32.mrf.mxu0
  %v8459 = vadd.f32 0.0, %v8458
  %v8460 = vpop.f32.mrf.mxu0
  %8461 = vmatprep.mubr.bf16.mxu0 0
  %8462 = vmatmul.mubr.bf16.gmra.mxu0 %v8378
  %v8463 = vpop.f32.mrf.mxu0
  %v8464 = vadd.f32 0.0, %v8463
  %v8465 = vpop.f32.mrf.mxu0
  %v8466 = vpop.f32.mrf.mxu0
  %v8467 = vadd.f32 0.0, %v8466
  %v8468 = vpop.f32.mrf.mxu0
  %8469 = vmatprep.mubr.bf16.mxu0 0
  %8470 = vmatmul.mubr.bf16.gmra.mxu0 %v8381
  %v8471 = vpop.f32.mrf.mxu0
  %v8472 = vadd.f32 0.0, %v8471
  %v8473 = vpop.f32.mrf.mxu0
  %v8474 = vpop.f32.mrf.mxu0
  %v8475 = vadd.f32 0.0, %v8474
  %v8476 = vpop.f32.mrf.mxu0
  %8477 = vmatprep.mubr.bf16.mxu0 0
  %8478 = vmatmul.mubr.bf16.gmra.mxu0 %v8384
  %v8479 = vpop.f32.mrf.mxu0
  %v8480 = vadd.f32 0.0, %v8479
  %v8481 = vpop.f32.mrf.mxu0
  %v8482 = vpop.f32.mrf.mxu0
  %v8483 = vadd.f32 0.0, %v8482
  %v8484 = vpop.f32.mrf.mxu0
  %8485 = vdwg.mxu0
  %v8486 = vld [vmem:[#allocation5 + $0x4] sm:$0xff]
  %v8487 = vld [vmem:[#allocation5 + $0xc] sm:$0xff]
  %v8488 = vld [vmem:[#allocation5 + $0x14] sm:$0xff]
  %v8489 = vld [vmem:[#allocation5 + $0x1c] sm:$0xff]
  %v8490 = vld [vmem:[#allocation5 + $0x24] sm:$0xff]
  %v8491 = vld [vmem:[#allocation5 + $0x2c] sm:$0xff]
  %v8492 = vld [vmem:[#allocation5 + $0x34] sm:$0xff]
  %v8493 = vld [vmem:[#allocation5 + $0x3c] sm:$0xff]
  %v8494 = vld [vmem:[#allocation5 + $0x4c] sm:$0xff]
  %v8495 = vld [vmem:[#allocation5 + $0x54] sm:$0xff]
  %v8496 = vld [vmem:[#allocation5 + $0x5c] sm:$0xff]
  %v8497 = vld [vmem:[#allocation5 + $0x64] sm:$0xff]
  %v8498 = vld [vmem:[#allocation5 + $0x6c] sm:$0xff]
  %v8499 = vld [vmem:[#allocation5 + $0x74] sm:$0xff]
  %v8500 = vld [vmem:[#allocation5 + $0x7c] sm:$0xff]
  %v8501 = vld [vmem:[#allocation5 + $0x84] sm:$0xff]
  %v8502 = vpack.c.bf16 %v8487, %v8486
  %v8503 = vpack.c.bf16 %v8489, %v8488
  %v8504 = vpack.c.bf16 %v8491, %v8490
  %v8505 = vpack.c.bf16 %v8493, %v8492
  %v8506 = vpack.c.bf16 %v8495, %v8494
  %v8507 = vpack.c.bf16 %v8497, %v8496
  %v8508 = vpack.c.bf16 %v8499, %v8498
  %v8509 = vpack.c.bf16 %v8501, %v8500
  %s8510 = scalar_lea.vmem %s2, 2144
  %v8511 = vld [vmem:[%s8510] sm:$0xf]
  %v8512 = vld [vmem:[#allocation5 + $0x5] sm:$0xff]
  %v8513 = vld [vmem:[#allocation5 + $0xd] sm:$0xff]
  %v8514 = vld [vmem:[#allocation5 + $0x15] sm:$0xff]
  %v8515 = vld [vmem:[#allocation5 + $0x1d] sm:$0xff]
  %v8516 = vld [vmem:[#allocation5 + $0x25] sm:$0xff]
  %v8517 = vld [vmem:[#allocation5 + $0x2d] sm:$0xff]
  %v8518 = vld [vmem:[#allocation5 + $0x35] sm:$0xff]
  %v8519 = vld [vmem:[#allocation5 + $0x3d] sm:$0xff]
  %v8520 = vld [vmem:[#allocation5 + $0x4d] sm:$0xff]
  %v8521 = vld [vmem:[#allocation5 + $0x55] sm:$0xff]
  %v8522 = vld [vmem:[#allocation5 + $0x5d] sm:$0xff]
  %v8523 = vld [vmem:[#allocation5 + $0x65] sm:$0xff]
  %v8524 = vld [vmem:[#allocation5 + $0x6d] sm:$0xff]
  %v8525 = vld [vmem:[#allocation5 + $0x75] sm:$0xff]
  %v8526 = vld [vmem:[#allocation5 + $0x7d] sm:$0xff]
  %v8527 = vld [vmem:[#allocation5 + $0x85] sm:$0xff]
  %v8528 = vpack.c.bf16 %v8513, %v8512
  %v8529 = vpack.c.bf16 %v8515, %v8514
  %v8530 = vpack.c.bf16 %v8517, %v8516
  %v8531 = vpack.c.bf16 %v8519, %v8518
  %v8532 = vpack.c.bf16 %v8521, %v8520
  %v8533 = vpack.c.bf16 %v8523, %v8522
  %v8534 = vpack.c.bf16 %v8525, %v8524
  %v8535 = vpack.c.bf16 %v8527, %v8526
  %s8536 = scalar_lea.vmem %s2, 2176
  %v8537 = vld [vmem:[%s8536] sm:$0xf]
  %v8539 = vsel %vm124, %v8528, 0
  %v8542 = vsel %vm124, %v8529, 0
  %v8545 = vsel %vm124, %v8530, 0
  %v8548 = vsel %vm124, %v8531, 0
  %v8551 = vsel %vm124, %v8532, 0
  %v8554 = vsel %vm124, %v8533, 0
  %v8557 = vsel %vm124, %v8534, 0
  %v8560 = vsel %vm124, %v8535, 0
  %v8563 = vsel %vm128, %v8537, 0
  %8565 = vmatprep.subr.bf16.mxu0 0
  %8566 = vmatpush1.bf16.msra.mxu0 0
  %8567 = vmatprep.subr.bf16.mxu0 0
  %8568 = vmatpush1.bf16.msra.mxu0 0
  %8569 = vmatprep.subr.bf16.mxu0 0
  %8570 = vmatpush1.bf16.msra.mxu0 0
  %8571 = vmatprep.subr.bf16.mxu0 0
  %8572 = vmatpush1.bf16.msra.mxu0 0
  %8573 = vmatprep.subr.bf16.mxu0 0
  %8574 = vmatpush1.bf16.msra.mxu0 0
  %8575 = vmatprep.subr.bf16.mxu0 0
  %8576 = vmatpush1.bf16.msra.mxu0 0
  %8577 = vmatprep.subr.bf16.mxu0 0
  %8578 = vmatpush1.bf16.msra.mxu0 0
  %8579 = vmatprep.subr.bf16.mxu0 0
  %8580 = vmatpush1.bf16.msra.mxu0 %v8563
  %8581 = vmatprep.subr.bf16.mxu0 0
  %8582 = vmatpush2.bf16.msra.mxu0 0
  %8583 = vmatprep.subr.bf16.mxu0 0
  %8584 = vmatpush2.bf16.msra.mxu0 0
  %8585 = vmatprep.subr.bf16.mxu0 0
  %8586 = vmatpush2.bf16.msra.mxu0 0
  %8587 = vmatprep.subr.bf16.mxu0 0
  %8588 = vmatpush2.bf16.msra.mxu0 0
  %8589 = vmatprep.subr.bf16.mxu0 0
  %8590 = vmatpush2.bf16.msra.mxu0 0
  %8591 = vmatprep.subr.bf16.mxu0 0
  %8592 = vmatpush2.bf16.msra.mxu0 0
  %8593 = vmatprep.subr.bf16.mxu0 0
  %8594 = vmatpush2.bf16.msra.mxu0 0
  %8595 = vmatprep.subr.bf16.mxu0 0
  %8596 = vmatpush2.bf16.msra.mxu0 0
  %8597 = vmatprep.mubr.bf16.mxu0 0
  %8598 = vmatmul.mubr.bf16.gmra.mxu0 %v8539
  %v8599 = vpop.f32.mrf.mxu0
  %v8600 = vadd.f32 0.0, %v8599
  %v8601 = vpop.f32.mrf.mxu0
  %v8602 = vpop.f32.mrf.mxu0
  %v8603 = vadd.f32 0.0, %v8602
  %v8604 = vpop.f32.mrf.mxu0
  %8605 = vmatprep.mubr.bf16.mxu0 0
  %8606 = vmatmul.mubr.bf16.gmra.mxu0 %v8542
  %v8607 = vpop.f32.mrf.mxu0
  %v8608 = vadd.f32 0.0, %v8607
  %v8609 = vpop.f32.mrf.mxu0
  %v8610 = vpop.f32.mrf.mxu0
  %v8611 = vadd.f32 0.0, %v8610
  %v8612 = vpop.f32.mrf.mxu0
  %8613 = vmatprep.mubr.bf16.mxu0 0
  %8614 = vmatmul.mubr.bf16.gmra.mxu0 %v8545
  %v8615 = vpop.f32.mrf.mxu0
  %v8616 = vadd.f32 0.0, %v8615
  %v8617 = vpop.f32.mrf.mxu0
  %v8618 = vpop.f32.mrf.mxu0
  %v8619 = vadd.f32 0.0, %v8618
  %v8620 = vpop.f32.mrf.mxu0
  %8621 = vmatprep.mubr.bf16.mxu0 0
  %8622 = vmatmul.mubr.bf16.gmra.mxu0 %v8548
  %v8623 = vpop.f32.mrf.mxu0
  %v8624 = vadd.f32 0.0, %v8623
  %v8625 = vpop.f32.mrf.mxu0
  %v8626 = vpop.f32.mrf.mxu0
  %v8627 = vadd.f32 0.0, %v8626
  %v8628 = vpop.f32.mrf.mxu0
  %8629 = vmatprep.mubr.bf16.mxu0 0
  %8630 = vmatmul.mubr.bf16.gmra.mxu0 %v8551
  %v8631 = vpop.f32.mrf.mxu0
  %v8632 = vadd.f32 0.0, %v8631
  %v8633 = vpop.f32.mrf.mxu0
  %v8634 = vpop.f32.mrf.mxu0
  %v8635 = vadd.f32 0.0, %v8634
  %v8636 = vpop.f32.mrf.mxu0
  %8637 = vmatprep.mubr.bf16.mxu0 0
  %8638 = vmatmul.mubr.bf16.gmra.mxu0 %v8554
  %v8639 = vpop.f32.mrf.mxu0
  %v8640 = vadd.f32 0.0, %v8639
  %v8641 = vpop.f32.mrf.mxu0
  %v8642 = vpop.f32.mrf.mxu0
  %v8643 = vadd.f32 0.0, %v8642
  %v8644 = vpop.f32.mrf.mxu0
  %8645 = vmatprep.mubr.bf16.mxu0 0
  %8646 = vmatmul.mubr.bf16.gmra.mxu0 %v8557
  %v8647 = vpop.f32.mrf.mxu0
  %v8648 = vadd.f32 0.0, %v8647
  %v8649 = vpop.f32.mrf.mxu0
  %v8650 = vpop.f32.mrf.mxu0
  %v8651 = vadd.f32 0.0, %v8650
  %v8652 = vpop.f32.mrf.mxu0
  %8653 = vmatprep.mubr.bf16.mxu0 0
  %8654 = vmatmul.mubr.bf16.gmra.mxu0 %v8560
  %v8655 = vpop.f32.mrf.mxu0
  %v8656 = vadd.f32 0.0, %v8655
  %v8657 = vpop.f32.mrf.mxu0
  %v8658 = vpop.f32.mrf.mxu0
  %v8659 = vadd.f32 0.0, %v8658
  %v8660 = vpop.f32.mrf.mxu0
  %8661 = vdwg.mxu0
  %v8662 = vld [vmem:[#allocation5 + $0x6] sm:$0xff]
  %v8663 = vld [vmem:[#allocation5 + $0xe] sm:$0xff]
  %v8664 = vld [vmem:[#allocation5 + $0x16] sm:$0xff]
  %v8665 = vld [vmem:[#allocation5 + $0x1e] sm:$0xff]
  %v8666 = vld [vmem:[#allocation5 + $0x26] sm:$0xff]
  %v8667 = vld [vmem:[#allocation5 + $0x2e] sm:$0xff]
  %v8668 = vld [vmem:[#allocation5 + $0x36] sm:$0xff]
  %v8669 = vld [vmem:[#allocation5 + $0x3e] sm:$0xff]
  %v8670 = vld [vmem:[#allocation5 + $0x4e] sm:$0xff]
  %v8671 = vld [vmem:[#allocation5 + $0x56] sm:$0xff]
  %v8672 = vld [vmem:[#allocation5 + $0x5e] sm:$0xff]
  %v8673 = vld [vmem:[#allocation5 + $0x66] sm:$0xff]
  %v8674 = vld [vmem:[#allocation5 + $0x6e] sm:$0xff]
  %v8675 = vld [vmem:[#allocation5 + $0x76] sm:$0xff]
  %v8676 = vld [vmem:[#allocation5 + $0x7e] sm:$0xff]
  %v8677 = vld [vmem:[#allocation5 + $0x86] sm:$0xff]
  %v8678 = vpack.c.bf16 %v8663, %v8662
  %v8679 = vpack.c.bf16 %v8665, %v8664
  %v8680 = vpack.c.bf16 %v8667, %v8666
  %v8681 = vpack.c.bf16 %v8669, %v8668
  %v8682 = vpack.c.bf16 %v8671, %v8670
  %v8683 = vpack.c.bf16 %v8673, %v8672
  %v8684 = vpack.c.bf16 %v8675, %v8674
  %v8685 = vpack.c.bf16 %v8677, %v8676
  %s8686 = scalar_lea.vmem %s2, 2208
  %v8687 = vld [vmem:[%s8686] sm:$0xf]
  %v8688 = vld [vmem:[#allocation5 + $0x7] sm:$0xff]
  %v8689 = vld [vmem:[#allocation5 + $0xf] sm:$0xff]
  %v8690 = vld [vmem:[#allocation5 + $0x17] sm:$0xff]
  %v8691 = vld [vmem:[#allocation5 + $0x1f] sm:$0xff]
  %v8692 = vld [vmem:[#allocation5 + $0x27] sm:$0xff]
  %v8693 = vld [vmem:[#allocation5 + $0x2f] sm:$0xff]
  %v8694 = vld [vmem:[#allocation5 + $0x37] sm:$0xff]
  %v8695 = vld [vmem:[#allocation5 + $0x3f] sm:$0xff]
  %v8696 = vld [vmem:[#allocation5 + $0x4f] sm:$0xff]
  %v8697 = vld [vmem:[#allocation5 + $0x57] sm:$0xff]
  %v8698 = vld [vmem:[#allocation5 + $0x5f] sm:$0xff]
  %v8699 = vld [vmem:[#allocation5 + $0x67] sm:$0xff]
  %v8700 = vld [vmem:[#allocation5 + $0x6f] sm:$0xff]
  %v8701 = vld [vmem:[#allocation5 + $0x77] sm:$0xff]
  %v8702 = vld [vmem:[#allocation5 + $0x7f] sm:$0xff]
  %v8703 = vld [vmem:[#allocation5 + $0x87] sm:$0xff]
  %v8704 = vpack.c.bf16 %v8689, %v8688
  %v8705 = vpack.c.bf16 %v8691, %v8690
  %v8706 = vpack.c.bf16 %v8693, %v8692
  %v8707 = vpack.c.bf16 %v8695, %v8694
  %v8708 = vpack.c.bf16 %v8697, %v8696
  %v8709 = vpack.c.bf16 %v8699, %v8698
  %v8710 = vpack.c.bf16 %v8701, %v8700
  %v8711 = vpack.c.bf16 %v8703, %v8702
  %s8712 = scalar_lea.vmem %s2, 2240
  %v8713 = vld [vmem:[%s8712] sm:$0xf]
  %v8715 = vsel %vm124, %v8704, 0
  %v8718 = vsel %vm124, %v8705, 0
  %v8721 = vsel %vm124, %v8706, 0
  %v8724 = vsel %vm124, %v8707, 0
  %v8727 = vsel %vm124, %v8708, 0
  %v8730 = vsel %vm124, %v8709, 0
  %v8733 = vsel %vm124, %v8710, 0
  %v8736 = vsel %vm124, %v8711, 0
  %v8739 = vsel %vm128, %v8713, 0
  %8741 = vmatprep.subr.bf16.mxu0 0
  %8742 = vmatpush1.bf16.msra.mxu0 0
  %8743 = vmatprep.subr.bf16.mxu0 0
  %8744 = vmatpush1.bf16.msra.mxu0 0
  %8745 = vmatprep.subr.bf16.mxu0 0
  %8746 = vmatpush1.bf16.msra.mxu0 0
  %8747 = vmatprep.subr.bf16.mxu0 0
  %8748 = vmatpush1.bf16.msra.mxu0 0
  %8749 = vmatprep.subr.bf16.mxu0 0
  %8750 = vmatpush1.bf16.msra.mxu0 0
  %8751 = vmatprep.subr.bf16.mxu0 0
  %8752 = vmatpush1.bf16.msra.mxu0 0
  %8753 = vmatprep.subr.bf16.mxu0 0
  %8754 = vmatpush1.bf16.msra.mxu0 0
  %8755 = vmatprep.subr.bf16.mxu0 0
  %8756 = vmatpush1.bf16.msra.mxu0 %v8739
  %8757 = vmatprep.subr.bf16.mxu0 0
  %8758 = vmatpush2.bf16.msra.mxu0 0
  %8759 = vmatprep.subr.bf16.mxu0 0
  %8760 = vmatpush2.bf16.msra.mxu0 0
  %8761 = vmatprep.subr.bf16.mxu0 0
  %8762 = vmatpush2.bf16.msra.mxu0 0
  %8763 = vmatprep.subr.bf16.mxu0 0
  %8764 = vmatpush2.bf16.msra.mxu0 0
  %8765 = vmatprep.subr.bf16.mxu0 0
  %8766 = vmatpush2.bf16.msra.mxu0 0
  %8767 = vmatprep.subr.bf16.mxu0 0
  %8768 = vmatpush2.bf16.msra.mxu0 0
  %8769 = vmatprep.subr.bf16.mxu0 0
  %8770 = vmatpush2.bf16.msra.mxu0 0
  %8771 = vmatprep.subr.bf16.mxu0 0
  %8772 = vmatpush2.bf16.msra.mxu0 0
  %8773 = vmatprep.mubr.bf16.mxu0 0
  %8774 = vmatmul.mubr.bf16.gmra.mxu0 %v8715
  %v8775 = vpop.f32.mrf.mxu0
  %v8776 = vadd.f32 0.0, %v8775
  %v8777 = vpop.f32.mrf.mxu0
  %v8778 = vpop.f32.mrf.mxu0
  %v8779 = vadd.f32 0.0, %v8778
  %v8780 = vpop.f32.mrf.mxu0
  %8781 = vmatprep.mubr.bf16.mxu0 0
  %8782 = vmatmul.mubr.bf16.gmra.mxu0 %v8718
  %v8783 = vpop.f32.mrf.mxu0
  %v8784 = vadd.f32 0.0, %v8783
  %v8785 = vpop.f32.mrf.mxu0
  %v8786 = vpop.f32.mrf.mxu0
  %v8787 = vadd.f32 0.0, %v8786
  %v8788 = vpop.f32.mrf.mxu0
  %8789 = vmatprep.mubr.bf16.mxu0 0
  %8790 = vmatmul.mubr.bf16.gmra.mxu0 %v8721
  %v8791 = vpop.f32.mrf.mxu0
  %v8792 = vadd.f32 0.0, %v8791
  %v8793 = vpop.f32.mrf.mxu0
  %v8794 = vpop.f32.mrf.mxu0
  %v8795 = vadd.f32 0.0, %v8794
  %v8796 = vpop.f32.mrf.mxu0
  %8797 = vmatprep.mubr.bf16.mxu0 0
  %8798 = vmatmul.mubr.bf16.gmra.mxu0 %v8724
  %v8799 = vpop.f32.mrf.mxu0
  %v8800 = vadd.f32 0.0, %v8799
  %v8801 = vpop.f32.mrf.mxu0
  %v8802 = vpop.f32.mrf.mxu0
  %v8803 = vadd.f32 0.0, %v8802
  %v8804 = vpop.f32.mrf.mxu0
  %8805 = vmatprep.mubr.bf16.mxu0 0
  %8806 = vmatmul.mubr.bf16.gmra.mxu0 %v8727
  %v8807 = vpop.f32.mrf.mxu0
  %v8808 = vadd.f32 0.0, %v8807
  %v8809 = vpop.f32.mrf.mxu0
  %v8810 = vpop.f32.mrf.mxu0
  %v8811 = vadd.f32 0.0, %v8810
  %v8812 = vpop.f32.mrf.mxu0
  %8813 = vmatprep.mubr.bf16.mxu0 0
  %8814 = vmatmul.mubr.bf16.gmra.mxu0 %v8730
  %v8815 = vpop.f32.mrf.mxu0
  %v8816 = vadd.f32 0.0, %v8815
  %v8817 = vpop.f32.mrf.mxu0
  %v8818 = vpop.f32.mrf.mxu0
  %v8819 = vadd.f32 0.0, %v8818
  %v8820 = vpop.f32.mrf.mxu0
  %8821 = vmatprep.mubr.bf16.mxu0 0
  %8822 = vmatmul.mubr.bf16.gmra.mxu0 %v8733
  %v8823 = vpop.f32.mrf.mxu0
  %v8824 = vadd.f32 0.0, %v8823
  %v8825 = vpop.f32.mrf.mxu0
  %v8826 = vpop.f32.mrf.mxu0
  %v8827 = vadd.f32 0.0, %v8826
  %v8828 = vpop.f32.mrf.mxu0
  %8829 = vmatprep.mubr.bf16.mxu0 0
  %8830 = vmatmul.mubr.bf16.gmra.mxu0 %v8736
  %v8831 = vpop.f32.mrf.mxu0
  %v8832 = vadd.f32 0.0, %v8831
  %v8833 = vpop.f32.mrf.mxu0
  %v8834 = vpop.f32.mrf.mxu0
  %v8835 = vadd.f32 0.0, %v8834
  %v8836 = vpop.f32.mrf.mxu0
  %8837 = vdwg.mxu0
  %v8838 = vld [vmem:[#allocation5 + $0x8] sm:$0xff]
  %v8839 = vld [vmem:[#allocation5 + $0x10] sm:$0xff]
  %v8840 = vld [vmem:[#allocation5 + $0x18] sm:$0xff]
  %v8841 = vld [vmem:[#allocation5 + $0x20] sm:$0xff]
  %v8842 = vld [vmem:[#allocation5 + $0x28] sm:$0xff]
  %v8843 = vld [vmem:[#allocation5 + $0x30] sm:$0xff]
  %v8844 = vld [vmem:[#allocation5 + $0x38] sm:$0xff]
  %v8845 = vld [vmem:[#allocation5 + $0x40] sm:$0xff]
  %v8846 = vld [vmem:[#allocation5 + $0x50] sm:$0xff]
  %v8847 = vld [vmem:[#allocation5 + $0x58] sm:$0xff]
  %v8848 = vld [vmem:[#allocation5 + $0x60] sm:$0xff]
  %v8849 = vld [vmem:[#allocation5 + $0x68] sm:$0xff]
  %v8850 = vld [vmem:[#allocation5 + $0x70] sm:$0xff]
  %v8851 = vld [vmem:[#allocation5 + $0x78] sm:$0xff]
  %v8852 = vld [vmem:[#allocation5 + $0x80] sm:$0xff]
  %v8853 = vld [vmem:[#allocation5 + $0x88] sm:$0xff]
  %v8854 = vpack.c.bf16 %v8839, %v8838
  %v8855 = vpack.c.bf16 %v8841, %v8840
  %v8856 = vpack.c.bf16 %v8843, %v8842
  %v8857 = vpack.c.bf16 %v8845, %v8844
  %v8858 = vpack.c.bf16 %v8847, %v8846
  %v8859 = vpack.c.bf16 %v8849, %v8848
  %v8860 = vpack.c.bf16 %v8851, %v8850
  %v8861 = vpack.c.bf16 %v8853, %v8852
  %s8862 = scalar_lea.vmem %s2, 2272
  %v8863 = vld [vmem:[%s8862] sm:$0xf]
  %v8865 = vsel %vm124, %v8854, 0
  %v8868 = vsel %vm124, %v8855, 0
  %v8871 = vsel %vm124, %v8856, 0
  %v8874 = vsel %vm124, %v8857, 0
  %v8877 = vsel %vm124, %v8858, 0
  %v8880 = vsel %vm124, %v8859, 0
  %v8883 = vsel %vm124, %v8860, 0
  %v8886 = vsel %vm124, %v8861, 0
  %v8889 = vsel %vm128, %v8863, 0
  %8891 = vmatprep.subr.bf16.mxu0 0
  %8892 = vmatpush1.bf16.msra.mxu0 0
  %8893 = vmatprep.subr.bf16.mxu0 0
  %8894 = vmatpush1.bf16.msra.mxu0 0
  %8895 = vmatprep.subr.bf16.mxu0 0
  %8896 = vmatpush1.bf16.msra.mxu0 0
  %8897 = vmatprep.subr.bf16.mxu0 0
  %8898 = vmatpush1.bf16.msra.mxu0 0
  %8899 = vmatprep.subr.bf16.mxu0 0
  %8900 = vmatpush1.bf16.msra.mxu0 0
  %8901 = vmatprep.subr.bf16.mxu0 0
  %8902 = vmatpush1.bf16.msra.mxu0 0
  %8903 = vmatprep.subr.bf16.mxu0 0
  %8904 = vmatpush1.bf16.msra.mxu0 0
  %8905 = vmatprep.subr.bf16.mxu0 0
  %8906 = vmatpush1.bf16.msra.mxu0 %v8889
  %8907 = vmatprep.subr.bf16.mxu0 0
  %8908 = vmatpush2.bf16.msra.mxu0 0
  %8909 = vmatprep.subr.bf16.mxu0 0
  %8910 = vmatpush2.bf16.msra.mxu0 0
  %8911 = vmatprep.subr.bf16.mxu0 0
  %8912 = vmatpush2.bf16.msra.mxu0 0
  %8913 = vmatprep.subr.bf16.mxu0 0
  %8914 = vmatpush2.bf16.msra.mxu0 0
  %8915 = vmatprep.subr.bf16.mxu0 0
  %8916 = vmatpush2.bf16.msra.mxu0 0
  %8917 = vmatprep.subr.bf16.mxu0 0
  %8918 = vmatpush2.bf16.msra.mxu0 0
  %8919 = vmatprep.subr.bf16.mxu0 0
  %8920 = vmatpush2.bf16.msra.mxu0 0
  %8921 = vmatprep.subr.bf16.mxu0 0
  %8922 = vmatpush2.bf16.msra.mxu0 0
  %8923 = vmatprep.mubr.bf16.mxu0 0
  %8924 = vmatmul.mubr.bf16.gmra.mxu0 %v8865
  %v8925 = vpop.f32.mrf.mxu0
  %v8926 = vadd.f32 0.0, %v8925
  %v8927 = vpop.f32.mrf.mxu0
  %v8928 = vpop.f32.mrf.mxu0
  %v8929 = vadd.f32 0.0, %v8928
  %v8930 = vpop.f32.mrf.mxu0
  %8931 = vmatprep.mubr.bf16.mxu0 0
  %8932 = vmatmul.mubr.bf16.gmra.mxu0 %v8868
  %v8933 = vpop.f32.mrf.mxu0
  %v8934 = vadd.f32 0.0, %v8933
  %v8935 = vpop.f32.mrf.mxu0
  %v8936 = vpop.f32.mrf.mxu0
  %v8937 = vadd.f32 0.0, %v8936
  %v8938 = vpop.f32.mrf.mxu0
  %8939 = vmatprep.mubr.bf16.mxu0 0
  %8940 = vmatmul.mubr.bf16.gmra.mxu0 %v8871
  %v8941 = vpop.f32.mrf.mxu0
  %v8942 = vadd.f32 0.0, %v8941
  %v8943 = vpop.f32.mrf.mxu0
  %v8944 = vpop.f32.mrf.mxu0
  %v8945 = vadd.f32 0.0, %v8944
  %v8946 = vpop.f32.mrf.mxu0
  %8947 = vmatprep.mubr.bf16.mxu0 0
  %8948 = vmatmul.mubr.bf16.gmra.mxu0 %v8874
  %v8949 = vpop.f32.mrf.mxu0
  %v8950 = vadd.f32 0.0, %v8949
  %v8951 = vpop.f32.mrf.mxu0
  %v8952 = vpop.f32.mrf.mxu0
  %v8953 = vadd.f32 0.0, %v8952
  %v8954 = vpop.f32.mrf.mxu0
  %8955 = vmatprep.mubr.bf16.mxu0 0
  %8956 = vmatmul.mubr.bf16.gmra.mxu0 %v8877
  %v8957 = vpop.f32.mrf.mxu0
  %v8958 = vadd.f32 0.0, %v8957
  %v8959 = vpop.f32.mrf.mxu0
  %v8960 = vpop.f32.mrf.mxu0
  %v8961 = vadd.f32 0.0, %v8960
  %v8962 = vpop.f32.mrf.mxu0
  %8963 = vmatprep.mubr.bf16.mxu0 0
  %8964 = vmatmul.mubr.bf16.gmra.mxu0 %v8880
  %v8965 = vpop.f32.mrf.mxu0
  %v8966 = vadd.f32 0.0, %v8965
  %v8967 = vpop.f32.mrf.mxu0
  %v8968 = vpop.f32.mrf.mxu0
  %v8969 = vadd.f32 0.0, %v8968
  %v8970 = vpop.f32.mrf.mxu0
  %8971 = vmatprep.mubr.bf16.mxu0 0
  %8972 = vmatmul.mubr.bf16.gmra.mxu0 %v8883
  %v8973 = vpop.f32.mrf.mxu0
  %v8974 = vadd.f32 0.0, %v8973
  %v8975 = vpop.f32.mrf.mxu0
  %v8976 = vpop.f32.mrf.mxu0
  %v8977 = vadd.f32 0.0, %v8976
  %v8978 = vpop.f32.mrf.mxu0
  %8979 = vmatprep.mubr.bf16.mxu0 0
  %8980 = vmatmul.mubr.bf16.gmra.mxu0 %v8886
  %v8981 = vpop.f32.mrf.mxu0
  %v8982 = vadd.f32 0.0, %v8981
  %v8983 = vpop.f32.mrf.mxu0
  %v8984 = vpop.f32.mrf.mxu0
  %v8985 = vadd.f32 0.0, %v8984
  %v8986 = vpop.f32.mrf.mxu0
  %8987 = vdwg.mxu0
  %v8989 = vsel %vm124, %v8150, 0
  %v8992 = vsel %vm124, %v8151, 0
  %v8995 = vsel %vm124, %v8152, 0
  %v8998 = vsel %vm124, %v8153, 0
  %v9001 = vsel %vm124, %v8154, 0
  %v9004 = vsel %vm124, %v8155, 0
  %v9007 = vsel %vm124, %v8156, 0
  %v9010 = vsel %vm124, %v8157, 0
  %v9013 = vsel %vm128, %v8159, 0
  %9015 = vmatprep.subr.bf16.mxu0 0
  %9016 = vmatpush1.bf16.msra.mxu0 0
  %9017 = vmatprep.subr.bf16.mxu0 0
  %9018 = vmatpush1.bf16.msra.mxu0 0
  %9019 = vmatprep.subr.bf16.mxu0 0
  %9020 = vmatpush1.bf16.msra.mxu0 0
  %9021 = vmatprep.subr.bf16.mxu0 0
  %9022 = vmatpush1.bf16.msra.mxu0 0
  %9023 = vmatprep.subr.bf16.mxu0 0
  %9024 = vmatpush1.bf16.msra.mxu0 0
  %9025 = vmatprep.subr.bf16.mxu0 0
  %9026 = vmatpush1.bf16.msra.mxu0 0
  %9027 = vmatprep.subr.bf16.mxu0 0
  %9028 = vmatpush1.bf16.msra.mxu0 0
  %9029 = vmatprep.subr.bf16.mxu0 0
  %9030 = vmatpush1.bf16.msra.mxu0 %v9013
  %9031 = vmatprep.subr.bf16.mxu0 0
  %9032 = vmatpush2.bf16.msra.mxu0 0
  %9033 = vmatprep.subr.bf16.mxu0 0
  %9034 = vmatpush2.bf16.msra.mxu0 0
  %9035 = vmatprep.subr.bf16.mxu0 0
  %9036 = vmatpush2.bf16.msra.mxu0 0
  %9037 = vmatprep.subr.bf16.mxu0 0
  %9038 = vmatpush2.bf16.msra.mxu0 0
  %9039 = vmatprep.subr.bf16.mxu0 0
  %9040 = vmatpush2.bf16.msra.mxu0 0
  %9041 = vmatprep.subr.bf16.mxu0 0
  %9042 = vmatpush2.bf16.msra.mxu0 0
  %9043 = vmatprep.subr.bf16.mxu0 0
  %9044 = vmatpush2.bf16.msra.mxu0 0
  %9045 = vmatprep.subr.bf16.mxu0 0
  %9046 = vmatpush2.bf16.msra.mxu0 0
  %9047 = vmatprep.mubr.bf16.mxu0 0
  %9048 = vmatmul.mubr.bf16.gmra.mxu0 %v8989
  %v9049 = vpop.f32.mrf.mxu0
  %v9050 = vadd.f32 %v8248, %v9049
  %v9051 = vpop.f32.mrf.mxu0
  %v9052 = vpop.f32.mrf.mxu0
  %v9053 = vadd.f32 %v8251, %v9052
  %v9054 = vpop.f32.mrf.mxu0
  %9055 = vmatprep.mubr.bf16.mxu0 0
  %9056 = vmatmul.mubr.bf16.gmra.mxu0 %v8992
  %v9057 = vpop.f32.mrf.mxu0
  %v9058 = vadd.f32 %v8256, %v9057
  %v9059 = vpop.f32.mrf.mxu0
  %v9060 = vpop.f32.mrf.mxu0
  %v9061 = vadd.f32 %v8259, %v9060
  %v9062 = vpop.f32.mrf.mxu0
  %9063 = vmatprep.mubr.bf16.mxu0 0
  %9064 = vmatmul.mubr.bf16.gmra.mxu0 %v8995
  %v9065 = vpop.f32.mrf.mxu0
  %v9066 = vadd.f32 %v8264, %v9065
  %v9067 = vpop.f32.mrf.mxu0
  %v9068 = vpop.f32.mrf.mxu0
  %v9069 = vadd.f32 %v8267, %v9068
  %v9070 = vpop.f32.mrf.mxu0
  %9071 = vmatprep.mubr.bf16.mxu0 0
  %9072 = vmatmul.mubr.bf16.gmra.mxu0 %v8998
  %v9073 = vpop.f32.mrf.mxu0
  %v9074 = vadd.f32 %v8272, %v9073
  %v9075 = vpop.f32.mrf.mxu0
  %v9076 = vpop.f32.mrf.mxu0
  %v9077 = vadd.f32 %v8275, %v9076
  %v9078 = vpop.f32.mrf.mxu0
  %9079 = vmatprep.mubr.bf16.mxu0 0
  %9080 = vmatmul.mubr.bf16.gmra.mxu0 %v9001
  %v9081 = vpop.f32.mrf.mxu0
  %v9082 = vadd.f32 %v8280, %v9081
  %v9083 = vpop.f32.mrf.mxu0
  %v9084 = vpop.f32.mrf.mxu0
  %v9085 = vadd.f32 %v8283, %v9084
  %v9086 = vpop.f32.mrf.mxu0
  %9087 = vmatprep.mubr.bf16.mxu0 0
  %9088 = vmatmul.mubr.bf16.gmra.mxu0 %v9004
  %v9089 = vpop.f32.mrf.mxu0
  %v9090 = vadd.f32 %v8288, %v9089
  %v9091 = vpop.f32.mrf.mxu0
  %v9092 = vpop.f32.mrf.mxu0
  %v9093 = vadd.f32 %v8291, %v9092
  %v9094 = vpop.f32.mrf.mxu0
  %9095 = vmatprep.mubr.bf16.mxu0 0
  %9096 = vmatmul.mubr.bf16.gmra.mxu0 %v9007
  %v9097 = vpop.f32.mrf.mxu0
  %v9098 = vadd.f32 %v8296, %v9097
  %v9099 = vpop.f32.mrf.mxu0
  %v9100 = vpop.f32.mrf.mxu0
  %v9101 = vadd.f32 %v8299, %v9100
  %v9102 = vpop.f32.mrf.mxu0
  %9103 = vmatprep.mubr.bf16.mxu0 0
  %9104 = vmatmul.mubr.bf16.gmra.mxu0 %v9010
  %v9105 = vpop.f32.mrf.mxu0
  %v9106 = vadd.f32 %v8304, %v9105
  %v9107 = vpop.f32.mrf.mxu0
  %v9108 = vpop.f32.mrf.mxu0
  %v9109 = vadd.f32 %v8307, %v9108
  %v9110 = vpop.f32.mrf.mxu0
  %9111 = vdwg.mxu0
  %v9113 = vsel %vm124, %v8326, 0
  %v9116 = vsel %vm124, %v8327, 0
  %v9119 = vsel %vm124, %v8328, 0
  %v9122 = vsel %vm124, %v8329, 0
  %v9125 = vsel %vm124, %v8330, 0
  %v9128 = vsel %vm124, %v8331, 0
  %v9131 = vsel %vm124, %v8332, 0
  %v9134 = vsel %vm124, %v8333, 0
  %v9137 = vsel %vm128, %v8335, 0
  %9139 = vmatprep.subr.bf16.mxu0 0
  %9140 = vmatpush1.bf16.msra.mxu0 0
  %9141 = vmatprep.subr.bf16.mxu0 0
  %9142 = vmatpush1.bf16.msra.mxu0 0
  %9143 = vmatprep.subr.bf16.mxu0 0
  %9144 = vmatpush1.bf16.msra.mxu0 0
  %9145 = vmatprep.subr.bf16.mxu0 0
  %9146 = vmatpush1.bf16.msra.mxu0 0
  %9147 = vmatprep.subr.bf16.mxu0 0
  %9148 = vmatpush1.bf16.msra.mxu0 0
  %9149 = vmatprep.subr.bf16.mxu0 0
  %9150 = vmatpush1.bf16.msra.mxu0 0
  %9151 = vmatprep.subr.bf16.mxu0 0
  %9152 = vmatpush1.bf16.msra.mxu0 0
  %9153 = vmatprep.subr.bf16.mxu0 0
  %9154 = vmatpush1.bf16.msra.mxu0 %v9137
  %9155 = vmatprep.subr.bf16.mxu0 0
  %9156 = vmatpush2.bf16.msra.mxu0 0
  %9157 = vmatprep.subr.bf16.mxu0 0
  %9158 = vmatpush2.bf16.msra.mxu0 0
  %9159 = vmatprep.subr.bf16.mxu0 0
  %9160 = vmatpush2.bf16.msra.mxu0 0
  %9161 = vmatprep.subr.bf16.mxu0 0
  %9162 = vmatpush2.bf16.msra.mxu0 0
  %9163 = vmatprep.subr.bf16.mxu0 0
  %9164 = vmatpush2.bf16.msra.mxu0 0
  %9165 = vmatprep.subr.bf16.mxu0 0
  %9166 = vmatpush2.bf16.msra.mxu0 0
  %9167 = vmatprep.subr.bf16.mxu0 0
  %9168 = vmatpush2.bf16.msra.mxu0 0
  %9169 = vmatprep.subr.bf16.mxu0 0
  %9170 = vmatpush2.bf16.msra.mxu0 0
  %9171 = vmatprep.mubr.bf16.mxu0 0
  %9172 = vmatmul.mubr.bf16.gmra.mxu0 %v9113
  %v9173 = vpop.f32.mrf.mxu0
  %v9174 = vadd.f32 %v8424, %v9173
  %v9175 = vpop.f32.mrf.mxu0
  %v9176 = vpop.f32.mrf.mxu0
  %v9177 = vadd.f32 %v8427, %v9176
  %v9178 = vpop.f32.mrf.mxu0
  %9179 = vmatprep.mubr.bf16.mxu0 0
  %9180 = vmatmul.mubr.bf16.gmra.mxu0 %v9116
  %v9181 = vpop.f32.mrf.mxu0
  %v9182 = vadd.f32 %v8432, %v9181
  %v9183 = vpop.f32.mrf.mxu0
  %v9184 = vpop.f32.mrf.mxu0
  %v9185 = vadd.f32 %v8435, %v9184
  %v9186 = vpop.f32.mrf.mxu0
  %9187 = vmatprep.mubr.bf16.mxu0 0
  %9188 = vmatmul.mubr.bf16.gmra.mxu0 %v9119
  %v9189 = vpop.f32.mrf.mxu0
  %v9190 = vadd.f32 %v8440, %v9189
  %v9191 = vpop.f32.mrf.mxu0
  %v9192 = vpop.f32.mrf.mxu0
  %v9193 = vadd.f32 %v8443, %v9192
  %v9194 = vpop.f32.mrf.mxu0
  %9195 = vmatprep.mubr.bf16.mxu0 0
  %9196 = vmatmul.mubr.bf16.gmra.mxu0 %v9122
  %v9197 = vpop.f32.mrf.mxu0
  %v9198 = vadd.f32 %v8448, %v9197
  %v9199 = vpop.f32.mrf.mxu0
  %v9200 = vpop.f32.mrf.mxu0
  %v9201 = vadd.f32 %v8451, %v9200
  %v9202 = vpop.f32.mrf.mxu0
  %9203 = vmatprep.mubr.bf16.mxu0 0
  %9204 = vmatmul.mubr.bf16.gmra.mxu0 %v9125
  %v9205 = vpop.f32.mrf.mxu0
  %v9206 = vadd.f32 %v8456, %v9205
  %v9207 = vpop.f32.mrf.mxu0
  %v9208 = vpop.f32.mrf.mxu0
  %v9209 = vadd.f32 %v8459, %v9208
  %v9210 = vpop.f32.mrf.mxu0
  %9211 = vmatprep.mubr.bf16.mxu0 0
  %9212 = vmatmul.mubr.bf16.gmra.mxu0 %v9128
  %v9213 = vpop.f32.mrf.mxu0
  %v9214 = vadd.f32 %v8464, %v9213
  %v9215 = vpop.f32.mrf.mxu0
  %v9216 = vpop.f32.mrf.mxu0
  %v9217 = vadd.f32 %v8467, %v9216
  %v9218 = vpop.f32.mrf.mxu0
  %9219 = vmatprep.mubr.bf16.mxu0 0
  %9220 = vmatmul.mubr.bf16.gmra.mxu0 %v9131
  %v9221 = vpop.f32.mrf.mxu0
  %v9222 = vadd.f32 %v8472, %v9221
  %v9223 = vpop.f32.mrf.mxu0
  %v9224 = vpop.f32.mrf.mxu0
  %v9225 = vadd.f32 %v8475, %v9224
  %v9226 = vpop.f32.mrf.mxu0
  %9227 = vmatprep.mubr.bf16.mxu0 0
  %9228 = vmatmul.mubr.bf16.gmra.mxu0 %v9134
  %v9229 = vpop.f32.mrf.mxu0
  %v9230 = vadd.f32 %v8480, %v9229
  %v9231 = vpop.f32.mrf.mxu0
  %v9232 = vpop.f32.mrf.mxu0
  %v9233 = vadd.f32 %v8483, %v9232
  %v9234 = vpop.f32.mrf.mxu0
  %9235 = vdwg.mxu0
  %v9237 = vsel %vm124, %v8502, 0
  %v9240 = vsel %vm124, %v8503, 0
  %v9243 = vsel %vm124, %v8504, 0
  %v9246 = vsel %vm124, %v8505, 0
  %v9249 = vsel %vm124, %v8506, 0
  %v9252 = vsel %vm124, %v8507, 0
  %v9255 = vsel %vm124, %v8508, 0
  %v9258 = vsel %vm124, %v8509, 0
  %v9261 = vsel %vm128, %v8511, 0
  %9263 = vmatprep.subr.bf16.mxu0 0
  %9264 = vmatpush1.bf16.msra.mxu0 0
  %9265 = vmatprep.subr.bf16.mxu0 0
  %9266 = vmatpush1.bf16.msra.mxu0 0
  %9267 = vmatprep.subr.bf16.mxu0 0
  %9268 = vmatpush1.bf16.msra.mxu0 0
  %9269 = vmatprep.subr.bf16.mxu0 0
  %9270 = vmatpush1.bf16.msra.mxu0 0
  %9271 = vmatprep.subr.bf16.mxu0 0
  %9272 = vmatpush1.bf16.msra.mxu0 0
  %9273 = vmatprep.subr.bf16.mxu0 0
  %9274 = vmatpush1.bf16.msra.mxu0 0
  %9275 = vmatprep.subr.bf16.mxu0 0
  %9276 = vmatpush1.bf16.msra.mxu0 0
  %9277 = vmatprep.subr.bf16.mxu0 0
  %9278 = vmatpush1.bf16.msra.mxu0 %v9261
  %9279 = vmatprep.subr.bf16.mxu0 0
  %9280 = vmatpush2.bf16.msra.mxu0 0
  %9281 = vmatprep.subr.bf16.mxu0 0
  %9282 = vmatpush2.bf16.msra.mxu0 0
  %9283 = vmatprep.subr.bf16.mxu0 0
  %9284 = vmatpush2.bf16.msra.mxu0 0
  %9285 = vmatprep.subr.bf16.mxu0 0
  %9286 = vmatpush2.bf16.msra.mxu0 0
  %9287 = vmatprep.subr.bf16.mxu0 0
  %9288 = vmatpush2.bf16.msra.mxu0 0
  %9289 = vmatprep.subr.bf16.mxu0 0
  %9290 = vmatpush2.bf16.msra.mxu0 0
  %9291 = vmatprep.subr.bf16.mxu0 0
  %9292 = vmatpush2.bf16.msra.mxu0 0
  %9293 = vmatprep.subr.bf16.mxu0 0
  %9294 = vmatpush2.bf16.msra.mxu0 0
  %9295 = vmatprep.mubr.bf16.mxu0 0
  %9296 = vmatmul.mubr.bf16.gmra.mxu0 %v9237
  %v9297 = vpop.f32.mrf.mxu0
  %v9298 = vadd.f32 %v8600, %v9297
  %v9299 = vpop.f32.mrf.mxu0
  %v9300 = vpop.f32.mrf.mxu0
  %v9301 = vadd.f32 %v8603, %v9300
  %v9302 = vpop.f32.mrf.mxu0
  %9303 = vmatprep.mubr.bf16.mxu0 0
  %9304 = vmatmul.mubr.bf16.gmra.mxu0 %v9240
  %v9305 = vpop.f32.mrf.mxu0
  %v9306 = vadd.f32 %v8608, %v9305
  %v9307 = vpop.f32.mrf.mxu0
  %v9308 = vpop.f32.mrf.mxu0
  %v9309 = vadd.f32 %v8611, %v9308
  %v9310 = vpop.f32.mrf.mxu0
  %9311 = vmatprep.mubr.bf16.mxu0 0
  %9312 = vmatmul.mubr.bf16.gmra.mxu0 %v9243
  %v9313 = vpop.f32.mrf.mxu0
  %v9314 = vadd.f32 %v8616, %v9313
  %v9315 = vpop.f32.mrf.mxu0
  %v9316 = vpop.f32.mrf.mxu0
  %v9317 = vadd.f32 %v8619, %v9316
  %v9318 = vpop.f32.mrf.mxu0
  %9319 = vmatprep.mubr.bf16.mxu0 0
  %9320 = vmatmul.mubr.bf16.gmra.mxu0 %v9246
  %v9321 = vpop.f32.mrf.mxu0
  %v9322 = vadd.f32 %v8624, %v9321
  %v9323 = vpop.f32.mrf.mxu0
  %v9324 = vpop.f32.mrf.mxu0
  %v9325 = vadd.f32 %v8627, %v9324
  %v9326 = vpop.f32.mrf.mxu0
  %9327 = vmatprep.mubr.bf16.mxu0 0
  %9328 = vmatmul.mubr.bf16.gmra.mxu0 %v9249
  %v9329 = vpop.f32.mrf.mxu0
  %v9330 = vadd.f32 %v8632, %v9329
  %v9331 = vpop.f32.mrf.mxu0
  %v9332 = vpop.f32.mrf.mxu0
  %v9333 = vadd.f32 %v8635, %v9332
  %v9334 = vpop.f32.mrf.mxu0
  %9335 = vmatprep.mubr.bf16.mxu0 0
  %9336 = vmatmul.mubr.bf16.gmra.mxu0 %v9252
  %v9337 = vpop.f32.mrf.mxu0
  %v9338 = vadd.f32 %v8640, %v9337
  %v9339 = vpop.f32.mrf.mxu0
  %v9340 = vpop.f32.mrf.mxu0
  %v9341 = vadd.f32 %v8643, %v9340
  %v9342 = vpop.f32.mrf.mxu0
  %9343 = vmatprep.mubr.bf16.mxu0 0
  %9344 = vmatmul.mubr.bf16.gmra.mxu0 %v9255
  %v9345 = vpop.f32.mrf.mxu0
  %v9346 = vadd.f32 %v8648, %v9345
  %v9347 = vpop.f32.mrf.mxu0
  %v9348 = vpop.f32.mrf.mxu0
  %v9349 = vadd.f32 %v8651, %v9348
  %v9350 = vpop.f32.mrf.mxu0
  %9351 = vmatprep.mubr.bf16.mxu0 0
  %9352 = vmatmul.mubr.bf16.gmra.mxu0 %v9258
  %v9353 = vpop.f32.mrf.mxu0
  %v9354 = vadd.f32 %v8656, %v9353
  %v9355 = vpop.f32.mrf.mxu0
  %v9356 = vpop.f32.mrf.mxu0
  %v9357 = vadd.f32 %v8659, %v9356
  %v9358 = vpop.f32.mrf.mxu0
  %9359 = vdwg.mxu0
  %v9361 = vsel %vm124, %v8678, 0
  %v9364 = vsel %vm124, %v8679, 0
  %v9367 = vsel %vm124, %v8680, 0
  %v9370 = vsel %vm124, %v8681, 0
  %v9373 = vsel %vm124, %v8682, 0
  %v9376 = vsel %vm124, %v8683, 0
  %v9379 = vsel %vm124, %v8684, 0
  %v9382 = vsel %vm124, %v8685, 0
  %v9385 = vsel %vm128, %v8687, 0
  %9387 = vmatprep.subr.bf16.mxu0 0
  %9388 = vmatpush1.bf16.msra.mxu0 0
  %9389 = vmatprep.subr.bf16.mxu0 0
  %9390 = vmatpush1.bf16.msra.mxu0 0
  %9391 = vmatprep.subr.bf16.mxu0 0
  %9392 = vmatpush1.bf16.msra.mxu0 0
  %9393 = vmatprep.subr.bf16.mxu0 0
  %9394 = vmatpush1.bf16.msra.mxu0 0
  %9395 = vmatprep.subr.bf16.mxu0 0
  %9396 = vmatpush1.bf16.msra.mxu0 0
  %9397 = vmatprep.subr.bf16.mxu0 0
  %9398 = vmatpush1.bf16.msra.mxu0 0
  %9399 = vmatprep.subr.bf16.mxu0 0
  %9400 = vmatpush1.bf16.msra.mxu0 0
  %9401 = vmatprep.subr.bf16.mxu0 0
  %9402 = vmatpush1.bf16.msra.mxu0 %v9385
  %9403 = vmatprep.subr.bf16.mxu0 0
  %9404 = vmatpush2.bf16.msra.mxu0 0
  %9405 = vmatprep.subr.bf16.mxu0 0
  %9406 = vmatpush2.bf16.msra.mxu0 0
  %9407 = vmatprep.subr.bf16.mxu0 0
  %9408 = vmatpush2.bf16.msra.mxu0 0
  %9409 = vmatprep.subr.bf16.mxu0 0
  %9410 = vmatpush2.bf16.msra.mxu0 0
  %9411 = vmatprep.subr.bf16.mxu0 0
  %9412 = vmatpush2.bf16.msra.mxu0 0
  %9413 = vmatprep.subr.bf16.mxu0 0
  %9414 = vmatpush2.bf16.msra.mxu0 0
  %9415 = vmatprep.subr.bf16.mxu0 0
  %9416 = vmatpush2.bf16.msra.mxu0 0
  %9417 = vmatprep.subr.bf16.mxu0 0
  %9418 = vmatpush2.bf16.msra.mxu0 0
  %9419 = vmatprep.mubr.bf16.mxu0 0
  %9420 = vmatmul.mubr.bf16.gmra.mxu0 %v9361
  %v9421 = vpop.f32.mrf.mxu0
  %v9422 = vadd.f32 %v8776, %v9421
  %v9423 = vpop.f32.mrf.mxu0
  %v9424 = vpop.f32.mrf.mxu0
  %v9425 = vadd.f32 %v8779, %v9424
  %v9426 = vpop.f32.mrf.mxu0
  %9427 = vmatprep.mubr.bf16.mxu0 0
  %9428 = vmatmul.mubr.bf16.gmra.mxu0 %v9364
  %v9429 = vpop.f32.mrf.mxu0
  %v9430 = vadd.f32 %v8784, %v9429
  %v9431 = vpop.f32.mrf.mxu0
  %v9432 = vpop.f32.mrf.mxu0
  %v9433 = vadd.f32 %v8787, %v9432
  %v9434 = vpop.f32.mrf.mxu0
  %9435 = vmatprep.mubr.bf16.mxu0 0
  %9436 = vmatmul.mubr.bf16.gmra.mxu0 %v9367
  %v9437 = vpop.f32.mrf.mxu0
  %v9438 = vadd.f32 %v8792, %v9437
  %v9439 = vpop.f32.mrf.mxu0
  %v9440 = vpop.f32.mrf.mxu0
  %v9441 = vadd.f32 %v8795, %v9440
  %v9442 = vpop.f32.mrf.mxu0
  %9443 = vmatprep.mubr.bf16.mxu0 0
  %9444 = vmatmul.mubr.bf16.gmra.mxu0 %v9370
  %v9445 = vpop.f32.mrf.mxu0
  %v9446 = vadd.f32 %v8800, %v9445
  %v9447 = vpop.f32.mrf.mxu0
  %v9448 = vpop.f32.mrf.mxu0
  %v9449 = vadd.f32 %v8803, %v9448
  %v9450 = vpop.f32.mrf.mxu0
  %9451 = vmatprep.mubr.bf16.mxu0 0
  %9452 = vmatmul.mubr.bf16.gmra.mxu0 %v9373
  %v9453 = vpop.f32.mrf.mxu0
  %v9454 = vadd.f32 %v8808, %v9453
  %v9455 = vpop.f32.mrf.mxu0
  %v9456 = vpop.f32.mrf.mxu0
  %v9457 = vadd.f32 %v8811, %v9456
  %v9458 = vpop.f32.mrf.mxu0
  %9459 = vmatprep.mubr.bf16.mxu0 0
  %9460 = vmatmul.mubr.bf16.gmra.mxu0 %v9376
  %v9461 = vpop.f32.mrf.mxu0
  %v9462 = vadd.f32 %v8816, %v9461
  %v9463 = vpop.f32.mrf.mxu0
  %v9464 = vpop.f32.mrf.mxu0
  %v9465 = vadd.f32 %v8819, %v9464
  %v9466 = vpop.f32.mrf.mxu0
  %9467 = vmatprep.mubr.bf16.mxu0 0
  %9468 = vmatmul.mubr.bf16.gmra.mxu0 %v9379
  %v9469 = vpop.f32.mrf.mxu0
  %v9470 = vadd.f32 %v8824, %v9469
  %v9471 = vpop.f32.mrf.mxu0
  %v9472 = vpop.f32.mrf.mxu0
  %v9473 = vadd.f32 %v8827, %v9472
  %v9474 = vpop.f32.mrf.mxu0
  %9475 = vmatprep.mubr.bf16.mxu0 0
  %9476 = vmatmul.mubr.bf16.gmra.mxu0 %v9382
  %v9477 = vpop.f32.mrf.mxu0
  %v9478 = vadd.f32 %v8832, %v9477
  %v9479 = vpop.f32.mrf.mxu0
  %v9480 = vpop.f32.mrf.mxu0
  %v9481 = vadd.f32 %v8835, %v9480
  %v9482 = vpop.f32.mrf.mxu0
  %9483 = vdwg.mxu0
  %v9484 = vadd.f32 %v9050, %v9174
  %v9485 = vadd.f32 %v9053, %v9177
  %v9486 = vadd.f32 %v9058, %v9182
  %v9487 = vadd.f32 %v9061, %v9185
  %v9488 = vadd.f32 %v9066, %v9190
  %v9489 = vadd.f32 %v9069, %v9193
  %v9490 = vadd.f32 %v9074, %v9198
  %v9491 = vadd.f32 %v9077, %v9201
  %v9492 = vadd.f32 %v9082, %v9206
  %v9493 = vadd.f32 %v9085, %v9209
  %v9494 = vadd.f32 %v9090, %v9214
  %v9495 = vadd.f32 %v9093, %v9217
  %v9496 = vadd.f32 %v9098, %v9222
  %v9497 = vadd.f32 %v9101, %v9225
  %v9498 = vadd.f32 %v9106, %v9230
  %v9499 = vadd.f32 %v9109, %v9233
  %v9500 = vadd.f32 %v9298, %v9422
  %v9501 = vadd.f32 %v9301, %v9425
  %v9502 = vadd.f32 %v9306, %v9430
  %v9503 = vadd.f32 %v9309, %v9433
  %v9504 = vadd.f32 %v9314, %v9438
  %v9505 = vadd.f32 %v9317, %v9441
  %v9506 = vadd.f32 %v9322, %v9446
  %v9507 = vadd.f32 %v9325, %v9449
  %v9508 = vadd.f32 %v9330, %v9454
  %v9509 = vadd.f32 %v9333, %v9457
  %v9510 = vadd.f32 %v9338, %v9462
  %v9511 = vadd.f32 %v9341, %v9465
  %v9512 = vadd.f32 %v9346, %v9470
  %v9513 = vadd.f32 %v9349, %v9473
  %v9514 = vadd.f32 %v9354, %v9478
  %v9515 = vadd.f32 %v9357, %v9481
  %v9516 = vadd.f32 %v9484, %v9500
  %v9517 = vadd.f32 %v9485, %v9501
  %v9518 = vadd.f32 %v9486, %v9502
  %v9519 = vadd.f32 %v9487, %v9503
  %v9520 = vadd.f32 %v9488, %v9504
  %v9521 = vadd.f32 %v9489, %v9505
  %v9522 = vadd.f32 %v9490, %v9506
  %v9523 = vadd.f32 %v9491, %v9507
  %v9524 = vadd.f32 %v9492, %v9508
  %v9525 = vadd.f32 %v9493, %v9509
  %v9526 = vadd.f32 %v9494, %v9510
  %v9527 = vadd.f32 %v9495, %v9511
  %v9528 = vadd.f32 %v9496, %v9512
  %v9529 = vadd.f32 %v9497, %v9513
  %v9530 = vadd.f32 %v9498, %v9514
  %v9531 = vadd.f32 %v9499, %v9515
  %v9532 = vadd.f32 %v9516, %v8926
  %v9533 = vadd.f32 %v9517, %v8929
  %v9534 = vadd.f32 %v9518, %v8934
  %v9535 = vadd.f32 %v9519, %v8937
  %v9536 = vadd.f32 %v9520, %v8942
  %v9537 = vadd.f32 %v9521, %v8945
  %v9538 = vadd.f32 %v9522, %v8950
  %v9539 = vadd.f32 %v9523, %v8953
  %v9540 = vadd.f32 %v9524, %v8958
  %v9541 = vadd.f32 %v9525, %v8961
  %v9542 = vadd.f32 %v9526, %v8966
  %v9543 = vadd.f32 %v9527, %v8969
  %v9544 = vadd.f32 %v9528, %v8974
  %v9545 = vadd.f32 %v9529, %v8977
  %v9546 = vadd.f32 %v9530, %v8982
  %v9547 = vadd.f32 %v9531, %v8985
  %s9548 = scalar_lea.vmem %s3, 7
  %v9549 = vld [vmem:[%s9548] sm:$0x1]
  %v9551 = vlaneseq
  %v9552 = vshrl.u32 %v9551, 7
  %v9553 = vsub.s32 0, %v9552
  %v9554 = vrot.slane %v9549, %v9553
  %v9556 = vadd.f32 %v9532, %v9554
  %v9557 = vadd.f32 %v9533, %v9554
  %v9558 = vadd.f32 %v9534, %v9554
  %v9559 = vadd.f32 %v9535, %v9554
  %v9560 = vadd.f32 %v9536, %v9554
  %v9561 = vadd.f32 %v9537, %v9554
  %v9562 = vadd.f32 %v9538, %v9554
  %v9563 = vadd.f32 %v9539, %v9554
  %v9564 = vadd.f32 %v9540, %v9554
  %v9565 = vadd.f32 %v9541, %v9554
  %v9566 = vadd.f32 %v9542, %v9554
  %v9567 = vadd.f32 %v9543, %v9554
  %v9568 = vadd.f32 %v9544, %v9554
  %v9569 = vadd.f32 %v9545, %v9554
  %v9570 = vadd.f32 %v9546, %v9554
  %v9571 = vadd.f32 %v9547, %v9554
  %v9572 = vsel %vm124, %v9556, 0.0
  %v9573 = vsel %vm124, %v9557, 0.0
  %v9574 = vadd.f32 %v9572, %v9573
  %v9575 = vsel %vm124, %v9558, 0.0
  %v9576 = vadd.f32 %v9574, %v9575
  %v9577 = vsel %vm124, %v9559, 0.0
  %v9578 = vadd.f32 %v9576, %v9577
  %v9579 = vsel %vm124, %v9560, 0.0
  %v9580 = vadd.f32 %v9578, %v9579
  %v9581 = vsel %vm124, %v9561, 0.0
  %v9582 = vadd.f32 %v9580, %v9581
  %v9583 = vsel %vm124, %v9562, 0.0
  %v9584 = vadd.f32 %v9582, %v9583
  %v9585 = vsel %vm124, %v9563, 0.0
  %v9586 = vadd.f32 %v9584, %v9585
  %v9587 = vrot.slane %v9586, 4
  %v9588 = vadd.f32 %v9586, %v9587
  %v9589 = vrot.slane %v9588, 2
  %v9590 = vadd.f32 %v9588, %v9589
  %v9591 = vrot.slane %v9590, 1
  %v9592 = vadd.f32 %v9590, %v9591
  %v9593 = vsel %vm124, %v9564, 0.0
  %v9594 = vsel %vm124, %v9565, 0.0
  %v9595 = vadd.f32 %v9593, %v9594
  %v9596 = vsel %vm124, %v9566, 0.0
  %v9597 = vadd.f32 %v9595, %v9596
  %v9598 = vsel %vm124, %v9567, 0.0
  %v9599 = vadd.f32 %v9597, %v9598
  %v9600 = vsel %vm124, %v9568, 0.0
  %v9601 = vadd.f32 %v9599, %v9600
  %v9602 = vsel %vm124, %v9569, 0.0
  %v9603 = vadd.f32 %v9601, %v9602
  %v9604 = vsel %vm124, %v9570, 0.0
  %v9605 = vadd.f32 %v9603, %v9604
  %v9606 = vsel %vm124, %v9571, 0.0
  %v9607 = vadd.f32 %v9605, %v9606
  %v9608 = vrot.slane %v9607, 4
  %v9609 = vadd.f32 %v9607, %v9608
  %v9610 = vrot.slane %v9609, 2
  %v9611 = vadd.f32 %v9609, %v9610
  %v9612 = vrot.slane %v9611, 1
  %v9613 = vadd.f32 %v9611, %v9612
  %v9614 = vmul.f32 %v9556, %v9556
  %v9615 = vmul.f32 %v9557, %v9557
  %v9616 = vmul.f32 %v9558, %v9558
  %v9617 = vmul.f32 %v9559, %v9559
  %v9618 = vmul.f32 %v9560, %v9560
  %v9619 = vmul.f32 %v9561, %v9561
  %v9620 = vmul.f32 %v9562, %v9562
  %v9621 = vmul.f32 %v9563, %v9563
  %v9622 = vmul.f32 %v9564, %v9564
  %v9623 = vmul.f32 %v9565, %v9565
  %v9624 = vmul.f32 %v9566, %v9566
  %v9625 = vmul.f32 %v9567, %v9567
  %v9626 = vmul.f32 %v9568, %v9568
  %v9627 = vmul.f32 %v9569, %v9569
  %v9628 = vmul.f32 %v9570, %v9570
  %v9629 = vmul.f32 %v9571, %v9571
  %v9630 = vsel %vm124, %v9614, 0.0
  %v9631 = vsel %vm124, %v9615, 0.0
  %v9632 = vadd.f32 %v9630, %v9631
  %v9633 = vsel %vm124, %v9616, 0.0
  %v9634 = vadd.f32 %v9632, %v9633
  %v9635 = vsel %vm124, %v9617, 0.0
  %v9636 = vadd.f32 %v9634, %v9635
  %v9637 = vsel %vm124, %v9618, 0.0
  %v9638 = vadd.f32 %v9636, %v9637
  %v9639 = vsel %vm124, %v9619, 0.0
  %v9640 = vadd.f32 %v9638, %v9639
  %v9641 = vsel %vm124, %v9620, 0.0
  %v9642 = vadd.f32 %v9640, %v9641
  %v9643 = vsel %vm124, %v9621, 0.0
  %v9644 = vadd.f32 %v9642, %v9643
  %v9645 = vrot.slane %v9644, 4
  %v9646 = vadd.f32 %v9644, %v9645
  %v9647 = vrot.slane %v9646, 2
  %v9648 = vadd.f32 %v9646, %v9647
  %v9649 = vrot.slane %v9648, 1
  %v9650 = vadd.f32 %v9648, %v9649
  %v9651 = vsel %vm124, %v9622, 0.0
  %v9652 = vsel %vm124, %v9623, 0.0
  %v9653 = vadd.f32 %v9651, %v9652
  %v9654 = vsel %vm124, %v9624, 0.0
  %v9655 = vadd.f32 %v9653, %v9654
  %v9656 = vsel %vm124, %v9625, 0.0
  %v9657 = vadd.f32 %v9655, %v9656
  %v9658 = vsel %vm124, %v9626, 0.0
  %v9659 = vadd.f32 %v9657, %v9658
  %v9660 = vsel %vm124, %v9627, 0.0
  %v9661 = vadd.f32 %v9659, %v9660
  %v9662 = vsel %vm124, %v9628, 0.0
  %v9663 = vadd.f32 %v9661, %v9662
  %v9664 = vsel %vm124, %v9629, 0.0
  %v9665 = vadd.f32 %v9663, %v9664
  %v9666 = vrot.slane %v9665, 4
  %v9667 = vadd.f32 %v9665, %v9666
  %v9668 = vrot.slane %v9667, 2
  %v9669 = vadd.f32 %v9667, %v9668
  %v9670 = vrot.slane %v9669, 1
  %v9671 = vadd.f32 %v9669, %v9670
  %v9672 = vmul.f32 %v9592, 0.015625
  %v9673 = vmul.f32 %v9613, 0.015625
  %v9674 = vmul.f32 %v9650, 0.015625
  %v9675 = vmul.f32 %v9671, 0.015625
  %v9676 = vmul.f32 %v9672, %v9672
  %v9677 = vmul.f32 %v9673, %v9673
  %v9678 = vsub.f32 %v9674, %v9676
  %v9679 = vsub.f32 %v9675, %v9677
  %v9680 = vsub.f32 %v9556, %v9672
  %v9681 = vsub.f32 %v9557, %v9672
  %v9682 = vsub.f32 %v9558, %v9672
  %v9683 = vsub.f32 %v9559, %v9672
  %v9684 = vsub.f32 %v9560, %v9672
  %v9685 = vsub.f32 %v9561, %v9672
  %v9686 = vsub.f32 %v9562, %v9672
  %v9687 = vsub.f32 %v9563, %v9672
  %v9688 = vsub.f32 %v9564, %v9673
  %v9689 = vsub.f32 %v9565, %v9673
  %v9690 = vsub.f32 %v9566, %v9673
  %v9691 = vsub.f32 %v9567, %v9673
  %v9692 = vsub.f32 %v9568, %v9673
  %v9693 = vsub.f32 %v9569, %v9673
  %v9694 = vsub.f32 %v9570, %v9673
  %v9695 = vsub.f32 %v9571, %v9673
  %v9696 = vadd.f32 %v9678, 1e-05
  %v9697 = vadd.f32 %v9679, 1e-05
  %v9698 = vrsqrt.pop %v9696
  %v9699 = vrsqrt.pop %v9697
  %v9700 = vmul.f32 %v9680, %v9698
  %v9701 = vmul.f32 %v9681, %v9698
  %v9702 = vmul.f32 %v9682, %v9698
  %v9703 = vmul.f32 %v9683, %v9698
  %v9704 = vmul.f32 %v9684, %v9698
  %v9705 = vmul.f32 %v9685, %v9698
  %v9706 = vmul.f32 %v9686, %v9698
  %v9707 = vmul.f32 %v9687, %v9698
  %v9708 = vmul.f32 %v9688, %v9699
  %v9709 = vmul.f32 %v9689, %v9699
  %v9710 = vmul.f32 %v9690, %v9699
  %v9711 = vmul.f32 %v9691, %v9699
  %v9712 = vmul.f32 %v9692, %v9699
  %v9713 = vmul.f32 %v9693, %v9699
  %v9714 = vmul.f32 %v9694, %v9699
  %v9715 = vmul.f32 %v9695, %v9699
  %v9716 = vadd.f32 %v6520, %v9700
  %v9717 = vadd.f32 %v6521, %v9701
  %v9718 = vadd.f32 %v6522, %v9702
  %v9719 = vadd.f32 %v6523, %v9703
  %v9720 = vadd.f32 %v6524, %v9704
  %v9721 = vadd.f32 %v6525, %v9705
  %v9722 = vadd.f32 %v6526, %v9706
  %v9723 = vadd.f32 %v6527, %v9707
  %v9724 = vadd.f32 %v6528, %v9708
  %v9725 = vadd.f32 %v6529, %v9709
  %v9726 = vadd.f32 %v6530, %v9710
  %v9727 = vadd.f32 %v6531, %v9711
  %v9728 = vadd.f32 %v6532, %v9712
  %v9729 = vadd.f32 %v6533, %v9713
  %v9730 = vadd.f32 %v6534, %v9714
  %v9731 = vadd.f32 %v6535, %v9715
  %v9732 = vmax.f32 %v9716, 0.0
  %v9733 = vmax.f32 %v9717, 0.0
  %v9734 = vmax.f32 %v9718, 0.0
  %v9735 = vmax.f32 %v9719, 0.0
  %v9736 = vmax.f32 %v9720, 0.0
  %v9737 = vmax.f32 %v9721, 0.0
  %v9738 = vmax.f32 %v9722, 0.0
  %v9739 = vmax.f32 %v9723, 0.0
  %v9740 = vmax.f32 %v9724, 0.0
  %v9741 = vmax.f32 %v9725, 0.0
  %v9742 = vmax.f32 %v9726, 0.0
  %v9743 = vmax.f32 %v9727, 0.0
  %v9744 = vmax.f32 %v9728, 0.0
  %v9745 = vmax.f32 %v9729, 0.0
  %v9746 = vmax.f32 %v9730, 0.0
  %v9747 = vmax.f32 %v9731, 0.0
  %v9748 = vld [vmem:[%s6] sm:$0xff]
  %v9749 = vld [vmem:[%s7] sm:$0xff]
  %9751 = vset.pattern.permute.xlu0 0
  %9752 = vperm.xlu0 %9751, %v9749
  %v9753 = vpop.permute.xlu0 %9752
  %v9756 = vsel %vm124, %v9748, 0
  %v9759 = vsel %vm124, %v9732, 0
  %v9762 = vsel %vm124, %v9733, 0
  %v9765 = vsel %vm124, %v9734, 0
  %v9768 = vsel %vm124, %v9735, 0
  %v9771 = vsel %vm124, %v9736, 0
  %v9774 = vsel %vm124, %v9737, 0
  %v9777 = vsel %vm124, %v9738, 0
  %v9780 = vsel %vm124, %v9739, 0
  %v9783 = vsel %vm124, %v9740, 0
  %v9786 = vsel %vm124, %v9741, 0
  %v9789 = vsel %vm124, %v9742, 0
  %v9792 = vsel %vm124, %v9743, 0
  %v9795 = vsel %vm124, %v9744, 0
  %v9798 = vsel %vm124, %v9745, 0
  %v9801 = vsel %vm124, %v9746, 0
  %v9804 = vsel %vm124, %v9747, 0
  %9806 = vmatprep.subr.mxu0 0.0
  %9807 = vmatpush1.xpose.msra.mxu0 %v9804
  %9808 = vmatprep.subr.mxu0 0.0
  %9809 = vmatpush1.xpose.msra.mxu0 %v9801
  %9810 = vmatprep.subr.mxu0 0.0
  %9811 = vmatpush1.xpose.msra.mxu0 %v9798
  %9812 = vmatprep.subr.mxu0 0.0
  %9813 = vmatpush1.xpose.msra.mxu0 %v9795
  %9814 = vmatprep.subr.mxu0 0.0
  %9815 = vmatpush1.xpose.msra.mxu0 %v9792
  %9816 = vmatprep.subr.mxu0 0.0
  %9817 = vmatpush1.xpose.msra.mxu0 %v9789
  %9818 = vmatprep.subr.mxu0 0.0
  %9819 = vmatpush1.xpose.msra.mxu0 %v9786
  %9820 = vmatprep.subr.mxu0 0.0
  %9821 = vmatpush1.xpose.msra.mxu0 %v9783
  %9822 = vmatprep.subr.mxu0 0.0
  %9823 = vmatpush1.xpose.msra.mxu0 %v9780
  %9824 = vmatprep.subr.mxu0 0.0
  %9825 = vmatpush1.xpose.msra.mxu0 %v9777
  %9826 = vmatprep.subr.mxu0 0.0
  %9827 = vmatpush1.xpose.msra.mxu0 %v9774
  %9828 = vmatprep.subr.mxu0 0.0
  %9829 = vmatpush1.xpose.msra.mxu0 %v9771
  %9830 = vmatprep.subr.mxu0 0.0
  %9831 = vmatpush1.xpose.msra.mxu0 %v9768
  %9832 = vmatprep.subr.mxu0 0.0
  %9833 = vmatpush1.xpose.msra.mxu0 %v9765
  %9834 = vmatprep.subr.mxu0 0.0
  %9835 = vmatpush1.xpose.msra.mxu0 %v9762
  %9836 = vmatprep.subr.mxu0 0.0
  %9837 = vmatpush1.xpose.msra.mxu0 %v9759
  %9838 = vmatprep.subr.mxu0 0.0
  %9839 = vmatpush2.xpose.msra.mxu0 0.0
  %9840 = vmatprep.subr.mxu0 0.0
  %9841 = vmatpush2.xpose.msra.mxu0 0.0
  %9842 = vmatprep.subr.mxu0 0.0
  %9843 = vmatpush2.xpose.msra.mxu0 0.0
  %9844 = vmatprep.subr.mxu0 0.0
  %9845 = vmatpush2.xpose.msra.mxu0 0.0
  %9846 = vmatprep.subr.mxu0 0.0
  %9847 = vmatpush2.xpose.msra.mxu0 0.0
  %9848 = vmatprep.subr.mxu0 0.0
  %9849 = vmatpush2.xpose.msra.mxu0 0.0
  %9850 = vmatprep.subr.mxu0 0.0
  %9851 = vmatpush2.xpose.msra.mxu0 0.0
  %9852 = vmatprep.subr.mxu0 0.0
  %9853 = vmatpush2.xpose.msra.mxu0 0.0
  %9854 = vmatprep.subr.mxu0 0.0
  %9855 = vmatpush2.xpose.msra.mxu0 0.0
  %9856 = vmatprep.subr.mxu0 0.0
  %9857 = vmatpush2.xpose.msra.mxu0 0.0
  %9858 = vmatprep.subr.mxu0 0.0
  %9859 = vmatpush2.xpose.msra.mxu0 0.0
  %9860 = vmatprep.subr.mxu0 0.0
  %9861 = vmatpush2.xpose.msra.mxu0 0.0
  %9862 = vmatprep.subr.mxu0 0.0
  %9863 = vmatpush2.xpose.msra.mxu0 0.0
  %9864 = vmatprep.subr.mxu0 0.0
  %9865 = vmatpush2.xpose.msra.mxu0 0.0
  %9866 = vmatprep.subr.mxu0 0.0
  %9867 = vmatpush2.xpose.msra.mxu0 0.0
  %9868 = vmatprep.subr.mxu0 0.0
  %9869 = vmatpush2.xpose.msra.mxu0 0.0
  %9870 = vmatprep.mubr.f32.mxu0 0.0
  %9871 = vmatmul.mubr.f32.gmra.mxu0 %v9756
  %v9872 = vpop.f32.mrf.mxu0
  %v9873 = vadd.f32 %v9753, %v9872
  %v9874 = vpop.f32.mrf.mxu0
  %9875 = vdwg.mxu0
  %v9876 = vtanh.pop %v9873
  %9877 = vst [vmem:[%s8] sm:$0xff] %v9876
  // Predicated region
  $region34: #{gen_forward.1} parent=0 // pred_check
    _
  $region35: #{gen_forward.1} parent=0 // pred_check_branch
    %9879 = sbr.rel (0) target = $region37
  $region36: #{gen_forward.1} parent=0 // pred_region
    _
  $region37: #{gen_forward.1} parent=0 // pred_fallthru
    _
  // Predicated region
  $region38: #{gen_forward.1} parent=0 // pred_check
    _
  $region39: #{gen_forward.1} parent=0 // pred_check_branch
    %9881 = sbr.rel (0) target = $region41
  $region40: #{gen_forward.1} parent=0 // pred_region
    _
  $region41: #{gen_forward.1} parent=0 // pred_fallthru
    _

</llo_original>
